<compile_context>
chip_gen: v6e
topology: v6e:2x2x1
jax: 0.10.0
libtpu: 0.0.40
codegen_flags: <defaults>
</compile_context>

<pallas_src>
import math

import jax
import jax.numpy as jnp
from jax.experimental import pallas as pl
from jax.experimental.pallas import tpu as pltpu

BN_EPS = 1e-5
LANE = 128


def _ceil_to(x, m):
    return ((x + m - 1) // m) * m


def _pad_channels(c):
    return _ceil_to(max(c, 1), LANE)


def _default_vmem_limit():
    # ~3/4 of physical VMEM per core: ~96 MiB on v5e/v6e, ~48 MiB on v7x.
    try:
        cap = pltpu.get_tpu_info().vmem_capacity_bytes
        return int(cap * 3 // 4)
    except Exception:
        return 48 * 1024 * 1024


VMEM_LIMIT = _default_vmem_limit()

_COMPILER_PARAMS = pltpu.CompilerParams(
    dimension_semantics=("parallel",),       # batch axis shards across v7x TCs
    vmem_limit_bytes=VMEM_LIMIT,
)


# ----------------------------------------------------------------------------
# Pallas kernels
# ----------------------------------------------------------------------------
def _make_conv_kernel(*, KH, KW, stride, Ho, Wph, relu, res_mode):
    """Fused conv (all taps) + bias (+ residual add / fused 1x1 projection) + ReLU.

    grid = (N,).  One image per grid step; the KH*KW tap matmuls are unrolled
    into a local f32 accumulator.  BN scale is pre-folded into the weights,
    so the epilogue is just bias + (residual) + ReLU.
    res_mode: None | 'add' | 'proj'.
    """
    n_taps = KH * KW
    Lo = Ho * Wph
    s = stride

    def kernel(*refs):
        if res_mode is None:
            xps_ref, w_ref, bi_ref, o_ref = refs
        elif res_mode == "add":
            xps_ref, w_ref, bi_ref, r_ref, o_ref = refs
        else:  # 'proj'
            xps_ref, w_ref, bi_ref, r_ref, wd_ref, bd_ref, o_ref = refs

        F = o_ref.shape[-1]

        # Initialize the accumulator with the residual / 1x1 projection so the
        # projection matmul sits at the head of the body, not on the tail.
        if res_mode == "proj":
            acc = jnp.dot(r_ref[0], wd_ref[...],
                          preferred_element_type=jnp.float32) + bd_ref[...]
        elif res_mode == "add":
            acc = r_ref[0].astype(jnp.float32)
        else:
            acc = jnp.zeros((Lo, F), jnp.float32)

        # Unrolled tap loop: every tap is a contiguous static slice of the
        # phase-decomposed flat activation feeding one MXU matmul.
        for k in range(n_taps):
            kh, kw = divmod(k, KW)
            if s == 1:
                ph = 0
                off = kh * Wph + kw
            else:
                ph = (kh % s) * s + (kw % s)
                off = (kh // s) * Wph + (kw // s)
            patch = xps_ref[ph, 0, pl.ds(off, Lo), :]            # (Lo, Cin)
            acc = acc + jnp.dot(patch, w_ref[k],
                                preferred_element_type=jnp.float32)

        out = acc + bi_ref[...]                                  # BN bias
        if relu:
            out = jnp.maximum(out, 0.0)
        o_ref[0] = out.astype(o_ref.dtype)

    return kernel


def _make_maxpool_kernel(*, KH, KW, stride, Ho, Wph):
    """All taps fused into one grid step; running max stays in the input dtype."""
    n_taps = KH * KW
    Lo = Ho * Wph
    s = stride

    def kernel(xps_ref, o_ref):
        best = None
        for k in range(n_taps):
            kh, kw = divmod(k, KW)
            ph = (kh % s) * s + (kw % s)
            off = (kh // s) * Wph + (kw // s)
            patch = xps_ref[ph, 0, pl.ds(off, Lo), :]
            best = patch if best is None else jnp.maximum(best, patch)
        o_ref[0] = best

    return kernel


def _stem_kernel(p_ref, w_ref, b_ref, o_ref):
    # Packed-K stem: one dense matmul (Lo, Kp) x (Kp, Fp) + bias + ReLU per image.
    out = jnp.dot(p_ref[0], w_ref[...],
                  preferred_element_type=jnp.float32) + b_ref[...]
    o_ref[0] = jnp.maximum(out, 0.0).astype(o_ref.dtype)


def _pool_fc_kernel(x_ref, w_ref, b_ref, o_ref):
    # AdaptiveAvgPool2d((1,1)) + flatten + Linear, fused into one kernel.
    x = x_ref[...].astype(jnp.float32)                  # (N, H*W, C)
    feat = jnp.mean(x, axis=1)                          # (N, C)
    o_ref[...] = jnp.dot(feat, w_ref[...],
                         preferred_element_type=jnp.float32) + b_ref[...]


# ----------------------------------------------------------------------------
# Wrappers (JAX layout glue around the Pallas calls)
# ----------------------------------------------------------------------------
def _phase_split(xp, stride, Ho, Wo, KH, KW, pad_value):
    """(N, Hp, Wp, C) -> ((stride^2, N, Hph*Wph, C), Wph).

    Phase-decomposes the padded input for the stride so every conv/pool tap
    becomes a contiguous, stride-free slice of the flattened spatial axis.
    A +1 guard row keeps flat tap slices in-bounds; junk columns (wo >= Wo)
    are cropped by the caller.
    """
    N, Hp, Wp, C = xp.shape
    s = stride
    Hph = max(-(-Hp // s), Ho + (KH - 1) // s) + 1
    Wph = max(-(-Wp // s), Wo + (KW - 1) // s)
    xp = jnp.pad(xp, ((0, 0), (0, Hph * s - Hp), (0, Wph * s - Wp), (0, 0)),
                 constant_values=pad_value)
    xp = xp.reshape(N, Hph, s, Wph, s, C)
    xp = jnp.transpose(xp, (2, 4, 0, 1, 3, 5))          # (s, s, N, Hph, Wph, C)
    return xp.reshape(s * s, N, Hph * Wph, C), Wph


def conv_bn_act(x, w_taps, bias, *, KH, KW, stride, padding, relu=True,
                residual=None, down_w=None, down_bias=None):
    """x: (N,H,W,Cp) bf16.  w_taps: (KH*KW, Cp, Fp) bf16 (BN scale pre-folded).
    Returns (N,Ho,Wo,Fp) bf16."""
    N, H, W, C = x.shape
    n_taps = KH * KW
    F = w_taps.shape[-1]
    Ho = (H + 2 * padding - KH) // stride + 1
    Wo = (W + 2 * padding - KW) // stride + 1
    xp = jnp.pad(x, ((0, 0), (padding, padding), (padding, padding), (0, 0)))
    xps, Wph = _phase_split(xp, stride, Ho, Wo, KH, KW, 0.0)
    P, _, Lp, _ = xps.shape
    Lo = Ho * Wph

    inputs = [xps, w_taps, bias]
    in_specs = [
        pl.BlockSpec((P, 1, Lp, C), lambda n: (0, n, 0, 0)),   # per-image activation
        pl.BlockSpec((n_taps, C, F), lambda n: (0, 0, 0)),     # whole weight, fetched once
        pl.BlockSpec((1, F), lambda n: (0, 0)),
    ]
    res_mode = None
    if residual is not None:
        Cr = residual.shape[-1]
        r = jnp.pad(residual, ((0, 0), (0, 0), (0, Wph - Wo), (0, 0)))
        r = r.reshape(N, Lo, Cr)
        inputs.append(r)
        in_specs.append(pl.BlockSpec((1, Lo, Cr), lambda n: (n, 0, 0)))
        if down_w is not None:
            res_mode = "proj"
            inputs += [down_w, down_bias]
            in_specs += [pl.BlockSpec((Cr, F), lambda n: (0, 0)),
                         pl.BlockSpec((1, F), lambda n: (0, 0))]
        else:
            res_mode = "add"

    kernel = _make_conv_kernel(KH=KH, KW=KW, stride=stride, Ho=Ho, Wph=Wph,
                               relu=relu, res_mode=res_mode)
    out = pl.pallas_call(
        kernel,
        out_shape=jax.ShapeDtypeStruct((N, Lo, F), jnp.bfloat16),
        grid=(N,),
        in_specs=in_specs,
        out_specs=pl.BlockSpec((1, Lo, F), lambda n: (n, 0, 0)),
        compiler_params=_COMPILER_PARAMS,
    )(*inputs)
    # Drop the junk columns (wo >= Wo) introduced by the flat layout.
    # TODO(synk): keep the flat (Ho*Wph, Cp) layout end-to-end (zeroing junk
    # columns in the epilogue) to avoid the crop/re-pad HBM round-trip at real
    # resolutions; negligible at these toy shapes.
    return out.reshape(N, Ho, Wph, F)[:, :, :Wo, :]


def stem_conv(x, w_col, bias, *, KH, KW, stride, padding):
    """Packed-K stem conv: im2col on true channels (Cin=3), one matmul per image.

    x: (N,H,W,Cin) bf16 (true channels).  w_col: (Kp, Fp) bf16 (scale folded).
    """
    N, H, W, C = x.shape
    Ho = (H + 2 * padding - KH) // stride + 1
    Wo = (W + 2 * padding - KW) // stride + 1
    xp = jnp.pad(x, ((0, 0), (padding, padding), (padding, padding), (0, 0)))
    cols = []
    for kh in range(KH):
        for kw in range(KW):
            cols.append(xp[:, kh:kh + (Ho - 1) * stride + 1:stride,
                           kw:kw + (Wo - 1) * stride + 1:stride, :])
    patches = jnp.concatenate(cols, axis=-1)             # (N, Ho, Wo, KH*KW*C)
    K = KH * KW * C
    Kp = _ceil_to(K, LANE)
    patches = jnp.pad(patches, ((0, 0), (0, 0), (0, 0), (0, Kp - K)))
    patches = patches.reshape(N, Ho * Wo, Kp).astype(jnp.bfloat16)
    Lo = Ho * Wo
    F = w_col.shape[-1]
    out = pl.pallas_call(
        _stem_kernel,
        out_shape=jax.ShapeDtypeStruct((N, Lo, F), jnp.bfloat16),
        grid=(N,),
        in_specs=[pl.BlockSpec((1, Lo, Kp), lambda n: (n, 0, 0)),
                  pl.BlockSpec((Kp, F), lambda n: (0, 0)),
                  pl.BlockSpec((1, F), lambda n: (0, 0))],
        out_specs=pl.BlockSpec((1, Lo, F), lambda n: (n, 0, 0)),
        compiler_params=_COMPILER_PARAMS,
    )(patches, w_col, bias)
    return out.reshape(N, Ho, Wo, F)


def maxpool2d(x, *, KH=3, KW=3, stride=2, padding=1):
    N, H, W, C = x.shape
    Ho = (H + 2 * padding - KH) // stride + 1
    Wo = (W + 2 * padding - KW) // stride + 1
    neg = jnp.asarray(-jnp.inf, x.dtype)
    xp = jnp.pad(x, ((0, 0), (padding, padding), (padding, padding), (0, 0)),
                 constant_values=neg)
    xps, Wph = _phase_split(xp, stride, Ho, Wo, KH, KW, neg)
    P, _, Lp, _ = xps.shape
    Lo = Ho * Wph
    out = pl.pallas_call(
        _make_maxpool_kernel(KH=KH, KW=KW, stride=stride, Ho=Ho, Wph=Wph),
        out_shape=jax.ShapeDtypeStruct((N, Lo, C), x.dtype),
        grid=(N,),
        in_specs=[pl.BlockSpec((P, 1, Lp, C), lambda n: (0, n, 0, 0))],
        out_specs=pl.BlockSpec((1, Lo, C), lambda n: (n, 0, 0)),
        compiler_params=_COMPILER_PARAMS,
    )(xps)
    return out.reshape(N, Ho, Wph, C)[:, :, :Wo, :]


def pool_fc(x, fc_w_pad, fc_b_pad):
    N, H, W, C = x.shape
    x3 = x.reshape(N, H * W, C)
    FP = fc_w_pad.shape[-1]
    return pl.pallas_call(
        _pool_fc_kernel,
        out_shape=jax.ShapeDtypeStruct((N, FP), jnp.float32),
        in_specs=[pl.BlockSpec(memory_space=pltpu.MemorySpace.VMEM)] * 3,
        out_specs=pl.BlockSpec(memory_space=pltpu.MemorySpace.VMEM),
        compiler_params=pltpu.CompilerParams(vmem_limit_bytes=VMEM_LIMIT),
    )(x3, fc_w_pad, fc_b_pad)


# ----------------------------------------------------------------------------
# Parameter preparation (lane padding, layout, BN folding into weights)
# ----------------------------------------------------------------------------
def bn_fold(num_features):
    """Eval-mode BN of a fresh BatchNorm2d: per-channel scale (folded into the
    conv weight) and lane-padded bias (added in the kernel epilogue)."""
    scale = jnp.full((num_features,), 1.0 / math.sqrt(1.0 + BN_EPS), jnp.float32)
    bias = jnp.zeros((1, _pad_channels(num_features)), jnp.float32)
    return scale, bias


def prep_conv_weight(w_oihw, bn_scale):
    """(F, C, KH, KW) f32 -> (KH*KW, Cp, Fp) bf16; BN scale folded over F."""
    F, C, KH, KW = w_oihw.shape
    w = jnp.transpose(w_oihw, (2, 3, 1, 0)) * bn_scale[None, None, None, :]
    w = jnp.pad(w, ((0, 0), (0, 0),
                    (0, _pad_channels(C) - C), (0, _pad_channels(F) - F)))
    return w.reshape(KH * KW, _pad_channels(C),
                     _pad_channels(F)).astype(jnp.bfloat16)


def prep_stem_weight(w_oihw, bn_scale):
    """(F, C, KH, KW) f32 -> (Kp, Fp) bf16 packed-K (im2col) layout."""
    F, C, KH, KW = w_oihw.shape
    w = jnp.transpose(w_oihw, (2, 3, 1, 0)) * bn_scale[None, None, None, :]
    K = KH * KW * C
    w = w.reshape(K, F)
    w = jnp.pad(w, ((0, _ceil_to(K, LANE) - K), (0, _pad_channels(F) - F)))
    return w.astype(jnp.bfloat16)


# ----------------------------------------------------------------------------
# ResNet forward (BasicBlock, layers=[1,1], inplanes=8, num_classes=10)
# ----------------------------------------------------------------------------
def basic_block(x, blk, stride):
    planes = blk["conv1_w"].shape[0]
    sc1, bi1 = bn_fold(planes)
    out = conv_bn_act(x, prep_conv_weight(blk["conv1_w"], sc1), bi1,
                      KH=3, KW=3, stride=stride, padding=1, relu=True)
    sc2, bi2 = bn_fold(planes)
    w2 = prep_conv_weight(blk["conv2_w"], sc2)
    if "down_w" in blk:
        # 1x1 stride-s downsample: subsample identity in the wrapper (XLA slice)
        # and fuse the 1x1 projection + its BN into conv2's kernel.
        ident = x[:, ::stride, ::stride, :]
        scd, bid = bn_fold(planes)
        wd = prep_conv_weight(blk["down_w"], scd)[0]              # (Cp, Fp)
        out = conv_bn_act(out, w2, bi2, KH=3, KW=3, stride=1, padding=1,
                          relu=True, residual=ident, down_w=wd, down_bias=bid)
    else:
        out = conv_bn_act(out, w2, bi2, KH=3, KW=3, stride=1, padding=1,
                          relu=True, residual=x)
    return out


def resnet_forward(x_nchw, params):
    # NCHW (PyTorch) -> NHWC (channels on lanes), bf16.
    x = jnp.transpose(x_nchw, (0, 2, 3, 1)).astype(jnp.bfloat16)

    # Stem: conv7x7 s2 p3 + BN + ReLU (packed-K path), then maxpool 3x3 s2 p1.
    inplanes = params["conv1_w"].shape[0]
    sc, bi = bn_fold(inplanes)
    x = stem_conv(x, prep_stem_weight(params["conv1_w"], sc), bi,
                  KH=7, KW=7, stride=2, padding=3)
    x = maxpool2d(x)

    for layer, stride in zip(params["layers"], params["layer_strides"]):
        for i, blk in enumerate(layer):
            x = basic_block(x, blk, stride if i == 0 else 1)

    logits = pool_fc(x, params["fc_w_pad"], params["fc_b_pad"])
    return logits[:, :params["num_classes"]]


# ----------------------------------------------------------------------------
# Deterministic parameter construction (kaiming fan_out for convs, like __init__)
# ----------------------------------------------------------------------------
def _kaiming_conv(key, cout, cin, kh, kw):
    fan_out = cout * kh * kw
    std = math.sqrt(2.0 / fan_out)
    return std * jax.random.normal(key, (cout, cin, kh, kw), jnp.float32)


def make_params(key, in_channels=3, inplanes=8, num_classes=10):
    keys = jax.random.split(key, 8)
    params = {"num_classes": num_classes}
    params["conv1_w"] = _kaiming_conv(keys[0], inplanes, in_channels, 7, 7)
    # layer1: planes=8, stride=1, 1 block, no downsample
    layer1 = [{
        "conv1_w": _kaiming_conv(keys[1], 8, 8, 3, 3),
        "conv2_w": _kaiming_conv(keys[2], 8, 8, 3, 3),
    }]
    # layer2: planes=16, stride=2, 1 block, with downsample conv1x1 s2
    layer2 = [{
        "conv1_w": _kaiming_conv(keys[3], 16, 8, 3, 3),
        "conv2_w": _kaiming_conv(keys[4], 16, 16, 3, 3),
        "down_w": _kaiming_conv(keys[5], 16, 8, 1, 1),
    }]
    params["layers"] = [layer1, layer2]
    params["layer_strides"] = [1, 2]
    # fc: Linear(16 -> num_classes), default PyTorch uniform init, lane-padded.
    in_feat = 16
    bound = 1.0 / math.sqrt(in_feat)
    fc_w = jax.random.uniform(keys[6], (num_classes, in_feat), jnp.float32,
                              -bound, bound)
    fc_b = jax.random.uniform(keys[7], (num_classes,), jnp.float32,
                              -bound, bound)
    FP_in = _pad_channels(in_feat)
    FP_out = _pad_channels(num_classes)
    params["fc_w_pad"] = jnp.pad(fc_w.T, ((0, FP_in - in_feat),
                                          (0, FP_out - num_classes)))
    params["fc_b_pad"] = jnp.pad(fc_b, (0, FP_out - num_classes)).reshape(1, FP_out)
    return params


if __name__ == "__main__":
    key = jax.random.PRNGKey(0)
    k_param, k_x = jax.random.split(key)
    params = make_params(k_param)
    # PyTorch-style NCHW input.
    x = jax.random.normal(k_x, (2, 3, 32, 32), jnp.float32)
    fwd = jax.jit(lambda inp: resnet_forward(inp, params))
    logits = jax.block_until_ready(fwd(x))
    assert logits.shape == (2, 10), logits.shape
    assert bool(jnp.all(jnp.isfinite(logits)))
    print("KERNEL_OK")
</pallas_src>

<mosaic_0001>
module attributes {stable_mosaic.version = 11 : i64} {
  func.func @_stem_kernel(%arg0: i32, %arg1: memref<1x256x256xbf16, #tpu.memory_space<vmem>>, %arg2: memref<256x128xbf16, #tpu.memory_space<vmem>>, %arg3: memref<1x128xf32, #tpu.memory_space<vmem>>, %arg4: memref<1x256x128xbf16, #tpu.memory_space<vmem>>) attributes {dimension_semantics = [#tpu.dimension_semantics<parallel>], iteration_bounds = array<i64: 2>, scalar_prefetch = 0 : i64, scratch_operands = 0 : i64, tpu.core_type = #tpu.core_type<tc>, window_params = [{transform_indices = @transform_0, window_bounds = array<i64: 1, 256, 256>}, {pipeline_mode = #tpu.pipeline_mode<synchronous>, transform_indices = @transform_1, window_bounds = array<i64: 256, 128>}, {pipeline_mode = #tpu.pipeline_mode<synchronous>, transform_indices = @transform_2, window_bounds = array<i64: 1, 128>}, {transform_indices = @transform_3, window_bounds = array<i64: 1, 256, 128>}]} {
    %c0 = arith.constant 0 : index
    %c0_0 = arith.constant 0 : index
    %c0_1 = arith.constant 0 : index
    %0 = vector.load %arg1[%c0, %c0_0, %c0_1] : memref<1x256x256xbf16, #tpu.memory_space<vmem>>, vector<1x256x256xbf16>
    %1 = vector.shape_cast %0 : vector<1x256x256xbf16> to vector<256x256xbf16>
    %c0_2 = arith.constant 0 : index
    %c0_3 = arith.constant 0 : index
    %2 = vector.load %arg2[%c0_2, %c0_3] : memref<256x128xbf16, #tpu.memory_space<vmem>>, vector<256x128xbf16>
    %cst = arith.constant dense<0.000000e+00> : vector<256x128xf32>
    %3 = tpu.matmul %1, %2, %cst {dimension_numbers = #tpu.dot_dimension_numbers<[1], [0], [0], [1], [0, 0, 1, 1], [], []>} : vector<256x256xbf16>, vector<256x128xbf16>, vector<256x128xf32> -> vector<256x128xf32>
    %c0_4 = arith.constant 0 : index
    %c0_5 = arith.constant 0 : index
    %4 = vector.load %arg3[%c0_4, %c0_5] : memref<1x128xf32, #tpu.memory_space<vmem>>, vector<1x128xf32>
    %5 = vector.broadcast %4 : vector<1x128xf32> to vector<256x128xf32>
    %6 = arith.addf %3, %5 : vector<256x128xf32>
    %cst_6 = arith.constant 0.000000e+00 : f32
    %7 = vector.broadcast %cst_6 : f32 to vector<256x128xf32>
    %8 = arith.maximumf %6, %7 : vector<256x128xf32>
    %9 = arith.truncf %8 : vector<256x128xf32> to vector<256x128xbf16>
    %c0_7 = arith.constant 0 : index
    %c0_8 = arith.constant 0 : index
    %c0_9 = arith.constant 0 : index
    %10 = vector.load %arg4[%c0_7, %c0_8, %c0_9] : memref<1x256x128xbf16, #tpu.memory_space<vmem>>, vector<1x256x128xbf16>
    %11 = vector.shape_cast %10 : vector<1x256x128xbf16> to vector<256x128xbf16>
    %12 = vector.shape_cast %9 : vector<256x128xbf16> to vector<1x256x128xbf16>
    tpu.vector_store %arg4[%c0_7, %c0_8, %c0_9], %12 {strides = array<i32>} : memref<1x256x128xbf16, #tpu.memory_space<vmem>>, vector<1x256x128xbf16>,
    return
  }
  func.func @transform_0(%arg0: i32) -> (i32, i32, i32) {
    %c0_i32 = arith.constant 0 : i32
    %c0_i32_0 = arith.constant 0 : i32
    %c0_i32_1 = arith.constant 0 : i32
    return %arg0, %c0_i32, %c0_i32_0 : i32, i32, i32
  }
  func.func @transform_1(%arg0: i32) -> (i32, i32) {
    %c0_i32 = arith.constant 0 : i32
    %c0_i32_0 = arith.constant 0 : i32
    %c0_i32_1 = arith.constant 0 : i32
    return %c0_i32, %c0_i32_0 : i32, i32
  }
  func.func @transform_2(%arg0: i32) -> (i32, i32) {
    %c0_i32 = arith.constant 0 : i32
    %c0_i32_0 = arith.constant 0 : i32
    %c0_i32_1 = arith.constant 0 : i32
    return %c0_i32, %c0_i32_0 : i32, i32
  }
  func.func @transform_3(%arg0: i32) -> (i32, i32, i32) {
    %c0_i32 = arith.constant 0 : i32
    %c0_i32_0 = arith.constant 0 : i32
    %c0_i32_1 = arith.constant 0 : i32
    return %arg0, %c0_i32, %c0_i32_0 : i32, i32, i32
  }
}

module attributes {stable_mosaic.version = 11 : i64} {
  func.func @kernel(%arg0: i32, %arg1: memref<4x1x90x128xbf16, #tpu.memory_space<vmem>>, %arg2: memref<1x72x128xbf16, #tpu.memory_space<vmem>>) attributes {dimension_semantics = [#tpu.dimension_semantics<parallel>], iteration_bounds = array<i64: 2>, scalar_prefetch = 0 : i64, scratch_operands = 0 : i64, tpu.core_type = #tpu.core_type<tc>, window_params = [{transform_indices = @transform_0, window_bounds = array<i64: 4, 1, 90, 128>}, {transform_indices = @transform_1, window_bounds = array<i64: 1, 72, 128>}]} {
    %c0 = arith.constant 0 : index
    %c0_0 = arith.constant 0 : index
    %c0_1 = arith.constant 0 : index
    %c0_2 = arith.constant 0 : index
    %0 = vector.load %arg1[%c0, %c0_0, %c0_1, %c0_2] : memref<4x1x90x128xbf16, #tpu.memory_space<vmem>>, vector<1x1x72x128xbf16>
    %1 = vector.shape_cast %0 : vector<1x1x72x128xbf16> to vector<72x128xbf16>
    %c1 = arith.constant 1 : index
    %c0_3 = arith.constant 0 : index
    %c0_4 = arith.constant 0 : index
    %c0_5 = arith.constant 0 : index
    %2 = vector.load %arg1[%c1, %c0_3, %c0_4, %c0_5] : memref<4x1x90x128xbf16, #tpu.memory_space<vmem>>, vector<1x1x72x128xbf16>
    %3 = vector.shape_cast %2 : vector<1x1x72x128xbf16> to vector<72x128xbf16>
    %4 = arith.maximumf %1, %3 : vector<72x128xbf16>
    %c0_6 = arith.constant 0 : index
    %c0_7 = arith.constant 0 : index
    %c1_8 = arith.constant 1 : index
    %c0_9 = arith.constant 0 : index
    %5 = vector.load %arg1[%c0_6, %c0_7, %c1_8, %c0_9] : memref<4x1x90x128xbf16, #tpu.memory_space<vmem>>, vector<1x1x72x128xbf16>
    %6 = vector.shape_cast %5 : vector<1x1x72x128xbf16> to vector<72x128xbf16>
    %7 = arith.maximumf %4, %6 : vector<72x128xbf16>
    %c2 = arith.constant 2 : index
    %c0_10 = arith.constant 0 : index
    %c0_11 = arith.constant 0 : index
    %c0_12 = arith.constant 0 : index
    %8 = vector.load %arg1[%c2, %c0_10, %c0_11, %c0_12] : memref<4x1x90x128xbf16, #tpu.memory_space<vmem>>, vector<1x1x72x128xbf16>
    %9 = vector.shape_cast %8 : vector<1x1x72x128xbf16> to vector<72x128xbf16>
    %10 = arith.maximumf %7, %9 : vector<72x128xbf16>
    %c3 = arith.constant 3 : index
    %c0_13 = arith.constant 0 : index
    %c0_14 = arith.constant 0 : index
    %c0_15 = arith.constant 0 : index
    %11 = vector.load %arg1[%c3, %c0_13, %c0_14, %c0_15] : memref<4x1x90x128xbf16, #tpu.memory_space<vmem>>, vector<1x1x72x128xbf16>
    %12 = vector.shape_cast %11 : vector<1x1x72x128xbf16> to vector<72x128xbf16>
    %13 = arith.maximumf %10, %12 : vector<72x128xbf16>
    %c2_16 = arith.constant 2 : index
    %c0_17 = arith.constant 0 : index
    %c1_18 = arith.constant 1 : index
    %c0_19 = arith.constant 0 : index
    %14 = vector.load %arg1[%c2_16, %c0_17, %c1_18, %c0_19] : memref<4x1x90x128xbf16, #tpu.memory_space<vmem>>, vector<1x1x72x128xbf16>
    %15 = vector.shape_cast %14 : vector<1x1x72x128xbf16> to vector<72x128xbf16>
    %16 = arith.maximumf %13, %15 : vector<72x128xbf16>
    %c0_20 = arith.constant 0 : index
    %c0_21 = arith.constant 0 : index
    %c9 = arith.constant 9 : index
    %c0_22 = arith.constant 0 : index
    %17 = vector.load %arg1[%c0_20, %c0_21, %c9, %c0_22] : memref<4x1x90x128xbf16, #tpu.memory_space<vmem>>, vector<1x1x72x128xbf16>
    %18 = vector.shape_cast %17 : vector<1x1x72x128xbf16> to vector<72x128xbf16>
    %19 = arith.maximumf %16, %18 : vector<72x128xbf16>
    %c1_23 = arith.constant 1 : index
    %c0_24 = arith.constant 0 : index
    %c9_25 = arith.constant 9 : index
    %c0_26 = arith.constant 0 : index
    %20 = vector.load %arg1[%c1_23, %c0_24, %c9_25, %c0_26] : memref<4x1x90x128xbf16, #tpu.memory_space<vmem>>, vector<1x1x72x128xbf16>
    %21 = vector.shape_cast %20 : vector<1x1x72x128xbf16> to vector<72x128xbf16>
    %22 = arith.maximumf %19, %21 : vector<72x128xbf16>
    %c0_27 = arith.constant 0 : index
    %c0_28 = arith.constant 0 : index
    %c10 = arith.constant 10 : index
    %c0_29 = arith.constant 0 : index
    %23 = vector.load %arg1[%c0_27, %c0_28, %c10, %c0_29] : memref<4x1x90x128xbf16, #tpu.memory_space<vmem>>, vector<1x1x72x128xbf16>
    %24 = vector.shape_cast %23 : vector<1x1x72x128xbf16> to vector<72x128xbf16>
    %25 = arith.maximumf %22, %24 : vector<72x128xbf16>
    %c0_30 = arith.constant 0 : index
    %c0_31 = arith.constant 0 : index
    %c0_32 = arith.constant 0 : index
    %26 = vector.load %arg2[%c0_30, %c0_31, %c0_32] : memref<1x72x128xbf16, #tpu.memory_space<vmem>>, vector<1x72x128xbf16>
    %27 = vector.shape_cast %26 : vector<1x72x128xbf16> to vector<72x128xbf16>
    %28 = vector.shape_cast %25 : vector<72x128xbf16> to vector<1x72x128xbf16>
    tpu.vector_store %arg2[%c0_30, %c0_31, %c0_32], %28 {strides = array<i32>} : memref<1x72x128xbf16, #tpu.memory_space<vmem>>, vector<1x72x128xbf16>,
    return
  }
  func.func @transform_0(%arg0: i32) -> (i32, i32, i32, i32) {
    %c0_i32 = arith.constant 0 : i32
    %c0_i32_0 = arith.constant 0 : i32
    %c0_i32_1 = arith.constant 0 : i32
    %c0_i32_2 = arith.constant 0 : i32
    return %c0_i32, %arg0, %c0_i32_0, %c0_i32_1 : i32, i32, i32, i32
  }
  func.func @transform_1(%arg0: i32) -> (i32, i32, i32) {
    %c0_i32 = arith.constant 0 : i32
    %c0_i32_0 = arith.constant 0 : i32
    %c0_i32_1 = arith.constant 0 : i32
    return %arg0, %c0_i32, %c0_i32_0 : i32, i32, i32
  }
}

module attributes {stable_mosaic.version = 11 : i64} {
  func.func @kernel(%arg0: i32, %arg1: memref<1x1x110x128xbf16, #tpu.memory_space<vmem>>, %arg2: memref<9x128x128xbf16, #tpu.memory_space<vmem>>, %arg3: memref<1x128xf32, #tpu.memory_space<vmem>>, %arg4: memref<1x80x128xbf16, #tpu.memory_space<vmem>>) attributes {dimension_semantics = [#tpu.dimension_semantics<parallel>], iteration_bounds = array<i64: 2>, scalar_prefetch = 0 : i64, scratch_operands = 0 : i64, tpu.core_type = #tpu.core_type<tc>, window_params = [{transform_indices = @transform_0, window_bounds = array<i64: 1, 1, 110, 128>}, {pipeline_mode = #tpu.pipeline_mode<synchronous>, transform_indices = @transform_1, window_bounds = array<i64: 9, 128, 128>}, {pipeline_mode = #tpu.pipeline_mode<synchronous>, transform_indices = @transform_2, window_bounds = array<i64: 1, 128>}, {transform_indices = @transform_3, window_bounds = array<i64: 1, 80, 128>}]} {
    %cst = arith.constant 0.000000e+00 : f32
    %0 = vector.broadcast %cst : f32 to vector<80x128xf32>
    %c0 = arith.constant 0 : index
    %c0_0 = arith.constant 0 : index
    %c0_1 = arith.constant 0 : index
    %c0_2 = arith.constant 0 : index
    %1 = vector.load %arg1[%c0, %c0_0, %c0_1, %c0_2] : memref<1x1x110x128xbf16, #tpu.memory_space<vmem>>, vector<1x1x80x128xbf16>
    %2 = vector.shape_cast %1 : vector<1x1x80x128xbf16> to vector<80x128xbf16>
    %c0_3 = arith.constant 0 : index
    %c0_4 = arith.constant 0 : index
    %c0_5 = arith.constant 0 : index
    %3 = vector.load %arg2[%c0_3, %c0_4, %c0_5] : memref<9x128x128xbf16, #tpu.memory_space<vmem>>, vector<1x128x128xbf16>
    %4 = vector.shape_cast %3 : vector<1x128x128xbf16> to vector<128x128xbf16>
    %cst_6 = arith.constant dense<0.000000e+00> : vector<80x128xf32>
    %5 = tpu.matmul %2, %4, %cst_6 {dimension_numbers = #tpu.dot_dimension_numbers<[1], [0], [0], [1], [0, 0, 1, 1], [], []>} : vector<80x128xbf16>, vector<128x128xbf16>, vector<80x128xf32> -> vector<80x128xf32>
    %6 = arith.addf %0, %5 : vector<80x128xf32>
    %c0_7 = arith.constant 0 : index
    %c0_8 = arith.constant 0 : index
    %c1 = arith.constant 1 : index
    %c0_9 = arith.constant 0 : index
    %7 = vector.load %arg1[%c0_7, %c0_8, %c1, %c0_9] : memref<1x1x110x128xbf16, #tpu.memory_space<vmem>>, vector<1x1x80x128xbf16>
    %8 = vector.shape_cast %7 : vector<1x1x80x128xbf16> to vector<80x128xbf16>
    %c1_10 = arith.constant 1 : index
    %c0_11 = arith.constant 0 : index
    %c0_12 = arith.constant 0 : index
    %9 = vector.load %arg2[%c1_10, %c0_11, %c0_12] : memref<9x128x128xbf16, #tpu.memory_space<vmem>>, vector<1x128x128xbf16>
    %10 = vector.shape_cast %9 : vector<1x128x128xbf16> to vector<128x128xbf16>
    %cst_13 = arith.constant dense<0.000000e+00> : vector<80x128xf32>
    %11 = tpu.matmul %8, %10, %cst_13 {dimension_numbers = #tpu.dot_dimension_numbers<[1], [0], [0], [1], [0, 0, 1, 1], [], []>} : vector<80x128xbf16>, vector<128x128xbf16>, vector<80x128xf32> -> vector<80x128xf32>
    %12 = arith.addf %6, %11 : vector<80x128xf32>
    %c0_14 = arith.constant 0 : index
    %c0_15 = arith.constant 0 : index
    %c2 = arith.constant 2 : index
    %c0_16 = arith.constant 0 : index
    %13 = vector.load %arg1[%c0_14, %c0_15, %c2, %c0_16] : memref<1x1x110x128xbf16, #tpu.memory_space<vmem>>, vector<1x1x80x128xbf16>
    %14 = vector.shape_cast %13 : vector<1x1x80x128xbf16> to vector<80x128xbf16>
    %c2_17 = arith.constant 2 : index
    %c0_18 = arith.constant 0 : index
    %c0_19 = arith.constant 0 : index
    %15 = vector.load %arg2[%c2_17, %c0_18, %c0_19] : memref<9x128x128xbf16, #tpu.memory_space<vmem>>, vector<1x128x128xbf16>
    %16 = vector.shape_cast %15 : vector<1x128x128xbf16> to vector<128x128xbf16>
    %cst_20 = arith.constant dense<0.000000e+00> : vector<80x128xf32>
    %17 = tpu.matmul %14, %16, %cst_20 {dimension_numbers = #tpu.dot_dimension_numbers<[1], [0], [0], [1], [0, 0, 1, 1], [], []>} : vector<80x128xbf16>, vector<128x128xbf16>, vector<80x128xf32> -> vector<80x128xf32>
    %18 = arith.addf %12, %17 : vector<80x128xf32>
    %c0_21 = arith.constant 0 : index
    %c0_22 = arith.constant 0 : index
    %c10 = arith.constant 10 : index
    %c0_23 = arith.constant 0 : index
    %19 = vector.load %arg1[%c0_21, %c0_22, %c10, %c0_23] : memref<1x1x110x128xbf16, #tpu.memory_space<vmem>>, vector<1x1x80x128xbf16>
    %20 = vector.shape_cast %19 : vector<1x1x80x128xbf16> to vector<80x128xbf16>
    %c3 = arith.constant 3 : index
    %c0_24 = arith.constant 0 : index
    %c0_25 = arith.constant 0 : index
    %21 = vector.load %arg2[%c3, %c0_24, %c0_25] : memref<9x128x128xbf16, #tpu.memory_space<vmem>>, vector<1x128x128xbf16>
    %22 = vector.shape_cast %21 : vector<1x128x128xbf16> to vector<128x128xbf16>
    %cst_26 = arith.constant dense<0.000000e+00> : vector<80x128xf32>
    %23 = tpu.matmul %20, %22, %cst_26 {dimension_numbers = #tpu.dot_dimension_numbers<[1], [0], [0], [1], [0, 0, 1, 1], [], []>} : vector<80x128xbf16>, vector<128x128xbf16>, vector<80x128xf32> -> vector<80x128xf32>
    %24 = arith.addf %18, %23 : vector<80x128xf32>
    %c0_27 = arith.constant 0 : index
    %c0_28 = arith.constant 0 : index
    %c11 = arith.constant 11 : index
    %c0_29 = arith.constant 0 : index
    %25 = vector.load %arg1[%c0_27, %c0_28, %c11, %c0_29] : memref<1x1x110x128xbf16, #tpu.memory_space<vmem>>, vector<1x1x80x128xbf16>
    %26 = vector.shape_cast %25 : vector<1x1x80x128xbf16> to vector<80x128xbf16>
    %c4 = arith.constant 4 : index
    %c0_30 = arith.constant 0 : index
    %c0_31 = arith.constant 0 : index
    %27 = vector.load %arg2[%c4, %c0_30, %c0_31] : memref<9x128x128xbf16, #tpu.memory_space<vmem>>, vector<1x128x128xbf16>
    %28 = vector.shape_cast %27 : vector<1x128x128xbf16> to vector<128x128xbf16>
    %cst_32 = arith.constant dense<0.000000e+00> : vector<80x128xf32>
    %29 = tpu.matmul %26, %28, %cst_32 {dimension_numbers = #tpu.dot_dimension_numbers<[1], [0], [0], [1], [0, 0, 1, 1], [], []>} : vector<80x128xbf16>, vector<128x128xbf16>, vector<80x128xf32> -> vector<80x128xf32>
    %30 = arith.addf %24, %29 : vector<80x128xf32>
    %c0_33 = arith.constant 0 : index
    %c0_34 = arith.constant 0 : index
    %c12 = arith.constant 12 : index
    %c0_35 = arith.constant 0 : index
    %31 = vector.load %arg1[%c0_33, %c0_34, %c12, %c0_35] : memref<1x1x110x128xbf16, #tpu.memory_space<vmem>>, vector<1x1x80x128xbf16>
    %32 = vector.shape_cast %31 : vector<1x1x80x128xbf16> to vector<80x128xbf16>
    %c5 = arith.constant 5 : index
    %c0_36 = arith.constant 0 : index
    %c0_37 = arith.constant 0 : index
    %33 = vector.load %arg2[%c5, %c0_36, %c0_37] : memref<9x128x128xbf16, #tpu.memory_space<vmem>>, vector<1x128x128xbf16>
    %34 = vector.shape_cast %33 : vector<1x128x128xbf16> to vector<128x128xbf16>
    %cst_38 = arith.constant dense<0.000000e+00> : vector<80x128xf32>
    %35 = tpu.matmul %32, %34, %cst_38 {dimension_numbers = #tpu.dot_dimension_numbers<[1], [0], [0], [1], [0, 0, 1, 1], [], []>} : vector<80x128xbf16>, vector<128x128xbf16>, vector<80x128xf32> -> vector<80x128xf32>
    %36 = arith.addf %30, %35 : vector<80x128xf32>
    %c0_39 = arith.constant 0 : index
    %c0_40 = arith.constant 0 : index
    %c20 = arith.constant 20 : index
    %c0_41 = arith.constant 0 : index
    %37 = vector.load %arg1[%c0_39, %c0_40, %c20, %c0_41] : memref<1x1x110x128xbf16, #tpu.memory_space<vmem>>, vector<1x1x80x128xbf16>
    %38 = vector.shape_cast %37 : vector<1x1x80x128xbf16> to vector<80x128xbf16>
    %c6 = arith.constant 6 : index
    %c0_42 = arith.constant 0 : index
    %c0_43 = arith.constant 0 : index
    %39 = vector.load %arg2[%c6, %c0_42, %c0_43] : memref<9x128x128xbf16, #tpu.memory_space<vmem>>, vector<1x128x128xbf16>
    %40 = vector.shape_cast %39 : vector<1x128x128xbf16> to vector<128x128xbf16>
    %cst_44 = arith.constant dense<0.000000e+00> : vector<80x128xf32>
    %41 = tpu.matmul %38, %40, %cst_44 {dimension_numbers = #tpu.dot_dimension_numbers<[1], [0], [0], [1], [0, 0, 1, 1], [], []>} : vector<80x128xbf16>, vector<128x128xbf16>, vector<80x128xf32> -> vector<80x128xf32>
    %42 = arith.addf %36, %41 : vector<80x128xf32>
    %c0_45 = arith.constant 0 : index
    %c0_46 = arith.constant 0 : index
    %c21 = arith.constant 21 : index
    %c0_47 = arith.constant 0 : index
    %43 = vector.load %arg1[%c0_45, %c0_46, %c21, %c0_47] : memref<1x1x110x128xbf16, #tpu.memory_space<vmem>>, vector<1x1x80x128xbf16>
    %44 = vector.shape_cast %43 : vector<1x1x80x128xbf16> to vector<80x128xbf16>
    %c7 = arith.constant 7 : index
    %c0_48 = arith.constant 0 : index
    %c0_49 = arith.constant 0 : index
    %45 = vector.load %arg2[%c7, %c0_48, %c0_49] : memref<9x128x128xbf16, #tpu.memory_space<vmem>>, vector<1x128x128xbf16>
    %46 = vector.shape_cast %45 : vector<1x128x128xbf16> to vector<128x128xbf16>
    %cst_50 = arith.constant dense<0.000000e+00> : vector<80x128xf32>
    %47 = tpu.matmul %44, %46, %cst_50 {dimension_numbers = #tpu.dot_dimension_numbers<[1], [0], [0], [1], [0, 0, 1, 1], [], []>} : vector<80x128xbf16>, vector<128x128xbf16>, vector<80x128xf32> -> vector<80x128xf32>
    %48 = arith.addf %42, %47 : vector<80x128xf32>
    %c0_51 = arith.constant 0 : index
    %c0_52 = arith.constant 0 : index
    %c22 = arith.constant 22 : index
    %c0_53 = arith.constant 0 : index
    %49 = vector.load %arg1[%c0_51, %c0_52, %c22, %c0_53] : memref<1x1x110x128xbf16, #tpu.memory_space<vmem>>, vector<1x1x80x128xbf16>
    %50 = vector.shape_cast %49 : vector<1x1x80x128xbf16> to vector<80x128xbf16>
    %c8 = arith.constant 8 : index
    %c0_54 = arith.constant 0 : index
    %c0_55 = arith.constant 0 : index
    %51 = vector.load %arg2[%c8, %c0_54, %c0_55] : memref<9x128x128xbf16, #tpu.memory_space<vmem>>, vector<1x128x128xbf16>
    %52 = vector.shape_cast %51 : vector<1x128x128xbf16> to vector<128x128xbf16>
    %cst_56 = arith.constant dense<0.000000e+00> : vector<80x128xf32>
    %53 = tpu.matmul %50, %52, %cst_56 {dimension_numbers = #tpu.dot_dimension_numbers<[1], [0], [0], [1], [0, 0, 1, 1], [], []>} : vector<80x128xbf16>, vector<128x128xbf16>, vector<80x128xf32> -> vector<80x128xf32>
    %54 = arith.addf %48, %53 : vector<80x128xf32>
    %c0_57 = arith.constant 0 : index
    %c0_58 = arith.constant 0 : index
    %55 = vector.load %arg3[%c0_57, %c0_58] : memref<1x128xf32, #tpu.memory_space<vmem>>, vector<1x128xf32>
    %56 = vector.broadcast %55 : vector<1x128xf32> to vector<80x128xf32>
    %57 = arith.addf %54, %56 : vector<80x128xf32>
    %cst_59 = arith.constant 0.000000e+00 : f32
    %58 = vector.broadcast %cst_59 : f32 to vector<80x128xf32>
    %59 = arith.maximumf %57, %58 : vector<80x128xf32>
    %60 = arith.truncf %59 : vector<80x128xf32> to vector<80x128xbf16>
    %c0_60 = arith.constant 0 : index
    %c0_61 = arith.constant 0 : index
    %c0_62 = arith.constant 0 : index
    %61 = vector.load %arg4[%c0_60, %c0_61, %c0_62] : memref<1x80x128xbf16, #tpu.memory_space<vmem>>, vector<1x80x128xbf16>
    %62 = vector.shape_cast %61 : vector<1x80x128xbf16> to vector<80x128xbf16>
    %63 = vector.shape_cast %60 : vector<80x128xbf16> to vector<1x80x128xbf16>
    tpu.vector_store %arg4[%c0_60, %c0_61, %c0_62], %63 {strides = array<i32>} : memref<1x80x128xbf16, #tpu.memory_space<vmem>>, vector<1x80x128xbf16>,
    return
  }
  func.func @transform_0(%arg0: i32) -> (i32, i32, i32, i32) {
    %c0_i32 = arith.constant 0 : i32
    %c0_i32_0 = arith.constant 0 : i32
    %c0_i32_1 = arith.constant 0 : i32
    %c0_i32_2 = arith.constant 0 : i32
    return %c0_i32, %arg0, %c0_i32_0, %c0_i32_1 : i32, i32, i32, i32
  }
  func.func @transform_1(%arg0: i32) -> (i32, i32, i32) {
    %c0_i32 = arith.constant 0 : i32
    %c0_i32_0 = arith.constant 0 : i32
    %c0_i32_1 = arith.constant 0 : i32
    %c0_i32_2 = arith.constant 0 : i32
    return %c0_i32, %c0_i32_0, %c0_i32_1 : i32, i32, i32
  }
  func.func @transform_2(%arg0: i32) -> (i32, i32) {
    %c0_i32 = arith.constant 0 : i32
    %c0_i32_0 = arith.constant 0 : i32
    %c0_i32_1 = arith.constant 0 : i32
    return %c0_i32, %c0_i32_0 : i32, i32
  }
  func.func @transform_3(%arg0: i32) -> (i32, i32, i32) {
    %c0_i32 = arith.constant 0 : i32
    %c0_i32_0 = arith.constant 0 : i32
    %c0_i32_1 = arith.constant 0 : i32
    return %arg0, %c0_i32, %c0_i32_0 : i32, i32, i32
  }
}

module attributes {stable_mosaic.version = 11 : i64} {
  func.func @kernel(%arg0: i32, %arg1: memref<1x1x110x128xbf16, #tpu.memory_space<vmem>>, %arg2: memref<9x128x128xbf16, #tpu.memory_space<vmem>>, %arg3: memref<1x128xf32, #tpu.memory_space<vmem>>, %arg4: memref<1x80x128xbf16, #tpu.memory_space<vmem>>, %arg5: memref<1x80x128xbf16, #tpu.memory_space<vmem>>) attributes {dimension_semantics = [#tpu.dimension_semantics<parallel>], iteration_bounds = array<i64: 2>, scalar_prefetch = 0 : i64, scratch_operands = 0 : i64, tpu.core_type = #tpu.core_type<tc>, window_params = [{transform_indices = @transform_0, window_bounds = array<i64: 1, 1, 110, 128>}, {pipeline_mode = #tpu.pipeline_mode<synchronous>, transform_indices = @transform_1, window_bounds = array<i64: 9, 128, 128>}, {pipeline_mode = #tpu.pipeline_mode<synchronous>, transform_indices = @transform_2, window_bounds = array<i64: 1, 128>}, {transform_indices = @transform_3, window_bounds = array<i64: 1, 80, 128>}, {transform_indices = @transform_4, window_bounds = array<i64: 1, 80, 128>}]} {
    %c0 = arith.constant 0 : index
    %c0_0 = arith.constant 0 : index
    %c0_1 = arith.constant 0 : index
    %0 = vector.load %arg4[%c0, %c0_0, %c0_1] : memref<1x80x128xbf16, #tpu.memory_space<vmem>>, vector<1x80x128xbf16>
    %1 = vector.shape_cast %0 : vector<1x80x128xbf16> to vector<80x128xbf16>
    %2 = arith.extf %1 : vector<80x128xbf16> to vector<80x128xf32>
    %c0_2 = arith.constant 0 : index
    %c0_3 = arith.constant 0 : index
    %c0_4 = arith.constant 0 : index
    %c0_5 = arith.constant 0 : index
    %3 = vector.load %arg1[%c0_2, %c0_3, %c0_4, %c0_5] : memref<1x1x110x128xbf16, #tpu.memory_space<vmem>>, vector<1x1x80x128xbf16>
    %4 = vector.shape_cast %3 : vector<1x1x80x128xbf16> to vector<80x128xbf16>
    %c0_6 = arith.constant 0 : index
    %c0_7 = arith.constant 0 : index
    %c0_8 = arith.constant 0 : index
    %5 = vector.load %arg2[%c0_6, %c0_7, %c0_8] : memref<9x128x128xbf16, #tpu.memory_space<vmem>>, vector<1x128x128xbf16>
    %6 = vector.shape_cast %5 : vector<1x128x128xbf16> to vector<128x128xbf16>
    %cst = arith.constant dense<0.000000e+00> : vector<80x128xf32>
    %7 = tpu.matmul %4, %6, %cst {dimension_numbers = #tpu.dot_dimension_numbers<[1], [0], [0], [1], [0, 0, 1, 1], [], []>} : vector<80x128xbf16>, vector<128x128xbf16>, vector<80x128xf32> -> vector<80x128xf32>
    %8 = arith.addf %2, %7 : vector<80x128xf32>
    %c0_9 = arith.constant 0 : index
    %c0_10 = arith.constant 0 : index
    %c1 = arith.constant 1 : index
    %c0_11 = arith.constant 0 : index
    %9 = vector.load %arg1[%c0_9, %c0_10, %c1, %c0_11] : memref<1x1x110x128xbf16, #tpu.memory_space<vmem>>, vector<1x1x80x128xbf16>
    %10 = vector.shape_cast %9 : vector<1x1x80x128xbf16> to vector<80x128xbf16>
    %c1_12 = arith.constant 1 : index
    %c0_13 = arith.constant 0 : index
    %c0_14 = arith.constant 0 : index
    %11 = vector.load %arg2[%c1_12, %c0_13, %c0_14] : memref<9x128x128xbf16, #tpu.memory_space<vmem>>, vector<1x128x128xbf16>
    %12 = vector.shape_cast %11 : vector<1x128x128xbf16> to vector<128x128xbf16>
    %cst_15 = arith.constant dense<0.000000e+00> : vector<80x128xf32>
    %13 = tpu.matmul %10, %12, %cst_15 {dimension_numbers = #tpu.dot_dimension_numbers<[1], [0], [0], [1], [0, 0, 1, 1], [], []>} : vector<80x128xbf16>, vector<128x128xbf16>, vector<80x128xf32> -> vector<80x128xf32>
    %14 = arith.addf %8, %13 : vector<80x128xf32>
    %c0_16 = arith.constant 0 : index
    %c0_17 = arith.constant 0 : index
    %c2 = arith.constant 2 : index
    %c0_18 = arith.constant 0 : index
    %15 = vector.load %arg1[%c0_16, %c0_17, %c2, %c0_18] : memref<1x1x110x128xbf16, #tpu.memory_space<vmem>>, vector<1x1x80x128xbf16>
    %16 = vector.shape_cast %15 : vector<1x1x80x128xbf16> to vector<80x128xbf16>
    %c2_19 = arith.constant 2 : index
    %c0_20 = arith.constant 0 : index
    %c0_21 = arith.constant 0 : index
    %17 = vector.load %arg2[%c2_19, %c0_20, %c0_21] : memref<9x128x128xbf16, #tpu.memory_space<vmem>>, vector<1x128x128xbf16>
    %18 = vector.shape_cast %17 : vector<1x128x128xbf16> to vector<128x128xbf16>
    %cst_22 = arith.constant dense<0.000000e+00> : vector<80x128xf32>
    %19 = tpu.matmul %16, %18, %cst_22 {dimension_numbers = #tpu.dot_dimension_numbers<[1], [0], [0], [1], [0, 0, 1, 1], [], []>} : vector<80x128xbf16>, vector<128x128xbf16>, vector<80x128xf32> -> vector<80x128xf32>
    %20 = arith.addf %14, %19 : vector<80x128xf32>
    %c0_23 = arith.constant 0 : index
    %c0_24 = arith.constant 0 : index
    %c10 = arith.constant 10 : index
    %c0_25 = arith.constant 0 : index
    %21 = vector.load %arg1[%c0_23, %c0_24, %c10, %c0_25] : memref<1x1x110x128xbf16, #tpu.memory_space<vmem>>, vector<1x1x80x128xbf16>
    %22 = vector.shape_cast %21 : vector<1x1x80x128xbf16> to vector<80x128xbf16>
    %c3 = arith.constant 3 : index
    %c0_26 = arith.constant 0 : index
    %c0_27 = arith.constant 0 : index
    %23 = vector.load %arg2[%c3, %c0_26, %c0_27] : memref<9x128x128xbf16, #tpu.memory_space<vmem>>, vector<1x128x128xbf16>
    %24 = vector.shape_cast %23 : vector<1x128x128xbf16> to vector<128x128xbf16>
    %cst_28 = arith.constant dense<0.000000e+00> : vector<80x128xf32>
    %25 = tpu.matmul %22, %24, %cst_28 {dimension_numbers = #tpu.dot_dimension_numbers<[1], [0], [0], [1], [0, 0, 1, 1], [], []>} : vector<80x128xbf16>, vector<128x128xbf16>, vector<80x128xf32> -> vector<80x128xf32>
    %26 = arith.addf %20, %25 : vector<80x128xf32>
    %c0_29 = arith.constant 0 : index
    %c0_30 = arith.constant 0 : index
    %c11 = arith.constant 11 : index
    %c0_31 = arith.constant 0 : index
    %27 = vector.load %arg1[%c0_29, %c0_30, %c11, %c0_31] : memref<1x1x110x128xbf16, #tpu.memory_space<vmem>>, vector<1x1x80x128xbf16>
    %28 = vector.shape_cast %27 : vector<1x1x80x128xbf16> to vector<80x128xbf16>
    %c4 = arith.constant 4 : index
    %c0_32 = arith.constant 0 : index
    %c0_33 = arith.constant 0 : index
    %29 = vector.load %arg2[%c4, %c0_32, %c0_33] : memref<9x128x128xbf16, #tpu.memory_space<vmem>>, vector<1x128x128xbf16>
    %30 = vector.shape_cast %29 : vector<1x128x128xbf16> to vector<128x128xbf16>
    %cst_34 = arith.constant dense<0.000000e+00> : vector<80x128xf32>
    %31 = tpu.matmul %28, %30, %cst_34 {dimension_numbers = #tpu.dot_dimension_numbers<[1], [0], [0], [1], [0, 0, 1, 1], [], []>} : vector<80x128xbf16>, vector<128x128xbf16>, vector<80x128xf32> -> vector<80x128xf32>
    %32 = arith.addf %26, %31 : vector<80x128xf32>
    %c0_35 = arith.constant 0 : index
    %c0_36 = arith.constant 0 : index
    %c12 = arith.constant 12 : index
    %c0_37 = arith.constant 0 : index
    %33 = vector.load %arg1[%c0_35, %c0_36, %c12, %c0_37] : memref<1x1x110x128xbf16, #tpu.memory_space<vmem>>, vector<1x1x80x128xbf16>
    %34 = vector.shape_cast %33 : vector<1x1x80x128xbf16> to vector<80x128xbf16>
    %c5 = arith.constant 5 : index
    %c0_38 = arith.constant 0 : index
    %c0_39 = arith.constant 0 : index
    %35 = vector.load %arg2[%c5, %c0_38, %c0_39] : memref<9x128x128xbf16, #tpu.memory_space<vmem>>, vector<1x128x128xbf16>
    %36 = vector.shape_cast %35 : vector<1x128x128xbf16> to vector<128x128xbf16>
    %cst_40 = arith.constant dense<0.000000e+00> : vector<80x128xf32>
    %37 = tpu.matmul %34, %36, %cst_40 {dimension_numbers = #tpu.dot_dimension_numbers<[1], [0], [0], [1], [0, 0, 1, 1], [], []>} : vector<80x128xbf16>, vector<128x128xbf16>, vector<80x128xf32> -> vector<80x128xf32>
    %38 = arith.addf %32, %37 : vector<80x128xf32>
    %c0_41 = arith.constant 0 : index
    %c0_42 = arith.constant 0 : index
    %c20 = arith.constant 20 : index
    %c0_43 = arith.constant 0 : index
    %39 = vector.load %arg1[%c0_41, %c0_42, %c20, %c0_43] : memref<1x1x110x128xbf16, #tpu.memory_space<vmem>>, vector<1x1x80x128xbf16>
    %40 = vector.shape_cast %39 : vector<1x1x80x128xbf16> to vector<80x128xbf16>
    %c6 = arith.constant 6 : index
    %c0_44 = arith.constant 0 : index
    %c0_45 = arith.constant 0 : index
    %41 = vector.load %arg2[%c6, %c0_44, %c0_45] : memref<9x128x128xbf16, #tpu.memory_space<vmem>>, vector<1x128x128xbf16>
    %42 = vector.shape_cast %41 : vector<1x128x128xbf16> to vector<128x128xbf16>
    %cst_46 = arith.constant dense<0.000000e+00> : vector<80x128xf32>
    %43 = tpu.matmul %40, %42, %cst_46 {dimension_numbers = #tpu.dot_dimension_numbers<[1], [0], [0], [1], [0, 0, 1, 1], [], []>} : vector<80x128xbf16>, vector<128x128xbf16>, vector<80x128xf32> -> vector<80x128xf32>
    %44 = arith.addf %38, %43 : vector<80x128xf32>
    %c0_47 = arith.constant 0 : index
    %c0_48 = arith.constant 0 : index
    %c21 = arith.constant 21 : index
    %c0_49 = arith.constant 0 : index
    %45 = vector.load %arg1[%c0_47, %c0_48, %c21, %c0_49] : memref<1x1x110x128xbf16, #tpu.memory_space<vmem>>, vector<1x1x80x128xbf16>
    %46 = vector.shape_cast %45 : vector<1x1x80x128xbf16> to vector<80x128xbf16>
    %c7 = arith.constant 7 : index
    %c0_50 = arith.constant 0 : index
    %c0_51 = arith.constant 0 : index
    %47 = vector.load %arg2[%c7, %c0_50, %c0_51] : memref<9x128x128xbf16, #tpu.memory_space<vmem>>, vector<1x128x128xbf16>
    %48 = vector.shape_cast %47 : vector<1x128x128xbf16> to vector<128x128xbf16>
    %cst_52 = arith.constant dense<0.000000e+00> : vector<80x128xf32>
    %49 = tpu.matmul %46, %48, %cst_52 {dimension_numbers = #tpu.dot_dimension_numbers<[1], [0], [0], [1], [0, 0, 1, 1], [], []>} : vector<80x128xbf16>, vector<128x128xbf16>, vector<80x128xf32> -> vector<80x128xf32>
    %50 = arith.addf %44, %49 : vector<80x128xf32>
    %c0_53 = arith.constant 0 : index
    %c0_54 = arith.constant 0 : index
    %c22 = arith.constant 22 : index
    %c0_55 = arith.constant 0 : index
    %51 = vector.load %arg1[%c0_53, %c0_54, %c22, %c0_55] : memref<1x1x110x128xbf16, #tpu.memory_space<vmem>>, vector<1x1x80x128xbf16>
    %52 = vector.shape_cast %51 : vector<1x1x80x128xbf16> to vector<80x128xbf16>
    %c8 = arith.constant 8 : index
    %c0_56 = arith.constant 0 : index
    %c0_57 = arith.constant 0 : index
    %53 = vector.load %arg2[%c8, %c0_56, %c0_57] : memref<9x128x128xbf16, #tpu.memory_space<vmem>>, vector<1x128x128xbf16>
    %54 = vector.shape_cast %53 : vector<1x128x128xbf16> to vector<128x128xbf16>
    %cst_58 = arith.constant dense<0.000000e+00> : vector<80x128xf32>
    %55 = tpu.matmul %52, %54, %cst_58 {dimension_numbers = #tpu.dot_dimension_numbers<[1], [0], [0], [1], [0, 0, 1, 1], [], []>} : vector<80x128xbf16>, vector<128x128xbf16>, vector<80x128xf32> -> vector<80x128xf32>
    %56 = arith.addf %50, %55 : vector<80x128xf32>
    %c0_59 = arith.constant 0 : index
    %c0_60 = arith.constant 0 : index
    %57 = vector.load %arg3[%c0_59, %c0_60] : memref<1x128xf32, #tpu.memory_space<vmem>>, vector<1x128xf32>
    %58 = vector.broadcast %57 : vector<1x128xf32> to vector<80x128xf32>
    %59 = arith.addf %56, %58 : vector<80x128xf32>
    %cst_61 = arith.constant 0.000000e+00 : f32
    %60 = vector.broadcast %cst_61 : f32 to vector<80x128xf32>
    %61 = arith.maximumf %59, %60 : vector<80x128xf32>
    %62 = arith.truncf %61 : vector<80x128xf32> to vector<80x128xbf16>
    %c0_62 = arith.constant 0 : index
    %c0_63 = arith.constant 0 : index
    %c0_64 = arith.constant 0 : index
    %63 = vector.load %arg5[%c0_62, %c0_63, %c0_64] : memref<1x80x128xbf16, #tpu.memory_space<vmem>>, vector<1x80x128xbf16>
    %64 = vector.shape_cast %63 : vector<1x80x128xbf16> to vector<80x128xbf16>
    %65 = vector.shape_cast %62 : vector<80x128xbf16> to vector<1x80x128xbf16>
    tpu.vector_store %arg5[%c0_62, %c0_63, %c0_64], %65 {strides = array<i32>} : memref<1x80x128xbf16, #tpu.memory_space<vmem>>, vector<1x80x128xbf16>,
    return
  }
  func.func @transform_0(%arg0: i32) -> (i32, i32, i32, i32) {
    %c0_i32 = arith.constant 0 : i32
    %c0_i32_0 = arith.constant 0 : i32
    %c0_i32_1 = arith.constant 0 : i32
    %c0_i32_2 = arith.constant 0 : i32
    return %c0_i32, %arg0, %c0_i32_0, %c0_i32_1 : i32, i32, i32, i32
  }
  func.func @transform_1(%arg0: i32) -> (i32, i32, i32) {
    %c0_i32 = arith.constant 0 : i32
    %c0_i32_0 = arith.constant 0 : i32
    %c0_i32_1 = arith.constant 0 : i32
    %c0_i32_2 = arith.constant 0 : i32
    return %c0_i32, %c0_i32_0, %c0_i32_1 : i32, i32, i32
  }
  func.func @transform_2(%arg0: i32) -> (i32, i32) {
    %c0_i32 = arith.constant 0 : i32
    %c0_i32_0 = arith.constant 0 : i32
    %c0_i32_1 = arith.constant 0 : i32
    return %c0_i32, %c0_i32_0 : i32, i32
  }
  func.func @transform_3(%arg0: i32) -> (i32, i32, i32) {
    %c0_i32 = arith.constant 0 : i32
    %c0_i32_0 = arith.constant 0 : i32
    %c0_i32_1 = arith.constant 0 : i32
    return %arg0, %c0_i32, %c0_i32_0 : i32, i32, i32
  }
  func.func @transform_4(%arg0: i32) -> (i32, i32, i32) {
    %c0_i32 = arith.constant 0 : i32
    %c0_i32_0 = arith.constant 0 : i32
    %c0_i32_1 = arith.constant 0 : i32
    return %arg0, %c0_i32, %c0_i32_0 : i32, i32, i32
  }
}

module attributes {stable_mosaic.version = 11 : i64} {
  func.func @kernel(%arg0: i32, %arg1: memref<4x1x30x128xbf16, #tpu.memory_space<vmem>>, %arg2: memref<9x128x128xbf16, #tpu.memory_space<vmem>>, %arg3: memref<1x128xf32, #tpu.memory_space<vmem>>, %arg4: memref<1x20x128xbf16, #tpu.memory_space<vmem>>) attributes {dimension_semantics = [#tpu.dimension_semantics<parallel>], iteration_bounds = array<i64: 2>, scalar_prefetch = 0 : i64, scratch_operands = 0 : i64, tpu.core_type = #tpu.core_type<tc>, window_params = [{transform_indices = @transform_0, window_bounds = array<i64: 4, 1, 30, 128>}, {pipeline_mode = #tpu.pipeline_mode<synchronous>, transform_indices = @transform_1, window_bounds = array<i64: 9, 128, 128>}, {pipeline_mode = #tpu.pipeline_mode<synchronous>, transform_indices = @transform_2, window_bounds = array<i64: 1, 128>}, {transform_indices = @transform_3, window_bounds = array<i64: 1, 20, 128>}]} {
    %cst = arith.constant 0.000000e+00 : f32
    %0 = vector.broadcast %cst : f32 to vector<20x128xf32>
    %c0 = arith.constant 0 : index
    %c0_0 = arith.constant 0 : index
    %c0_1 = arith.constant 0 : index
    %c0_2 = arith.constant 0 : index
    %1 = vector.load %arg1[%c0, %c0_0, %c0_1, %c0_2] : memref<4x1x30x128xbf16, #tpu.memory_space<vmem>>, vector<1x1x20x128xbf16>
    %2 = vector.shape_cast %1 : vector<1x1x20x128xbf16> to vector<20x128xbf16>
    %c0_3 = arith.constant 0 : index
    %c0_4 = arith.constant 0 : index
    %c0_5 = arith.constant 0 : index
    %3 = vector.load %arg2[%c0_3, %c0_4, %c0_5] : memref<9x128x128xbf16, #tpu.memory_space<vmem>>, vector<1x128x128xbf16>
    %4 = vector.shape_cast %3 : vector<1x128x128xbf16> to vector<128x128xbf16>
    %cst_6 = arith.constant dense<0.000000e+00> : vector<20x128xf32>
    %5 = tpu.matmul %2, %4, %cst_6 {dimension_numbers = #tpu.dot_dimension_numbers<[1], [0], [0], [1], [0, 0, 1, 1], [], []>} : vector<20x128xbf16>, vector<128x128xbf16>, vector<20x128xf32> -> vector<20x128xf32>
    %6 = arith.addf %0, %5 : vector<20x128xf32>
    %c1 = arith.constant 1 : index
    %c0_7 = arith.constant 0 : index
    %c0_8 = arith.constant 0 : index
    %c0_9 = arith.constant 0 : index
    %7 = vector.load %arg1[%c1, %c0_7, %c0_8, %c0_9] : memref<4x1x30x128xbf16, #tpu.memory_space<vmem>>, vector<1x1x20x128xbf16>
    %8 = vector.shape_cast %7 : vector<1x1x20x128xbf16> to vector<20x128xbf16>
    %c1_10 = arith.constant 1 : index
    %c0_11 = arith.constant 0 : index
    %c0_12 = arith.constant 0 : index
    %9 = vector.load %arg2[%c1_10, %c0_11, %c0_12] : memref<9x128x128xbf16, #tpu.memory_space<vmem>>, vector<1x128x128xbf16>
    %10 = vector.shape_cast %9 : vector<1x128x128xbf16> to vector<128x128xbf16>
    %cst_13 = arith.constant dense<0.000000e+00> : vector<20x128xf32>
    %11 = tpu.matmul %8, %10, %cst_13 {dimension_numbers = #tpu.dot_dimension_numbers<[1], [0], [0], [1], [0, 0, 1, 1], [], []>} : vector<20x128xbf16>, vector<128x128xbf16>, vector<20x128xf32> -> vector<20x128xf32>
    %12 = arith.addf %6, %11 : vector<20x128xf32>
    %c0_14 = arith.constant 0 : index
    %c0_15 = arith.constant 0 : index
    %c1_16 = arith.constant 1 : index
    %c0_17 = arith.constant 0 : index
    %13 = vector.load %arg1[%c0_14, %c0_15, %c1_16, %c0_17] : memref<4x1x30x128xbf16, #tpu.memory_space<vmem>>, vector<1x1x20x128xbf16>
    %14 = vector.shape_cast %13 : vector<1x1x20x128xbf16> to vector<20x128xbf16>
    %c2 = arith.constant 2 : index
    %c0_18 = arith.constant 0 : index
    %c0_19 = arith.constant 0 : index
    %15 = vector.load %arg2[%c2, %c0_18, %c0_19] : memref<9x128x128xbf16, #tpu.memory_space<vmem>>, vector<1x128x128xbf16>
    %16 = vector.shape_cast %15 : vector<1x128x128xbf16> to vector<128x128xbf16>
    %cst_20 = arith.constant dense<0.000000e+00> : vector<20x128xf32>
    %17 = tpu.matmul %14, %16, %cst_20 {dimension_numbers = #tpu.dot_dimension_numbers<[1], [0], [0], [1], [0, 0, 1, 1], [], []>} : vector<20x128xbf16>, vector<128x128xbf16>, vector<20x128xf32> -> vector<20x128xf32>
    %18 = arith.addf %12, %17 : vector<20x128xf32>
    %c2_21 = arith.constant 2 : index
    %c0_22 = arith.constant 0 : index
    %c0_23 = arith.constant 0 : index
    %c0_24 = arith.constant 0 : index
    %19 = vector.load %arg1[%c2_21, %c0_22, %c0_23, %c0_24] : memref<4x1x30x128xbf16, #tpu.memory_space<vmem>>, vector<1x1x20x128xbf16>
    %20 = vector.shape_cast %19 : vector<1x1x20x128xbf16> to vector<20x128xbf16>
    %c3 = arith.constant 3 : index
    %c0_25 = arith.constant 0 : index
    %c0_26 = arith.constant 0 : index
    %21 = vector.load %arg2[%c3, %c0_25, %c0_26] : memref<9x128x128xbf16, #tpu.memory_space<vmem>>, vector<1x128x128xbf16>
    %22 = vector.shape_cast %21 : vector<1x128x128xbf16> to vector<128x128xbf16>
    %cst_27 = arith.constant dense<0.000000e+00> : vector<20x128xf32>
    %23 = tpu.matmul %20, %22, %cst_27 {dimension_numbers = #tpu.dot_dimension_numbers<[1], [0], [0], [1], [0, 0, 1, 1], [], []>} : vector<20x128xbf16>, vector<128x128xbf16>, vector<20x128xf32> -> vector<20x128xf32>
    %24 = arith.addf %18, %23 : vector<20x128xf32>
    %c3_28 = arith.constant 3 : index
    %c0_29 = arith.constant 0 : index
    %c0_30 = arith.constant 0 : index
    %c0_31 = arith.constant 0 : index
    %25 = vector.load %arg1[%c3_28, %c0_29, %c0_30, %c0_31] : memref<4x1x30x128xbf16, #tpu.memory_space<vmem>>, vector<1x1x20x128xbf16>
    %26 = vector.shape_cast %25 : vector<1x1x20x128xbf16> to vector<20x128xbf16>
    %c4 = arith.constant 4 : index
    %c0_32 = arith.constant 0 : index
    %c0_33 = arith.constant 0 : index
    %27 = vector.load %arg2[%c4, %c0_32, %c0_33] : memref<9x128x128xbf16, #tpu.memory_space<vmem>>, vector<1x128x128xbf16>
    %28 = vector.shape_cast %27 : vector<1x128x128xbf16> to vector<128x128xbf16>
    %cst_34 = arith.constant dense<0.000000e+00> : vector<20x128xf32>
    %29 = tpu.matmul %26, %28, %cst_34 {dimension_numbers = #tpu.dot_dimension_numbers<[1], [0], [0], [1], [0, 0, 1, 1], [], []>} : vector<20x128xbf16>, vector<128x128xbf16>, vector<20x128xf32> -> vector<20x128xf32>
    %30 = arith.addf %24, %29 : vector<20x128xf32>
    %c2_35 = arith.constant 2 : index
    %c0_36 = arith.constant 0 : index
    %c1_37 = arith.constant 1 : index
    %c0_38 = arith.constant 0 : index
    %31 = vector.load %arg1[%c2_35, %c0_36, %c1_37, %c0_38] : memref<4x1x30x128xbf16, #tpu.memory_space<vmem>>, vector<1x1x20x128xbf16>
    %32 = vector.shape_cast %31 : vector<1x1x20x128xbf16> to vector<20x128xbf16>
    %c5 = arith.constant 5 : index
    %c0_39 = arith.constant 0 : index
    %c0_40 = arith.constant 0 : index
    %33 = vector.load %arg2[%c5, %c0_39, %c0_40] : memref<9x128x128xbf16, #tpu.memory_space<vmem>>, vector<1x128x128xbf16>
    %34 = vector.shape_cast %33 : vector<1x128x128xbf16> to vector<128x128xbf16>
    %cst_41 = arith.constant dense<0.000000e+00> : vector<20x128xf32>
    %35 = tpu.matmul %32, %34, %cst_41 {dimension_numbers = #tpu.dot_dimension_numbers<[1], [0], [0], [1], [0, 0, 1, 1], [], []>} : vector<20x128xbf16>, vector<128x128xbf16>, vector<20x128xf32> -> vector<20x128xf32>
    %36 = arith.addf %30, %35 : vector<20x128xf32>
    %c0_42 = arith.constant 0 : index
    %c0_43 = arith.constant 0 : index
    %c5_44 = arith.constant 5 : index
    %c0_45 = arith.constant 0 : index
    %37 = vector.load %arg1[%c0_42, %c0_43, %c5_44, %c0_45] : memref<4x1x30x128xbf16, #tpu.memory_space<vmem>>, vector<1x1x20x128xbf16>
    %38 = vector.shape_cast %37 : vector<1x1x20x128xbf16> to vector<20x128xbf16>
    %c6 = arith.constant 6 : index
    %c0_46 = arith.constant 0 : index
    %c0_47 = arith.constant 0 : index
    %39 = vector.load %arg2[%c6, %c0_46, %c0_47] : memref<9x128x128xbf16, #tpu.memory_space<vmem>>, vector<1x128x128xbf16>
    %40 = vector.shape_cast %39 : vector<1x128x128xbf16> to vector<128x128xbf16>
    %cst_48 = arith.constant dense<0.000000e+00> : vector<20x128xf32>
    %41 = tpu.matmul %38, %40, %cst_48 {dimension_numbers = #tpu.dot_dimension_numbers<[1], [0], [0], [1], [0, 0, 1, 1], [], []>} : vector<20x128xbf16>, vector<128x128xbf16>, vector<20x128xf32> -> vector<20x128xf32>
    %42 = arith.addf %36, %41 : vector<20x128xf32>
    %c1_49 = arith.constant 1 : index
    %c0_50 = arith.constant 0 : index
    %c5_51 = arith.constant 5 : index
    %c0_52 = arith.constant 0 : index
    %43 = vector.load %arg1[%c1_49, %c0_50, %c5_51, %c0_52] : memref<4x1x30x128xbf16, #tpu.memory_space<vmem>>, vector<1x1x20x128xbf16>
    %44 = vector.shape_cast %43 : vector<1x1x20x128xbf16> to vector<20x128xbf16>
    %c7 = arith.constant 7 : index
    %c0_53 = arith.constant 0 : index
    %c0_54 = arith.constant 0 : index
    %45 = vector.load %arg2[%c7, %c0_53, %c0_54] : memref<9x128x128xbf16, #tpu.memory_space<vmem>>, vector<1x128x128xbf16>
    %46 = vector.shape_cast %45 : vector<1x128x128xbf16> to vector<128x128xbf16>
    %cst_55 = arith.constant dense<0.000000e+00> : vector<20x128xf32>
    %47 = tpu.matmul %44, %46, %cst_55 {dimension_numbers = #tpu.dot_dimension_numbers<[1], [0], [0], [1], [0, 0, 1, 1], [], []>} : vector<20x128xbf16>, vector<128x128xbf16>, vector<20x128xf32> -> vector<20x128xf32>
    %48 = arith.addf %42, %47 : vector<20x128xf32>
    %c0_56 = arith.constant 0 : index
    %c0_57 = arith.constant 0 : index
    %c6_58 = arith.constant 6 : index
    %c0_59 = arith.constant 0 : index
    %49 = vector.load %arg1[%c0_56, %c0_57, %c6_58, %c0_59] : memref<4x1x30x128xbf16, #tpu.memory_space<vmem>>, vector<1x1x20x128xbf16>
    %50 = vector.shape_cast %49 : vector<1x1x20x128xbf16> to vector<20x128xbf16>
    %c8 = arith.constant 8 : index
    %c0_60 = arith.constant 0 : index
    %c0_61 = arith.constant 0 : index
    %51 = vector.load %arg2[%c8, %c0_60, %c0_61] : memref<9x128x128xbf16, #tpu.memory_space<vmem>>, vector<1x128x128xbf16>
    %52 = vector.shape_cast %51 : vector<1x128x128xbf16> to vector<128x128xbf16>
    %cst_62 = arith.constant dense<0.000000e+00> : vector<20x128xf32>
    %53 = tpu.matmul %50, %52, %cst_62 {dimension_numbers = #tpu.dot_dimension_numbers<[1], [0], [0], [1], [0, 0, 1, 1], [], []>} : vector<20x128xbf16>, vector<128x128xbf16>, vector<20x128xf32> -> vector<20x128xf32>
    %54 = arith.addf %48, %53 : vector<20x128xf32>
    %c0_63 = arith.constant 0 : index
    %c0_64 = arith.constant 0 : index
    %55 = vector.load %arg3[%c0_63, %c0_64] : memref<1x128xf32, #tpu.memory_space<vmem>>, vector<1x128xf32>
    %56 = vector.broadcast %55 : vector<1x128xf32> to vector<20x128xf32>
    %57 = arith.addf %54, %56 : vector<20x128xf32>
    %cst_65 = arith.constant 0.000000e+00 : f32
    %58 = vector.broadcast %cst_65 : f32 to vector<20x128xf32>
    %59 = arith.maximumf %57, %58 : vector<20x128xf32>
    %60 = arith.truncf %59 : vector<20x128xf32> to vector<20x128xbf16>
    %c0_66 = arith.constant 0 : index
    %c0_67 = arith.constant 0 : index
    %c0_68 = arith.constant 0 : index
    %61 = vector.load %arg4[%c0_66, %c0_67, %c0_68] : memref<1x20x128xbf16, #tpu.memory_space<vmem>>, vector<1x20x128xbf16>
    %62 = vector.shape_cast %61 : vector<1x20x128xbf16> to vector<20x128xbf16>
    %63 = vector.shape_cast %60 : vector<20x128xbf16> to vector<1x20x128xbf16>
    tpu.vector_store %arg4[%c0_66, %c0_67, %c0_68], %63 {strides = array<i32>} : memref<1x20x128xbf16, #tpu.memory_space<vmem>>, vector<1x20x128xbf16>,
    return
  }
  func.func @transform_0(%arg0: i32) -> (i32, i32, i32, i32) {
    %c0_i32 = arith.constant 0 : i32
    %c0_i32_0 = arith.constant 0 : i32
    %c0_i32_1 = arith.constant 0 : i32
    %c0_i32_2 = arith.constant 0 : i32
    return %c0_i32, %arg0, %c0_i32_0, %c0_i32_1 : i32, i32, i32, i32
  }
  func.func @transform_1(%arg0: i32) -> (i32, i32, i32) {
    %c0_i32 = arith.constant 0 : i32
    %c0_i32_0 = arith.constant 0 : i32
    %c0_i32_1 = arith.constant 0 : i32
    %c0_i32_2 = arith.constant 0 : i32
    return %c0_i32, %c0_i32_0, %c0_i32_1 : i32, i32, i32
  }
  func.func @transform_2(%arg0: i32) -> (i32, i32) {
    %c0_i32 = arith.constant 0 : i32
    %c0_i32_0 = arith.constant 0 : i32
    %c0_i32_1 = arith.constant 0 : i32
    return %c0_i32, %c0_i32_0 : i32, i32
  }
  func.func @transform_3(%arg0: i32) -> (i32, i32, i32) {
    %c0_i32 = arith.constant 0 : i32
    %c0_i32_0 = arith.constant 0 : i32
    %c0_i32_1 = arith.constant 0 : i32
    return %arg0, %c0_i32, %c0_i32_0 : i32, i32, i32
  }
}

module attributes {stable_mosaic.version = 11 : i64} {
  func.func @kernel(%arg0: i32, %arg1: memref<1x1x42x128xbf16, #tpu.memory_space<vmem>>, %arg2: memref<9x128x128xbf16, #tpu.memory_space<vmem>>, %arg3: memref<1x128xf32, #tpu.memory_space<vmem>>, %arg4: memref<1x24x128xbf16, #tpu.memory_space<vmem>>, %arg5: memref<128x128xbf16, #tpu.memory_space<vmem>>, %arg6: memref<1x128xf32, #tpu.memory_space<vmem>>, %arg7: memref<1x24x128xbf16, #tpu.memory_space<vmem>>) attributes {dimension_semantics = [#tpu.dimension_semantics<parallel>], iteration_bounds = array<i64: 2>, scalar_prefetch = 0 : i64, scratch_operands = 0 : i64, tpu.core_type = #tpu.core_type<tc>, window_params = [{transform_indices = @transform_0, window_bounds = array<i64: 1, 1, 42, 128>}, {pipeline_mode = #tpu.pipeline_mode<synchronous>, transform_indices = @transform_1, window_bounds = array<i64: 9, 128, 128>}, {pipeline_mode = #tpu.pipeline_mode<synchronous>, transform_indices = @transform_2, window_bounds = array<i64: 1, 128>}, {transform_indices = @transform_3, window_bounds = array<i64: 1, 24, 128>}, {pipeline_mode = #tpu.pipeline_mode<synchronous>, transform_indices = @transform_4, window_bounds = array<i64: 128, 128>}, {pipeline_mode = #tpu.pipeline_mode<synchronous>, transform_indices = @transform_5, window_bounds = array<i64: 1, 128>}, {transform_indices = @transform_6, window_bounds = array<i64: 1, 24, 128>}]} {
    %c0 = arith.constant 0 : index
    %c0_0 = arith.constant 0 : index
    %c0_1 = arith.constant 0 : index
    %0 = vector.load %arg4[%c0, %c0_0, %c0_1] : memref<1x24x128xbf16, #tpu.memory_space<vmem>>, vector<1x24x128xbf16>
    %1 = vector.shape_cast %0 : vector<1x24x128xbf16> to vector<24x128xbf16>
    %c0_2 = arith.constant 0 : index
    %c0_3 = arith.constant 0 : index
    %2 = vector.load %arg5[%c0_2, %c0_3] : memref<128x128xbf16, #tpu.memory_space<vmem>>, vector<128x128xbf16>
    %cst = arith.constant dense<0.000000e+00> : vector<24x128xf32>
    %3 = tpu.matmul %1, %2, %cst {dimension_numbers = #tpu.dot_dimension_numbers<[1], [0], [0], [1], [0, 0, 1, 1], [], []>} : vector<24x128xbf16>, vector<128x128xbf16>, vector<24x128xf32> -> vector<24x128xf32>
    %c0_4 = arith.constant 0 : index
    %c0_5 = arith.constant 0 : index
    %4 = vector.load %arg6[%c0_4, %c0_5] : memref<1x128xf32, #tpu.memory_space<vmem>>, vector<1x128xf32>
    %5 = vector.broadcast %4 : vector<1x128xf32> to vector<24x128xf32>
    %6 = arith.addf %3, %5 : vector<24x128xf32>
    %c0_6 = arith.constant 0 : index
    %c0_7 = arith.constant 0 : index
    %c0_8 = arith.constant 0 : index
    %c0_9 = arith.constant 0 : index
    %7 = vector.load %arg1[%c0_6, %c0_7, %c0_8, %c0_9] : memref<1x1x42x128xbf16, #tpu.memory_space<vmem>>, vector<1x1x24x128xbf16>
    %8 = vector.shape_cast %7 : vector<1x1x24x128xbf16> to vector<24x128xbf16>
    %c0_10 = arith.constant 0 : index
    %c0_11 = arith.constant 0 : index
    %c0_12 = arith.constant 0 : index
    %9 = vector.load %arg2[%c0_10, %c0_11, %c0_12] : memref<9x128x128xbf16, #tpu.memory_space<vmem>>, vector<1x128x128xbf16>
    %10 = vector.shape_cast %9 : vector<1x128x128xbf16> to vector<128x128xbf16>
    %cst_13 = arith.constant dense<0.000000e+00> : vector<24x128xf32>
    %11 = tpu.matmul %8, %10, %cst_13 {dimension_numbers = #tpu.dot_dimension_numbers<[1], [0], [0], [1], [0, 0, 1, 1], [], []>} : vector<24x128xbf16>, vector<128x128xbf16>, vector<24x128xf32> -> vector<24x128xf32>
    %12 = arith.addf %6, %11 : vector<24x128xf32>
    %c0_14 = arith.constant 0 : index
    %c0_15 = arith.constant 0 : index
    %c1 = arith.constant 1 : index
    %c0_16 = arith.constant 0 : index
    %13 = vector.load %arg1[%c0_14, %c0_15, %c1, %c0_16] : memref<1x1x42x128xbf16, #tpu.memory_space<vmem>>, vector<1x1x24x128xbf16>
    %14 = vector.shape_cast %13 : vector<1x1x24x128xbf16> to vector<24x128xbf16>
    %c1_17 = arith.constant 1 : index
    %c0_18 = arith.constant 0 : index
    %c0_19 = arith.constant 0 : index
    %15 = vector.load %arg2[%c1_17, %c0_18, %c0_19] : memref<9x128x128xbf16, #tpu.memory_space<vmem>>, vector<1x128x128xbf16>
    %16 = vector.shape_cast %15 : vector<1x128x128xbf16> to vector<128x128xbf16>
    %cst_20 = arith.constant dense<0.000000e+00> : vector<24x128xf32>
    %17 = tpu.matmul %14, %16, %cst_20 {dimension_numbers = #tpu.dot_dimension_numbers<[1], [0], [0], [1], [0, 0, 1, 1], [], []>} : vector<24x128xbf16>, vector<128x128xbf16>, vector<24x128xf32> -> vector<24x128xf32>
    %18 = arith.addf %12, %17 : vector<24x128xf32>
    %c0_21 = arith.constant 0 : index
    %c0_22 = arith.constant 0 : index
    %c2 = arith.constant 2 : index
    %c0_23 = arith.constant 0 : index
    %19 = vector.load %arg1[%c0_21, %c0_22, %c2, %c0_23] : memref<1x1x42x128xbf16, #tpu.memory_space<vmem>>, vector<1x1x24x128xbf16>
    %20 = vector.shape_cast %19 : vector<1x1x24x128xbf16> to vector<24x128xbf16>
    %c2_24 = arith.constant 2 : index
    %c0_25 = arith.constant 0 : index
    %c0_26 = arith.constant 0 : index
    %21 = vector.load %arg2[%c2_24, %c0_25, %c0_26] : memref<9x128x128xbf16, #tpu.memory_space<vmem>>, vector<1x128x128xbf16>
    %22 = vector.shape_cast %21 : vector<1x128x128xbf16> to vector<128x128xbf16>
    %cst_27 = arith.constant dense<0.000000e+00> : vector<24x128xf32>
    %23 = tpu.matmul %20, %22, %cst_27 {dimension_numbers = #tpu.dot_dimension_numbers<[1], [0], [0], [1], [0, 0, 1, 1], [], []>} : vector<24x128xbf16>, vector<128x128xbf16>, vector<24x128xf32> -> vector<24x128xf32>
    %24 = arith.addf %18, %23 : vector<24x128xf32>
    %c0_28 = arith.constant 0 : index
    %c0_29 = arith.constant 0 : index
    %c6 = arith.constant 6 : index
    %c0_30 = arith.constant 0 : index
    %25 = vector.load %arg1[%c0_28, %c0_29, %c6, %c0_30] : memref<1x1x42x128xbf16, #tpu.memory_space<vmem>>, vector<1x1x24x128xbf16>
    %26 = vector.shape_cast %25 : vector<1x1x24x128xbf16> to vector<24x128xbf16>
    %c3 = arith.constant 3 : index
    %c0_31 = arith.constant 0 : index
    %c0_32 = arith.constant 0 : index
    %27 = vector.load %arg2[%c3, %c0_31, %c0_32] : memref<9x128x128xbf16, #tpu.memory_space<vmem>>, vector<1x128x128xbf16>
    %28 = vector.shape_cast %27 : vector<1x128x128xbf16> to vector<128x128xbf16>
    %cst_33 = arith.constant dense<0.000000e+00> : vector<24x128xf32>
    %29 = tpu.matmul %26, %28, %cst_33 {dimension_numbers = #tpu.dot_dimension_numbers<[1], [0], [0], [1], [0, 0, 1, 1], [], []>} : vector<24x128xbf16>, vector<128x128xbf16>, vector<24x128xf32> -> vector<24x128xf32>
    %30 = arith.addf %24, %29 : vector<24x128xf32>
    %c0_34 = arith.constant 0 : index
    %c0_35 = arith.constant 0 : index
    %c7 = arith.constant 7 : index
    %c0_36 = arith.constant 0 : index
    %31 = vector.load %arg1[%c0_34, %c0_35, %c7, %c0_36] : memref<1x1x42x128xbf16, #tpu.memory_space<vmem>>, vector<1x1x24x128xbf16>
    %32 = vector.shape_cast %31 : vector<1x1x24x128xbf16> to vector<24x128xbf16>
    %c4 = arith.constant 4 : index
    %c0_37 = arith.constant 0 : index
    %c0_38 = arith.constant 0 : index
    %33 = vector.load %arg2[%c4, %c0_37, %c0_38] : memref<9x128x128xbf16, #tpu.memory_space<vmem>>, vector<1x128x128xbf16>
    %34 = vector.shape_cast %33 : vector<1x128x128xbf16> to vector<128x128xbf16>
    %cst_39 = arith.constant dense<0.000000e+00> : vector<24x128xf32>
    %35 = tpu.matmul %32, %34, %cst_39 {dimension_numbers = #tpu.dot_dimension_numbers<[1], [0], [0], [1], [0, 0, 1, 1], [], []>} : vector<24x128xbf16>, vector<128x128xbf16>, vector<24x128xf32> -> vector<24x128xf32>
    %36 = arith.addf %30, %35 : vector<24x128xf32>
    %c0_40 = arith.constant 0 : index
    %c0_41 = arith.constant 0 : index
    %c8 = arith.constant 8 : index
    %c0_42 = arith.constant 0 : index
    %37 = vector.load %arg1[%c0_40, %c0_41, %c8, %c0_42] : memref<1x1x42x128xbf16, #tpu.memory_space<vmem>>, vector<1x1x24x128xbf16>
    %38 = vector.shape_cast %37 : vector<1x1x24x128xbf16> to vector<24x128xbf16>
    %c5 = arith.constant 5 : index
    %c0_43 = arith.constant 0 : index
    %c0_44 = arith.constant 0 : index
    %39 = vector.load %arg2[%c5, %c0_43, %c0_44] : memref<9x128x128xbf16, #tpu.memory_space<vmem>>, vector<1x128x128xbf16>
    %40 = vector.shape_cast %39 : vector<1x128x128xbf16> to vector<128x128xbf16>
    %cst_45 = arith.constant dense<0.000000e+00> : vector<24x128xf32>
    %41 = tpu.matmul %38, %40, %cst_45 {dimension_numbers = #tpu.dot_dimension_numbers<[1], [0], [0], [1], [0, 0, 1, 1], [], []>} : vector<24x128xbf16>, vector<128x128xbf16>, vector<24x128xf32> -> vector<24x128xf32>
    %42 = arith.addf %36, %41 : vector<24x128xf32>
    %c0_46 = arith.constant 0 : index
    %c0_47 = arith.constant 0 : index
    %c12 = arith.constant 12 : index
    %c0_48 = arith.constant 0 : index
    %43 = vector.load %arg1[%c0_46, %c0_47, %c12, %c0_48] : memref<1x1x42x128xbf16, #tpu.memory_space<vmem>>, vector<1x1x24x128xbf16>
    %44 = vector.shape_cast %43 : vector<1x1x24x128xbf16> to vector<24x128xbf16>
    %c6_49 = arith.constant 6 : index
    %c0_50 = arith.constant 0 : index
    %c0_51 = arith.constant 0 : index
    %45 = vector.load %arg2[%c6_49, %c0_50, %c0_51] : memref<9x128x128xbf16, #tpu.memory_space<vmem>>, vector<1x128x128xbf16>
    %46 = vector.shape_cast %45 : vector<1x128x128xbf16> to vector<128x128xbf16>
    %cst_52 = arith.constant dense<0.000000e+00> : vector<24x128xf32>
    %47 = tpu.matmul %44, %46, %cst_52 {dimension_numbers = #tpu.dot_dimension_numbers<[1], [0], [0], [1], [0, 0, 1, 1], [], []>} : vector<24x128xbf16>, vector<128x128xbf16>, vector<24x128xf32> -> vector<24x128xf32>
    %48 = arith.addf %42, %47 : vector<24x128xf32>
    %c0_53 = arith.constant 0 : index
    %c0_54 = arith.constant 0 : index
    %c13 = arith.constant 13 : index
    %c0_55 = arith.constant 0 : index
    %49 = vector.load %arg1[%c0_53, %c0_54, %c13, %c0_55] : memref<1x1x42x128xbf16, #tpu.memory_space<vmem>>, vector<1x1x24x128xbf16>
    %50 = vector.shape_cast %49 : vector<1x1x24x128xbf16> to vector<24x128xbf16>
    %c7_56 = arith.constant 7 : index
    %c0_57 = arith.constant 0 : index
    %c0_58 = arith.constant 0 : index
    %51 = vector.load %arg2[%c7_56, %c0_57, %c0_58] : memref<9x128x128xbf16, #tpu.memory_space<vmem>>, vector<1x128x128xbf16>
    %52 = vector.shape_cast %51 : vector<1x128x128xbf16> to vector<128x128xbf16>
    %cst_59 = arith.constant dense<0.000000e+00> : vector<24x128xf32>
    %53 = tpu.matmul %50, %52, %cst_59 {dimension_numbers = #tpu.dot_dimension_numbers<[1], [0], [0], [1], [0, 0, 1, 1], [], []>} : vector<24x128xbf16>, vector<128x128xbf16>, vector<24x128xf32> -> vector<24x128xf32>
    %54 = arith.addf %48, %53 : vector<24x128xf32>
    %c0_60 = arith.constant 0 : index
    %c0_61 = arith.constant 0 : index
    %c14 = arith.constant 14 : index
    %c0_62 = arith.constant 0 : index
    %55 = vector.load %arg1[%c0_60, %c0_61, %c14, %c0_62] : memref<1x1x42x128xbf16, #tpu.memory_space<vmem>>, vector<1x1x24x128xbf16>
    %56 = vector.shape_cast %55 : vector<1x1x24x128xbf16> to vector<24x128xbf16>
    %c8_63 = arith.constant 8 : index
    %c0_64 = arith.constant 0 : index
    %c0_65 = arith.constant 0 : index
    %57 = vector.load %arg2[%c8_63, %c0_64, %c0_65] : memref<9x128x128xbf16, #tpu.memory_space<vmem>>, vector<1x128x128xbf16>
    %58 = vector.shape_cast %57 : vector<1x128x128xbf16> to vector<128x128xbf16>
    %cst_66 = arith.constant dense<0.000000e+00> : vector<24x128xf32>
    %59 = tpu.matmul %56, %58, %cst_66 {dimension_numbers = #tpu.dot_dimension_numbers<[1], [0], [0], [1], [0, 0, 1, 1], [], []>} : vector<24x128xbf16>, vector<128x128xbf16>, vector<24x128xf32> -> vector<24x128xf32>
    %60 = arith.addf %54, %59 : vector<24x128xf32>
    %c0_67 = arith.constant 0 : index
    %c0_68 = arith.constant 0 : index
    %61 = vector.load %arg3[%c0_67, %c0_68] : memref<1x128xf32, #tpu.memory_space<vmem>>, vector<1x128xf32>
    %62 = vector.broadcast %61 : vector<1x128xf32> to vector<24x128xf32>
    %63 = arith.addf %60, %62 : vector<24x128xf32>
    %cst_69 = arith.constant 0.000000e+00 : f32
    %64 = vector.broadcast %cst_69 : f32 to vector<24x128xf32>
    %65 = arith.maximumf %63, %64 : vector<24x128xf32>
    %66 = arith.truncf %65 : vector<24x128xf32> to vector<24x128xbf16>
    %c0_70 = arith.constant 0 : index
    %c0_71 = arith.constant 0 : index
    %c0_72 = arith.constant 0 : index
    %67 = vector.load %arg7[%c0_70, %c0_71, %c0_72] : memref<1x24x128xbf16, #tpu.memory_space<vmem>>, vector<1x24x128xbf16>
    %68 = vector.shape_cast %67 : vector<1x24x128xbf16> to vector<24x128xbf16>
    %69 = vector.shape_cast %66 : vector<24x128xbf16> to vector<1x24x128xbf16>
    tpu.vector_store %arg7[%c0_70, %c0_71, %c0_72], %69 {strides = array<i32>} : memref<1x24x128xbf16, #tpu.memory_space<vmem>>, vector<1x24x128xbf16>,
    return
  }
  func.func @transform_0(%arg0: i32) -> (i32, i32, i32, i32) {
    %c0_i32 = arith.constant 0 : i32
    %c0_i32_0 = arith.constant 0 : i32
    %c0_i32_1 = arith.constant 0 : i32
    %c0_i32_2 = arith.constant 0 : i32
    return %c0_i32, %arg0, %c0_i32_0, %c0_i32_1 : i32, i32, i32, i32
  }
  func.func @transform_1(%arg0: i32) -> (i32, i32, i32) {
    %c0_i32 = arith.constant 0 : i32
    %c0_i32_0 = arith.constant 0 : i32
    %c0_i32_1 = arith.constant 0 : i32
    %c0_i32_2 = arith.constant 0 : i32
    return %c0_i32, %c0_i32_0, %c0_i32_1 : i32, i32, i32
  }
  func.func @transform_2(%arg0: i32) -> (i32, i32) {
    %c0_i32 = arith.constant 0 : i32
    %c0_i32_0 = arith.constant 0 : i32
    %c0_i32_1 = arith.constant 0 : i32
    return %c0_i32, %c0_i32_0 : i32, i32
  }
  func.func @transform_3(%arg0: i32) -> (i32, i32, i32) {
    %c0_i32 = arith.constant 0 : i32
    %c0_i32_0 = arith.constant 0 : i32
    %c0_i32_1 = arith.constant 0 : i32
    return %arg0, %c0_i32, %c0_i32_0 : i32, i32, i32
  }
  func.func @transform_4(%arg0: i32) -> (i32, i32) {
    %c0_i32 = arith.constant 0 : i32
    %c0_i32_0 = arith.constant 0 : i32
    %c0_i32_1 = arith.constant 0 : i32
    return %c0_i32, %c0_i32_0 : i32, i32
  }
  func.func @transform_5(%arg0: i32) -> (i32, i32) {
    %c0_i32 = arith.constant 0 : i32
    %c0_i32_0 = arith.constant 0 : i32
    %c0_i32_1 = arith.constant 0 : i32
    return %c0_i32, %c0_i32_0 : i32, i32
  }
  func.func @transform_6(%arg0: i32) -> (i32, i32, i32) {
    %c0_i32 = arith.constant 0 : i32
    %c0_i32_0 = arith.constant 0 : i32
    %c0_i32_1 = arith.constant 0 : i32
    return %arg0, %c0_i32, %c0_i32_0 : i32, i32, i32
  }
}

module attributes {stable_mosaic.version = 11 : i64} {
  func.func @_pool_fc_kernel(%arg0: memref<2x16x128xbf16, #tpu.memory_space<vmem>>, %arg1: memref<128x128xf32, #tpu.memory_space<vmem>>, %arg2: memref<1x128xf32, #tpu.memory_space<vmem>>, %arg3: memref<2x128xf32, #tpu.memory_space<vmem>>) attributes {dimension_semantics = [], scalar_prefetch = 0 : i64, scratch_operands = 0 : i64, tpu.core_type = #tpu.core_type<tc>} {
    %c0 = arith.constant 0 : index
    %c0_0 = arith.constant 0 : index
    %c0_1 = arith.constant 0 : index
    %0 = vector.load %arg0[%c0, %c0_0, %c0_1] : memref<2x16x128xbf16, #tpu.memory_space<vmem>>, vector<2x16x128xbf16>
    %1 = arith.extf %0 : vector<2x16x128xbf16> to vector<2x16x128xf32>
    %cst = arith.constant dense<0.000000e+00> : vector<2x128xf32>
    %2 = vector.multi_reduction <add>, %1, %cst [1] : vector<2x16x128xf32> to vector<2x128xf32>
    %cst_2 = arith.constant 1.600000e+01 : f32
    %3 = vector.broadcast %cst_2 : f32 to vector<2x128xf32>
    %4 = arith.divf %2, %3 : vector<2x128xf32>
    %c0_3 = arith.constant 0 : index
    %c0_4 = arith.constant 0 : index
    %5 = vector.load %arg1[%c0_3, %c0_4] : memref<128x128xf32, #tpu.memory_space<vmem>>, vector<128x128xf32>
    %cst_5 = arith.constant dense<0.000000e+00> : vector<2x128xf32>
    %6 = tpu.matmul %4, %5, %cst_5 {dimension_numbers = #tpu.dot_dimension_numbers<[1], [0], [0], [1], [0, 0, 1, 1], [], []>} : vector<2x128xf32>, vector<128x128xf32>, vector<2x128xf32> -> vector<2x128xf32>
    %c0_6 = arith.constant 0 : index
    %c0_7 = arith.constant 0 : index
    %7 = vector.load %arg2[%c0_6, %c0_7] : memref<1x128xf32, #tpu.memory_space<vmem>>, vector<1x128xf32>
    %8 = vector.broadcast %7 : vector<1x128xf32> to vector<2x128xf32>
    %9 = arith.addf %6, %8 : vector<2x128xf32>
    %c0_8 = arith.constant 0 : index
    %c0_9 = arith.constant 0 : index
    %10 = vector.load %arg3[%c0_8, %c0_9] : memref<2x128xf32, #tpu.memory_space<vmem>>, vector<2x128xf32>
    tpu.vector_store %arg3[%c0_8, %c0_9], %9 {strides = array<i32>} : memref<2x128xf32, #tpu.memory_space<vmem>>, vector<2x128xf32>,
    return
  }
}

</mosaic_0001>

<llo_original>
// kernel: _lambda_.7
$region0: #{_lambda_.7}
  #allocation0 [shape = 'u32[]', space=smem, size = 0x4, offset = 0x4, fixed_abs, tag = 'smem constant byte address 0x4 - core index']
  #allocation1 [shape = 'u32[144,128]{1,0:T(1,128)}', space=vmem, size = 0x12000, scoped, tag = 'internal scratch']
  %s0 = inlined_call_operand.vmem [shape: bf16[2,256,256], index: 0, kind: input, shape index: {}]
  %s1 = inlined_call_operand.vmem [shape: bf16[256,128], index: 1, kind: input, shape index: {}]
  %s2 = inlined_call_operand.vmem [shape: f32[1,128], index: 2, kind: input, shape index: {}]
  %s3 = inlined_call_operand.vmem [shape: bf16[2,256,128], index: 3, kind: output, shape index: {}]
  %s4 = sld [smem:[#allocation0]]
  $region45: #{_lambda_.7} parent=0
    _
  %s6 = ssub.s32 1, %s4
  %s7 = scalar_select 0, %s6, %s4
  loop: start=0, step=1, limit=4
  $region2: #{_lambda_.7} parent=0 // loop_pre_header
    _
  $region3: #{_lambda_.7} parent=0 // loop_header
    %s9 = sphi 0, %s13
    %p10 = scmp.ge.s32.totalorder %s9, 4
    %s19 = sphi 0, %s21
    %s22 = sphi 0, %s19
    %s23 = sphi 0, %s22
    %s39 = sphi 0, %s23
    %s43 = sphi 0, %s43
    %s45 = sphi 0, %s43
    %s46 = sphi 0, %s45
    %s60 = sphi 0, %s46
    %s64 = sphi 0, %s64
    %s66 = sphi 0, %s64
    %s67 = sphi 0, %s66
    %s81 = sphi 0, %s67
    %s87 = sphi 0, %s89
    %s90 = sphi 0, %s87
    %s91 = sphi 0, %s90
    %s107 = sphi 0, %s91
  $region4: #{_lambda_.7} parent=0 // loop_header_branch
    %12 = sbr.rel (%p10) target = $region8
  $region5: #{_lambda_.7} parent=0 // loop_body
    %s14 = ssub.s32 %s9, 1
    %s15 = ssub.s32 %s9, 2
    %s16 = sadd.s32 %s9, 1
    %s17 = ssub.s32 %s9, %s16
    %p18 = scmp.eq.s32.totalorder %s17, 0
    %s20 = sadd.s32 %s19, 1
    %s21 = scalar_select %p18, %s19, %s20
    %p24 = pneg %p18
    %p25 = scmp.eq.s32.totalorder %s9, 1
    %p26 = por %p24, %p25
    %p27 = scmp.ne.s32.totalorder %s19, %s22
    %p28 = scmp.eq.s32.totalorder %s9, 0
    %p29 = por %p27, %p28
    %p30 = scmp.ne.s32.totalorder %s19, %s22
    %p31 = scmp.eq.s32.totalorder %s14, 1
    %p32 = por %p30, %p31
    %p33 = scmp.ne.s32.totalorder %s22, %s23
    %p34 = scmp.eq.s32.totalorder %s14, 0
    %p35 = por %p33, %p34
    %p36 = scmp.ne.s32.totalorder %s22, %s23
    %p37 = scmp.eq.s32.totalorder %s15, 1
    %p38 = por %p36, %p37
    %p40 = scmp.ne.s32.totalorder %s23, %s39
    %p41 = scmp.eq.s32.totalorder %s15, 0
    %p42 = por %p40, %p41
    %s44 = sadd.s32 %s43, 1
    %p47 = scmp.eq.s32.totalorder %s9, 1
    %p48 = scmp.ne.s32.totalorder %s43, %s45
    %p49 = scmp.eq.s32.totalorder %s9, 0
    %p50 = por %p48, %p49
    %p51 = scmp.ne.s32.totalorder %s43, %s45
    %p52 = scmp.eq.s32.totalorder %s14, 1
    %p53 = por %p51, %p52
    %p54 = scmp.ne.s32.totalorder %s45, %s46
    %p55 = scmp.eq.s32.totalorder %s14, 0
    %p56 = por %p54, %p55
    %p57 = scmp.ne.s32.totalorder %s45, %s46
    %p58 = scmp.eq.s32.totalorder %s15, 1
    %p59 = por %p57, %p58
    %p61 = scmp.ne.s32.totalorder %s46, %s60
    %p62 = scmp.eq.s32.totalorder %s15, 0
    %p63 = por %p61, %p62
    %s65 = sadd.s32 %s64, 1
    %p68 = scmp.eq.s32.totalorder %s9, 1
    %p69 = scmp.ne.s32.totalorder %s64, %s66
    %p70 = scmp.eq.s32.totalorder %s9, 0
    %p71 = por %p69, %p70
    %p72 = scmp.ne.s32.totalorder %s64, %s66
    %p73 = scmp.eq.s32.totalorder %s14, 1
    %p74 = por %p72, %p73
    %p75 = scmp.ne.s32.totalorder %s66, %s67
    %p76 = scmp.eq.s32.totalorder %s14, 0
    %p77 = por %p75, %p76
    %p78 = scmp.ne.s32.totalorder %s66, %s67
    %p79 = scmp.eq.s32.totalorder %s15, 1
    %p80 = por %p78, %p79
    %p82 = scmp.ne.s32.totalorder %s67, %s81
    %p83 = scmp.eq.s32.totalorder %s15, 0
    %p84 = por %p82, %p83
    %s85 = ssub.s32 %s9, %s16
    %p86 = scmp.eq.s32.totalorder %s85, 0
    %s88 = sadd.s32 %s87, 1
    %s89 = scalar_select %p86, %s87, %s88
    %p92 = pneg %p86
    %p93 = scmp.eq.s32.totalorder %s9, 1
    %p94 = por %p92, %p93
    %p95 = scmp.ne.s32.totalorder %s87, %s90
    %p96 = scmp.eq.s32.totalorder %s9, 0
    %p97 = por %p95, %p96
    %p98 = scmp.ne.s32.totalorder %s87, %s90
    %p99 = scmp.eq.s32.totalorder %s14, 1
    %p100 = por %p98, %p99
    %p101 = scmp.ne.s32.totalorder %s90, %s91
    %p102 = scmp.eq.s32.totalorder %s14, 0
    %p103 = por %p101, %p102
    %p104 = scmp.ne.s32.totalorder %s90, %s91
    %p105 = scmp.eq.s32.totalorder %s15, 1
    %p106 = por %p104, %p105
    %p108 = scmp.ne.s32.totalorder %s91, %s107
    %p109 = scmp.eq.s32.totalorder %s15, 0
    %p110 = por %p108, %p109
    %p111 = scmp.le.s32.totalorder 1, %s9
    %p112 = scmp.lt.s32.totalorder %s9, 3
    %p113 = pnand %p111, %p112
    %p114 = pneg %p113
    // Predicated region
    $region9: #{_lambda_.7} parent=5 // pred_check
      _
    $region10: #{_lambda_.7} parent=5 // pred_check_branch
      %116 = sbr.rel (%p113) target = $region12
    $region11: #{_lambda_.7} parent=5 // pred_region
      %s117 = ssub.s32 %s9, 1
      // Predicated region
      $region13: #{_lambda_.7} parent=11 // pred_check
        %p118 = pneg %p56
      $region14: #{_lambda_.7} parent=11 // pred_check_branch
        %120 = sbr.rel (%p118) target = $region16
      $region15: #{_lambda_.7} parent=11 // pred_region
        _
      $region16: #{_lambda_.7} parent=11 // pred_fallthru
        _
      // Predicated region
      $region17: #{_lambda_.7} parent=11 // pred_check
        %p121 = pneg %p77
      $region18: #{_lambda_.7} parent=11 // pred_check_branch
        %123 = sbr.rel (%p121) target = $region20
      $region19: #{_lambda_.7} parent=11 // pred_region
        _
      $region20: #{_lambda_.7} parent=11 // pred_fallthru
        _
    $region12: #{_lambda_.7} parent=5 // pred_fallthru
      _
    %p124 = scmp.lt.s32.totalorder %s9, 2
    // Predicated region
    $region21: #{_lambda_.7} parent=5 // pred_check
      %p125 = pneg %p124
    $region22: #{_lambda_.7} parent=5 // pred_check_branch
      %127 = sbr.rel (%p125) target = $region24
    $region23: #{_lambda_.7} parent=5 // pred_region
      // Predicated region
      $region25: #{_lambda_.7} parent=23 // pred_check
        %p128 = pneg %p29
      $region26: #{_lambda_.7} parent=23 // pred_check_branch
        %130 = sbr.rel (%p128) target = $region28
      $region27: #{_lambda_.7} parent=23 // pred_region
        %p131 = scmp.lt.s32.totalorder %s9, 1
        %s132 = scalar_select %p131, %s9, 1
        %s133 = smul.addr %s132, 64
        %s134 = smul.addr %s133, 4
        %s135 = scalar_lea.vmem %s0, %s134
      $region28: #{_lambda_.7} parent=23 // pred_fallthru
        _
    $region24: #{_lambda_.7} parent=5 // pred_fallthru
      _
    %p136 = scmp.le.s32.totalorder 1, %s9
    %p137 = scmp.lt.s32.totalorder %s9, 3
    %p138 = pnand %p136, %p137
    %p139 = pneg %p138
    // Predicated region
    $region29: #{_lambda_.7} parent=5 // pred_check
      _
    $region30: #{_lambda_.7} parent=5 // pred_check_branch
      %141 = sbr.rel (%p138) target = $region32
    $region31: #{_lambda_.7} parent=5 // pred_region
      %s142 = ssub.s32 %s9, 1
      %p143 = scmp.lt.s32.totalorder %s14, 1
      %s144 = scalar_select %p143, %s14, 1
      %s145 = smul.addr %s144, 64
      %s146 = smul.addr %s145, 4
      %s147 = scalar_lea.vmem %s0, %s146
      %p148 = pneg %p35
      %p149 = pneg %p32
      %p150 = pneg %p56
      %p151 = pneg %p53
      %p152 = pneg %p77
      %p153 = pneg %p74
      %p154 = pneg %p103
      %p155 = pneg %p100
      %p156 = scmp.lt.s32.totalorder %s14, 1
      %s157 = scalar_select %p156, %s14, 1
      %s158 = smul.addr %s157, 32
      %s159 = smul.addr %s158, 4
      %s160 = scalar_lea.vmem %s3, %s159
      %p161 = scmp.lt.s32.totalorder %s14, 1
      %s162 = scalar_select %p161, %s14, 1
      %s163 = smul.addr %s162, 64
      %s164 = smul.addr %s163, 4
      %s165 = scalar_lea.vmem %s0, %s164
      %p166 = scmp.lt.s32.totalorder %s14, 1
      %s167 = scalar_select %p166, %s14, 1
      %s168 = smul.addr %s167, 32
      %s169 = smul.addr %s168, 4
      %s170 = scalar_lea.vmem %s3, %s169
      %v172 = vld [vmem:[%s165] sm:$0xff]
      %v173 = vld [vmem:[%s165 + $0x8] sm:$0xff]
      %v174 = vld [vmem:[%s165 + $0x10] sm:$0xff]
      %v175 = vld [vmem:[%s165 + $0x18] sm:$0xff]
      %v176 = vld [vmem:[%s165 + $0x20] sm:$0xff]
      %v177 = vld [vmem:[%s165 + $0x28] sm:$0xff]
      %v178 = vld [vmem:[%s165 + $0x30] sm:$0xff]
      %v179 = vld [vmem:[%s165 + $0x38] sm:$0xff]
      %v180 = vld [vmem:[%s165 + $0x40] sm:$0xff]
      %v181 = vld [vmem:[%s165 + $0x48] sm:$0xff]
      %v182 = vld [vmem:[%s165 + $0x50] sm:$0xff]
      %v183 = vld [vmem:[%s165 + $0x58] sm:$0xff]
      %v184 = vld [vmem:[%s165 + $0x60] sm:$0xff]
      %v185 = vld [vmem:[%s165 + $0x68] sm:$0xff]
      %v186 = vld [vmem:[%s165 + $0x70] sm:$0xff]
      %v187 = vld [vmem:[%s165 + $0x78] sm:$0xff]
      %v188 = vld [vmem:[%s165 + $0x80] sm:$0xff]
      %v189 = vld [vmem:[%s165 + $0x88] sm:$0xff]
      %v190 = vld [vmem:[%s165 + $0x90] sm:$0xff]
      %v191 = vld [vmem:[%s165 + $0x98] sm:$0xff]
      %v192 = vld [vmem:[%s165 + $0xa0] sm:$0xff]
      %v193 = vld [vmem:[%s165 + $0xa8] sm:$0xff]
      %v194 = vld [vmem:[%s165 + $0xb0] sm:$0xff]
      %v195 = vld [vmem:[%s165 + $0xb8] sm:$0xff]
      %v196 = vld [vmem:[%s165 + $0xc0] sm:$0xff]
      %v197 = vld [vmem:[%s165 + $0xc8] sm:$0xff]
      %v198 = vld [vmem:[%s165 + $0xd0] sm:$0xff]
      %v199 = vld [vmem:[%s165 + $0xd8] sm:$0xff]
      %v200 = vld [vmem:[%s165 + $0xe0] sm:$0xff]
      %v201 = vld [vmem:[%s165 + $0xe8] sm:$0xff]
      %v202 = vld [vmem:[%s165 + $0xf0] sm:$0xff]
      %v203 = vld [vmem:[%s165 + $0xf8] sm:$0xff]
      %v204 = vld [vmem:[%s1] sm:$0xf]
      %v205 = vld [vmem:[%s1 + $0x4] sm:$0xf]
      %v206 = vld [vmem:[%s1 + $0x8] sm:$0xf]
      %v207 = vld [vmem:[%s1 + $0xc] sm:$0xf]
      %v208 = vld [vmem:[%s1 + $0x10] sm:$0xf]
      %v209 = vld [vmem:[%s1 + $0x14] sm:$0xf]
      %v210 = vld [vmem:[%s1 + $0x18] sm:$0xf]
      %v211 = vld [vmem:[%s1 + $0x1c] sm:$0xf]
      %v212 = vld [vmem:[%s1 + $0x20] sm:$0xf]
      %v213 = vld [vmem:[%s1 + $0x24] sm:$0xf]
      %v214 = vld [vmem:[%s1 + $0x28] sm:$0xf]
      %v215 = vld [vmem:[%s1 + $0x2c] sm:$0xf]
      %v216 = vld [vmem:[%s1 + $0x30] sm:$0xf]
      %v217 = vld [vmem:[%s1 + $0x34] sm:$0xf]
      %v218 = vld [vmem:[%s1 + $0x38] sm:$0xf]
      %v219 = vld [vmem:[%s1 + $0x3c] sm:$0xf]
      %v220 = vld [vmem:[%s1 + $0x40] sm:$0xf]
      %v221 = vld [vmem:[%s1 + $0x44] sm:$0xf]
      %v222 = vld [vmem:[%s1 + $0x48] sm:$0xf]
      %v223 = vld [vmem:[%s1 + $0x4c] sm:$0xf]
      %v224 = vld [vmem:[%s1 + $0x50] sm:$0xf]
      %v225 = vld [vmem:[%s1 + $0x54] sm:$0xf]
      %v226 = vld [vmem:[%s1 + $0x58] sm:$0xf]
      %v227 = vld [vmem:[%s1 + $0x5c] sm:$0xf]
      %v228 = vld [vmem:[%s1 + $0x60] sm:$0xf]
      %v229 = vld [vmem:[%s1 + $0x64] sm:$0xf]
      %v230 = vld [vmem:[%s1 + $0x68] sm:$0xf]
      %v231 = vld [vmem:[%s1 + $0x6c] sm:$0xf]
      %v232 = vld [vmem:[%s1 + $0x70] sm:$0xf]
      %v233 = vld [vmem:[%s1 + $0x74] sm:$0xf]
      %v234 = vld [vmem:[%s1 + $0x78] sm:$0xf]
      %v235 = vld [vmem:[%s1 + $0x7c] sm:$0xf]
      %v236 = vld [vmem:[%s2] sm:$0x1]
      %v238 = vlaneseq
      %v239 = vshrl.u32 %v238, 7
      %v240 = vsub.s32 0, %v239
      %v241 = vrot.slane %v236, %v240
      %v275 = vunpack.c.l.b16 %v172
      %v276 = vunpack.c.h.b16 %v172
      %v277 = vunpack.c.l.b16 %v173
      %v278 = vunpack.c.h.b16 %v173
      %v279 = vunpack.c.l.b16 %v174
      %v280 = vunpack.c.h.b16 %v174
      %v281 = vunpack.c.l.b16 %v175
      %v282 = vunpack.c.h.b16 %v175
      %v283 = vunpack.c.l.b16 %v176
      %v284 = vunpack.c.h.b16 %v176
      %v285 = vunpack.c.l.b16 %v177
      %v286 = vunpack.c.h.b16 %v177
      %v287 = vunpack.c.l.b16 %v178
      %v288 = vunpack.c.h.b16 %v178
      %v289 = vunpack.c.l.b16 %v179
      %v290 = vunpack.c.h.b16 %v179
      %v291 = vunpack.c.l.b16 %v180
      %v292 = vunpack.c.h.b16 %v180
      %v293 = vunpack.c.l.b16 %v181
      %v294 = vunpack.c.h.b16 %v181
      %v295 = vunpack.c.l.b16 %v182
      %v296 = vunpack.c.h.b16 %v182
      %v297 = vunpack.c.l.b16 %v183
      %v298 = vunpack.c.h.b16 %v183
      %v299 = vunpack.c.l.b16 %v184
      %v300 = vunpack.c.h.b16 %v184
      %v301 = vunpack.c.l.b16 %v185
      %v302 = vunpack.c.h.b16 %v185
      %v303 = vunpack.c.l.b16 %v186
      %v304 = vunpack.c.h.b16 %v186
      %v305 = vunpack.c.l.b16 %v187
      %v306 = vunpack.c.h.b16 %v187
      %v307 = vunpack.c.l.b16 %v188
      %v308 = vunpack.c.h.b16 %v188
      %v309 = vunpack.c.l.b16 %v189
      %v310 = vunpack.c.h.b16 %v189
      %v311 = vunpack.c.l.b16 %v190
      %v312 = vunpack.c.h.b16 %v190
      %v313 = vunpack.c.l.b16 %v191
      %v314 = vunpack.c.h.b16 %v191
      %v315 = vunpack.c.l.b16 %v192
      %v316 = vunpack.c.h.b16 %v192
      %v317 = vunpack.c.l.b16 %v193
      %v318 = vunpack.c.h.b16 %v193
      %v319 = vunpack.c.l.b16 %v194
      %v320 = vunpack.c.h.b16 %v194
      %v321 = vunpack.c.l.b16 %v195
      %v322 = vunpack.c.h.b16 %v195
      %v323 = vunpack.c.l.b16 %v196
      %v324 = vunpack.c.h.b16 %v196
      %v325 = vunpack.c.l.b16 %v197
      %v326 = vunpack.c.h.b16 %v197
      %v327 = vunpack.c.l.b16 %v198
      %v328 = vunpack.c.h.b16 %v198
      %v329 = vunpack.c.l.b16 %v199
      %v330 = vunpack.c.h.b16 %v199
      %v331 = vunpack.c.l.b16 %v200
      %v332 = vunpack.c.h.b16 %v200
      %v333 = vunpack.c.l.b16 %v201
      %v334 = vunpack.c.h.b16 %v201
      %v335 = vunpack.c.l.b16 %v202
      %v336 = vunpack.c.h.b16 %v202
      %v337 = vunpack.c.l.b16 %v203
      %v338 = vunpack.c.h.b16 %v203
      %v339 = vpack.c.b16 %v277, %v275
      %v340 = vpack.c.b16 %v278, %v276
      %v341 = vpack.c.b16 %v281, %v279
      %v342 = vpack.c.b16 %v282, %v280
      %v343 = vpack.c.b16 %v285, %v283
      %v344 = vpack.c.b16 %v286, %v284
      %v345 = vpack.c.b16 %v289, %v287
      %v346 = vpack.c.b16 %v290, %v288
      %v347 = vpack.c.b16 %v293, %v291
      %v348 = vpack.c.b16 %v294, %v292
      %v349 = vpack.c.b16 %v297, %v295
      %v350 = vpack.c.b16 %v298, %v296
      %v351 = vpack.c.b16 %v301, %v299
      %v352 = vpack.c.b16 %v302, %v300
      %v353 = vpack.c.b16 %v305, %v303
      %v354 = vpack.c.b16 %v306, %v304
      %v355 = vpack.c.b16 %v309, %v307
      %v356 = vpack.c.b16 %v310, %v308
      %v357 = vpack.c.b16 %v313, %v311
      %v358 = vpack.c.b16 %v314, %v312
      %v359 = vpack.c.b16 %v317, %v315
      %v360 = vpack.c.b16 %v318, %v316
      %v361 = vpack.c.b16 %v321, %v319
      %v362 = vpack.c.b16 %v322, %v320
      %v363 = vpack.c.b16 %v325, %v323
      %v364 = vpack.c.b16 %v326, %v324
      %v365 = vpack.c.b16 %v329, %v327
      %v366 = vpack.c.b16 %v330, %v328
      %v367 = vpack.c.b16 %v333, %v331
      %v368 = vpack.c.b16 %v334, %v332
      %v369 = vpack.c.b16 %v337, %v335
      %v370 = vpack.c.b16 %v338, %v336
      %v435 = vunpack.c.l.b16 %v204
      %v436 = vunpack.c.l.b16 %v205
      %v437 = vunpack.c.l.b16 %v206
      %v438 = vunpack.c.l.b16 %v207
      %v439 = vunpack.c.l.b16 %v208
      %v440 = vunpack.c.l.b16 %v209
      %v441 = vunpack.c.l.b16 %v210
      %v442 = vunpack.c.l.b16 %v211
      %v443 = vunpack.c.l.b16 %v212
      %v444 = vunpack.c.l.b16 %v213
      %v445 = vunpack.c.l.b16 %v214
      %v446 = vunpack.c.l.b16 %v215
      %v447 = vunpack.c.l.b16 %v216
      %v448 = vunpack.c.l.b16 %v217
      %v449 = vunpack.c.l.b16 %v218
      %v450 = vunpack.c.l.b16 %v219
      %v451 = vunpack.c.l.b16 %v220
      %v452 = vunpack.c.l.b16 %v221
      %v453 = vunpack.c.l.b16 %v222
      %v454 = vunpack.c.l.b16 %v223
      %v455 = vunpack.c.l.b16 %v224
      %v456 = vunpack.c.l.b16 %v225
      %v457 = vunpack.c.l.b16 %v226
      %v458 = vunpack.c.l.b16 %v227
      %v459 = vunpack.c.l.b16 %v228
      %v460 = vunpack.c.l.b16 %v229
      %v461 = vunpack.c.l.b16 %v230
      %v462 = vunpack.c.l.b16 %v231
      %v463 = vunpack.c.l.b16 %v232
      %v464 = vunpack.c.l.b16 %v233
      %v465 = vunpack.c.l.b16 %v234
      %v466 = vunpack.c.l.b16 %v235
      %v467 = vpack.c.b16 %v436, %v435
      %v468 = vpack.c.b16 %v438, %v437
      %v469 = vpack.c.b16 %v440, %v439
      %v470 = vpack.c.b16 %v442, %v441
      %v471 = vpack.c.b16 %v444, %v443
      %v472 = vpack.c.b16 %v446, %v445
      %v473 = vpack.c.b16 %v448, %v447
      %v474 = vpack.c.b16 %v450, %v449
      %v475 = vpack.c.b16 %v452, %v451
      %v476 = vpack.c.b16 %v454, %v453
      %v477 = vpack.c.b16 %v456, %v455
      %v478 = vpack.c.b16 %v458, %v457
      %v479 = vpack.c.b16 %v460, %v459
      %v480 = vpack.c.b16 %v462, %v461
      %v481 = vpack.c.b16 %v464, %v463
      %v482 = vpack.c.b16 %v466, %v465
      %499 = vmatprep.subr.bf16.mxu0 0
      %500 = vmatpush1.bf16.msra.mxu0 %v474
      %501 = vmatprep.subr.bf16.mxu0 0
      %502 = vmatpush1.bf16.msra.mxu0 %v473
      %503 = vmatprep.subr.bf16.mxu0 0
      %504 = vmatpush1.bf16.msra.mxu0 %v472
      %505 = vmatprep.subr.bf16.mxu0 0
      %506 = vmatpush1.bf16.msra.mxu0 %v471
      %507 = vmatprep.subr.bf16.mxu0 0
      %508 = vmatpush1.bf16.msra.mxu0 %v470
      %509 = vmatprep.subr.bf16.mxu0 0
      %510 = vmatpush1.bf16.msra.mxu0 %v469
      %511 = vmatprep.subr.bf16.mxu0 0
      %512 = vmatpush1.bf16.msra.mxu0 %v468
      %513 = vmatprep.subr.bf16.mxu0 0
      %514 = vmatpush1.bf16.msra.mxu0 %v467
      %515 = vmatprep.subr.bf16.mxu0 0
      %516 = vmatpush2.bf16.msra.mxu0 %v482
      %517 = vmatprep.subr.bf16.mxu0 0
      %518 = vmatpush2.bf16.msra.mxu0 %v481
      %519 = vmatprep.subr.bf16.mxu0 0
      %520 = vmatpush2.bf16.msra.mxu0 %v480
      %521 = vmatprep.subr.bf16.mxu0 0
      %522 = vmatpush2.bf16.msra.mxu0 %v479
      %523 = vmatprep.subr.bf16.mxu0 0
      %524 = vmatpush2.bf16.msra.mxu0 %v478
      %525 = vmatprep.subr.bf16.mxu0 0
      %526 = vmatpush2.bf16.msra.mxu0 %v477
      %527 = vmatprep.subr.bf16.mxu0 0
      %528 = vmatpush2.bf16.msra.mxu0 %v476
      %529 = vmatprep.subr.bf16.mxu0 0
      %530 = vmatpush2.bf16.msra.mxu0 %v475
      %531 = vmatprep.mubr.bf16.mxu0 %v340
      %532 = vmatmul.mubr.bf16.gmra.mxu0 %v339
      %v533 = vpop.f32.mrf.mxu0
      %v534 = vadd.f32 %v241, %v533
      %v535 = vpop.f32.mrf.mxu0
      %v536 = vpop.f32.mrf.mxu0
      %v537 = vadd.f32 %v241, %v536
      %v538 = vpop.f32.mrf.mxu0
      %539 = vmatprep.mubr.bf16.mxu0 %v342
      %540 = vmatmul.mubr.bf16.gmra.mxu0 %v341
      %v541 = vpop.f32.mrf.mxu0
      %v542 = vadd.f32 %v241, %v541
      %v543 = vpop.f32.mrf.mxu0
      %v544 = vpop.f32.mrf.mxu0
      %v545 = vadd.f32 %v241, %v544
      %v546 = vpop.f32.mrf.mxu0
      %547 = vmatprep.mubr.bf16.mxu0 %v344
      %548 = vmatmul.mubr.bf16.gmra.mxu0 %v343
      %v549 = vpop.f32.mrf.mxu0
      %v550 = vadd.f32 %v241, %v549
      %v551 = vpop.f32.mrf.mxu0
      %v552 = vpop.f32.mrf.mxu0
      %v553 = vadd.f32 %v241, %v552
      %v554 = vpop.f32.mrf.mxu0
      %555 = vmatprep.mubr.bf16.mxu0 %v346
      %556 = vmatmul.mubr.bf16.gmra.mxu0 %v345
      %v557 = vpop.f32.mrf.mxu0
      %v558 = vadd.f32 %v241, %v557
      %v559 = vpop.f32.mrf.mxu0
      %v560 = vpop.f32.mrf.mxu0
      %v561 = vadd.f32 %v241, %v560
      %v562 = vpop.f32.mrf.mxu0
      %563 = vmatprep.mubr.bf16.mxu0 %v348
      %564 = vmatmul.mubr.bf16.gmra.mxu0 %v347
      %v565 = vpop.f32.mrf.mxu0
      %v566 = vadd.f32 %v241, %v565
      %v567 = vpop.f32.mrf.mxu0
      %v568 = vpop.f32.mrf.mxu0
      %v569 = vadd.f32 %v241, %v568
      %v570 = vpop.f32.mrf.mxu0
      %571 = vmatprep.mubr.bf16.mxu0 %v350
      %572 = vmatmul.mubr.bf16.gmra.mxu0 %v349
      %v573 = vpop.f32.mrf.mxu0
      %v574 = vadd.f32 %v241, %v573
      %v575 = vpop.f32.mrf.mxu0
      %v576 = vpop.f32.mrf.mxu0
      %v577 = vadd.f32 %v241, %v576
      %v578 = vpop.f32.mrf.mxu0
      %579 = vmatprep.mubr.bf16.mxu0 %v352
      %580 = vmatmul.mubr.bf16.gmra.mxu0 %v351
      %v581 = vpop.f32.mrf.mxu0
      %v582 = vadd.f32 %v241, %v581
      %v583 = vpop.f32.mrf.mxu0
      %v584 = vpop.f32.mrf.mxu0
      %v585 = vadd.f32 %v241, %v584
      %v586 = vpop.f32.mrf.mxu0
      %587 = vmatprep.mubr.bf16.mxu0 %v354
      %588 = vmatmul.mubr.bf16.gmra.mxu0 %v353
      %v589 = vpop.f32.mrf.mxu0
      %v590 = vadd.f32 %v241, %v589
      %v591 = vpop.f32.mrf.mxu0
      %v592 = vpop.f32.mrf.mxu0
      %v593 = vadd.f32 %v241, %v592
      %v594 = vpop.f32.mrf.mxu0
      %595 = vmatprep.mubr.bf16.mxu0 %v356
      %596 = vmatmul.mubr.bf16.gmra.mxu0 %v355
      %v597 = vpop.f32.mrf.mxu0
      %v598 = vadd.f32 %v241, %v597
      %v599 = vpop.f32.mrf.mxu0
      %v600 = vpop.f32.mrf.mxu0
      %v601 = vadd.f32 %v241, %v600
      %v602 = vpop.f32.mrf.mxu0
      %603 = vmatprep.mubr.bf16.mxu0 %v358
      %604 = vmatmul.mubr.bf16.gmra.mxu0 %v357
      %v605 = vpop.f32.mrf.mxu0
      %v606 = vadd.f32 %v241, %v605
      %v607 = vpop.f32.mrf.mxu0
      %v608 = vpop.f32.mrf.mxu0
      %v609 = vadd.f32 %v241, %v608
      %v610 = vpop.f32.mrf.mxu0
      %611 = vmatprep.mubr.bf16.mxu0 %v360
      %612 = vmatmul.mubr.bf16.gmra.mxu0 %v359
      %v613 = vpop.f32.mrf.mxu0
      %v614 = vadd.f32 %v241, %v613
      %v615 = vpop.f32.mrf.mxu0
      %v616 = vpop.f32.mrf.mxu0
      %v617 = vadd.f32 %v241, %v616
      %v618 = vpop.f32.mrf.mxu0
      %619 = vmatprep.mubr.bf16.mxu0 %v362
      %620 = vmatmul.mubr.bf16.gmra.mxu0 %v361
      %v621 = vpop.f32.mrf.mxu0
      %v622 = vadd.f32 %v241, %v621
      %v623 = vpop.f32.mrf.mxu0
      %v624 = vpop.f32.mrf.mxu0
      %v625 = vadd.f32 %v241, %v624
      %v626 = vpop.f32.mrf.mxu0
      %627 = vmatprep.mubr.bf16.mxu0 %v364
      %628 = vmatmul.mubr.bf16.gmra.mxu0 %v363
      %v629 = vpop.f32.mrf.mxu0
      %v630 = vadd.f32 %v241, %v629
      %v631 = vpop.f32.mrf.mxu0
      %v632 = vpop.f32.mrf.mxu0
      %v633 = vadd.f32 %v241, %v632
      %v634 = vpop.f32.mrf.mxu0
      %635 = vmatprep.mubr.bf16.mxu0 %v366
      %636 = vmatmul.mubr.bf16.gmra.mxu0 %v365
      %v637 = vpop.f32.mrf.mxu0
      %v638 = vadd.f32 %v241, %v637
      %v639 = vpop.f32.mrf.mxu0
      %v640 = vpop.f32.mrf.mxu0
      %v641 = vadd.f32 %v241, %v640
      %v642 = vpop.f32.mrf.mxu0
      %643 = vmatprep.mubr.bf16.mxu0 %v368
      %644 = vmatmul.mubr.bf16.gmra.mxu0 %v367
      %v645 = vpop.f32.mrf.mxu0
      %v646 = vadd.f32 %v241, %v645
      %v647 = vpop.f32.mrf.mxu0
      %v648 = vpop.f32.mrf.mxu0
      %v649 = vadd.f32 %v241, %v648
      %v650 = vpop.f32.mrf.mxu0
      %651 = vmatprep.mubr.bf16.mxu0 %v370
      %652 = vmatmul.mubr.bf16.gmra.mxu0 %v369
      %v653 = vpop.f32.mrf.mxu0
      %v654 = vadd.f32 %v241, %v653
      %v655 = vpop.f32.mrf.mxu0
      %v656 = vpop.f32.mrf.mxu0
      %v657 = vadd.f32 %v241, %v656
      %v658 = vpop.f32.mrf.mxu0
      %659 = vdwg.mxu0
      %v660 = vmax.f32 %v534, 0.0
      %v661 = vmax.f32 %v537, 0.0
      %v662 = vmax.f32 %v542, 0.0
      %v663 = vmax.f32 %v545, 0.0
      %v664 = vmax.f32 %v550, 0.0
      %v665 = vmax.f32 %v553, 0.0
      %v666 = vmax.f32 %v558, 0.0
      %v667 = vmax.f32 %v561, 0.0
      %v668 = vmax.f32 %v566, 0.0
      %v669 = vmax.f32 %v569, 0.0
      %v670 = vmax.f32 %v574, 0.0
      %v671 = vmax.f32 %v577, 0.0
      %v672 = vmax.f32 %v582, 0.0
      %v673 = vmax.f32 %v585, 0.0
      %v674 = vmax.f32 %v590, 0.0
      %v675 = vmax.f32 %v593, 0.0
      %v676 = vmax.f32 %v598, 0.0
      %v677 = vmax.f32 %v601, 0.0
      %v678 = vmax.f32 %v606, 0.0
      %v679 = vmax.f32 %v609, 0.0
      %v680 = vmax.f32 %v614, 0.0
      %v681 = vmax.f32 %v617, 0.0
      %v682 = vmax.f32 %v622, 0.0
      %v683 = vmax.f32 %v625, 0.0
      %v684 = vmax.f32 %v630, 0.0
      %v685 = vmax.f32 %v633, 0.0
      %v686 = vmax.f32 %v638, 0.0
      %v687 = vmax.f32 %v641, 0.0
      %v688 = vmax.f32 %v646, 0.0
      %v689 = vmax.f32 %v649, 0.0
      %v690 = vmax.f32 %v654, 0.0
      %v691 = vmax.f32 %v657, 0.0
      %v692 = vpack.c.bf16 %v661, %v660
      %v693 = vpack.c.bf16 %v663, %v662
      %v694 = vpack.c.bf16 %v665, %v664
      %v695 = vpack.c.bf16 %v667, %v666
      %v696 = vpack.c.bf16 %v669, %v668
      %v697 = vpack.c.bf16 %v671, %v670
      %v698 = vpack.c.bf16 %v673, %v672
      %v699 = vpack.c.bf16 %v675, %v674
      %v700 = vpack.c.bf16 %v677, %v676
      %v701 = vpack.c.bf16 %v679, %v678
      %v702 = vpack.c.bf16 %v681, %v680
      %v703 = vpack.c.bf16 %v683, %v682
      %v704 = vpack.c.bf16 %v685, %v684
      %v705 = vpack.c.bf16 %v687, %v686
      %v706 = vpack.c.bf16 %v689, %v688
      %v707 = vpack.c.bf16 %v691, %v690
      %v724 = vunpack.c.l.b16 %v692
      %v725 = vunpack.c.h.b16 %v692
      %v726 = vunpack.c.l.b16 %v693
      %v727 = vunpack.c.h.b16 %v693
      %v728 = vunpack.c.l.b16 %v694
      %v729 = vunpack.c.h.b16 %v694
      %v730 = vunpack.c.l.b16 %v695
      %v731 = vunpack.c.h.b16 %v695
      %v732 = vunpack.c.l.b16 %v696
      %v733 = vunpack.c.h.b16 %v696
      %v734 = vunpack.c.l.b16 %v697
      %v735 = vunpack.c.h.b16 %v697
      %v736 = vunpack.c.l.b16 %v698
      %v737 = vunpack.c.h.b16 %v698
      %v738 = vunpack.c.l.b16 %v699
      %v739 = vunpack.c.h.b16 %v699
      %v740 = vunpack.c.l.b16 %v700
      %v741 = vunpack.c.h.b16 %v700
      %v742 = vunpack.c.l.b16 %v701
      %v743 = vunpack.c.h.b16 %v701
      %v744 = vunpack.c.l.b16 %v702
      %v745 = vunpack.c.h.b16 %v702
      %v746 = vunpack.c.l.b16 %v703
      %v747 = vunpack.c.h.b16 %v703
      %v748 = vunpack.c.l.b16 %v704
      %v749 = vunpack.c.h.b16 %v704
      %v750 = vunpack.c.l.b16 %v705
      %v751 = vunpack.c.h.b16 %v705
      %v752 = vunpack.c.l.b16 %v706
      %v753 = vunpack.c.h.b16 %v706
      %v754 = vunpack.c.l.b16 %v707
      %v755 = vunpack.c.h.b16 %v707
      %v756 = vpack.c.b16 %v724, %v724
      %v757 = vpack.c.b16 %v725, %v725
      %v758 = vpack.c.b16 %v726, %v726
      %v759 = vpack.c.b16 %v727, %v727
      %v760 = vpack.c.b16 %v728, %v728
      %v761 = vpack.c.b16 %v729, %v729
      %v762 = vpack.c.b16 %v730, %v730
      %v763 = vpack.c.b16 %v731, %v731
      %v764 = vpack.c.b16 %v732, %v732
      %v765 = vpack.c.b16 %v733, %v733
      %v766 = vpack.c.b16 %v734, %v734
      %v767 = vpack.c.b16 %v735, %v735
      %v768 = vpack.c.b16 %v736, %v736
      %v769 = vpack.c.b16 %v737, %v737
      %v770 = vpack.c.b16 %v738, %v738
      %v771 = vpack.c.b16 %v739, %v739
      %v772 = vpack.c.b16 %v740, %v740
      %v773 = vpack.c.b16 %v741, %v741
      %v774 = vpack.c.b16 %v742, %v742
      %v775 = vpack.c.b16 %v743, %v743
      %v776 = vpack.c.b16 %v744, %v744
      %v777 = vpack.c.b16 %v745, %v745
      %v778 = vpack.c.b16 %v746, %v746
      %v779 = vpack.c.b16 %v747, %v747
      %v780 = vpack.c.b16 %v748, %v748
      %v781 = vpack.c.b16 %v749, %v749
      %v782 = vpack.c.b16 %v750, %v750
      %v783 = vpack.c.b16 %v751, %v751
      %v784 = vpack.c.b16 %v752, %v752
      %v785 = vpack.c.b16 %v753, %v753
      %v786 = vpack.c.b16 %v754, %v754
      %v787 = vpack.c.b16 %v755, %v755
      %820 = vst [vmem:[%s170] sm:$0xf] %v756
      %821 = vst [vmem:[%s170 + $0x4] sm:$0xf] %v757
      %822 = vst [vmem:[%s170 + $0x8] sm:$0xf] %v758
      %823 = vst [vmem:[%s170 + $0xc] sm:$0xf] %v759
      %824 = vst [vmem:[%s170 + $0x10] sm:$0xf] %v760
      %825 = vst [vmem:[%s170 + $0x14] sm:$0xf] %v761
      %826 = vst [vmem:[%s170 + $0x18] sm:$0xf] %v762
      %827 = vst [vmem:[%s170 + $0x1c] sm:$0xf] %v763
      %828 = vst [vmem:[%s170 + $0x20] sm:$0xf] %v764
      %829 = vst [vmem:[%s170 + $0x24] sm:$0xf] %v765
      %830 = vst [vmem:[%s170 + $0x28] sm:$0xf] %v766
      %831 = vst [vmem:[%s170 + $0x2c] sm:$0xf] %v767
      %832 = vst [vmem:[%s170 + $0x30] sm:$0xf] %v768
      %833 = vst [vmem:[%s170 + $0x34] sm:$0xf] %v769
      %834 = vst [vmem:[%s170 + $0x38] sm:$0xf] %v770
      %835 = vst [vmem:[%s170 + $0x3c] sm:$0xf] %v771
      %836 = vst [vmem:[%s170 + $0x40] sm:$0xf] %v772
      %837 = vst [vmem:[%s170 + $0x44] sm:$0xf] %v773
      %838 = vst [vmem:[%s170 + $0x48] sm:$0xf] %v774
      %839 = vst [vmem:[%s170 + $0x4c] sm:$0xf] %v775
      %840 = vst [vmem:[%s170 + $0x50] sm:$0xf] %v776
      %841 = vst [vmem:[%s170 + $0x54] sm:$0xf] %v777
      %842 = vst [vmem:[%s170 + $0x58] sm:$0xf] %v778
      %843 = vst [vmem:[%s170 + $0x5c] sm:$0xf] %v779
      %844 = vst [vmem:[%s170 + $0x60] sm:$0xf] %v780
      %845 = vst [vmem:[%s170 + $0x64] sm:$0xf] %v781
      %846 = vst [vmem:[%s170 + $0x68] sm:$0xf] %v782
      %847 = vst [vmem:[%s170 + $0x6c] sm:$0xf] %v783
      %848 = vst [vmem:[%s170 + $0x70] sm:$0xf] %v784
      %849 = vst [vmem:[%s170 + $0x74] sm:$0xf] %v785
      %850 = vst [vmem:[%s170 + $0x78] sm:$0xf] %v786
      %851 = vst [vmem:[%s170 + $0x7c] sm:$0xf] %v787
      %p852 = scmp.lt.s32.totalorder %s14, 1
      %s853 = scalar_select %p852, %s14, 1
      %s854 = smul.addr %s853, 32
      %s855 = smul.addr %s854, 4
      %s856 = scalar_lea.vmem %s3, %s855
      // Predicated region
      $region33: #{_lambda_.7} parent=31 // pred_check
        %p857 = pneg %p100
      $region34: #{_lambda_.7} parent=31 // pred_check_branch
        %859 = sbr.rel (%p857) target = $region36
      $region35: #{_lambda_.7} parent=31 // pred_region
        _
      $region36: #{_lambda_.7} parent=31 // pred_fallthru
        _
    $region32: #{_lambda_.7} parent=5 // pred_fallthru
      _
    %p860 = scmp.le.s32.totalorder 2, %s9
    // Predicated region
    $region37: #{_lambda_.7} parent=5 // pred_check
      %p861 = pneg %p860
    $region38: #{_lambda_.7} parent=5 // pred_check_branch
      %863 = sbr.rel (%p861) target = $region40
    $region39: #{_lambda_.7} parent=5 // pred_region
      %s864 = ssub.s32 %s9, 2
      // Predicated region
      $region41: #{_lambda_.7} parent=39 // pred_check
        %p865 = pneg %p106
      $region42: #{_lambda_.7} parent=39 // pred_check_branch
        %867 = sbr.rel (%p865) target = $region44
      $region43: #{_lambda_.7} parent=39 // pred_region
        %p868 = scmp.lt.s32.totalorder %s15, 1
        %s869 = scalar_select %p868, %s15, 1
        %s870 = smul.addr %s869, 32
        %s871 = smul.addr %s870, 4
        %s872 = scalar_lea.vmem %s3, %s871
      $region44: #{_lambda_.7} parent=39 // pred_fallthru
        _
    $region40: #{_lambda_.7} parent=5 // pred_fallthru
      _
  $region6: #{_lambda_.7} parent=0 // loop_footer
    %s13 = sadd.s32 1, %s9
  $region7: #{_lambda_.7} parent=0 // loop_footer_branch
    %8 = sbr.rel target = $region3
  $region8: #{_lambda_.7} parent=0 // loop_exit
    _

// kernel: _lambda_.8
$region0: #{_lambda_.8}
  #allocation0 [shape = 'u32[]', space=smem, size = 0x4, offset = 0x4, fixed_abs, tag = 'smem constant byte address 0x4 - core index']
  #allocation1 [shape = 'u32[144,128]{1,0:T(1,128)}', space=vmem, size = 0x12000, scoped, tag = 'internal scratch']
  %s0 = inlined_call_operand.vmem [shape: bf16[4,2,90,128], index: 0, kind: input, shape index: {}]
  %s1 = inlined_call_operand.vmem [shape: bf16[2,72,128], index: 1, kind: output, shape index: {}]
  %s2 = sld [smem:[#allocation0]]
  $region78: #{_lambda_.8} parent=0
    _
  %s4 = ssub.s32 1, %s2
  %s5 = scalar_select 0, %s4, %s2
  $region1: #{_lambda_.8} parent=0
    #allocation2 [shape = 'u8[196608]{0}', space=vmem, size = 0x30000, scoped, tag = 'input window, operand 0']
    loop: start=0, step=1, limit=4
    $region2: #{_lambda_.8} parent=1 // loop_pre_header
      _
    $region3: #{_lambda_.8} parent=1 // loop_header
      %s7 = sphi 0, %s11
      %p8 = scmp.ge.s32.totalorder %s7, 4
      %s17 = sphi 0, %s19
      %s20 = sphi 0, %s17
      %s21 = sphi 0, %s20
      %s37 = sphi 0, %s21
      %s43 = sphi 0, %s45
      %s46 = sphi 0, %s43
      %s47 = sphi 0, %s46
      %s63 = sphi 0, %s47
    $region4: #{_lambda_.8} parent=1 // loop_header_branch
      %10 = sbr.rel (%p8) target = $region8
    $region5: #{_lambda_.8} parent=1 // loop_body
      %s12 = ssub.s32 %s7, 1
      %s13 = ssub.s32 %s7, 2
      %s14 = sadd.s32 %s7, 1
      %s15 = ssub.s32 %s7, %s14
      %p16 = scmp.eq.s32.totalorder %s15, 0
      %s18 = sadd.s32 %s17, 1
      %s19 = scalar_select %p16, %s17, %s18
      %p22 = pneg %p16
      %p23 = scmp.eq.s32.totalorder %s7, 1
      %p24 = por %p22, %p23
      %p25 = scmp.ne.s32.totalorder %s17, %s20
      %p26 = scmp.eq.s32.totalorder %s7, 0
      %p27 = por %p25, %p26
      %p28 = scmp.ne.s32.totalorder %s17, %s20
      %p29 = scmp.eq.s32.totalorder %s12, 1
      %p30 = por %p28, %p29
      %p31 = scmp.ne.s32.totalorder %s20, %s21
      %p32 = scmp.eq.s32.totalorder %s12, 0
      %p33 = por %p31, %p32
      %p34 = scmp.ne.s32.totalorder %s20, %s21
      %p35 = scmp.eq.s32.totalorder %s13, 1
      %p36 = por %p34, %p35
      %p38 = scmp.ne.s32.totalorder %s21, %s37
      %p39 = scmp.eq.s32.totalorder %s13, 0
      %p40 = por %p38, %p39
      %s41 = ssub.s32 %s7, %s14
      %p42 = scmp.eq.s32.totalorder %s41, 0
      %s44 = sadd.s32 %s43, 1
      %s45 = scalar_select %p42, %s43, %s44
      %p48 = pneg %p42
      %p49 = scmp.eq.s32.totalorder %s7, 1
      %p50 = por %p48, %p49
      %p51 = scmp.ne.s32.totalorder %s43, %s46
      %p52 = scmp.eq.s32.totalorder %s7, 0
      %p53 = por %p51, %p52
      %p54 = scmp.ne.s32.totalorder %s43, %s46
      %p55 = scmp.eq.s32.totalorder %s12, 1
      %p56 = por %p54, %p55
      %p57 = scmp.ne.s32.totalorder %s46, %s47
      %p58 = scmp.eq.s32.totalorder %s12, 0
      %p59 = por %p57, %p58
      %p60 = scmp.ne.s32.totalorder %s46, %s47
      %p61 = scmp.eq.s32.totalorder %s13, 1
      %p62 = por %p60, %p61
      %p64 = scmp.ne.s32.totalorder %s47, %s63
      %p65 = scmp.eq.s32.totalorder %s13, 0
      %p66 = por %p64, %p65
      %p67 = scmp.le.s32.totalorder 1, %s7
      %p68 = scmp.lt.s32.totalorder %s7, 3
      %p69 = pnand %p67, %p68
      %p70 = pneg %p69
      // Predicated region
      $region9: #{_lambda_.8} parent=5 // pred_check
        _
      $region10: #{_lambda_.8} parent=5 // pred_check_branch
        %72 = sbr.rel (%p69) target = $region12
      $region11: #{_lambda_.8} parent=5 // pred_region
        %s73 = ssub.s32 %s7, 1
      $region12: #{_lambda_.8} parent=5 // pred_fallthru
        _
      %p74 = scmp.lt.s32.totalorder %s7, 2
      // Predicated region
      $region13: #{_lambda_.8} parent=5 // pred_check
        %p75 = pneg %p74
      $region14: #{_lambda_.8} parent=5 // pred_check_branch
        %77 = sbr.rel (%p75) target = $region16
      $region15: #{_lambda_.8} parent=5 // pred_region
        // Predicated region
        $region17: #{_lambda_.8} parent=15 // pred_check
          %p78 = pneg %p27
        $region18: #{_lambda_.8} parent=15 // pred_check_branch
          %80 = sbr.rel (%p78) target = $region20
        $region19: #{_lambda_.8} parent=15 // pred_region
          %s81 = sand.u32 %s17, 1
          %s82 = sand.u32 %s17, 1
          %s83 = smul.addr %s82, 192
          %s84 = scalar_lea.vmem [#allocation2], %s83
          %s85 = smul.addr %s7, 12
          %s86 = smul.addr %s85, 4
          %s87 = scalar_lea.vmem %s0, %s86
          // Predicated region
          $region21: #{_lambda_.8} parent=19 // pred_check
            _
          $region22: #{_lambda_.8} parent=19 // pred_check_branch
            %89 = sbr.rel (0) target = $region24
          $region23: #{_lambda_.8} parent=19 // pred_region
            // Predicated region
            $region25: #{_lambda_.8} parent=23 // pred_check
              _
            $region26: #{_lambda_.8} parent=23 // pred_check_branch
              %91 = sbr.rel target = $region28
            $region27: #{_lambda_.8} parent=23 // pred_region
              // Predicated region
              $region40: #{_lambda_.8} parent=27 // pred_check
                _
              $region41: #{_lambda_.8} parent=27 // pred_check_branch
                %201 = sbr.rel (0) target = $region43
              $region42: #{_lambda_.8} parent=27 // pred_region
                loop: start=0, step=1, limit=1
                $region44: #{_lambda_.8} parent=42 // loop_pre_header
                  _
                $region45: #{_lambda_.8} parent=42 // loop_header
                  %s203 = sphi 0, %s207
                  %p204 = scmp.ge.s32.totalorder %s203, 1
                  %s208 = sphi %s87, %s87
                  %s209 = sphi %s84, %s84
                $region46: #{_lambda_.8} parent=42 // loop_header_branch
                  %206 = sbr.rel (%p204) target = $region50
                $region47: #{_lambda_.8} parent=42 // loop_body
                  _
                $region48: #{_lambda_.8} parent=42 // loop_footer
                  %s207 = sadd.s32 1, %s203
                $region49: #{_lambda_.8} parent=42 // loop_footer_branch
                  %202 = sbr.rel target = $region45
                $region50: #{_lambda_.8} parent=42 // loop_exit
                  _
                %s211 = ssub.s32 16, 1
                loop: start=0, step=1, limit=1
                $region51: #{_lambda_.8} parent=42 // loop_pre_header
                  _
                $region52: #{_lambda_.8} parent=42 // loop_header
                  %s213 = sphi 0, %s217
                  %p214 = scmp.ge.s32.totalorder %s213, 1
                  %s218 = sphi %s87, %s87
                  %s219 = sphi %s84, %s84
                $region53: #{_lambda_.8} parent=42 // loop_header_branch
                  %216 = sbr.rel (%p214) target = $region57
                $region54: #{_lambda_.8} parent=42 // loop_body
                  %v220 = vld [vmem:[%s218] sm:%s211]
                  %221 = vst [vmem:[%s219] sm:%s211] %v220
                  %v222 = vld [vmem:[%s218 + $0x4] sm:%s211]
                  %223 = vst [vmem:[%s219 + $0x4] sm:%s211] %v222
                  %v224 = vld [vmem:[%s218 + $0x8] sm:%s211]
                  %225 = vst [vmem:[%s219 + $0x8] sm:%s211] %v224
                  %v226 = vld [vmem:[%s218 + $0xc] sm:%s211]
                  %227 = vst [vmem:[%s219 + $0xc] sm:%s211] %v226
                  %v228 = vld [vmem:[%s218 + $0x10] sm:%s211]
                  %229 = vst [vmem:[%s219 + $0x10] sm:%s211] %v228
                  %v230 = vld [vmem:[%s218 + $0x14] sm:%s211]
                  %231 = vst [vmem:[%s219 + $0x14] sm:%s211] %v230
                  %v232 = vld [vmem:[%s218 + $0x18] sm:%s211]
                  %233 = vst [vmem:[%s219 + $0x18] sm:%s211] %v232
                  %v234 = vld [vmem:[%s218 + $0x1c] sm:%s211]
                  %235 = vst [vmem:[%s219 + $0x1c] sm:%s211] %v234
                  %v236 = vld [vmem:[%s218 + $0x20] sm:%s211]
                  %237 = vst [vmem:[%s219 + $0x20] sm:%s211] %v236
                  %v238 = vld [vmem:[%s218 + $0x24] sm:%s211]
                  %239 = vst [vmem:[%s219 + $0x24] sm:%s211] %v238
                  %v240 = vld [vmem:[%s218 + $0x28] sm:%s211]
                  %241 = vst [vmem:[%s219 + $0x28] sm:%s211] %v240
                  %v242 = vld [vmem:[%s218 + $0x2c] sm:%s211]
                  %243 = vst [vmem:[%s219 + $0x2c] sm:%s211] %v242
                  %v244 = vld [vmem:[%s218 + $0x60] sm:%s211]
                  %245 = vst [vmem:[%s219 + $0x30] sm:%s211] %v244
                  %v246 = vld [vmem:[%s218 + $0x64] sm:%s211]
                  %247 = vst [vmem:[%s219 + $0x34] sm:%s211] %v246
                  %v248 = vld [vmem:[%s218 + $0x68] sm:%s211]
                  %249 = vst [vmem:[%s219 + $0x38] sm:%s211] %v248
                  %v250 = vld [vmem:[%s218 + $0x6c] sm:%s211]
                  %251 = vst [vmem:[%s219 + $0x3c] sm:%s211] %v250
                  %v252 = vld [vmem:[%s218 + $0x70] sm:%s211]
                  %253 = vst [vmem:[%s219 + $0x40] sm:%s211] %v252
                  %v254 = vld [vmem:[%s218 + $0x74] sm:%s211]
                  %255 = vst [vmem:[%s219 + $0x44] sm:%s211] %v254
                  %v256 = vld [vmem:[%s218 + $0x78] sm:%s211]
                  %257 = vst [vmem:[%s219 + $0x48] sm:%s211] %v256
                  %v258 = vld [vmem:[%s218 + $0x7c] sm:%s211]
                  %259 = vst [vmem:[%s219 + $0x4c] sm:%s211] %v258
                  %v260 = vld [vmem:[%s218 + $0x80] sm:%s211]
                  %261 = vst [vmem:[%s219 + $0x50] sm:%s211] %v260
                  %v262 = vld [vmem:[%s218 + $0x84] sm:%s211]
                  %263 = vst [vmem:[%s219 + $0x54] sm:%s211] %v262
                  %v264 = vld [vmem:[%s218 + $0x88] sm:%s211]
                  %265 = vst [vmem:[%s219 + $0x58] sm:%s211] %v264
                  %v266 = vld [vmem:[%s218 + $0x8c] sm:%s211]
                  %267 = vst [vmem:[%s219 + $0x5c] sm:%s211] %v266
                  %v268 = vld [vmem:[%s218 + $0xc0] sm:%s211]
                  %269 = vst [vmem:[%s219 + $0x60] sm:%s211] %v268
                  %v270 = vld [vmem:[%s218 + $0xc4] sm:%s211]
                  %271 = vst [vmem:[%s219 + $0x64] sm:%s211] %v270
                  %v272 = vld [vmem:[%s218 + $0xc8] sm:%s211]
                  %273 = vst [vmem:[%s219 + $0x68] sm:%s211] %v272
                  %v274 = vld [vmem:[%s218 + $0xcc] sm:%s211]
                  %275 = vst [vmem:[%s219 + $0x6c] sm:%s211] %v274
                  %v276 = vld [vmem:[%s218 + $0xd0] sm:%s211]
                  %277 = vst [vmem:[%s219 + $0x70] sm:%s211] %v276
                  %v278 = vld [vmem:[%s218 + $0xd4] sm:%s211]
                  %279 = vst [vmem:[%s219 + $0x74] sm:%s211] %v278
                  %v280 = vld [vmem:[%s218 + $0xd8] sm:%s211]
                  %281 = vst [vmem:[%s219 + $0x78] sm:%s211] %v280
                  %v282 = vld [vmem:[%s218 + $0xdc] sm:%s211]
                  %283 = vst [vmem:[%s219 + $0x7c] sm:%s211] %v282
                  %v284 = vld [vmem:[%s218 + $0xe0] sm:%s211]
                  %285 = vst [vmem:[%s219 + $0x80] sm:%s211] %v284
                  %v286 = vld [vmem:[%s218 + $0xe4] sm:%s211]
                  %287 = vst [vmem:[%s219 + $0x84] sm:%s211] %v286
                  %v288 = vld [vmem:[%s218 + $0xe8] sm:%s211]
                  %289 = vst [vmem:[%s219 + $0x88] sm:%s211] %v288
                  %v290 = vld [vmem:[%s218 + $0xec] sm:%s211]
                  %291 = vst [vmem:[%s219 + $0x8c] sm:%s211] %v290
                  %v292 = vld [vmem:[%s218 + $0x120] sm:%s211]
                  %293 = vst [vmem:[%s219 + $0x90] sm:%s211] %v292
                  %v294 = vld [vmem:[%s218 + $0x124] sm:%s211]
                  %295 = vst [vmem:[%s219 + $0x94] sm:%s211] %v294
                  %v296 = vld [vmem:[%s218 + $0x128] sm:%s211]
                  %297 = vst [vmem:[%s219 + $0x98] sm:%s211] %v296
                  %v298 = vld [vmem:[%s218 + $0x12c] sm:%s211]
                  %299 = vst [vmem:[%s219 + $0x9c] sm:%s211] %v298
                  %v300 = vld [vmem:[%s218 + $0x130] sm:%s211]
                  %301 = vst [vmem:[%s219 + $0xa0] sm:%s211] %v300
                  %v302 = vld [vmem:[%s218 + $0x134] sm:%s211]
                  %303 = vst [vmem:[%s219 + $0xa4] sm:%s211] %v302
                  %v304 = vld [vmem:[%s218 + $0x138] sm:%s211]
                  %305 = vst [vmem:[%s219 + $0xa8] sm:%s211] %v304
                  %v306 = vld [vmem:[%s218 + $0x13c] sm:%s211]
                  %307 = vst [vmem:[%s219 + $0xac] sm:%s211] %v306
                  %v308 = vld [vmem:[%s218 + $0x140] sm:%s211]
                  %309 = vst [vmem:[%s219 + $0xb0] sm:%s211] %v308
                  %v310 = vld [vmem:[%s218 + $0x144] sm:%s211]
                  %311 = vst [vmem:[%s219 + $0xb4] sm:%s211] %v310
                  %v312 = vld [vmem:[%s218 + $0x148] sm:%s211]
                  %313 = vst [vmem:[%s219 + $0xb8] sm:%s211] %v312
                  %v314 = vld [vmem:[%s218 + $0x14c] sm:%s211]
                  %315 = vst [vmem:[%s219 + $0xbc] sm:%s211] %v314
                $region55: #{_lambda_.8} parent=42 // loop_footer
                  %s217 = sadd.s32 1, %s213
                $region56: #{_lambda_.8} parent=42 // loop_footer_branch
                  %212 = sbr.rel target = $region52
                $region57: #{_lambda_.8} parent=42 // loop_exit
                  _
              $region43: #{_lambda_.8} parent=27 // pred_fallthru
                _
            $region28: #{_lambda_.8} parent=23 // pred_fallthru
              _
            // Predicated region
            $region29: #{_lambda_.8} parent=23 // pred_check
              _
            $region30: #{_lambda_.8} parent=23 // pred_check_branch
              %93 = sbr.rel (0) target = $region32
            $region31: #{_lambda_.8} parent=23 // pred_region
              %s95 = ssub.s32 16, 1
              loop: start=0, step=1, limit=1
              $region33: #{_lambda_.8} parent=31 // loop_pre_header
                _
              $region34: #{_lambda_.8} parent=31 // loop_header
                %s97 = sphi 0, %s101
                %p98 = scmp.ge.s32.totalorder %s97, 1
                %s102 = sphi %s87, %s87
                %s103 = sphi %s84, %s84
              $region35: #{_lambda_.8} parent=31 // loop_header_branch
                %100 = sbr.rel (%p98) target = $region39
              $region36: #{_lambda_.8} parent=31 // loop_body
                %v104 = vld [vmem:[%s102] sm:%s95]
                %105 = vst [vmem:[%s103] sm:%s95] %v104
                %v106 = vld [vmem:[%s102 + $0x4] sm:%s95]
                %107 = vst [vmem:[%s103 + $0x4] sm:%s95] %v106
                %v108 = vld [vmem:[%s102 + $0x8] sm:%s95]
                %109 = vst [vmem:[%s103 + $0x8] sm:%s95] %v108
                %v110 = vld [vmem:[%s102 + $0xc] sm:%s95]
                %111 = vst [vmem:[%s103 + $0xc] sm:%s95] %v110
                %v112 = vld [vmem:[%s102 + $0x10] sm:%s95]
                %113 = vst [vmem:[%s103 + $0x10] sm:%s95] %v112
                %v114 = vld [vmem:[%s102 + $0x14] sm:%s95]
                %115 = vst [vmem:[%s103 + $0x14] sm:%s95] %v114
                %v116 = vld [vmem:[%s102 + $0x18] sm:%s95]
                %117 = vst [vmem:[%s103 + $0x18] sm:%s95] %v116
                %v118 = vld [vmem:[%s102 + $0x1c] sm:%s95]
                %119 = vst [vmem:[%s103 + $0x1c] sm:%s95] %v118
                %v120 = vld [vmem:[%s102 + $0x20] sm:%s95]
                %121 = vst [vmem:[%s103 + $0x20] sm:%s95] %v120
                %v122 = vld [vmem:[%s102 + $0x24] sm:%s95]
                %123 = vst [vmem:[%s103 + $0x24] sm:%s95] %v122
                %v124 = vld [vmem:[%s102 + $0x28] sm:%s95]
                %125 = vst [vmem:[%s103 + $0x28] sm:%s95] %v124
                %v126 = vld [vmem:[%s102 + $0x2c] sm:%s95]
                %127 = vst [vmem:[%s103 + $0x2c] sm:%s95] %v126
                %v128 = vld [vmem:[%s102 + $0x60] sm:%s95]
                %129 = vst [vmem:[%s103 + $0x30] sm:%s95] %v128
                %v130 = vld [vmem:[%s102 + $0x64] sm:%s95]
                %131 = vst [vmem:[%s103 + $0x34] sm:%s95] %v130
                %v132 = vld [vmem:[%s102 + $0x68] sm:%s95]
                %133 = vst [vmem:[%s103 + $0x38] sm:%s95] %v132
                %v134 = vld [vmem:[%s102 + $0x6c] sm:%s95]
                %135 = vst [vmem:[%s103 + $0x3c] sm:%s95] %v134
                %v136 = vld [vmem:[%s102 + $0x70] sm:%s95]
                %137 = vst [vmem:[%s103 + $0x40] sm:%s95] %v136
                %v138 = vld [vmem:[%s102 + $0x74] sm:%s95]
                %139 = vst [vmem:[%s103 + $0x44] sm:%s95] %v138
                %v140 = vld [vmem:[%s102 + $0x78] sm:%s95]
                %141 = vst [vmem:[%s103 + $0x48] sm:%s95] %v140
                %v142 = vld [vmem:[%s102 + $0x7c] sm:%s95]
                %143 = vst [vmem:[%s103 + $0x4c] sm:%s95] %v142
                %v144 = vld [vmem:[%s102 + $0x80] sm:%s95]
                %145 = vst [vmem:[%s103 + $0x50] sm:%s95] %v144
                %v146 = vld [vmem:[%s102 + $0x84] sm:%s95]
                %147 = vst [vmem:[%s103 + $0x54] sm:%s95] %v146
                %v148 = vld [vmem:[%s102 + $0x88] sm:%s95]
                %149 = vst [vmem:[%s103 + $0x58] sm:%s95] %v148
                %v150 = vld [vmem:[%s102 + $0x8c] sm:%s95]
                %151 = vst [vmem:[%s103 + $0x5c] sm:%s95] %v150
                %v152 = vld [vmem:[%s102 + $0xc0] sm:%s95]
                %153 = vst [vmem:[%s103 + $0x60] sm:%s95] %v152
                %v154 = vld [vmem:[%s102 + $0xc4] sm:%s95]
                %155 = vst [vmem:[%s103 + $0x64] sm:%s95] %v154
                %v156 = vld [vmem:[%s102 + $0xc8] sm:%s95]
                %157 = vst [vmem:[%s103 + $0x68] sm:%s95] %v156
                %v158 = vld [vmem:[%s102 + $0xcc] sm:%s95]
                %159 = vst [vmem:[%s103 + $0x6c] sm:%s95] %v158
                %v160 = vld [vmem:[%s102 + $0xd0] sm:%s95]
                %161 = vst [vmem:[%s103 + $0x70] sm:%s95] %v160
                %v162 = vld [vmem:[%s102 + $0xd4] sm:%s95]
                %163 = vst [vmem:[%s103 + $0x74] sm:%s95] %v162
                %v164 = vld [vmem:[%s102 + $0xd8] sm:%s95]
                %165 = vst [vmem:[%s103 + $0x78] sm:%s95] %v164
                %v166 = vld [vmem:[%s102 + $0xdc] sm:%s95]
                %167 = vst [vmem:[%s103 + $0x7c] sm:%s95] %v166
                %v168 = vld [vmem:[%s102 + $0xe0] sm:%s95]
                %169 = vst [vmem:[%s103 + $0x80] sm:%s95] %v168
                %v170 = vld [vmem:[%s102 + $0xe4] sm:%s95]
                %171 = vst [vmem:[%s103 + $0x84] sm:%s95] %v170
                %v172 = vld [vmem:[%s102 + $0xe8] sm:%s95]
                %173 = vst [vmem:[%s103 + $0x88] sm:%s95] %v172
                %v174 = vld [vmem:[%s102 + $0xec] sm:%s95]
                %175 = vst [vmem:[%s103 + $0x8c] sm:%s95] %v174
                %v176 = vld [vmem:[%s102 + $0x120] sm:%s95]
                %177 = vst [vmem:[%s103 + $0x90] sm:%s95] %v176
                %v178 = vld [vmem:[%s102 + $0x124] sm:%s95]
                %179 = vst [vmem:[%s103 + $0x94] sm:%s95] %v178
                %v180 = vld [vmem:[%s102 + $0x128] sm:%s95]
                %181 = vst [vmem:[%s103 + $0x98] sm:%s95] %v180
                %v182 = vld [vmem:[%s102 + $0x12c] sm:%s95]
                %183 = vst [vmem:[%s103 + $0x9c] sm:%s95] %v182
                %v184 = vld [vmem:[%s102 + $0x130] sm:%s95]
                %185 = vst [vmem:[%s103 + $0xa0] sm:%s95] %v184
                %v186 = vld [vmem:[%s102 + $0x134] sm:%s95]
                %187 = vst [vmem:[%s103 + $0xa4] sm:%s95] %v186
                %v188 = vld [vmem:[%s102 + $0x138] sm:%s95]
                %189 = vst [vmem:[%s103 + $0xa8] sm:%s95] %v188
                %v190 = vld [vmem:[%s102 + $0x13c] sm:%s95]
                %191 = vst [vmem:[%s103 + $0xac] sm:%s95] %v190
                %v192 = vld [vmem:[%s102 + $0x140] sm:%s95]
                %193 = vst [vmem:[%s103 + $0xb0] sm:%s95] %v192
                %v194 = vld [vmem:[%s102 + $0x144] sm:%s95]
                %195 = vst [vmem:[%s103 + $0xb4] sm:%s95] %v194
                %v196 = vld [vmem:[%s102 + $0x148] sm:%s95]
                %197 = vst [vmem:[%s103 + $0xb8] sm:%s95] %v196
                %v198 = vld [vmem:[%s102 + $0x14c] sm:%s95]
                %199 = vst [vmem:[%s103 + $0xbc] sm:%s95] %v198
              $region37: #{_lambda_.8} parent=31 // loop_footer
                %s101 = sadd.s32 1, %s97
              $region38: #{_lambda_.8} parent=31 // loop_footer_branch
                %96 = sbr.rel target = $region34
              $region39: #{_lambda_.8} parent=31 // loop_exit
                _
            $region32: #{_lambda_.8} parent=23 // pred_fallthru
              _
          $region24: #{_lambda_.8} parent=19 // pred_fallthru
            _
          %316 = vnop
        $region20: #{_lambda_.8} parent=15 // pred_fallthru
          _
      $region16: #{_lambda_.8} parent=5 // pred_fallthru
        _
      %p317 = scmp.le.s32.totalorder 1, %s7
      %p318 = scmp.lt.s32.totalorder %s7, 3
      %p319 = pnand %p317, %p318
      %p320 = pneg %p319
      // Predicated region
      $region58: #{_lambda_.8} parent=5 // pred_check
        _
      $region59: #{_lambda_.8} parent=5 // pred_check_branch
        %322 = sbr.rel (%p319) target = $region61
      $region60: #{_lambda_.8} parent=5 // pred_region
        %s323 = ssub.s32 %s7, 1
        %s324 = sand.u32 %s20, 1
        %s325 = sand.u32 %s20, 1
        %s326 = smul.addr %s325, 192
        %s327 = scalar_lea.vmem [#allocation2], %s326
        // Predicated region
        $region62: #{_lambda_.8} parent=60 // pred_check
          %p328 = pneg %p33
        $region63: #{_lambda_.8} parent=60 // pred_check_branch
          %330 = sbr.rel (%p328) target = $region65
        $region64: #{_lambda_.8} parent=60 // pred_region
          _
        $region65: #{_lambda_.8} parent=60 // pred_fallthru
          _
        %s331 = sand.u32 %s20, 1
        %s332 = sand.u32 %s20, 1
        %s333 = smul.addr %s332, 192
        %s334 = scalar_lea.vmem [#allocation2], %s333
        %p335 = pneg %p33
        %p336 = pneg %p30
        %p337 = pneg %p59
        %p338 = pneg %p56
        %p339 = scmp.lt.s32.totalorder %s12, 1
        %s340 = scalar_select %p339, %s12, 1
        %s341 = smul.addr %s340, 9
        %s342 = smul.addr %s341, 4
        %s343 = scalar_lea.vmem %s1, %s342
        %p344 = scmp.lt.s32.totalorder %s12, 1
        %s345 = scalar_select %p344, %s12, 1
        %s346 = smul.addr %s345, 9
        %s347 = smul.addr %s346, 4
        %s348 = scalar_lea.vmem %s1, %s347
        %v349 = vld [vmem:[%s327] sm:$0xf]
        %v350 = vld [vmem:[%s327 + $0x4] sm:$0xf]
        %v351 = vld [vmem:[%s327 + $0x8] sm:$0xf]
        %v352 = vld [vmem:[%s327 + $0xc] sm:$0xf]
        %v353 = vld [vmem:[%s327 + $0x10] sm:$0xf]
        %v354 = vld [vmem:[%s327 + $0x14] sm:$0xf]
        %v355 = vld [vmem:[%s327 + $0x18] sm:$0xf]
        %v356 = vld [vmem:[%s327 + $0x1c] sm:$0xf]
        %v357 = vld [vmem:[%s327 + $0x20] sm:$0xf]
        %s358 = scalar_lea.vmem %s327, 48 [#allocation2]
        %v359 = vld [vmem:[%s358] sm:$0xf]
        %v360 = vld [vmem:[%s358 + $0x4] sm:$0xf]
        %v361 = vld [vmem:[%s358 + $0x8] sm:$0xf]
        %v362 = vld [vmem:[%s358 + $0xc] sm:$0xf]
        %v363 = vld [vmem:[%s358 + $0x10] sm:$0xf]
        %v364 = vld [vmem:[%s358 + $0x14] sm:$0xf]
        %v365 = vld [vmem:[%s358 + $0x18] sm:$0xf]
        %v366 = vld [vmem:[%s358 + $0x1c] sm:$0xf]
        %v367 = vld [vmem:[%s358 + $0x20] sm:$0xf]
        %v368 = vmax.bf16 %v349, %v359
        %v369 = vmax.bf16 %v350, %v360
        %v370 = vmax.bf16 %v351, %v361
        %v371 = vmax.bf16 %v352, %v362
        %v372 = vmax.bf16 %v353, %v363
        %v373 = vmax.bf16 %v354, %v364
        %v374 = vmax.bf16 %v355, %v365
        %v375 = vmax.bf16 %v356, %v366
        %v376 = vmax.bf16 %v357, %v367
        %v377 = vld [vmem:[%s327 + $0x24] sm:$0x1]
        %vm378 = vsmask.f32 3328
        %vm379 = vsmask.f32 7440
        %vm380 = vmor %vm378, %vm379
        %v382 = vshrl.u32 %v349, 16
        %v384 = vrot.slane %v382, 4
        %v385 = vshll.u32 %v349, 16
        %v387 = vrot.slane %v385, 5
        %v388 = vor.u32 %v384, %v387
        %v389 = vrot.slane %v388, 4
        %v391 = vshll.u32 %v350, 16
        %v393 = vrot.slane %v391, 5
        %v394 = vsel %vm380, %v389, %v393
        %v395 = vshrl.u32 %v350, 16
        %v397 = vrot.slane %v395, 4
        %v398 = vor.u32 %v397, %v393
        %v399 = vrot.slane %v398, 4
        %v401 = vshll.u32 %v351, 16
        %v403 = vrot.slane %v401, 5
        %v404 = vsel %vm380, %v399, %v403
        %v405 = vshrl.u32 %v351, 16
        %v407 = vrot.slane %v405, 4
        %v408 = vor.u32 %v407, %v403
        %v409 = vrot.slane %v408, 4
        %v411 = vshll.u32 %v352, 16
        %v413 = vrot.slane %v411, 5
        %v414 = vsel %vm380, %v409, %v413
        %v415 = vshrl.u32 %v352, 16
        %v417 = vrot.slane %v415, 4
        %v418 = vor.u32 %v417, %v413
        %v419 = vrot.slane %v418, 4
        %v421 = vshll.u32 %v353, 16
        %v423 = vrot.slane %v421, 5
        %v424 = vsel %vm380, %v419, %v423
        %v425 = vshrl.u32 %v353, 16
        %v427 = vrot.slane %v425, 4
        %v428 = vor.u32 %v427, %v423
        %v429 = vrot.slane %v428, 4
        %v431 = vshll.u32 %v354, 16
        %v433 = vrot.slane %v431, 5
        %v434 = vsel %vm380, %v429, %v433
        %v435 = vshrl.u32 %v354, 16
        %v437 = vrot.slane %v435, 4
        %v438 = vor.u32 %v437, %v433
        %v439 = vrot.slane %v438, 4
        %v441 = vshll.u32 %v355, 16
        %v443 = vrot.slane %v441, 5
        %v444 = vsel %vm380, %v439, %v443
        %v445 = vshrl.u32 %v355, 16
        %v447 = vrot.slane %v445, 4
        %v448 = vor.u32 %v447, %v443
        %v449 = vrot.slane %v448, 4
        %v451 = vshll.u32 %v356, 16
        %v453 = vrot.slane %v451, 5
        %v454 = vsel %vm380, %v449, %v453
        %v455 = vshrl.u32 %v356, 16
        %v457 = vrot.slane %v455, 4
        %v458 = vor.u32 %v457, %v453
        %v459 = vrot.slane %v458, 4
        %v461 = vshll.u32 %v357, 16
        %v463 = vrot.slane %v461, 5
        %v464 = vsel %vm380, %v459, %v463
        %v465 = vshrl.u32 %v357, 16
        %v467 = vrot.slane %v465, 4
        %v468 = vor.u32 %v467, %v463
        %v469 = vrot.slane %v468, 4
        %v471 = vshll.u32 %v377, 16
        %v473 = vrot.slane %v471, 5
        %v474 = vsel %vm380, %v469, %v473
        %v484 = vmax.bf16 %v368, %v394
        %v485 = vmax.bf16 %v369, %v404
        %v486 = vmax.bf16 %v370, %v414
        %v487 = vmax.bf16 %v371, %v424
        %v488 = vmax.bf16 %v372, %v434
        %v489 = vmax.bf16 %v373, %v444
        %v490 = vmax.bf16 %v374, %v454
        %v491 = vmax.bf16 %v375, %v464
        %v492 = vmax.bf16 %v376, %v474
        %s493 = scalar_lea.vmem %s327, 96 [#allocation2]
        %v494 = vld [vmem:[%s493] sm:$0xf]
        %v495 = vld [vmem:[%s493 + $0x4] sm:$0xf]
        %v496 = vld [vmem:[%s493 + $0x8] sm:$0xf]
        %v497 = vld [vmem:[%s493 + $0xc] sm:$0xf]
        %v498 = vld [vmem:[%s493 + $0x10] sm:$0xf]
        %v499 = vld [vmem:[%s493 + $0x14] sm:$0xf]
        %v500 = vld [vmem:[%s493 + $0x18] sm:$0xf]
        %v501 = vld [vmem:[%s493 + $0x1c] sm:$0xf]
        %v502 = vld [vmem:[%s493 + $0x20] sm:$0xf]
        %v503 = vmax.bf16 %v484, %v494
        %v504 = vmax.bf16 %v485, %v495
        %v505 = vmax.bf16 %v486, %v496
        %v506 = vmax.bf16 %v487, %v497
        %v507 = vmax.bf16 %v488, %v498
        %v508 = vmax.bf16 %v489, %v499
        %v509 = vmax.bf16 %v490, %v500
        %v510 = vmax.bf16 %v491, %v501
        %v511 = vmax.bf16 %v492, %v502
        %s512 = scalar_lea.vmem %s327, 144 [#allocation2]
        %v513 = vld [vmem:[%s512] sm:$0xf]
        %v514 = vld [vmem:[%s512 + $0x4] sm:$0xf]
        %v515 = vld [vmem:[%s512 + $0x8] sm:$0xf]
        %v516 = vld [vmem:[%s512 + $0xc] sm:$0xf]
        %v517 = vld [vmem:[%s512 + $0x10] sm:$0xf]
        %v518 = vld [vmem:[%s512 + $0x14] sm:$0xf]
        %v519 = vld [vmem:[%s512 + $0x18] sm:$0xf]
        %v520 = vld [vmem:[%s512 + $0x1c] sm:$0xf]
        %v521 = vld [vmem:[%s512 + $0x20] sm:$0xf]
        %v522 = vmax.bf16 %v503, %v513
        %v523 = vmax.bf16 %v504, %v514
        %v524 = vmax.bf16 %v505, %v515
        %v525 = vmax.bf16 %v506, %v516
        %v526 = vmax.bf16 %v507, %v517
        %v527 = vmax.bf16 %v508, %v518
        %v528 = vmax.bf16 %v509, %v519
        %v529 = vmax.bf16 %v510, %v520
        %v530 = vmax.bf16 %v511, %v521
        %v531 = vld [vmem:[%s493 + $0x24] sm:$0x1]
        %v533 = vshrl.u32 %v494, 16
        %v535 = vrot.slane %v533, 4
        %v536 = vshll.u32 %v494, 16
        %v538 = vrot.slane %v536, 5
        %v539 = vor.u32 %v535, %v538
        %v540 = vrot.slane %v539, 4
        %v542 = vshll.u32 %v495, 16
        %v544 = vrot.slane %v542, 5
        %v545 = vsel %vm380, %v540, %v544
        %v546 = vshrl.u32 %v495, 16
        %v548 = vrot.slane %v546, 4
        %v549 = vor.u32 %v548, %v544
        %v550 = vrot.slane %v549, 4
        %v552 = vshll.u32 %v496, 16
        %v554 = vrot.slane %v552, 5
        %v555 = vsel %vm380, %v550, %v554
        %v556 = vshrl.u32 %v496, 16
        %v558 = vrot.slane %v556, 4
        %v559 = vor.u32 %v558, %v554
        %v560 = vrot.slane %v559, 4
        %v562 = vshll.u32 %v497, 16
        %v564 = vrot.slane %v562, 5
        %v565 = vsel %vm380, %v560, %v564
        %v566 = vshrl.u32 %v497, 16
        %v568 = vrot.slane %v566, 4
        %v569 = vor.u32 %v568, %v564
        %v570 = vrot.slane %v569, 4
        %v572 = vshll.u32 %v498, 16
        %v574 = vrot.slane %v572, 5
        %v575 = vsel %vm380, %v570, %v574
        %v576 = vshrl.u32 %v498, 16
        %v578 = vrot.slane %v576, 4
        %v579 = vor.u32 %v578, %v574
        %v580 = vrot.slane %v579, 4
        %v582 = vshll.u32 %v499, 16
        %v584 = vrot.slane %v582, 5
        %v585 = vsel %vm380, %v580, %v584
        %v586 = vshrl.u32 %v499, 16
        %v588 = vrot.slane %v586, 4
        %v589 = vor.u32 %v588, %v584
        %v590 = vrot.slane %v589, 4
        %v592 = vshll.u32 %v500, 16
        %v594 = vrot.slane %v592, 5
        %v595 = vsel %vm380, %v590, %v594
        %v596 = vshrl.u32 %v500, 16
        %v598 = vrot.slane %v596, 4
        %v599 = vor.u32 %v598, %v594
        %v600 = vrot.slane %v599, 4
        %v602 = vshll.u32 %v501, 16
        %v604 = vrot.slane %v602, 5
        %v605 = vsel %vm380, %v600, %v604
        %v606 = vshrl.u32 %v501, 16
        %v608 = vrot.slane %v606, 4
        %v609 = vor.u32 %v608, %v604
        %v610 = vrot.slane %v609, 4
        %v612 = vshll.u32 %v502, 16
        %v614 = vrot.slane %v612, 5
        %v615 = vsel %vm380, %v610, %v614
        %v616 = vshrl.u32 %v502, 16
        %v618 = vrot.slane %v616, 4
        %v619 = vor.u32 %v618, %v614
        %v620 = vrot.slane %v619, 4
        %v622 = vshll.u32 %v531, 16
        %v624 = vrot.slane %v622, 5
        %v625 = vsel %vm380, %v620, %v624
        %v635 = vmax.bf16 %v522, %v545
        %v636 = vmax.bf16 %v523, %v555
        %v637 = vmax.bf16 %v524, %v565
        %v638 = vmax.bf16 %v525, %v575
        %v639 = vmax.bf16 %v526, %v585
        %v640 = vmax.bf16 %v527, %v595
        %v641 = vmax.bf16 %v528, %v605
        %v642 = vmax.bf16 %v529, %v615
        %v643 = vmax.bf16 %v530, %v625
        %v644 = vld [vmem:[%s327 + $0x24] sm:$0xf]
        %v645 = vld [vmem:[%s327 + $0x28] sm:$0x1]
        %v647 = vshll.u32 %v644, 16
        %v649 = vrot.slane %v647, 5
        %v650 = vsel %vm380, %v469, %v649
        %v651 = vshrl.u32 %v644, 16
        %v653 = vrot.slane %v651, 4
        %v654 = vor.u32 %v653, %v649
        %v655 = vrot.slane %v654, 4
        %v657 = vshll.u32 %v645, 16
        %v659 = vrot.slane %v657, 5
        %v660 = vsel %vm380, %v655, %v659
        %v663 = vmax.bf16 %v635, %v404
        %v664 = vmax.bf16 %v636, %v414
        %v665 = vmax.bf16 %v637, %v424
        %v666 = vmax.bf16 %v638, %v434
        %v667 = vmax.bf16 %v639, %v444
        %v668 = vmax.bf16 %v640, %v454
        %v669 = vmax.bf16 %v641, %v464
        %v670 = vmax.bf16 %v642, %v650
        %v671 = vmax.bf16 %v643, %v660
        %v672 = vld [vmem:[%s358 + $0x24] sm:$0xf]
        %v673 = vld [vmem:[%s358 + $0x28] sm:$0x1]
        %v675 = vshrl.u32 %v360, 16
        %v677 = vrot.slane %v675, 4
        %v678 = vshll.u32 %v360, 16
        %v680 = vrot.slane %v678, 5
        %v681 = vor.u32 %v677, %v680
        %v682 = vrot.slane %v681, 4
        %v684 = vshll.u32 %v361, 16
        %v686 = vrot.slane %v684, 5
        %v687 = vsel %vm380, %v682, %v686
        %v688 = vshrl.u32 %v361, 16
        %v690 = vrot.slane %v688, 4
        %v691 = vor.u32 %v690, %v686
        %v692 = vrot.slane %v691, 4
        %v694 = vshll.u32 %v362, 16
        %v696 = vrot.slane %v694, 5
        %v697 = vsel %vm380, %v692, %v696
        %v698 = vshrl.u32 %v362, 16
        %v700 = vrot.slane %v698, 4
        %v701 = vor.u32 %v700, %v696
        %v702 = vrot.slane %v701, 4
        %v704 = vshll.u32 %v363, 16
        %v706 = vrot.slane %v704, 5
        %v707 = vsel %vm380, %v702, %v706
        %v708 = vshrl.u32 %v363, 16
        %v710 = vrot.slane %v708, 4
        %v711 = vor.u32 %v710, %v706
        %v712 = vrot.slane %v711, 4
        %v714 = vshll.u32 %v364, 16
        %v716 = vrot.slane %v714, 5
        %v717 = vsel %vm380, %v712, %v716
        %v718 = vshrl.u32 %v364, 16
        %v720 = vrot.slane %v718, 4
        %v721 = vor.u32 %v720, %v716
        %v722 = vrot.slane %v721, 4
        %v724 = vshll.u32 %v365, 16
        %v726 = vrot.slane %v724, 5
        %v727 = vsel %vm380, %v722, %v726
        %v728 = vshrl.u32 %v365, 16
        %v730 = vrot.slane %v728, 4
        %v731 = vor.u32 %v730, %v726
        %v732 = vrot.slane %v731, 4
        %v734 = vshll.u32 %v366, 16
        %v736 = vrot.slane %v734, 5
        %v737 = vsel %vm380, %v732, %v736
        %v738 = vshrl.u32 %v366, 16
        %v740 = vrot.slane %v738, 4
        %v741 = vor.u32 %v740, %v736
        %v742 = vrot.slane %v741, 4
        %v744 = vshll.u32 %v367, 16
        %v746 = vrot.slane %v744, 5
        %v747 = vsel %vm380, %v742, %v746
        %v748 = vshrl.u32 %v367, 16
        %v750 = vrot.slane %v748, 4
        %v751 = vor.u32 %v750, %v746
        %v752 = vrot.slane %v751, 4
        %v754 = vshll.u32 %v672, 16
        %v756 = vrot.slane %v754, 5
        %v757 = vsel %vm380, %v752, %v756
        %v758 = vshrl.u32 %v672, 16
        %v760 = vrot.slane %v758, 4
        %v761 = vor.u32 %v760, %v756
        %v762 = vrot.slane %v761, 4
        %v764 = vshll.u32 %v673, 16
        %v766 = vrot.slane %v764, 5
        %v767 = vsel %vm380, %v762, %v766
        %v777 = vmax.bf16 %v663, %v687
        %v778 = vmax.bf16 %v664, %v697
        %v779 = vmax.bf16 %v665, %v707
        %v780 = vmax.bf16 %v666, %v717
        %v781 = vmax.bf16 %v667, %v727
        %v782 = vmax.bf16 %v668, %v737
        %v783 = vmax.bf16 %v669, %v747
        %v784 = vmax.bf16 %v670, %v757
        %v785 = vmax.bf16 %v671, %v767
        %v786 = vld [vmem:[%s327 + $0x4] sm:$0xe]
        %vm797 = vcmask 1042432
        %vm798 = vcmask 1046532
        %vm799 = vmor %vm797, %vm798
        %v800 = vrot.slane %v786, 5
        %v801 = vrot.slane %v800, 4
        %v802 = vrot.slane %v351, 5
        %v803 = vsel %vm799, %v801, %v802
        %v804 = vrot.slane %v802, 4
        %v805 = vrot.slane %v352, 5
        %v806 = vsel %vm799, %v804, %v805
        %v807 = vrot.slane %v805, 4
        %v808 = vrot.slane %v353, 5
        %v809 = vsel %vm799, %v807, %v808
        %v810 = vrot.slane %v808, 4
        %v811 = vrot.slane %v354, 5
        %v812 = vsel %vm799, %v810, %v811
        %v813 = vrot.slane %v811, 4
        %v814 = vrot.slane %v355, 5
        %v815 = vsel %vm799, %v813, %v814
        %v816 = vrot.slane %v814, 4
        %v817 = vrot.slane %v356, 5
        %v818 = vsel %vm799, %v816, %v817
        %v819 = vrot.slane %v817, 4
        %v820 = vrot.slane %v357, 5
        %v821 = vsel %vm799, %v819, %v820
        %v822 = vrot.slane %v820, 4
        %v823 = vrot.slane %v644, 5
        %v824 = vsel %vm799, %v822, %v823
        %v825 = vrot.slane %v823, 4
        %v826 = vrot.slane %v645, 5
        %v827 = vsel %vm799, %v825, %v826
        %v837 = vmax.bf16 %v777, %v803
        %v838 = vmax.bf16 %v778, %v806
        %v839 = vmax.bf16 %v779, %v809
        %v840 = vmax.bf16 %v780, %v812
        %v841 = vmax.bf16 %v781, %v815
        %v842 = vmax.bf16 %v782, %v818
        %v843 = vmax.bf16 %v783, %v821
        %v844 = vmax.bf16 %v784, %v824
        %v845 = vmax.bf16 %v785, %v827
        %846 = vst [vmem:[%s348] sm:$0xf] %v837
        %847 = vst [vmem:[%s348 + $0x4] sm:$0xf] %v838
        %848 = vst [vmem:[%s348 + $0x8] sm:$0xf] %v839
        %849 = vst [vmem:[%s348 + $0xc] sm:$0xf] %v840
        %850 = vst [vmem:[%s348 + $0x10] sm:$0xf] %v841
        %851 = vst [vmem:[%s348 + $0x14] sm:$0xf] %v842
        %852 = vst [vmem:[%s348 + $0x18] sm:$0xf] %v843
        %853 = vst [vmem:[%s348 + $0x1c] sm:$0xf] %v844
        %854 = vst [vmem:[%s348 + $0x20] sm:$0xf] %v845
        %p855 = scmp.lt.s32.totalorder %s12, 1
        %s856 = scalar_select %p855, %s12, 1
        %s857 = smul.addr %s856, 9
        %s858 = smul.addr %s857, 4
        %s859 = scalar_lea.vmem %s1, %s858
        // Predicated region
        $region66: #{_lambda_.8} parent=60 // pred_check
          %p860 = pneg %p56
        $region67: #{_lambda_.8} parent=60 // pred_check_branch
          %862 = sbr.rel (%p860) target = $region69
        $region68: #{_lambda_.8} parent=60 // pred_region
          _
        $region69: #{_lambda_.8} parent=60 // pred_fallthru
          _
      $region61: #{_lambda_.8} parent=5 // pred_fallthru
        _
      %p863 = scmp.le.s32.totalorder 2, %s7
      // Predicated region
      $region70: #{_lambda_.8} parent=5 // pred_check
        %p864 = pneg %p863
      $region71: #{_lambda_.8} parent=5 // pred_check_branch
        %866 = sbr.rel (%p864) target = $region73
      $region72: #{_lambda_.8} parent=5 // pred_region
        %s867 = ssub.s32 %s7, 2
        // Predicated region
        $region74: #{_lambda_.8} parent=72 // pred_check
          %p868 = pneg %p62
        $region75: #{_lambda_.8} parent=72 // pred_check_branch
          %870 = sbr.rel (%p868) target = $region77
        $region76: #{_lambda_.8} parent=72 // pred_region
          %p871 = scmp.lt.s32.totalorder %s13, 1
          %s872 = scalar_select %p871, %s13, 1
          %s873 = smul.addr %s872, 9
          %s874 = smul.addr %s873, 4
          %s875 = scalar_lea.vmem %s1, %s874
        $region77: #{_lambda_.8} parent=72 // pred_fallthru
          _
      $region73: #{_lambda_.8} parent=5 // pred_fallthru
        _
    $region6: #{_lambda_.8} parent=1 // loop_footer
      %s11 = sadd.s32 1, %s7
    $region7: #{_lambda_.8} parent=1 // loop_footer_branch
      %6 = sbr.rel target = $region3
    $region8: #{_lambda_.8} parent=1 // loop_exit
      _

// kernel: _lambda_.9
$region0: #{_lambda_.9}
  #allocation0 [shape = 'u32[]', space=smem, size = 0x4, offset = 0x4, fixed_abs, tag = 'smem constant byte address 0x4 - core index']
  #allocation1 [shape = 'u32[144,128]{1,0:T(1,128)}', space=vmem, size = 0x12000, scoped, tag = 'internal scratch']
  %s0 = inlined_call_operand.vmem [shape: bf16[1,2,110,128], index: 0, kind: input, shape index: {}]
  %s1 = inlined_call_operand.vmem [shape: bf16[9,128,128], index: 1, kind: input, shape index: {}]
  %s2 = inlined_call_operand.vmem [shape: f32[1,128], index: 2, kind: input, shape index: {}]
  %s3 = inlined_call_operand.vmem [shape: bf16[2,80,128], index: 3, kind: output, shape index: {}]
  %s4 = sld [smem:[#allocation0]]
  $region45: #{_lambda_.9} parent=0
    _
  %s6 = ssub.s32 1, %s4
  %s7 = scalar_select 0, %s6, %s4
  loop: start=0, step=1, limit=4
  $region2: #{_lambda_.9} parent=0 // loop_pre_header
    _
  $region3: #{_lambda_.9} parent=0 // loop_header
    %s9 = sphi 0, %s13
    %p10 = scmp.ge.s32.totalorder %s9, 4
    %s19 = sphi 0, %s21
    %s22 = sphi 0, %s19
    %s23 = sphi 0, %s22
    %s39 = sphi 0, %s23
    %s43 = sphi 0, %s43
    %s45 = sphi 0, %s43
    %s46 = sphi 0, %s45
    %s60 = sphi 0, %s46
    %s64 = sphi 0, %s64
    %s66 = sphi 0, %s64
    %s67 = sphi 0, %s66
    %s81 = sphi 0, %s67
    %s87 = sphi 0, %s89
    %s90 = sphi 0, %s87
    %s91 = sphi 0, %s90
    %s107 = sphi 0, %s91
  $region4: #{_lambda_.9} parent=0 // loop_header_branch
    %12 = sbr.rel (%p10) target = $region8
  $region5: #{_lambda_.9} parent=0 // loop_body
    %s14 = ssub.s32 %s9, 1
    %s15 = ssub.s32 %s9, 2
    %s16 = sadd.s32 %s9, 1
    %s17 = ssub.s32 %s9, %s16
    %p18 = scmp.eq.s32.totalorder %s17, 0
    %s20 = sadd.s32 %s19, 1
    %s21 = scalar_select %p18, %s19, %s20
    %p24 = pneg %p18
    %p25 = scmp.eq.s32.totalorder %s9, 1
    %p26 = por %p24, %p25
    %p27 = scmp.ne.s32.totalorder %s19, %s22
    %p28 = scmp.eq.s32.totalorder %s9, 0
    %p29 = por %p27, %p28
    %p30 = scmp.ne.s32.totalorder %s19, %s22
    %p31 = scmp.eq.s32.totalorder %s14, 1
    %p32 = por %p30, %p31
    %p33 = scmp.ne.s32.totalorder %s22, %s23
    %p34 = scmp.eq.s32.totalorder %s14, 0
    %p35 = por %p33, %p34
    %p36 = scmp.ne.s32.totalorder %s22, %s23
    %p37 = scmp.eq.s32.totalorder %s15, 1
    %p38 = por %p36, %p37
    %p40 = scmp.ne.s32.totalorder %s23, %s39
    %p41 = scmp.eq.s32.totalorder %s15, 0
    %p42 = por %p40, %p41
    %s44 = sadd.s32 %s43, 1
    %p47 = scmp.eq.s32.totalorder %s9, 1
    %p48 = scmp.ne.s32.totalorder %s43, %s45
    %p49 = scmp.eq.s32.totalorder %s9, 0
    %p50 = por %p48, %p49
    %p51 = scmp.ne.s32.totalorder %s43, %s45
    %p52 = scmp.eq.s32.totalorder %s14, 1
    %p53 = por %p51, %p52
    %p54 = scmp.ne.s32.totalorder %s45, %s46
    %p55 = scmp.eq.s32.totalorder %s14, 0
    %p56 = por %p54, %p55
    %p57 = scmp.ne.s32.totalorder %s45, %s46
    %p58 = scmp.eq.s32.totalorder %s15, 1
    %p59 = por %p57, %p58
    %p61 = scmp.ne.s32.totalorder %s46, %s60
    %p62 = scmp.eq.s32.totalorder %s15, 0
    %p63 = por %p61, %p62
    %s65 = sadd.s32 %s64, 1
    %p68 = scmp.eq.s32.totalorder %s9, 1
    %p69 = scmp.ne.s32.totalorder %s64, %s66
    %p70 = scmp.eq.s32.totalorder %s9, 0
    %p71 = por %p69, %p70
    %p72 = scmp.ne.s32.totalorder %s64, %s66
    %p73 = scmp.eq.s32.totalorder %s14, 1
    %p74 = por %p72, %p73
    %p75 = scmp.ne.s32.totalorder %s66, %s67
    %p76 = scmp.eq.s32.totalorder %s14, 0
    %p77 = por %p75, %p76
    %p78 = scmp.ne.s32.totalorder %s66, %s67
    %p79 = scmp.eq.s32.totalorder %s15, 1
    %p80 = por %p78, %p79
    %p82 = scmp.ne.s32.totalorder %s67, %s81
    %p83 = scmp.eq.s32.totalorder %s15, 0
    %p84 = por %p82, %p83
    %s85 = ssub.s32 %s9, %s16
    %p86 = scmp.eq.s32.totalorder %s85, 0
    %s88 = sadd.s32 %s87, 1
    %s89 = scalar_select %p86, %s87, %s88
    %p92 = pneg %p86
    %p93 = scmp.eq.s32.totalorder %s9, 1
    %p94 = por %p92, %p93
    %p95 = scmp.ne.s32.totalorder %s87, %s90
    %p96 = scmp.eq.s32.totalorder %s9, 0
    %p97 = por %p95, %p96
    %p98 = scmp.ne.s32.totalorder %s87, %s90
    %p99 = scmp.eq.s32.totalorder %s14, 1
    %p100 = por %p98, %p99
    %p101 = scmp.ne.s32.totalorder %s90, %s91
    %p102 = scmp.eq.s32.totalorder %s14, 0
    %p103 = por %p101, %p102
    %p104 = scmp.ne.s32.totalorder %s90, %s91
    %p105 = scmp.eq.s32.totalorder %s15, 1
    %p106 = por %p104, %p105
    %p108 = scmp.ne.s32.totalorder %s91, %s107
    %p109 = scmp.eq.s32.totalorder %s15, 0
    %p110 = por %p108, %p109
    %p111 = scmp.le.s32.totalorder 1, %s9
    %p112 = scmp.lt.s32.totalorder %s9, 3
    %p113 = pnand %p111, %p112
    %p114 = pneg %p113
    // Predicated region
    $region9: #{_lambda_.9} parent=5 // pred_check
      _
    $region10: #{_lambda_.9} parent=5 // pred_check_branch
      %116 = sbr.rel (%p113) target = $region12
    $region11: #{_lambda_.9} parent=5 // pred_region
      %s117 = ssub.s32 %s9, 1
      // Predicated region
      $region13: #{_lambda_.9} parent=11 // pred_check
        %p118 = pneg %p56
      $region14: #{_lambda_.9} parent=11 // pred_check_branch
        %120 = sbr.rel (%p118) target = $region16
      $region15: #{_lambda_.9} parent=11 // pred_region
        _
      $region16: #{_lambda_.9} parent=11 // pred_fallthru
        _
      // Predicated region
      $region17: #{_lambda_.9} parent=11 // pred_check
        %p121 = pneg %p77
      $region18: #{_lambda_.9} parent=11 // pred_check_branch
        %123 = sbr.rel (%p121) target = $region20
      $region19: #{_lambda_.9} parent=11 // pred_region
        _
      $region20: #{_lambda_.9} parent=11 // pred_fallthru
        _
    $region12: #{_lambda_.9} parent=5 // pred_fallthru
      _
    %p124 = scmp.lt.s32.totalorder %s9, 2
    // Predicated region
    $region21: #{_lambda_.9} parent=5 // pred_check
      %p125 = pneg %p124
    $region22: #{_lambda_.9} parent=5 // pred_check_branch
      %127 = sbr.rel (%p125) target = $region24
    $region23: #{_lambda_.9} parent=5 // pred_region
      // Predicated region
      $region25: #{_lambda_.9} parent=23 // pred_check
        %p128 = pneg %p29
      $region26: #{_lambda_.9} parent=23 // pred_check_branch
        %130 = sbr.rel (%p128) target = $region28
      $region27: #{_lambda_.9} parent=23 // pred_region
        %p131 = scmp.lt.s32.totalorder %s9, 1
        %s132 = scalar_select %p131, %s9, 1
        %s133 = smul.addr %s132, 14
        %s134 = smul.addr %s133, 4
        %s135 = scalar_lea.vmem %s0, %s134
      $region28: #{_lambda_.9} parent=23 // pred_fallthru
        _
    $region24: #{_lambda_.9} parent=5 // pred_fallthru
      _
    %p136 = scmp.le.s32.totalorder 1, %s9
    %p137 = scmp.lt.s32.totalorder %s9, 3
    %p138 = pnand %p136, %p137
    %p139 = pneg %p138
    // Predicated region
    $region29: #{_lambda_.9} parent=5 // pred_check
      _
    $region30: #{_lambda_.9} parent=5 // pred_check_branch
      %141 = sbr.rel (%p138) target = $region32
    $region31: #{_lambda_.9} parent=5 // pred_region
      %s142 = ssub.s32 %s9, 1
      %p143 = scmp.lt.s32.totalorder %s14, 1
      %s144 = scalar_select %p143, %s14, 1
      %s145 = smul.addr %s144, 14
      %s146 = smul.addr %s145, 4
      %s147 = scalar_lea.vmem %s0, %s146
      %p148 = pneg %p35
      %p149 = pneg %p32
      %p150 = pneg %p56
      %p151 = pneg %p53
      %p152 = pneg %p77
      %p153 = pneg %p74
      %p154 = pneg %p103
      %p155 = pneg %p100
      %p156 = scmp.lt.s32.totalorder %s14, 1
      %s157 = scalar_select %p156, %s14, 1
      %s158 = smul.addr %s157, 10
      %s159 = smul.addr %s158, 4
      %s160 = scalar_lea.vmem %s3, %s159
      %p161 = scmp.lt.s32.totalorder %s14, 1
      %s162 = scalar_select %p161, %s14, 1
      %s163 = smul.addr %s162, 14
      %s164 = smul.addr %s163, 4
      %s165 = scalar_lea.vmem %s0, %s164
      %p166 = scmp.lt.s32.totalorder %s14, 1
      %s167 = scalar_select %p166, %s14, 1
      %s168 = smul.addr %s167, 10
      %s169 = smul.addr %s168, 4
      %s170 = scalar_lea.vmem %s3, %s169
      %v172 = vld [vmem:[%s165] sm:$0xf]
      %v173 = vld [vmem:[%s165 + $0x4] sm:$0xf]
      %v174 = vld [vmem:[%s165 + $0x8] sm:$0xf]
      %v175 = vld [vmem:[%s165 + $0xc] sm:$0xf]
      %v176 = vld [vmem:[%s165 + $0x10] sm:$0xf]
      %v177 = vld [vmem:[%s165 + $0x14] sm:$0xf]
      %v178 = vld [vmem:[%s165 + $0x18] sm:$0xf]
      %v179 = vld [vmem:[%s165 + $0x1c] sm:$0xf]
      %v180 = vld [vmem:[%s165 + $0x20] sm:$0xf]
      %v181 = vld [vmem:[%s165 + $0x24] sm:$0xf]
      %v182 = vld [vmem:[%s1] sm:$0xf]
      %v183 = vld [vmem:[%s1 + $0x4] sm:$0xf]
      %v184 = vld [vmem:[%s1 + $0x8] sm:$0xf]
      %v185 = vld [vmem:[%s1 + $0xc] sm:$0xf]
      %v186 = vld [vmem:[%s1 + $0x10] sm:$0xf]
      %v187 = vld [vmem:[%s1 + $0x14] sm:$0xf]
      %v188 = vld [vmem:[%s1 + $0x18] sm:$0xf]
      %v189 = vld [vmem:[%s1 + $0x1c] sm:$0xf]
      %v190 = vld [vmem:[%s1 + $0x20] sm:$0xf]
      %v191 = vld [vmem:[%s1 + $0x24] sm:$0xf]
      %v192 = vld [vmem:[%s1 + $0x28] sm:$0xf]
      %v193 = vld [vmem:[%s1 + $0x2c] sm:$0xf]
      %v194 = vld [vmem:[%s1 + $0x30] sm:$0xf]
      %v195 = vld [vmem:[%s1 + $0x34] sm:$0xf]
      %v196 = vld [vmem:[%s1 + $0x38] sm:$0xf]
      %v197 = vld [vmem:[%s1 + $0x3c] sm:$0xf]
      %v198 = vld [vmem:[%s165 + $0x28] sm:$0x1]
      %s199 = scalar_lea.vmem %s1, 64
      %v200 = vld [vmem:[%s199] sm:$0xf]
      %v201 = vld [vmem:[%s199 + $0x4] sm:$0xf]
      %v202 = vld [vmem:[%s199 + $0x8] sm:$0xf]
      %v203 = vld [vmem:[%s199 + $0xc] sm:$0xf]
      %v204 = vld [vmem:[%s199 + $0x10] sm:$0xf]
      %v205 = vld [vmem:[%s199 + $0x14] sm:$0xf]
      %v206 = vld [vmem:[%s199 + $0x18] sm:$0xf]
      %v207 = vld [vmem:[%s199 + $0x1c] sm:$0xf]
      %v208 = vld [vmem:[%s199 + $0x20] sm:$0xf]
      %v209 = vld [vmem:[%s199 + $0x24] sm:$0xf]
      %v210 = vld [vmem:[%s199 + $0x28] sm:$0xf]
      %v211 = vld [vmem:[%s199 + $0x2c] sm:$0xf]
      %v212 = vld [vmem:[%s199 + $0x30] sm:$0xf]
      %v213 = vld [vmem:[%s199 + $0x34] sm:$0xf]
      %v214 = vld [vmem:[%s199 + $0x38] sm:$0xf]
      %v215 = vld [vmem:[%s199 + $0x3c] sm:$0xf]
      %v227 = vunpack.c.l.b16 %v172
      %v228 = vunpack.c.l.b16 %v173
      %v229 = vunpack.c.l.b16 %v174
      %v230 = vunpack.c.l.b16 %v175
      %v231 = vunpack.c.l.b16 %v176
      %v232 = vunpack.c.l.b16 %v177
      %v233 = vunpack.c.l.b16 %v178
      %v234 = vunpack.c.l.b16 %v179
      %v235 = vunpack.c.l.b16 %v180
      %v236 = vunpack.c.l.b16 %v181
      %v237 = vunpack.c.l.b16 %v198
      %v238 = vpack.c.b16 %v228, %v227
      %v239 = vpack.c.b16 %v230, %v229
      %v240 = vpack.c.b16 %v232, %v231
      %v241 = vpack.c.b16 %v234, %v233
      %v242 = vpack.c.b16 %v236, %v235
      %v243 = vpack.c.b16 %v237, %v237
      %vm244 = vsmask.f32 7424
      %v246 = vshrl.u32 %v238, 16
      %v248 = vshll.u32 %v238, 16
      %v250 = vrot.slane %v248, 1
      %v251 = vor.u32 %v246, %v250
      %v253 = vshll.u32 %v239, 16
      %v255 = vrot.slane %v253, 1
      %v256 = vsel %vm244, %v251, %v255
      %v257 = vshrl.u32 %v239, 16
      %v259 = vor.u32 %v257, %v255
      %v261 = vshll.u32 %v240, 16
      %v263 = vrot.slane %v261, 1
      %v264 = vsel %vm244, %v259, %v263
      %v265 = vshrl.u32 %v240, 16
      %v267 = vor.u32 %v265, %v263
      %v269 = vshll.u32 %v241, 16
      %v271 = vrot.slane %v269, 1
      %v272 = vsel %vm244, %v267, %v271
      %v273 = vshrl.u32 %v241, 16
      %v275 = vor.u32 %v273, %v271
      %v277 = vshll.u32 %v242, 16
      %v279 = vrot.slane %v277, 1
      %v280 = vsel %vm244, %v275, %v279
      %v281 = vshrl.u32 %v242, 16
      %v283 = vor.u32 %v281, %v279
      %v285 = vshll.u32 %v243, 16
      %v287 = vrot.slane %v285, 1
      %v288 = vsel %vm244, %v283, %v287
      %v310 = vunpack.c.l.b16 %v200
      %v311 = vunpack.c.l.b16 %v201
      %v312 = vunpack.c.l.b16 %v202
      %v313 = vunpack.c.l.b16 %v203
      %v314 = vunpack.c.l.b16 %v204
      %v315 = vunpack.c.l.b16 %v205
      %v316 = vunpack.c.l.b16 %v206
      %v317 = vunpack.c.l.b16 %v207
      %v318 = vunpack.c.l.b16 %v208
      %v319 = vunpack.c.l.b16 %v209
      %v320 = vunpack.c.l.b16 %v210
      %v321 = vunpack.c.l.b16 %v211
      %v322 = vunpack.c.l.b16 %v212
      %v323 = vunpack.c.l.b16 %v213
      %v324 = vunpack.c.l.b16 %v214
      %v325 = vunpack.c.l.b16 %v215
      %v326 = vpack.c.b16 %v311, %v310
      %v327 = vpack.c.b16 %v313, %v312
      %v328 = vpack.c.b16 %v315, %v314
      %v329 = vpack.c.b16 %v317, %v316
      %v330 = vpack.c.b16 %v319, %v318
      %v331 = vpack.c.b16 %v321, %v320
      %v332 = vpack.c.b16 %v323, %v322
      %v333 = vpack.c.b16 %v325, %v324
      %342 = vmatprep.subr.bf16.mxu0 0
      %343 = vmatpush1.bf16.msra.mxu0 %v333
      %344 = vmatprep.subr.bf16.mxu0 0
      %345 = vmatpush1.bf16.msra.mxu0 %v332
      %346 = vmatprep.subr.bf16.mxu0 0
      %347 = vmatpush1.bf16.msra.mxu0 %v331
      %348 = vmatprep.subr.bf16.mxu0 0
      %349 = vmatpush1.bf16.msra.mxu0 %v330
      %350 = vmatprep.subr.bf16.mxu0 0
      %351 = vmatpush1.bf16.msra.mxu0 %v329
      %352 = vmatprep.subr.bf16.mxu0 0
      %353 = vmatpush1.bf16.msra.mxu0 %v328
      %354 = vmatprep.subr.bf16.mxu0 0
      %355 = vmatpush1.bf16.msra.mxu0 %v327
      %356 = vmatprep.subr.bf16.mxu0 0
      %357 = vmatpush1.bf16.msra.mxu0 %v326
      %358 = vmatprep.subr.bf16.mxu0 0
      %359 = vmatpush2.bf16.msra.mxu0 0
      %360 = vmatprep.subr.bf16.mxu0 0
      %361 = vmatpush2.bf16.msra.mxu0 0
      %362 = vmatprep.subr.bf16.mxu0 0
      %363 = vmatpush2.bf16.msra.mxu0 0
      %364 = vmatprep.subr.bf16.mxu0 0
      %365 = vmatpush2.bf16.msra.mxu0 0
      %366 = vmatprep.subr.bf16.mxu0 0
      %367 = vmatpush2.bf16.msra.mxu0 0
      %368 = vmatprep.subr.bf16.mxu0 0
      %369 = vmatpush2.bf16.msra.mxu0 0
      %370 = vmatprep.subr.bf16.mxu0 0
      %371 = vmatpush2.bf16.msra.mxu0 0
      %372 = vmatprep.subr.bf16.mxu0 0
      %373 = vmatpush2.bf16.msra.mxu0 0
      %374 = vmatprep.mubr.bf16.mxu0 0
      %375 = vmatmul.mubr.bf16.gmra.mxu0 %v256
      %v376 = vpop.f32.mrf.mxu0
      %v377 = vadd.f32 0.0, %v376
      %v378 = vpop.f32.mrf.mxu0
      %v379 = vpop.f32.mrf.mxu0
      %v380 = vadd.f32 0.0, %v379
      %v381 = vpop.f32.mrf.mxu0
      %382 = vmatprep.mubr.bf16.mxu0 0
      %383 = vmatmul.mubr.bf16.gmra.mxu0 %v264
      %v384 = vpop.f32.mrf.mxu0
      %v385 = vadd.f32 0.0, %v384
      %v386 = vpop.f32.mrf.mxu0
      %v387 = vpop.f32.mrf.mxu0
      %v388 = vadd.f32 0.0, %v387
      %v389 = vpop.f32.mrf.mxu0
      %390 = vmatprep.mubr.bf16.mxu0 0
      %391 = vmatmul.mubr.bf16.gmra.mxu0 %v272
      %v392 = vpop.f32.mrf.mxu0
      %v393 = vadd.f32 0.0, %v392
      %v394 = vpop.f32.mrf.mxu0
      %v395 = vpop.f32.mrf.mxu0
      %v396 = vadd.f32 0.0, %v395
      %v397 = vpop.f32.mrf.mxu0
      %398 = vmatprep.mubr.bf16.mxu0 0
      %399 = vmatmul.mubr.bf16.gmra.mxu0 %v280
      %v400 = vpop.f32.mrf.mxu0
      %v401 = vadd.f32 0.0, %v400
      %v402 = vpop.f32.mrf.mxu0
      %v403 = vpop.f32.mrf.mxu0
      %v404 = vadd.f32 0.0, %v403
      %v405 = vpop.f32.mrf.mxu0
      %406 = vmatprep.mubr.bf16.mxu0 0
      %407 = vmatmul.mubr.bf16.gmra.mxu0 %v288
      %v408 = vpop.f32.mrf.mxu0
      %v409 = vadd.f32 0.0, %v408
      %v410 = vpop.f32.mrf.mxu0
      %v411 = vpop.f32.mrf.mxu0
      %v412 = vadd.f32 0.0, %v411
      %v413 = vpop.f32.mrf.mxu0
      %414 = vdwg.mxu0
      %v436 = vunpack.c.l.b16 %v182
      %v437 = vunpack.c.l.b16 %v183
      %v438 = vunpack.c.l.b16 %v184
      %v439 = vunpack.c.l.b16 %v185
      %v440 = vunpack.c.l.b16 %v186
      %v441 = vunpack.c.l.b16 %v187
      %v442 = vunpack.c.l.b16 %v188
      %v443 = vunpack.c.l.b16 %v189
      %v444 = vunpack.c.l.b16 %v190
      %v445 = vunpack.c.l.b16 %v191
      %v446 = vunpack.c.l.b16 %v192
      %v447 = vunpack.c.l.b16 %v193
      %v448 = vunpack.c.l.b16 %v194
      %v449 = vunpack.c.l.b16 %v195
      %v450 = vunpack.c.l.b16 %v196
      %v451 = vunpack.c.l.b16 %v197
      %v452 = vpack.c.b16 %v437, %v436
      %v453 = vpack.c.b16 %v439, %v438
      %v454 = vpack.c.b16 %v441, %v440
      %v455 = vpack.c.b16 %v443, %v442
      %v456 = vpack.c.b16 %v445, %v444
      %v457 = vpack.c.b16 %v447, %v446
      %v458 = vpack.c.b16 %v449, %v448
      %v459 = vpack.c.b16 %v451, %v450
      %468 = vmatprep.subr.bf16.mxu0 0
      %469 = vmatpush1.bf16.msra.mxu0 %v459
      %470 = vmatprep.subr.bf16.mxu0 0
      %471 = vmatpush1.bf16.msra.mxu0 %v458
      %472 = vmatprep.subr.bf16.mxu0 0
      %473 = vmatpush1.bf16.msra.mxu0 %v457
      %474 = vmatprep.subr.bf16.mxu0 0
      %475 = vmatpush1.bf16.msra.mxu0 %v456
      %476 = vmatprep.subr.bf16.mxu0 0
      %477 = vmatpush1.bf16.msra.mxu0 %v455
      %478 = vmatprep.subr.bf16.mxu0 0
      %479 = vmatpush1.bf16.msra.mxu0 %v454
      %480 = vmatprep.subr.bf16.mxu0 0
      %481 = vmatpush1.bf16.msra.mxu0 %v453
      %482 = vmatprep.subr.bf16.mxu0 0
      %483 = vmatpush1.bf16.msra.mxu0 %v452
      %484 = vmatprep.subr.bf16.mxu0 0
      %485 = vmatpush2.bf16.msra.mxu0 0
      %486 = vmatprep.subr.bf16.mxu0 0
      %487 = vmatpush2.bf16.msra.mxu0 0
      %488 = vmatprep.subr.bf16.mxu0 0
      %489 = vmatpush2.bf16.msra.mxu0 0
      %490 = vmatprep.subr.bf16.mxu0 0
      %491 = vmatpush2.bf16.msra.mxu0 0
      %492 = vmatprep.subr.bf16.mxu0 0
      %493 = vmatpush2.bf16.msra.mxu0 0
      %494 = vmatprep.subr.bf16.mxu0 0
      %495 = vmatpush2.bf16.msra.mxu0 0
      %496 = vmatprep.subr.bf16.mxu0 0
      %497 = vmatpush2.bf16.msra.mxu0 0
      %498 = vmatprep.subr.bf16.mxu0 0
      %499 = vmatpush2.bf16.msra.mxu0 0
      %500 = vmatprep.mubr.bf16.mxu0 0
      %501 = vmatmul.mubr.bf16.gmra.mxu0 %v238
      %v502 = vpop.f32.mrf.mxu0
      %v503 = vadd.f32 %v377, %v502
      %v504 = vpop.f32.mrf.mxu0
      %v505 = vpop.f32.mrf.mxu0
      %v506 = vadd.f32 %v380, %v505
      %v507 = vpop.f32.mrf.mxu0
      %508 = vmatprep.mubr.bf16.mxu0 0
      %509 = vmatmul.mubr.bf16.gmra.mxu0 %v239
      %v510 = vpop.f32.mrf.mxu0
      %v511 = vadd.f32 %v385, %v510
      %v512 = vpop.f32.mrf.mxu0
      %v513 = vpop.f32.mrf.mxu0
      %v514 = vadd.f32 %v388, %v513
      %v515 = vpop.f32.mrf.mxu0
      %516 = vmatprep.mubr.bf16.mxu0 0
      %517 = vmatmul.mubr.bf16.gmra.mxu0 %v240
      %v518 = vpop.f32.mrf.mxu0
      %v519 = vadd.f32 %v393, %v518
      %v520 = vpop.f32.mrf.mxu0
      %v521 = vpop.f32.mrf.mxu0
      %v522 = vadd.f32 %v396, %v521
      %v523 = vpop.f32.mrf.mxu0
      %524 = vmatprep.mubr.bf16.mxu0 0
      %525 = vmatmul.mubr.bf16.gmra.mxu0 %v241
      %v526 = vpop.f32.mrf.mxu0
      %v527 = vadd.f32 %v401, %v526
      %v528 = vpop.f32.mrf.mxu0
      %v529 = vpop.f32.mrf.mxu0
      %v530 = vadd.f32 %v404, %v529
      %v531 = vpop.f32.mrf.mxu0
      %532 = vmatprep.mubr.bf16.mxu0 0
      %533 = vmatmul.mubr.bf16.gmra.mxu0 %v242
      %v534 = vpop.f32.mrf.mxu0
      %v535 = vadd.f32 %v409, %v534
      %v536 = vpop.f32.mrf.mxu0
      %v537 = vpop.f32.mrf.mxu0
      %v538 = vadd.f32 %v412, %v537
      %v539 = vpop.f32.mrf.mxu0
      %540 = vdwg.mxu0
      %v541 = vld [vmem:[%s165] sm:$0xe]
      %s542 = scalar_lea.vmem %s1, 128
      %v543 = vld [vmem:[%s542] sm:$0xf]
      %v544 = vld [vmem:[%s542 + $0x4] sm:$0xf]
      %v545 = vld [vmem:[%s542 + $0x8] sm:$0xf]
      %v546 = vld [vmem:[%s542 + $0xc] sm:$0xf]
      %v547 = vld [vmem:[%s542 + $0x10] sm:$0xf]
      %v548 = vld [vmem:[%s542 + $0x14] sm:$0xf]
      %v549 = vld [vmem:[%s542 + $0x18] sm:$0xf]
      %v550 = vld [vmem:[%s542 + $0x1c] sm:$0xf]
      %v551 = vld [vmem:[%s542 + $0x20] sm:$0xf]
      %v552 = vld [vmem:[%s542 + $0x24] sm:$0xf]
      %v553 = vld [vmem:[%s542 + $0x28] sm:$0xf]
      %v554 = vld [vmem:[%s542 + $0x2c] sm:$0xf]
      %v555 = vld [vmem:[%s542 + $0x30] sm:$0xf]
      %v556 = vld [vmem:[%s542 + $0x34] sm:$0xf]
      %v557 = vld [vmem:[%s542 + $0x38] sm:$0xf]
      %v558 = vld [vmem:[%s542 + $0x3c] sm:$0xf]
      %v560 = vunpack.c.l.b16 %v541
      %v561 = vpack.c.b16 %v228, %v560
      %vm562 = vcmask 1046528
      %v563 = vrot.slane %v561, 1
      %v564 = vrot.slane %v239, 1
      %v565 = vsel %vm562, %v563, %v564
      %v566 = vrot.slane %v240, 1
      %v567 = vsel %vm562, %v564, %v566
      %v568 = vrot.slane %v241, 1
      %v569 = vsel %vm562, %v566, %v568
      %v570 = vrot.slane %v242, 1
      %v571 = vsel %vm562, %v568, %v570
      %v572 = vrot.slane %v243, 1
      %v573 = vsel %vm562, %v570, %v572
      %v595 = vunpack.c.l.b16 %v543
      %v596 = vunpack.c.l.b16 %v544
      %v597 = vunpack.c.l.b16 %v545
      %v598 = vunpack.c.l.b16 %v546
      %v599 = vunpack.c.l.b16 %v547
      %v600 = vunpack.c.l.b16 %v548
      %v601 = vunpack.c.l.b16 %v549
      %v602 = vunpack.c.l.b16 %v550
      %v603 = vunpack.c.l.b16 %v551
      %v604 = vunpack.c.l.b16 %v552
      %v605 = vunpack.c.l.b16 %v553
      %v606 = vunpack.c.l.b16 %v554
      %v607 = vunpack.c.l.b16 %v555
      %v608 = vunpack.c.l.b16 %v556
      %v609 = vunpack.c.l.b16 %v557
      %v610 = vunpack.c.l.b16 %v558
      %v611 = vpack.c.b16 %v596, %v595
      %v612 = vpack.c.b16 %v598, %v597
      %v613 = vpack.c.b16 %v600, %v599
      %v614 = vpack.c.b16 %v602, %v601
      %v615 = vpack.c.b16 %v604, %v603
      %v616 = vpack.c.b16 %v606, %v605
      %v617 = vpack.c.b16 %v608, %v607
      %v618 = vpack.c.b16 %v610, %v609
      %627 = vmatprep.subr.bf16.mxu0 0
      %628 = vmatpush1.bf16.msra.mxu0 %v618
      %629 = vmatprep.subr.bf16.mxu0 0
      %630 = vmatpush1.bf16.msra.mxu0 %v617
      %631 = vmatprep.subr.bf16.mxu0 0
      %632 = vmatpush1.bf16.msra.mxu0 %v616
      %633 = vmatprep.subr.bf16.mxu0 0
      %634 = vmatpush1.bf16.msra.mxu0 %v615
      %635 = vmatprep.subr.bf16.mxu0 0
      %636 = vmatpush1.bf16.msra.mxu0 %v614
      %637 = vmatprep.subr.bf16.mxu0 0
      %638 = vmatpush1.bf16.msra.mxu0 %v613
      %639 = vmatprep.subr.bf16.mxu0 0
      %640 = vmatpush1.bf16.msra.mxu0 %v612
      %641 = vmatprep.subr.bf16.mxu0 0
      %642 = vmatpush1.bf16.msra.mxu0 %v611
      %643 = vmatprep.subr.bf16.mxu0 0
      %644 = vmatpush2.bf16.msra.mxu0 0
      %645 = vmatprep.subr.bf16.mxu0 0
      %646 = vmatpush2.bf16.msra.mxu0 0
      %647 = vmatprep.subr.bf16.mxu0 0
      %648 = vmatpush2.bf16.msra.mxu0 0
      %649 = vmatprep.subr.bf16.mxu0 0
      %650 = vmatpush2.bf16.msra.mxu0 0
      %651 = vmatprep.subr.bf16.mxu0 0
      %652 = vmatpush2.bf16.msra.mxu0 0
      %653 = vmatprep.subr.bf16.mxu0 0
      %654 = vmatpush2.bf16.msra.mxu0 0
      %655 = vmatprep.subr.bf16.mxu0 0
      %656 = vmatpush2.bf16.msra.mxu0 0
      %657 = vmatprep.subr.bf16.mxu0 0
      %658 = vmatpush2.bf16.msra.mxu0 0
      %659 = vmatprep.mubr.bf16.mxu0 0
      %660 = vmatmul.mubr.bf16.gmra.mxu0 %v565
      %v661 = vpop.f32.mrf.mxu0
      %v662 = vadd.f32 0.0, %v661
      %v663 = vpop.f32.mrf.mxu0
      %v664 = vpop.f32.mrf.mxu0
      %v665 = vadd.f32 0.0, %v664
      %v666 = vpop.f32.mrf.mxu0
      %667 = vmatprep.mubr.bf16.mxu0 0
      %668 = vmatmul.mubr.bf16.gmra.mxu0 %v567
      %v669 = vpop.f32.mrf.mxu0
      %v670 = vadd.f32 0.0, %v669
      %v671 = vpop.f32.mrf.mxu0
      %v672 = vpop.f32.mrf.mxu0
      %v673 = vadd.f32 0.0, %v672
      %v674 = vpop.f32.mrf.mxu0
      %675 = vmatprep.mubr.bf16.mxu0 0
      %676 = vmatmul.mubr.bf16.gmra.mxu0 %v569
      %v677 = vpop.f32.mrf.mxu0
      %v678 = vadd.f32 0.0, %v677
      %v679 = vpop.f32.mrf.mxu0
      %v680 = vpop.f32.mrf.mxu0
      %v681 = vadd.f32 0.0, %v680
      %v682 = vpop.f32.mrf.mxu0
      %683 = vmatprep.mubr.bf16.mxu0 0
      %684 = vmatmul.mubr.bf16.gmra.mxu0 %v571
      %v685 = vpop.f32.mrf.mxu0
      %v686 = vadd.f32 0.0, %v685
      %v687 = vpop.f32.mrf.mxu0
      %v688 = vpop.f32.mrf.mxu0
      %v689 = vadd.f32 0.0, %v688
      %v690 = vpop.f32.mrf.mxu0
      %691 = vmatprep.mubr.bf16.mxu0 0
      %692 = vmatmul.mubr.bf16.gmra.mxu0 %v573
      %v693 = vpop.f32.mrf.mxu0
      %v694 = vadd.f32 0.0, %v693
      %v695 = vpop.f32.mrf.mxu0
      %v696 = vpop.f32.mrf.mxu0
      %v697 = vadd.f32 0.0, %v696
      %v698 = vpop.f32.mrf.mxu0
      %699 = vdwg.mxu0
      %v700 = vadd.f32 %v503, %v662
      %v701 = vadd.f32 %v506, %v665
      %v702 = vadd.f32 %v511, %v670
      %v703 = vadd.f32 %v514, %v673
      %v704 = vadd.f32 %v519, %v678
      %v705 = vadd.f32 %v522, %v681
      %v706 = vadd.f32 %v527, %v686
      %v707 = vadd.f32 %v530, %v689
      %v708 = vadd.f32 %v535, %v694
      %v709 = vadd.f32 %v538, %v697
      %v710 = vld [vmem:[%s165 + $0x4] sm:$0xe]
      %v711 = vld [vmem:[%s165 + $0x8] sm:$0xf]
      %v712 = vld [vmem:[%s165 + $0xc] sm:$0xf]
      %v713 = vld [vmem:[%s165 + $0x10] sm:$0xf]
      %v714 = vld [vmem:[%s165 + $0x14] sm:$0xf]
      %v715 = vld [vmem:[%s165 + $0x18] sm:$0xf]
      %v716 = vld [vmem:[%s165 + $0x1c] sm:$0xf]
      %v717 = vld [vmem:[%s165 + $0x20] sm:$0xf]
      %v718 = vld [vmem:[%s165 + $0x24] sm:$0xf]
      %v719 = vld [vmem:[%s165 + $0x28] sm:$0xf]
      %v720 = vld [vmem:[%s165 + $0x2c] sm:$0x1]
      %s721 = scalar_lea.vmem %s1, 192
      %v722 = vld [vmem:[%s721] sm:$0xf]
      %v723 = vld [vmem:[%s721 + $0x4] sm:$0xf]
      %v724 = vld [vmem:[%s721 + $0x8] sm:$0xf]
      %v725 = vld [vmem:[%s721 + $0xc] sm:$0xf]
      %v726 = vld [vmem:[%s721 + $0x10] sm:$0xf]
      %v727 = vld [vmem:[%s721 + $0x14] sm:$0xf]
      %v728 = vld [vmem:[%s721 + $0x18] sm:$0xf]
      %v729 = vld [vmem:[%s721 + $0x1c] sm:$0xf]
      %v730 = vld [vmem:[%s721 + $0x20] sm:$0xf]
      %v731 = vld [vmem:[%s721 + $0x24] sm:$0xf]
      %v732 = vld [vmem:[%s721 + $0x28] sm:$0xf]
      %v733 = vld [vmem:[%s721 + $0x2c] sm:$0xf]
      %v734 = vld [vmem:[%s721 + $0x30] sm:$0xf]
      %v735 = vld [vmem:[%s721 + $0x34] sm:$0xf]
      %v736 = vld [vmem:[%s721 + $0x38] sm:$0xf]
      %v737 = vld [vmem:[%s721 + $0x3c] sm:$0xf]
      %v749 = vunpack.c.l.b16 %v710
      %v750 = vunpack.c.l.b16 %v711
      %v751 = vunpack.c.l.b16 %v712
      %v752 = vunpack.c.l.b16 %v713
      %v753 = vunpack.c.l.b16 %v714
      %v754 = vunpack.c.l.b16 %v715
      %v755 = vunpack.c.l.b16 %v716
      %v756 = vunpack.c.l.b16 %v717
      %v757 = vunpack.c.l.b16 %v718
      %v758 = vunpack.c.l.b16 %v719
      %v759 = vunpack.c.l.b16 %v720
      %v760 = vpack.c.b16 %v750, %v749
      %v761 = vpack.c.b16 %v752, %v751
      %v762 = vpack.c.b16 %v754, %v753
      %v763 = vpack.c.b16 %v756, %v755
      %v764 = vpack.c.b16 %v758, %v757
      %v765 = vpack.c.b16 %v759, %v759
      %v766 = vrot.slane %v760, 1
      %v767 = vrot.slane %v761, 1
      %v768 = vsel %vm562, %v766, %v767
      %v769 = vrot.slane %v762, 1
      %v770 = vsel %vm562, %v767, %v769
      %v771 = vrot.slane %v763, 1
      %v772 = vsel %vm562, %v769, %v771
      %v773 = vrot.slane %v764, 1
      %v774 = vsel %vm562, %v771, %v773
      %v775 = vrot.slane %v765, 1
      %v776 = vsel %vm562, %v773, %v775
      %v798 = vunpack.c.l.b16 %v722
      %v799 = vunpack.c.l.b16 %v723
      %v800 = vunpack.c.l.b16 %v724
      %v801 = vunpack.c.l.b16 %v725
      %v802 = vunpack.c.l.b16 %v726
      %v803 = vunpack.c.l.b16 %v727
      %v804 = vunpack.c.l.b16 %v728
      %v805 = vunpack.c.l.b16 %v729
      %v806 = vunpack.c.l.b16 %v730
      %v807 = vunpack.c.l.b16 %v731
      %v808 = vunpack.c.l.b16 %v732
      %v809 = vunpack.c.l.b16 %v733
      %v810 = vunpack.c.l.b16 %v734
      %v811 = vunpack.c.l.b16 %v735
      %v812 = vunpack.c.l.b16 %v736
      %v813 = vunpack.c.l.b16 %v737
      %v814 = vpack.c.b16 %v799, %v798
      %v815 = vpack.c.b16 %v801, %v800
      %v816 = vpack.c.b16 %v803, %v802
      %v817 = vpack.c.b16 %v805, %v804
      %v818 = vpack.c.b16 %v807, %v806
      %v819 = vpack.c.b16 %v809, %v808
      %v820 = vpack.c.b16 %v811, %v810
      %v821 = vpack.c.b16 %v813, %v812
      %830 = vmatprep.subr.bf16.mxu0 0
      %831 = vmatpush1.bf16.msra.mxu0 %v821
      %832 = vmatprep.subr.bf16.mxu0 0
      %833 = vmatpush1.bf16.msra.mxu0 %v820
      %834 = vmatprep.subr.bf16.mxu0 0
      %835 = vmatpush1.bf16.msra.mxu0 %v819
      %836 = vmatprep.subr.bf16.mxu0 0
      %837 = vmatpush1.bf16.msra.mxu0 %v818
      %838 = vmatprep.subr.bf16.mxu0 0
      %839 = vmatpush1.bf16.msra.mxu0 %v817
      %840 = vmatprep.subr.bf16.mxu0 0
      %841 = vmatpush1.bf16.msra.mxu0 %v816
      %842 = vmatprep.subr.bf16.mxu0 0
      %843 = vmatpush1.bf16.msra.mxu0 %v815
      %844 = vmatprep.subr.bf16.mxu0 0
      %845 = vmatpush1.bf16.msra.mxu0 %v814
      %846 = vmatprep.subr.bf16.mxu0 0
      %847 = vmatpush2.bf16.msra.mxu0 0
      %848 = vmatprep.subr.bf16.mxu0 0
      %849 = vmatpush2.bf16.msra.mxu0 0
      %850 = vmatprep.subr.bf16.mxu0 0
      %851 = vmatpush2.bf16.msra.mxu0 0
      %852 = vmatprep.subr.bf16.mxu0 0
      %853 = vmatpush2.bf16.msra.mxu0 0
      %854 = vmatprep.subr.bf16.mxu0 0
      %855 = vmatpush2.bf16.msra.mxu0 0
      %856 = vmatprep.subr.bf16.mxu0 0
      %857 = vmatpush2.bf16.msra.mxu0 0
      %858 = vmatprep.subr.bf16.mxu0 0
      %859 = vmatpush2.bf16.msra.mxu0 0
      %860 = vmatprep.subr.bf16.mxu0 0
      %861 = vmatpush2.bf16.msra.mxu0 0
      %862 = vmatprep.mubr.bf16.mxu0 0
      %863 = vmatmul.mubr.bf16.gmra.mxu0 %v768
      %v864 = vpop.f32.mrf.mxu0
      %v865 = vadd.f32 0.0, %v864
      %v866 = vpop.f32.mrf.mxu0
      %v867 = vpop.f32.mrf.mxu0
      %v868 = vadd.f32 0.0, %v867
      %v869 = vpop.f32.mrf.mxu0
      %870 = vmatprep.mubr.bf16.mxu0 0
      %871 = vmatmul.mubr.bf16.gmra.mxu0 %v770
      %v872 = vpop.f32.mrf.mxu0
      %v873 = vadd.f32 0.0, %v872
      %v874 = vpop.f32.mrf.mxu0
      %v875 = vpop.f32.mrf.mxu0
      %v876 = vadd.f32 0.0, %v875
      %v877 = vpop.f32.mrf.mxu0
      %878 = vmatprep.mubr.bf16.mxu0 0
      %879 = vmatmul.mubr.bf16.gmra.mxu0 %v772
      %v880 = vpop.f32.mrf.mxu0
      %v881 = vadd.f32 0.0, %v880
      %v882 = vpop.f32.mrf.mxu0
      %v883 = vpop.f32.mrf.mxu0
      %v884 = vadd.f32 0.0, %v883
      %v885 = vpop.f32.mrf.mxu0
      %886 = vmatprep.mubr.bf16.mxu0 0
      %887 = vmatmul.mubr.bf16.gmra.mxu0 %v774
      %v888 = vpop.f32.mrf.mxu0
      %v889 = vadd.f32 0.0, %v888
      %v890 = vpop.f32.mrf.mxu0
      %v891 = vpop.f32.mrf.mxu0
      %v892 = vadd.f32 0.0, %v891
      %v893 = vpop.f32.mrf.mxu0
      %894 = vmatprep.mubr.bf16.mxu0 0
      %895 = vmatmul.mubr.bf16.gmra.mxu0 %v776
      %v896 = vpop.f32.mrf.mxu0
      %v897 = vadd.f32 0.0, %v896
      %v898 = vpop.f32.mrf.mxu0
      %v899 = vpop.f32.mrf.mxu0
      %v900 = vadd.f32 0.0, %v899
      %v901 = vpop.f32.mrf.mxu0
      %902 = vdwg.mxu0
      %v903 = vadd.f32 %v700, %v865
      %v904 = vadd.f32 %v701, %v868
      %v905 = vadd.f32 %v702, %v873
      %v906 = vadd.f32 %v703, %v876
      %v907 = vadd.f32 %v704, %v881
      %v908 = vadd.f32 %v705, %v884
      %v909 = vadd.f32 %v706, %v889
      %v910 = vadd.f32 %v707, %v892
      %v911 = vadd.f32 %v708, %v897
      %v912 = vadd.f32 %v709, %v900
      %v913 = vld [vmem:[%s165 + $0x2c] sm:$0x3]
      %s914 = scalar_lea.vmem %s1, 256
      %v915 = vld [vmem:[%s914] sm:$0xf]
      %v916 = vld [vmem:[%s914 + $0x4] sm:$0xf]
      %v917 = vld [vmem:[%s914 + $0x8] sm:$0xf]
      %v918 = vld [vmem:[%s914 + $0xc] sm:$0xf]
      %v919 = vld [vmem:[%s914 + $0x10] sm:$0xf]
      %v920 = vld [vmem:[%s914 + $0x14] sm:$0xf]
      %v921 = vld [vmem:[%s914 + $0x18] sm:$0xf]
      %v922 = vld [vmem:[%s914 + $0x1c] sm:$0xf]
      %v923 = vld [vmem:[%s914 + $0x20] sm:$0xf]
      %v924 = vld [vmem:[%s914 + $0x24] sm:$0xf]
      %v925 = vld [vmem:[%s914 + $0x28] sm:$0xf]
      %v926 = vld [vmem:[%s914 + $0x2c] sm:$0xf]
      %v927 = vld [vmem:[%s914 + $0x30] sm:$0xf]
      %v928 = vld [vmem:[%s914 + $0x34] sm:$0xf]
      %v929 = vld [vmem:[%s914 + $0x38] sm:$0xf]
      %v930 = vld [vmem:[%s914 + $0x3c] sm:$0xf]
      %v932 = vunpack.c.l.b16 %v913
      %v933 = vpack.c.b16 %v932, %v932
      %vm934 = vsmask.f32 6400
      %v936 = vshrl.u32 %v760, 16
      %v938 = vrot.slane %v936, 1
      %v939 = vshll.u32 %v760, 16
      %v941 = vrot.slane %v939, 2
      %v942 = vor.u32 %v938, %v941
      %v944 = vshrl.u32 %v761, 16
      %v946 = vrot.slane %v944, 1
      %v947 = vshll.u32 %v761, 16
      %v949 = vrot.slane %v947, 2
      %v950 = vor.u32 %v946, %v949
      %v951 = vsel %vm934, %v942, %v950
      %v953 = vshrl.u32 %v762, 16
      %v955 = vrot.slane %v953, 1
      %v956 = vshll.u32 %v762, 16
      %v958 = vrot.slane %v956, 2
      %v959 = vor.u32 %v955, %v958
      %v960 = vsel %vm934, %v950, %v959
      %v962 = vshrl.u32 %v763, 16
      %v964 = vrot.slane %v962, 1
      %v965 = vshll.u32 %v763, 16
      %v967 = vrot.slane %v965, 2
      %v968 = vor.u32 %v964, %v967
      %v969 = vsel %vm934, %v959, %v968
      %v971 = vshrl.u32 %v764, 16
      %v973 = vrot.slane %v971, 1
      %v974 = vshll.u32 %v764, 16
      %v976 = vrot.slane %v974, 2
      %v977 = vor.u32 %v973, %v976
      %v978 = vsel %vm934, %v968, %v977
      %v980 = vshrl.u32 %v933, 16
      %v982 = vrot.slane %v980, 1
      %v983 = vshll.u32 %v933, 16
      %v985 = vrot.slane %v983, 2
      %v986 = vor.u32 %v982, %v985
      %v987 = vsel %vm934, %v977, %v986
      %v1009 = vunpack.c.l.b16 %v915
      %v1010 = vunpack.c.l.b16 %v916
      %v1011 = vunpack.c.l.b16 %v917
      %v1012 = vunpack.c.l.b16 %v918
      %v1013 = vunpack.c.l.b16 %v919
      %v1014 = vunpack.c.l.b16 %v920
      %v1015 = vunpack.c.l.b16 %v921
      %v1016 = vunpack.c.l.b16 %v922
      %v1017 = vunpack.c.l.b16 %v923
      %v1018 = vunpack.c.l.b16 %v924
      %v1019 = vunpack.c.l.b16 %v925
      %v1020 = vunpack.c.l.b16 %v926
      %v1021 = vunpack.c.l.b16 %v927
      %v1022 = vunpack.c.l.b16 %v928
      %v1023 = vunpack.c.l.b16 %v929
      %v1024 = vunpack.c.l.b16 %v930
      %v1025 = vpack.c.b16 %v1010, %v1009
      %v1026 = vpack.c.b16 %v1012, %v1011
      %v1027 = vpack.c.b16 %v1014, %v1013
      %v1028 = vpack.c.b16 %v1016, %v1015
      %v1029 = vpack.c.b16 %v1018, %v1017
      %v1030 = vpack.c.b16 %v1020, %v1019
      %v1031 = vpack.c.b16 %v1022, %v1021
      %v1032 = vpack.c.b16 %v1024, %v1023
      %1041 = vmatprep.subr.bf16.mxu0 0
      %1042 = vmatpush1.bf16.msra.mxu0 %v1032
      %1043 = vmatprep.subr.bf16.mxu0 0
      %1044 = vmatpush1.bf16.msra.mxu0 %v1031
      %1045 = vmatprep.subr.bf16.mxu0 0
      %1046 = vmatpush1.bf16.msra.mxu0 %v1030
      %1047 = vmatprep.subr.bf16.mxu0 0
      %1048 = vmatpush1.bf16.msra.mxu0 %v1029
      %1049 = vmatprep.subr.bf16.mxu0 0
      %1050 = vmatpush1.bf16.msra.mxu0 %v1028
      %1051 = vmatprep.subr.bf16.mxu0 0
      %1052 = vmatpush1.bf16.msra.mxu0 %v1027
      %1053 = vmatprep.subr.bf16.mxu0 0
      %1054 = vmatpush1.bf16.msra.mxu0 %v1026
      %1055 = vmatprep.subr.bf16.mxu0 0
      %1056 = vmatpush1.bf16.msra.mxu0 %v1025
      %1057 = vmatprep.subr.bf16.mxu0 0
      %1058 = vmatpush2.bf16.msra.mxu0 0
      %1059 = vmatprep.subr.bf16.mxu0 0
      %1060 = vmatpush2.bf16.msra.mxu0 0
      %1061 = vmatprep.subr.bf16.mxu0 0
      %1062 = vmatpush2.bf16.msra.mxu0 0
      %1063 = vmatprep.subr.bf16.mxu0 0
      %1064 = vmatpush2.bf16.msra.mxu0 0
      %1065 = vmatprep.subr.bf16.mxu0 0
      %1066 = vmatpush2.bf16.msra.mxu0 0
      %1067 = vmatprep.subr.bf16.mxu0 0
      %1068 = vmatpush2.bf16.msra.mxu0 0
      %1069 = vmatprep.subr.bf16.mxu0 0
      %1070 = vmatpush2.bf16.msra.mxu0 0
      %1071 = vmatprep.subr.bf16.mxu0 0
      %1072 = vmatpush2.bf16.msra.mxu0 0
      %1073 = vmatprep.mubr.bf16.mxu0 0
      %1074 = vmatmul.mubr.bf16.gmra.mxu0 %v951
      %v1075 = vpop.f32.mrf.mxu0
      %v1076 = vadd.f32 0.0, %v1075
      %v1077 = vpop.f32.mrf.mxu0
      %v1078 = vpop.f32.mrf.mxu0
      %v1079 = vadd.f32 0.0, %v1078
      %v1080 = vpop.f32.mrf.mxu0
      %1081 = vmatprep.mubr.bf16.mxu0 0
      %1082 = vmatmul.mubr.bf16.gmra.mxu0 %v960
      %v1083 = vpop.f32.mrf.mxu0
      %v1084 = vadd.f32 0.0, %v1083
      %v1085 = vpop.f32.mrf.mxu0
      %v1086 = vpop.f32.mrf.mxu0
      %v1087 = vadd.f32 0.0, %v1086
      %v1088 = vpop.f32.mrf.mxu0
      %1089 = vmatprep.mubr.bf16.mxu0 0
      %1090 = vmatmul.mubr.bf16.gmra.mxu0 %v969
      %v1091 = vpop.f32.mrf.mxu0
      %v1092 = vadd.f32 0.0, %v1091
      %v1093 = vpop.f32.mrf.mxu0
      %v1094 = vpop.f32.mrf.mxu0
      %v1095 = vadd.f32 0.0, %v1094
      %v1096 = vpop.f32.mrf.mxu0
      %1097 = vmatprep.mubr.bf16.mxu0 0
      %1098 = vmatmul.mubr.bf16.gmra.mxu0 %v978
      %v1099 = vpop.f32.mrf.mxu0
      %v1100 = vadd.f32 0.0, %v1099
      %v1101 = vpop.f32.mrf.mxu0
      %v1102 = vpop.f32.mrf.mxu0
      %v1103 = vadd.f32 0.0, %v1102
      %v1104 = vpop.f32.mrf.mxu0
      %1105 = vmatprep.mubr.bf16.mxu0 0
      %1106 = vmatmul.mubr.bf16.gmra.mxu0 %v987
      %v1107 = vpop.f32.mrf.mxu0
      %v1108 = vadd.f32 0.0, %v1107
      %v1109 = vpop.f32.mrf.mxu0
      %v1110 = vpop.f32.mrf.mxu0
      %v1111 = vadd.f32 0.0, %v1110
      %v1112 = vpop.f32.mrf.mxu0
      %1113 = vdwg.mxu0
      %v1114 = vadd.f32 %v903, %v1076
      %v1115 = vadd.f32 %v904, %v1079
      %v1116 = vadd.f32 %v905, %v1084
      %v1117 = vadd.f32 %v906, %v1087
      %v1118 = vadd.f32 %v907, %v1092
      %v1119 = vadd.f32 %v908, %v1095
      %v1120 = vadd.f32 %v909, %v1100
      %v1121 = vadd.f32 %v910, %v1103
      %v1122 = vadd.f32 %v911, %v1108
      %v1123 = vadd.f32 %v912, %v1111
      %v1124 = vld [vmem:[%s165 + $0x4] sm:$0xc]
      %s1125 = scalar_lea.vmem %s1, 320
      %v1126 = vld [vmem:[%s1125] sm:$0xf]
      %v1127 = vld [vmem:[%s1125 + $0x4] sm:$0xf]
      %v1128 = vld [vmem:[%s1125 + $0x8] sm:$0xf]
      %v1129 = vld [vmem:[%s1125 + $0xc] sm:$0xf]
      %v1130 = vld [vmem:[%s1125 + $0x10] sm:$0xf]
      %v1131 = vld [vmem:[%s1125 + $0x14] sm:$0xf]
      %v1132 = vld [vmem:[%s1125 + $0x18] sm:$0xf]
      %v1133 = vld [vmem:[%s1125 + $0x1c] sm:$0xf]
      %v1134 = vld [vmem:[%s1125 + $0x20] sm:$0xf]
      %v1135 = vld [vmem:[%s1125 + $0x24] sm:$0xf]
      %v1136 = vld [vmem:[%s1125 + $0x28] sm:$0xf]
      %v1137 = vld [vmem:[%s1125 + $0x2c] sm:$0xf]
      %v1138 = vld [vmem:[%s1125 + $0x30] sm:$0xf]
      %v1139 = vld [vmem:[%s1125 + $0x34] sm:$0xf]
      %v1140 = vld [vmem:[%s1125 + $0x38] sm:$0xf]
      %v1141 = vld [vmem:[%s1125 + $0x3c] sm:$0xf]
      %v1143 = vunpack.c.l.b16 %v1124
      %v1144 = vpack.c.b16 %v750, %v1143
      %vm1145 = vcmask 1045504
      %v1146 = vrot.slane %v1144, 2
      %v1147 = vrot.slane %v761, 2
      %v1148 = vsel %vm1145, %v1146, %v1147
      %v1149 = vrot.slane %v762, 2
      %v1150 = vsel %vm1145, %v1147, %v1149
      %v1151 = vrot.slane %v763, 2
      %v1152 = vsel %vm1145, %v1149, %v1151
      %v1153 = vrot.slane %v764, 2
      %v1154 = vsel %vm1145, %v1151, %v1153
      %v1155 = vrot.slane %v933, 2
      %v1156 = vsel %vm1145, %v1153, %v1155
      %v1178 = vunpack.c.l.b16 %v1126
      %v1179 = vunpack.c.l.b16 %v1127
      %v1180 = vunpack.c.l.b16 %v1128
      %v1181 = vunpack.c.l.b16 %v1129
      %v1182 = vunpack.c.l.b16 %v1130
      %v1183 = vunpack.c.l.b16 %v1131
      %v1184 = vunpack.c.l.b16 %v1132
      %v1185 = vunpack.c.l.b16 %v1133
      %v1186 = vunpack.c.l.b16 %v1134
      %v1187 = vunpack.c.l.b16 %v1135
      %v1188 = vunpack.c.l.b16 %v1136
      %v1189 = vunpack.c.l.b16 %v1137
      %v1190 = vunpack.c.l.b16 %v1138
      %v1191 = vunpack.c.l.b16 %v1139
      %v1192 = vunpack.c.l.b16 %v1140
      %v1193 = vunpack.c.l.b16 %v1141
      %v1194 = vpack.c.b16 %v1179, %v1178
      %v1195 = vpack.c.b16 %v1181, %v1180
      %v1196 = vpack.c.b16 %v1183, %v1182
      %v1197 = vpack.c.b16 %v1185, %v1184
      %v1198 = vpack.c.b16 %v1187, %v1186
      %v1199 = vpack.c.b16 %v1189, %v1188
      %v1200 = vpack.c.b16 %v1191, %v1190
      %v1201 = vpack.c.b16 %v1193, %v1192
      %1210 = vmatprep.subr.bf16.mxu0 0
      %1211 = vmatpush1.bf16.msra.mxu0 %v1201
      %1212 = vmatprep.subr.bf16.mxu0 0
      %1213 = vmatpush1.bf16.msra.mxu0 %v1200
      %1214 = vmatprep.subr.bf16.mxu0 0
      %1215 = vmatpush1.bf16.msra.mxu0 %v1199
      %1216 = vmatprep.subr.bf16.mxu0 0
      %1217 = vmatpush1.bf16.msra.mxu0 %v1198
      %1218 = vmatprep.subr.bf16.mxu0 0
      %1219 = vmatpush1.bf16.msra.mxu0 %v1197
      %1220 = vmatprep.subr.bf16.mxu0 0
      %1221 = vmatpush1.bf16.msra.mxu0 %v1196
      %1222 = vmatprep.subr.bf16.mxu0 0
      %1223 = vmatpush1.bf16.msra.mxu0 %v1195
      %1224 = vmatprep.subr.bf16.mxu0 0
      %1225 = vmatpush1.bf16.msra.mxu0 %v1194
      %1226 = vmatprep.subr.bf16.mxu0 0
      %1227 = vmatpush2.bf16.msra.mxu0 0
      %1228 = vmatprep.subr.bf16.mxu0 0
      %1229 = vmatpush2.bf16.msra.mxu0 0
      %1230 = vmatprep.subr.bf16.mxu0 0
      %1231 = vmatpush2.bf16.msra.mxu0 0
      %1232 = vmatprep.subr.bf16.mxu0 0
      %1233 = vmatpush2.bf16.msra.mxu0 0
      %1234 = vmatprep.subr.bf16.mxu0 0
      %1235 = vmatpush2.bf16.msra.mxu0 0
      %1236 = vmatprep.subr.bf16.mxu0 0
      %1237 = vmatpush2.bf16.msra.mxu0 0
      %1238 = vmatprep.subr.bf16.mxu0 0
      %1239 = vmatpush2.bf16.msra.mxu0 0
      %1240 = vmatprep.subr.bf16.mxu0 0
      %1241 = vmatpush2.bf16.msra.mxu0 0
      %1242 = vmatprep.mubr.bf16.mxu0 0
      %1243 = vmatmul.mubr.bf16.gmra.mxu0 %v1148
      %v1244 = vpop.f32.mrf.mxu0
      %v1245 = vadd.f32 0.0, %v1244
      %v1246 = vpop.f32.mrf.mxu0
      %v1247 = vpop.f32.mrf.mxu0
      %v1248 = vadd.f32 0.0, %v1247
      %v1249 = vpop.f32.mrf.mxu0
      %1250 = vmatprep.mubr.bf16.mxu0 0
      %1251 = vmatmul.mubr.bf16.gmra.mxu0 %v1150
      %v1252 = vpop.f32.mrf.mxu0
      %v1253 = vadd.f32 0.0, %v1252
      %v1254 = vpop.f32.mrf.mxu0
      %v1255 = vpop.f32.mrf.mxu0
      %v1256 = vadd.f32 0.0, %v1255
      %v1257 = vpop.f32.mrf.mxu0
      %1258 = vmatprep.mubr.bf16.mxu0 0
      %1259 = vmatmul.mubr.bf16.gmra.mxu0 %v1152
      %v1260 = vpop.f32.mrf.mxu0
      %v1261 = vadd.f32 0.0, %v1260
      %v1262 = vpop.f32.mrf.mxu0
      %v1263 = vpop.f32.mrf.mxu0
      %v1264 = vadd.f32 0.0, %v1263
      %v1265 = vpop.f32.mrf.mxu0
      %1266 = vmatprep.mubr.bf16.mxu0 0
      %1267 = vmatmul.mubr.bf16.gmra.mxu0 %v1154
      %v1268 = vpop.f32.mrf.mxu0
      %v1269 = vadd.f32 0.0, %v1268
      %v1270 = vpop.f32.mrf.mxu0
      %v1271 = vpop.f32.mrf.mxu0
      %v1272 = vadd.f32 0.0, %v1271
      %v1273 = vpop.f32.mrf.mxu0
      %1274 = vmatprep.mubr.bf16.mxu0 0
      %1275 = vmatmul.mubr.bf16.gmra.mxu0 %v1156
      %v1276 = vpop.f32.mrf.mxu0
      %v1277 = vadd.f32 0.0, %v1276
      %v1278 = vpop.f32.mrf.mxu0
      %v1279 = vpop.f32.mrf.mxu0
      %v1280 = vadd.f32 0.0, %v1279
      %v1281 = vpop.f32.mrf.mxu0
      %1282 = vdwg.mxu0
      %v1283 = vadd.f32 %v1114, %v1245
      %v1284 = vadd.f32 %v1115, %v1248
      %v1285 = vadd.f32 %v1116, %v1253
      %v1286 = vadd.f32 %v1117, %v1256
      %v1287 = vadd.f32 %v1118, %v1261
      %v1288 = vadd.f32 %v1119, %v1264
      %v1289 = vadd.f32 %v1120, %v1269
      %v1290 = vadd.f32 %v1121, %v1272
      %v1291 = vadd.f32 %v1122, %v1277
      %v1292 = vadd.f32 %v1123, %v1280
      %v1293 = vld [vmem:[%s165 + $0x8] sm:$0xc]
      %v1294 = vld [vmem:[%s165 + $0xc] sm:$0xf]
      %v1295 = vld [vmem:[%s165 + $0x10] sm:$0xf]
      %v1296 = vld [vmem:[%s165 + $0x14] sm:$0xf]
      %v1297 = vld [vmem:[%s165 + $0x18] sm:$0xf]
      %v1298 = vld [vmem:[%s165 + $0x1c] sm:$0xf]
      %v1299 = vld [vmem:[%s165 + $0x20] sm:$0xf]
      %v1300 = vld [vmem:[%s165 + $0x24] sm:$0xf]
      %v1301 = vld [vmem:[%s165 + $0x28] sm:$0xf]
      %v1302 = vld [vmem:[%s165 + $0x2c] sm:$0xf]
      %v1303 = vld [vmem:[%s165 + $0x30] sm:$0x3]
      %s1304 = scalar_lea.vmem %s1, 384
      %v1305 = vld [vmem:[%s1304] sm:$0xf]
      %v1306 = vld [vmem:[%s1304 + $0x4] sm:$0xf]
      %v1307 = vld [vmem:[%s1304 + $0x8] sm:$0xf]
      %v1308 = vld [vmem:[%s1304 + $0xc] sm:$0xf]
      %v1309 = vld [vmem:[%s1304 + $0x10] sm:$0xf]
      %v1310 = vld [vmem:[%s1304 + $0x14] sm:$0xf]
      %v1311 = vld [vmem:[%s1304 + $0x18] sm:$0xf]
      %v1312 = vld [vmem:[%s1304 + $0x1c] sm:$0xf]
      %v1313 = vld [vmem:[%s1304 + $0x20] sm:$0xf]
      %v1314 = vld [vmem:[%s1304 + $0x24] sm:$0xf]
      %v1315 = vld [vmem:[%s1304 + $0x28] sm:$0xf]
      %v1316 = vld [vmem:[%s1304 + $0x2c] sm:$0xf]
      %v1317 = vld [vmem:[%s1304 + $0x30] sm:$0xf]
      %v1318 = vld [vmem:[%s1304 + $0x34] sm:$0xf]
      %v1319 = vld [vmem:[%s1304 + $0x38] sm:$0xf]
      %v1320 = vld [vmem:[%s1304 + $0x3c] sm:$0xf]
      %v1332 = vunpack.c.l.b16 %v1293
      %v1333 = vunpack.c.l.b16 %v1294
      %v1334 = vunpack.c.l.b16 %v1295
      %v1335 = vunpack.c.l.b16 %v1296
      %v1336 = vunpack.c.l.b16 %v1297
      %v1337 = vunpack.c.l.b16 %v1298
      %v1338 = vunpack.c.l.b16 %v1299
      %v1339 = vunpack.c.l.b16 %v1300
      %v1340 = vunpack.c.l.b16 %v1301
      %v1341 = vunpack.c.l.b16 %v1302
      %v1342 = vunpack.c.l.b16 %v1303
      %v1343 = vpack.c.b16 %v1333, %v1332
      %v1344 = vpack.c.b16 %v1335, %v1334
      %v1345 = vpack.c.b16 %v1337, %v1336
      %v1346 = vpack.c.b16 %v1339, %v1338
      %v1347 = vpack.c.b16 %v1341, %v1340
      %v1348 = vpack.c.b16 %v1342, %v1342
      %v1349 = vrot.slane %v1343, 2
      %v1350 = vrot.slane %v1344, 2
      %v1351 = vsel %vm1145, %v1349, %v1350
      %v1352 = vrot.slane %v1345, 2
      %v1353 = vsel %vm1145, %v1350, %v1352
      %v1354 = vrot.slane %v1346, 2
      %v1355 = vsel %vm1145, %v1352, %v1354
      %v1356 = vrot.slane %v1347, 2
      %v1357 = vsel %vm1145, %v1354, %v1356
      %v1358 = vrot.slane %v1348, 2
      %v1359 = vsel %vm1145, %v1356, %v1358
      %v1381 = vunpack.c.l.b16 %v1305
      %v1382 = vunpack.c.l.b16 %v1306
      %v1383 = vunpack.c.l.b16 %v1307
      %v1384 = vunpack.c.l.b16 %v1308
      %v1385 = vunpack.c.l.b16 %v1309
      %v1386 = vunpack.c.l.b16 %v1310
      %v1387 = vunpack.c.l.b16 %v1311
      %v1388 = vunpack.c.l.b16 %v1312
      %v1389 = vunpack.c.l.b16 %v1313
      %v1390 = vunpack.c.l.b16 %v1314
      %v1391 = vunpack.c.l.b16 %v1315
      %v1392 = vunpack.c.l.b16 %v1316
      %v1393 = vunpack.c.l.b16 %v1317
      %v1394 = vunpack.c.l.b16 %v1318
      %v1395 = vunpack.c.l.b16 %v1319
      %v1396 = vunpack.c.l.b16 %v1320
      %v1397 = vpack.c.b16 %v1382, %v1381
      %v1398 = vpack.c.b16 %v1384, %v1383
      %v1399 = vpack.c.b16 %v1386, %v1385
      %v1400 = vpack.c.b16 %v1388, %v1387
      %v1401 = vpack.c.b16 %v1390, %v1389
      %v1402 = vpack.c.b16 %v1392, %v1391
      %v1403 = vpack.c.b16 %v1394, %v1393
      %v1404 = vpack.c.b16 %v1396, %v1395
      %1413 = vmatprep.subr.bf16.mxu0 0
      %1414 = vmatpush1.bf16.msra.mxu0 %v1404
      %1415 = vmatprep.subr.bf16.mxu0 0
      %1416 = vmatpush1.bf16.msra.mxu0 %v1403
      %1417 = vmatprep.subr.bf16.mxu0 0
      %1418 = vmatpush1.bf16.msra.mxu0 %v1402
      %1419 = vmatprep.subr.bf16.mxu0 0
      %1420 = vmatpush1.bf16.msra.mxu0 %v1401
      %1421 = vmatprep.subr.bf16.mxu0 0
      %1422 = vmatpush1.bf16.msra.mxu0 %v1400
      %1423 = vmatprep.subr.bf16.mxu0 0
      %1424 = vmatpush1.bf16.msra.mxu0 %v1399
      %1425 = vmatprep.subr.bf16.mxu0 0
      %1426 = vmatpush1.bf16.msra.mxu0 %v1398
      %1427 = vmatprep.subr.bf16.mxu0 0
      %1428 = vmatpush1.bf16.msra.mxu0 %v1397
      %1429 = vmatprep.subr.bf16.mxu0 0
      %1430 = vmatpush2.bf16.msra.mxu0 0
      %1431 = vmatprep.subr.bf16.mxu0 0
      %1432 = vmatpush2.bf16.msra.mxu0 0
      %1433 = vmatprep.subr.bf16.mxu0 0
      %1434 = vmatpush2.bf16.msra.mxu0 0
      %1435 = vmatprep.subr.bf16.mxu0 0
      %1436 = vmatpush2.bf16.msra.mxu0 0
      %1437 = vmatprep.subr.bf16.mxu0 0
      %1438 = vmatpush2.bf16.msra.mxu0 0
      %1439 = vmatprep.subr.bf16.mxu0 0
      %1440 = vmatpush2.bf16.msra.mxu0 0
      %1441 = vmatprep.subr.bf16.mxu0 0
      %1442 = vmatpush2.bf16.msra.mxu0 0
      %1443 = vmatprep.subr.bf16.mxu0 0
      %1444 = vmatpush2.bf16.msra.mxu0 0
      %1445 = vmatprep.mubr.bf16.mxu0 0
      %1446 = vmatmul.mubr.bf16.gmra.mxu0 %v1351
      %v1447 = vpop.f32.mrf.mxu0
      %v1448 = vadd.f32 0.0, %v1447
      %v1449 = vpop.f32.mrf.mxu0
      %v1450 = vpop.f32.mrf.mxu0
      %v1451 = vadd.f32 0.0, %v1450
      %v1452 = vpop.f32.mrf.mxu0
      %1453 = vmatprep.mubr.bf16.mxu0 0
      %1454 = vmatmul.mubr.bf16.gmra.mxu0 %v1353
      %v1455 = vpop.f32.mrf.mxu0
      %v1456 = vadd.f32 0.0, %v1455
      %v1457 = vpop.f32.mrf.mxu0
      %v1458 = vpop.f32.mrf.mxu0
      %v1459 = vadd.f32 0.0, %v1458
      %v1460 = vpop.f32.mrf.mxu0
      %1461 = vmatprep.mubr.bf16.mxu0 0
      %1462 = vmatmul.mubr.bf16.gmra.mxu0 %v1355
      %v1463 = vpop.f32.mrf.mxu0
      %v1464 = vadd.f32 0.0, %v1463
      %v1465 = vpop.f32.mrf.mxu0
      %v1466 = vpop.f32.mrf.mxu0
      %v1467 = vadd.f32 0.0, %v1466
      %v1468 = vpop.f32.mrf.mxu0
      %1469 = vmatprep.mubr.bf16.mxu0 0
      %1470 = vmatmul.mubr.bf16.gmra.mxu0 %v1357
      %v1471 = vpop.f32.mrf.mxu0
      %v1472 = vadd.f32 0.0, %v1471
      %v1473 = vpop.f32.mrf.mxu0
      %v1474 = vpop.f32.mrf.mxu0
      %v1475 = vadd.f32 0.0, %v1474
      %v1476 = vpop.f32.mrf.mxu0
      %1477 = vmatprep.mubr.bf16.mxu0 0
      %1478 = vmatmul.mubr.bf16.gmra.mxu0 %v1359
      %v1479 = vpop.f32.mrf.mxu0
      %v1480 = vadd.f32 0.0, %v1479
      %v1481 = vpop.f32.mrf.mxu0
      %v1482 = vpop.f32.mrf.mxu0
      %v1483 = vadd.f32 0.0, %v1482
      %v1484 = vpop.f32.mrf.mxu0
      %1485 = vdwg.mxu0
      %v1486 = vadd.f32 %v1283, %v1448
      %v1487 = vadd.f32 %v1284, %v1451
      %v1488 = vadd.f32 %v1285, %v1456
      %v1489 = vadd.f32 %v1286, %v1459
      %v1490 = vadd.f32 %v1287, %v1464
      %v1491 = vadd.f32 %v1288, %v1467
      %v1492 = vadd.f32 %v1289, %v1472
      %v1493 = vadd.f32 %v1290, %v1475
      %v1494 = vadd.f32 %v1291, %v1480
      %v1495 = vadd.f32 %v1292, %v1483
      %v1496 = vld [vmem:[%s165 + $0x30] sm:$0x7]
      %s1497 = scalar_lea.vmem %s1, 448
      %v1498 = vld [vmem:[%s1497] sm:$0xf]
      %v1499 = vld [vmem:[%s1497 + $0x4] sm:$0xf]
      %v1500 = vld [vmem:[%s1497 + $0x8] sm:$0xf]
      %v1501 = vld [vmem:[%s1497 + $0xc] sm:$0xf]
      %v1502 = vld [vmem:[%s1497 + $0x10] sm:$0xf]
      %v1503 = vld [vmem:[%s1497 + $0x14] sm:$0xf]
      %v1504 = vld [vmem:[%s1497 + $0x18] sm:$0xf]
      %v1505 = vld [vmem:[%s1497 + $0x1c] sm:$0xf]
      %v1506 = vld [vmem:[%s1497 + $0x20] sm:$0xf]
      %v1507 = vld [vmem:[%s1497 + $0x24] sm:$0xf]
      %v1508 = vld [vmem:[%s1497 + $0x28] sm:$0xf]
      %v1509 = vld [vmem:[%s1497 + $0x2c] sm:$0xf]
      %v1510 = vld [vmem:[%s1497 + $0x30] sm:$0xf]
      %v1511 = vld [vmem:[%s1497 + $0x34] sm:$0xf]
      %v1512 = vld [vmem:[%s1497 + $0x38] sm:$0xf]
      %v1513 = vld [vmem:[%s1497 + $0x3c] sm:$0xf]
      %v1515 = vunpack.c.l.b16 %v1496
      %v1516 = vpack.c.b16 %v1515, %v1515
      %vm1517 = vsmask.f32 5376
      %v1519 = vshrl.u32 %v1343, 16
      %v1521 = vrot.slane %v1519, 2
      %v1522 = vshll.u32 %v1343, 16
      %v1524 = vrot.slane %v1522, 3
      %v1525 = vor.u32 %v1521, %v1524
      %v1527 = vshrl.u32 %v1344, 16
      %v1529 = vrot.slane %v1527, 2
      %v1530 = vshll.u32 %v1344, 16
      %v1532 = vrot.slane %v1530, 3
      %v1533 = vor.u32 %v1529, %v1532
      %v1534 = vsel %vm1517, %v1525, %v1533
      %v1536 = vshrl.u32 %v1345, 16
      %v1538 = vrot.slane %v1536, 2
      %v1539 = vshll.u32 %v1345, 16
      %v1541 = vrot.slane %v1539, 3
      %v1542 = vor.u32 %v1538, %v1541
      %v1543 = vsel %vm1517, %v1533, %v1542
      %v1545 = vshrl.u32 %v1346, 16
      %v1547 = vrot.slane %v1545, 2
      %v1548 = vshll.u32 %v1346, 16
      %v1550 = vrot.slane %v1548, 3
      %v1551 = vor.u32 %v1547, %v1550
      %v1552 = vsel %vm1517, %v1542, %v1551
      %v1554 = vshrl.u32 %v1347, 16
      %v1556 = vrot.slane %v1554, 2
      %v1557 = vshll.u32 %v1347, 16
      %v1559 = vrot.slane %v1557, 3
      %v1560 = vor.u32 %v1556, %v1559
      %v1561 = vsel %vm1517, %v1551, %v1560
      %v1563 = vshrl.u32 %v1516, 16
      %v1565 = vrot.slane %v1563, 2
      %v1566 = vshll.u32 %v1516, 16
      %v1568 = vrot.slane %v1566, 3
      %v1569 = vor.u32 %v1565, %v1568
      %v1570 = vsel %vm1517, %v1560, %v1569
      %v1592 = vunpack.c.l.b16 %v1498
      %v1593 = vunpack.c.l.b16 %v1499
      %v1594 = vunpack.c.l.b16 %v1500
      %v1595 = vunpack.c.l.b16 %v1501
      %v1596 = vunpack.c.l.b16 %v1502
      %v1597 = vunpack.c.l.b16 %v1503
      %v1598 = vunpack.c.l.b16 %v1504
      %v1599 = vunpack.c.l.b16 %v1505
      %v1600 = vunpack.c.l.b16 %v1506
      %v1601 = vunpack.c.l.b16 %v1507
      %v1602 = vunpack.c.l.b16 %v1508
      %v1603 = vunpack.c.l.b16 %v1509
      %v1604 = vunpack.c.l.b16 %v1510
      %v1605 = vunpack.c.l.b16 %v1511
      %v1606 = vunpack.c.l.b16 %v1512
      %v1607 = vunpack.c.l.b16 %v1513
      %v1608 = vpack.c.b16 %v1593, %v1592
      %v1609 = vpack.c.b16 %v1595, %v1594
      %v1610 = vpack.c.b16 %v1597, %v1596
      %v1611 = vpack.c.b16 %v1599, %v1598
      %v1612 = vpack.c.b16 %v1601, %v1600
      %v1613 = vpack.c.b16 %v1603, %v1602
      %v1614 = vpack.c.b16 %v1605, %v1604
      %v1615 = vpack.c.b16 %v1607, %v1606
      %1624 = vmatprep.subr.bf16.mxu0 0
      %1625 = vmatpush1.bf16.msra.mxu0 %v1615
      %1626 = vmatprep.subr.bf16.mxu0 0
      %1627 = vmatpush1.bf16.msra.mxu0 %v1614
      %1628 = vmatprep.subr.bf16.mxu0 0
      %1629 = vmatpush1.bf16.msra.mxu0 %v1613
      %1630 = vmatprep.subr.bf16.mxu0 0
      %1631 = vmatpush1.bf16.msra.mxu0 %v1612
      %1632 = vmatprep.subr.bf16.mxu0 0
      %1633 = vmatpush1.bf16.msra.mxu0 %v1611
      %1634 = vmatprep.subr.bf16.mxu0 0
      %1635 = vmatpush1.bf16.msra.mxu0 %v1610
      %1636 = vmatprep.subr.bf16.mxu0 0
      %1637 = vmatpush1.bf16.msra.mxu0 %v1609
      %1638 = vmatprep.subr.bf16.mxu0 0
      %1639 = vmatpush1.bf16.msra.mxu0 %v1608
      %1640 = vmatprep.subr.bf16.mxu0 0
      %1641 = vmatpush2.bf16.msra.mxu0 0
      %1642 = vmatprep.subr.bf16.mxu0 0
      %1643 = vmatpush2.bf16.msra.mxu0 0
      %1644 = vmatprep.subr.bf16.mxu0 0
      %1645 = vmatpush2.bf16.msra.mxu0 0
      %1646 = vmatprep.subr.bf16.mxu0 0
      %1647 = vmatpush2.bf16.msra.mxu0 0
      %1648 = vmatprep.subr.bf16.mxu0 0
      %1649 = vmatpush2.bf16.msra.mxu0 0
      %1650 = vmatprep.subr.bf16.mxu0 0
      %1651 = vmatpush2.bf16.msra.mxu0 0
      %1652 = vmatprep.subr.bf16.mxu0 0
      %1653 = vmatpush2.bf16.msra.mxu0 0
      %1654 = vmatprep.subr.bf16.mxu0 0
      %1655 = vmatpush2.bf16.msra.mxu0 0
      %1656 = vmatprep.mubr.bf16.mxu0 0
      %1657 = vmatmul.mubr.bf16.gmra.mxu0 %v1534
      %v1658 = vpop.f32.mrf.mxu0
      %v1659 = vadd.f32 0.0, %v1658
      %v1660 = vpop.f32.mrf.mxu0
      %v1661 = vpop.f32.mrf.mxu0
      %v1662 = vadd.f32 0.0, %v1661
      %v1663 = vpop.f32.mrf.mxu0
      %1664 = vmatprep.mubr.bf16.mxu0 0
      %1665 = vmatmul.mubr.bf16.gmra.mxu0 %v1543
      %v1666 = vpop.f32.mrf.mxu0
      %v1667 = vadd.f32 0.0, %v1666
      %v1668 = vpop.f32.mrf.mxu0
      %v1669 = vpop.f32.mrf.mxu0
      %v1670 = vadd.f32 0.0, %v1669
      %v1671 = vpop.f32.mrf.mxu0
      %1672 = vmatprep.mubr.bf16.mxu0 0
      %1673 = vmatmul.mubr.bf16.gmra.mxu0 %v1552
      %v1674 = vpop.f32.mrf.mxu0
      %v1675 = vadd.f32 0.0, %v1674
      %v1676 = vpop.f32.mrf.mxu0
      %v1677 = vpop.f32.mrf.mxu0
      %v1678 = vadd.f32 0.0, %v1677
      %v1679 = vpop.f32.mrf.mxu0
      %1680 = vmatprep.mubr.bf16.mxu0 0
      %1681 = vmatmul.mubr.bf16.gmra.mxu0 %v1561
      %v1682 = vpop.f32.mrf.mxu0
      %v1683 = vadd.f32 0.0, %v1682
      %v1684 = vpop.f32.mrf.mxu0
      %v1685 = vpop.f32.mrf.mxu0
      %v1686 = vadd.f32 0.0, %v1685
      %v1687 = vpop.f32.mrf.mxu0
      %1688 = vmatprep.mubr.bf16.mxu0 0
      %1689 = vmatmul.mubr.bf16.gmra.mxu0 %v1570
      %v1690 = vpop.f32.mrf.mxu0
      %v1691 = vadd.f32 0.0, %v1690
      %v1692 = vpop.f32.mrf.mxu0
      %v1693 = vpop.f32.mrf.mxu0
      %v1694 = vadd.f32 0.0, %v1693
      %v1695 = vpop.f32.mrf.mxu0
      %1696 = vdwg.mxu0
      %v1697 = vadd.f32 %v1486, %v1659
      %v1698 = vadd.f32 %v1487, %v1662
      %v1699 = vadd.f32 %v1488, %v1667
      %v1700 = vadd.f32 %v1489, %v1670
      %v1701 = vadd.f32 %v1490, %v1675
      %v1702 = vadd.f32 %v1491, %v1678
      %v1703 = vadd.f32 %v1492, %v1683
      %v1704 = vadd.f32 %v1493, %v1686
      %v1705 = vadd.f32 %v1494, %v1691
      %v1706 = vadd.f32 %v1495, %v1694
      %v1707 = vld [vmem:[%s165 + $0x8] sm:$0x8]
      %s1708 = scalar_lea.vmem %s1, 512
      %v1709 = vld [vmem:[%s1708] sm:$0xf]
      %v1710 = vld [vmem:[%s1708 + $0x4] sm:$0xf]
      %v1711 = vld [vmem:[%s1708 + $0x8] sm:$0xf]
      %v1712 = vld [vmem:[%s1708 + $0xc] sm:$0xf]
      %v1713 = vld [vmem:[%s1708 + $0x10] sm:$0xf]
      %v1714 = vld [vmem:[%s1708 + $0x14] sm:$0xf]
      %v1715 = vld [vmem:[%s1708 + $0x18] sm:$0xf]
      %v1716 = vld [vmem:[%s1708 + $0x1c] sm:$0xf]
      %v1717 = vld [vmem:[%s1708 + $0x20] sm:$0xf]
      %v1718 = vld [vmem:[%s1708 + $0x24] sm:$0xf]
      %v1719 = vld [vmem:[%s1708 + $0x28] sm:$0xf]
      %v1720 = vld [vmem:[%s1708 + $0x2c] sm:$0xf]
      %v1721 = vld [vmem:[%s1708 + $0x30] sm:$0xf]
      %v1722 = vld [vmem:[%s1708 + $0x34] sm:$0xf]
      %v1723 = vld [vmem:[%s1708 + $0x38] sm:$0xf]
      %v1724 = vld [vmem:[%s1708 + $0x3c] sm:$0xf]
      %v1726 = vunpack.c.l.b16 %v1707
      %v1727 = vpack.c.b16 %v1333, %v1726
      %vm1728 = vcmask 1044480
      %v1729 = vrot.slane %v1727, 3
      %v1730 = vrot.slane %v1344, 3
      %v1731 = vsel %vm1728, %v1729, %v1730
      %v1732 = vrot.slane %v1345, 3
      %v1733 = vsel %vm1728, %v1730, %v1732
      %v1734 = vrot.slane %v1346, 3
      %v1735 = vsel %vm1728, %v1732, %v1734
      %v1736 = vrot.slane %v1347, 3
      %v1737 = vsel %vm1728, %v1734, %v1736
      %v1738 = vrot.slane %v1516, 3
      %v1739 = vsel %vm1728, %v1736, %v1738
      %v1761 = vunpack.c.l.b16 %v1709
      %v1762 = vunpack.c.l.b16 %v1710
      %v1763 = vunpack.c.l.b16 %v1711
      %v1764 = vunpack.c.l.b16 %v1712
      %v1765 = vunpack.c.l.b16 %v1713
      %v1766 = vunpack.c.l.b16 %v1714
      %v1767 = vunpack.c.l.b16 %v1715
      %v1768 = vunpack.c.l.b16 %v1716
      %v1769 = vunpack.c.l.b16 %v1717
      %v1770 = vunpack.c.l.b16 %v1718
      %v1771 = vunpack.c.l.b16 %v1719
      %v1772 = vunpack.c.l.b16 %v1720
      %v1773 = vunpack.c.l.b16 %v1721
      %v1774 = vunpack.c.l.b16 %v1722
      %v1775 = vunpack.c.l.b16 %v1723
      %v1776 = vunpack.c.l.b16 %v1724
      %v1777 = vpack.c.b16 %v1762, %v1761
      %v1778 = vpack.c.b16 %v1764, %v1763
      %v1779 = vpack.c.b16 %v1766, %v1765
      %v1780 = vpack.c.b16 %v1768, %v1767
      %v1781 = vpack.c.b16 %v1770, %v1769
      %v1782 = vpack.c.b16 %v1772, %v1771
      %v1783 = vpack.c.b16 %v1774, %v1773
      %v1784 = vpack.c.b16 %v1776, %v1775
      %1793 = vmatprep.subr.bf16.mxu0 0
      %1794 = vmatpush1.bf16.msra.mxu0 %v1784
      %1795 = vmatprep.subr.bf16.mxu0 0
      %1796 = vmatpush1.bf16.msra.mxu0 %v1783
      %1797 = vmatprep.subr.bf16.mxu0 0
      %1798 = vmatpush1.bf16.msra.mxu0 %v1782
      %1799 = vmatprep.subr.bf16.mxu0 0
      %1800 = vmatpush1.bf16.msra.mxu0 %v1781
      %1801 = vmatprep.subr.bf16.mxu0 0
      %1802 = vmatpush1.bf16.msra.mxu0 %v1780
      %1803 = vmatprep.subr.bf16.mxu0 0
      %1804 = vmatpush1.bf16.msra.mxu0 %v1779
      %1805 = vmatprep.subr.bf16.mxu0 0
      %1806 = vmatpush1.bf16.msra.mxu0 %v1778
      %1807 = vmatprep.subr.bf16.mxu0 0
      %1808 = vmatpush1.bf16.msra.mxu0 %v1777
      %1809 = vmatprep.subr.bf16.mxu0 0
      %1810 = vmatpush2.bf16.msra.mxu0 0
      %1811 = vmatprep.subr.bf16.mxu0 0
      %1812 = vmatpush2.bf16.msra.mxu0 0
      %1813 = vmatprep.subr.bf16.mxu0 0
      %1814 = vmatpush2.bf16.msra.mxu0 0
      %1815 = vmatprep.subr.bf16.mxu0 0
      %1816 = vmatpush2.bf16.msra.mxu0 0
      %1817 = vmatprep.subr.bf16.mxu0 0
      %1818 = vmatpush2.bf16.msra.mxu0 0
      %1819 = vmatprep.subr.bf16.mxu0 0
      %1820 = vmatpush2.bf16.msra.mxu0 0
      %1821 = vmatprep.subr.bf16.mxu0 0
      %1822 = vmatpush2.bf16.msra.mxu0 0
      %1823 = vmatprep.subr.bf16.mxu0 0
      %1824 = vmatpush2.bf16.msra.mxu0 0
      %1825 = vmatprep.mubr.bf16.mxu0 0
      %1826 = vmatmul.mubr.bf16.gmra.mxu0 %v1731
      %v1827 = vpop.f32.mrf.mxu0
      %v1828 = vadd.f32 0.0, %v1827
      %v1829 = vpop.f32.mrf.mxu0
      %v1830 = vpop.f32.mrf.mxu0
      %v1831 = vadd.f32 0.0, %v1830
      %v1832 = vpop.f32.mrf.mxu0
      %1833 = vmatprep.mubr.bf16.mxu0 0
      %1834 = vmatmul.mubr.bf16.gmra.mxu0 %v1733
      %v1835 = vpop.f32.mrf.mxu0
      %v1836 = vadd.f32 0.0, %v1835
      %v1837 = vpop.f32.mrf.mxu0
      %v1838 = vpop.f32.mrf.mxu0
      %v1839 = vadd.f32 0.0, %v1838
      %v1840 = vpop.f32.mrf.mxu0
      %1841 = vmatprep.mubr.bf16.mxu0 0
      %1842 = vmatmul.mubr.bf16.gmra.mxu0 %v1735
      %v1843 = vpop.f32.mrf.mxu0
      %v1844 = vadd.f32 0.0, %v1843
      %v1845 = vpop.f32.mrf.mxu0
      %v1846 = vpop.f32.mrf.mxu0
      %v1847 = vadd.f32 0.0, %v1846
      %v1848 = vpop.f32.mrf.mxu0
      %1849 = vmatprep.mubr.bf16.mxu0 0
      %1850 = vmatmul.mubr.bf16.gmra.mxu0 %v1737
      %v1851 = vpop.f32.mrf.mxu0
      %v1852 = vadd.f32 0.0, %v1851
      %v1853 = vpop.f32.mrf.mxu0
      %v1854 = vpop.f32.mrf.mxu0
      %v1855 = vadd.f32 0.0, %v1854
      %v1856 = vpop.f32.mrf.mxu0
      %1857 = vmatprep.mubr.bf16.mxu0 0
      %1858 = vmatmul.mubr.bf16.gmra.mxu0 %v1739
      %v1859 = vpop.f32.mrf.mxu0
      %v1860 = vadd.f32 0.0, %v1859
      %v1861 = vpop.f32.mrf.mxu0
      %v1862 = vpop.f32.mrf.mxu0
      %v1863 = vadd.f32 0.0, %v1862
      %v1864 = vpop.f32.mrf.mxu0
      %1865 = vdwg.mxu0
      %v1866 = vadd.f32 %v1697, %v1828
      %v1867 = vadd.f32 %v1698, %v1831
      %v1868 = vadd.f32 %v1699, %v1836
      %v1869 = vadd.f32 %v1700, %v1839
      %v1870 = vadd.f32 %v1701, %v1844
      %v1871 = vadd.f32 %v1702, %v1847
      %v1872 = vadd.f32 %v1703, %v1852
      %v1873 = vadd.f32 %v1704, %v1855
      %v1874 = vadd.f32 %v1705, %v1860
      %v1875 = vadd.f32 %v1706, %v1863
      %v1876 = vld [vmem:[%s2] sm:$0x1]
      %v1878 = vlaneseq
      %v1879 = vshrl.u32 %v1878, 7
      %v1880 = vsub.s32 0, %v1879
      %v1881 = vrot.slane %v1876, %v1880
      %v1883 = vadd.f32 %v1866, %v1881
      %v1884 = vadd.f32 %v1867, %v1881
      %v1885 = vadd.f32 %v1868, %v1881
      %v1886 = vadd.f32 %v1869, %v1881
      %v1887 = vadd.f32 %v1870, %v1881
      %v1888 = vadd.f32 %v1871, %v1881
      %v1889 = vadd.f32 %v1872, %v1881
      %v1890 = vadd.f32 %v1873, %v1881
      %v1891 = vadd.f32 %v1874, %v1881
      %v1892 = vadd.f32 %v1875, %v1881
      %v1893 = vmax.f32 %v1883, 0.0
      %v1894 = vmax.f32 %v1884, 0.0
      %v1895 = vmax.f32 %v1885, 0.0
      %v1896 = vmax.f32 %v1886, 0.0
      %v1897 = vmax.f32 %v1887, 0.0
      %v1898 = vmax.f32 %v1888, 0.0
      %v1899 = vmax.f32 %v1889, 0.0
      %v1900 = vmax.f32 %v1890, 0.0
      %v1901 = vmax.f32 %v1891, 0.0
      %v1902 = vmax.f32 %v1892, 0.0
      %v1903 = vpack.c.bf16 %v1894, %v1893
      %v1904 = vpack.c.bf16 %v1896, %v1895
      %v1905 = vpack.c.bf16 %v1898, %v1897
      %v1906 = vpack.c.bf16 %v1900, %v1899
      %v1907 = vpack.c.bf16 %v1902, %v1901
      %v1913 = vunpack.c.l.b16 %v1903
      %v1914 = vunpack.c.h.b16 %v1903
      %v1915 = vunpack.c.l.b16 %v1904
      %v1916 = vunpack.c.h.b16 %v1904
      %v1917 = vunpack.c.l.b16 %v1905
      %v1918 = vunpack.c.h.b16 %v1905
      %v1919 = vunpack.c.l.b16 %v1906
      %v1920 = vunpack.c.h.b16 %v1906
      %v1921 = vunpack.c.l.b16 %v1907
      %v1922 = vunpack.c.h.b16 %v1907
      %v1923 = vpack.c.b16 %v1913, %v1913
      %v1924 = vpack.c.b16 %v1914, %v1914
      %v1925 = vpack.c.b16 %v1915, %v1915
      %v1926 = vpack.c.b16 %v1916, %v1916
      %v1927 = vpack.c.b16 %v1917, %v1917
      %v1928 = vpack.c.b16 %v1918, %v1918
      %v1929 = vpack.c.b16 %v1919, %v1919
      %v1930 = vpack.c.b16 %v1920, %v1920
      %v1931 = vpack.c.b16 %v1921, %v1921
      %v1932 = vpack.c.b16 %v1922, %v1922
      %1943 = vst [vmem:[%s170] sm:$0xf] %v1923
      %1944 = vst [vmem:[%s170 + $0x4] sm:$0xf] %v1924
      %1945 = vst [vmem:[%s170 + $0x8] sm:$0xf] %v1925
      %1946 = vst [vmem:[%s170 + $0xc] sm:$0xf] %v1926
      %1947 = vst [vmem:[%s170 + $0x10] sm:$0xf] %v1927
      %1948 = vst [vmem:[%s170 + $0x14] sm:$0xf] %v1928
      %1949 = vst [vmem:[%s170 + $0x18] sm:$0xf] %v1929
      %1950 = vst [vmem:[%s170 + $0x1c] sm:$0xf] %v1930
      %1951 = vst [vmem:[%s170 + $0x20] sm:$0xf] %v1931
      %1952 = vst [vmem:[%s170 + $0x24] sm:$0xf] %v1932
      %p1953 = scmp.lt.s32.totalorder %s14, 1
      %s1954 = scalar_select %p1953, %s14, 1
      %s1955 = smul.addr %s1954, 10
      %s1956 = smul.addr %s1955, 4
      %s1957 = scalar_lea.vmem %s3, %s1956
      // Predicated region
      $region33: #{_lambda_.9} parent=31 // pred_check
        %p1958 = pneg %p100
      $region34: #{_lambda_.9} parent=31 // pred_check_branch
        %1960 = sbr.rel (%p1958) target = $region36
      $region35: #{_lambda_.9} parent=31 // pred_region
        _
      $region36: #{_lambda_.9} parent=31 // pred_fallthru
        _
    $region32: #{_lambda_.9} parent=5 // pred_fallthru
      _
    %p1961 = scmp.le.s32.totalorder 2, %s9
    // Predicated region
    $region37: #{_lambda_.9} parent=5 // pred_check
      %p1962 = pneg %p1961
    $region38: #{_lambda_.9} parent=5 // pred_check_branch
      %1964 = sbr.rel (%p1962) target = $region40
    $region39: #{_lambda_.9} parent=5 // pred_region
      %s1965 = ssub.s32 %s9, 2
      // Predicated region
      $region41: #{_lambda_.9} parent=39 // pred_check
        %p1966 = pneg %p106
      $region42: #{_lambda_.9} parent=39 // pred_check_branch
        %1968 = sbr.rel (%p1966) target = $region44
      $region43: #{_lambda_.9} parent=39 // pred_region
        %p1969 = scmp.lt.s32.totalorder %s15, 1
        %s1970 = scalar_select %p1969, %s15, 1
        %s1971 = smul.addr %s1970, 10
        %s1972 = smul.addr %s1971, 4
        %s1973 = scalar_lea.vmem %s3, %s1972
      $region44: #{_lambda_.9} parent=39 // pred_fallthru
        _
    $region40: #{_lambda_.9} parent=5 // pred_fallthru
      _
  $region6: #{_lambda_.9} parent=0 // loop_footer
    %s13 = sadd.s32 1, %s9
  $region7: #{_lambda_.9} parent=0 // loop_footer_branch
    %8 = sbr.rel target = $region3
  $region8: #{_lambda_.9} parent=0 // loop_exit
    _

// kernel: _lambda_.11
$region0: #{_lambda_.11}
  #allocation0 [shape = 'u32[]', space=smem, size = 0x4, offset = 0x4, fixed_abs, tag = 'smem constant byte address 0x4 - core index']
  #allocation1 [shape = 'u32[144,128]{1,0:T(1,128)}', space=vmem, size = 0x12000, scoped, tag = 'internal scratch']
  %s0 = inlined_call_operand.vmem [shape: bf16[4,2,30,128], index: 0, kind: input, shape index: {}]
  %s1 = inlined_call_operand.vmem [shape: bf16[9,128,128], index: 1, kind: input, shape index: {}]
  %s2 = inlined_call_operand.vmem [shape: f32[1,128], index: 2, kind: input, shape index: {}]
  %s3 = inlined_call_operand.vmem [shape: bf16[2,20,128], index: 3, kind: output, shape index: {}]
  %s4 = sld [smem:[#allocation0]]
  $region86: #{_lambda_.11} parent=0
    _
  %s6 = ssub.s32 1, %s4
  %s7 = scalar_select 0, %s6, %s4
  $region1: #{_lambda_.11} parent=0
    #allocation2 [shape = 'u8[65536]{0}', space=vmem, size = 0x10000, scoped, tag = 'input window, operand 0']
    loop: start=0, step=1, limit=4
    $region2: #{_lambda_.11} parent=1 // loop_pre_header
      _
    $region3: #{_lambda_.11} parent=1 // loop_header
      %s9 = sphi 0, %s13
      %p10 = scmp.ge.s32.totalorder %s9, 4
      %s19 = sphi 0, %s21
      %s22 = sphi 0, %s19
      %s23 = sphi 0, %s22
      %s39 = sphi 0, %s23
      %s43 = sphi 0, %s43
      %s45 = sphi 0, %s43
      %s46 = sphi 0, %s45
      %s60 = sphi 0, %s46
      %s64 = sphi 0, %s64
      %s66 = sphi 0, %s64
      %s67 = sphi 0, %s66
      %s81 = sphi 0, %s67
      %s87 = sphi 0, %s89
      %s90 = sphi 0, %s87
      %s91 = sphi 0, %s90
      %s107 = sphi 0, %s91
    $region4: #{_lambda_.11} parent=1 // loop_header_branch
      %12 = sbr.rel (%p10) target = $region8
    $region5: #{_lambda_.11} parent=1 // loop_body
      %s14 = ssub.s32 %s9, 1
      %s15 = ssub.s32 %s9, 2
      %s16 = sadd.s32 %s9, 1
      %s17 = ssub.s32 %s9, %s16
      %p18 = scmp.eq.s32.totalorder %s17, 0
      %s20 = sadd.s32 %s19, 1
      %s21 = scalar_select %p18, %s19, %s20
      %p24 = pneg %p18
      %p25 = scmp.eq.s32.totalorder %s9, 1
      %p26 = por %p24, %p25
      %p27 = scmp.ne.s32.totalorder %s19, %s22
      %p28 = scmp.eq.s32.totalorder %s9, 0
      %p29 = por %p27, %p28
      %p30 = scmp.ne.s32.totalorder %s19, %s22
      %p31 = scmp.eq.s32.totalorder %s14, 1
      %p32 = por %p30, %p31
      %p33 = scmp.ne.s32.totalorder %s22, %s23
      %p34 = scmp.eq.s32.totalorder %s14, 0
      %p35 = por %p33, %p34
      %p36 = scmp.ne.s32.totalorder %s22, %s23
      %p37 = scmp.eq.s32.totalorder %s15, 1
      %p38 = por %p36, %p37
      %p40 = scmp.ne.s32.totalorder %s23, %s39
      %p41 = scmp.eq.s32.totalorder %s15, 0
      %p42 = por %p40, %p41
      %s44 = sadd.s32 %s43, 1
      %p47 = scmp.eq.s32.totalorder %s9, 1
      %p48 = scmp.ne.s32.totalorder %s43, %s45
      %p49 = scmp.eq.s32.totalorder %s9, 0
      %p50 = por %p48, %p49
      %p51 = scmp.ne.s32.totalorder %s43, %s45
      %p52 = scmp.eq.s32.totalorder %s14, 1
      %p53 = por %p51, %p52
      %p54 = scmp.ne.s32.totalorder %s45, %s46
      %p55 = scmp.eq.s32.totalorder %s14, 0
      %p56 = por %p54, %p55
      %p57 = scmp.ne.s32.totalorder %s45, %s46
      %p58 = scmp.eq.s32.totalorder %s15, 1
      %p59 = por %p57, %p58
      %p61 = scmp.ne.s32.totalorder %s46, %s60
      %p62 = scmp.eq.s32.totalorder %s15, 0
      %p63 = por %p61, %p62
      %s65 = sadd.s32 %s64, 1
      %p68 = scmp.eq.s32.totalorder %s9, 1
      %p69 = scmp.ne.s32.totalorder %s64, %s66
      %p70 = scmp.eq.s32.totalorder %s9, 0
      %p71 = por %p69, %p70
      %p72 = scmp.ne.s32.totalorder %s64, %s66
      %p73 = scmp.eq.s32.totalorder %s14, 1
      %p74 = por %p72, %p73
      %p75 = scmp.ne.s32.totalorder %s66, %s67
      %p76 = scmp.eq.s32.totalorder %s14, 0
      %p77 = por %p75, %p76
      %p78 = scmp.ne.s32.totalorder %s66, %s67
      %p79 = scmp.eq.s32.totalorder %s15, 1
      %p80 = por %p78, %p79
      %p82 = scmp.ne.s32.totalorder %s67, %s81
      %p83 = scmp.eq.s32.totalorder %s15, 0
      %p84 = por %p82, %p83
      %s85 = ssub.s32 %s9, %s16
      %p86 = scmp.eq.s32.totalorder %s85, 0
      %s88 = sadd.s32 %s87, 1
      %s89 = scalar_select %p86, %s87, %s88
      %p92 = pneg %p86
      %p93 = scmp.eq.s32.totalorder %s9, 1
      %p94 = por %p92, %p93
      %p95 = scmp.ne.s32.totalorder %s87, %s90
      %p96 = scmp.eq.s32.totalorder %s9, 0
      %p97 = por %p95, %p96
      %p98 = scmp.ne.s32.totalorder %s87, %s90
      %p99 = scmp.eq.s32.totalorder %s14, 1
      %p100 = por %p98, %p99
      %p101 = scmp.ne.s32.totalorder %s90, %s91
      %p102 = scmp.eq.s32.totalorder %s14, 0
      %p103 = por %p101, %p102
      %p104 = scmp.ne.s32.totalorder %s90, %s91
      %p105 = scmp.eq.s32.totalorder %s15, 1
      %p106 = por %p104, %p105
      %p108 = scmp.ne.s32.totalorder %s91, %s107
      %p109 = scmp.eq.s32.totalorder %s15, 0
      %p110 = por %p108, %p109
      %p111 = scmp.le.s32.totalorder 1, %s9
      %p112 = scmp.lt.s32.totalorder %s9, 3
      %p113 = pnand %p111, %p112
      %p114 = pneg %p113
      // Predicated region
      $region9: #{_lambda_.11} parent=5 // pred_check
        _
      $region10: #{_lambda_.11} parent=5 // pred_check_branch
        %116 = sbr.rel (%p113) target = $region12
      $region11: #{_lambda_.11} parent=5 // pred_region
        %s117 = ssub.s32 %s9, 1
        // Predicated region
        $region13: #{_lambda_.11} parent=11 // pred_check
          %p118 = pneg %p56
        $region14: #{_lambda_.11} parent=11 // pred_check_branch
          %120 = sbr.rel (%p118) target = $region16
        $region15: #{_lambda_.11} parent=11 // pred_region
          _
        $region16: #{_lambda_.11} parent=11 // pred_fallthru
          _
        // Predicated region
        $region17: #{_lambda_.11} parent=11 // pred_check
          %p121 = pneg %p77
        $region18: #{_lambda_.11} parent=11 // pred_check_branch
          %123 = sbr.rel (%p121) target = $region20
        $region19: #{_lambda_.11} parent=11 // pred_region
          _
        $region20: #{_lambda_.11} parent=11 // pred_fallthru
          _
      $region12: #{_lambda_.11} parent=5 // pred_fallthru
        _
      %p124 = scmp.lt.s32.totalorder %s9, 2
      // Predicated region
      $region21: #{_lambda_.11} parent=5 // pred_check
        %p125 = pneg %p124
      $region22: #{_lambda_.11} parent=5 // pred_check_branch
        %127 = sbr.rel (%p125) target = $region24
      $region23: #{_lambda_.11} parent=5 // pred_region
        // Predicated region
        $region25: #{_lambda_.11} parent=23 // pred_check
          %p128 = pneg %p29
        $region26: #{_lambda_.11} parent=23 // pred_check_branch
          %130 = sbr.rel (%p128) target = $region28
        $region27: #{_lambda_.11} parent=23 // pred_region
          %s131 = sand.u32 %s19, 1
          %s132 = sand.u32 %s19, 1
          %s133 = smul.addr %s132, 64
          %s134 = scalar_lea.vmem [#allocation2], %s133
          %s135 = smul.addr %s9, 4
          %s136 = smul.addr %s135, 4
          %s137 = scalar_lea.vmem %s0, %s136
          // Predicated region
          $region29: #{_lambda_.11} parent=27 // pred_check
            _
          $region30: #{_lambda_.11} parent=27 // pred_check_branch
            %139 = sbr.rel (0) target = $region32
          $region31: #{_lambda_.11} parent=27 // pred_region
            // Predicated region
            $region33: #{_lambda_.11} parent=31 // pred_check
              _
            $region34: #{_lambda_.11} parent=31 // pred_check_branch
              %141 = sbr.rel target = $region36
            $region35: #{_lambda_.11} parent=31 // pred_region
              // Predicated region
              $region48: #{_lambda_.11} parent=35 // pred_check
                _
              $region49: #{_lambda_.11} parent=35 // pred_check_branch
                %187 = sbr.rel (0) target = $region51
              $region50: #{_lambda_.11} parent=35 // pred_region
                loop: start=0, step=1, limit=1
                $region52: #{_lambda_.11} parent=50 // loop_pre_header
                  _
                $region53: #{_lambda_.11} parent=50 // loop_header
                  %s189 = sphi 0, %s193
                  %p190 = scmp.ge.s32.totalorder %s189, 1
                  %s194 = sphi %s137, %s137
                  %s195 = sphi %s134, %s134
                $region54: #{_lambda_.11} parent=50 // loop_header_branch
                  %192 = sbr.rel (%p190) target = $region58
                $region55: #{_lambda_.11} parent=50 // loop_body
                  _
                $region56: #{_lambda_.11} parent=50 // loop_footer
                  %s193 = sadd.s32 1, %s189
                $region57: #{_lambda_.11} parent=50 // loop_footer_branch
                  %188 = sbr.rel target = $region53
                $region58: #{_lambda_.11} parent=50 // loop_exit
                  _
                %s197 = ssub.s32 16, 1
                loop: start=0, step=1, limit=1
                $region59: #{_lambda_.11} parent=50 // loop_pre_header
                  _
                $region60: #{_lambda_.11} parent=50 // loop_header
                  %s199 = sphi 0, %s203
                  %p200 = scmp.ge.s32.totalorder %s199, 1
                  %s204 = sphi %s137, %s137
                  %s205 = sphi %s134, %s134
                $region61: #{_lambda_.11} parent=50 // loop_header_branch
                  %202 = sbr.rel (%p200) target = $region65
                $region62: #{_lambda_.11} parent=50 // loop_body
                  %v206 = vld [vmem:[%s204] sm:%s197]
                  %207 = vst [vmem:[%s205] sm:%s197] %v206
                  %v208 = vld [vmem:[%s204 + $0x4] sm:%s197]
                  %209 = vst [vmem:[%s205 + $0x4] sm:%s197] %v208
                  %v210 = vld [vmem:[%s204 + $0x8] sm:%s197]
                  %211 = vst [vmem:[%s205 + $0x8] sm:%s197] %v210
                  %v212 = vld [vmem:[%s204 + $0xc] sm:%s197]
                  %213 = vst [vmem:[%s205 + $0xc] sm:%s197] %v212
                  %v214 = vld [vmem:[%s204 + $0x20] sm:%s197]
                  %215 = vst [vmem:[%s205 + $0x10] sm:%s197] %v214
                  %v216 = vld [vmem:[%s204 + $0x24] sm:%s197]
                  %217 = vst [vmem:[%s205 + $0x14] sm:%s197] %v216
                  %v218 = vld [vmem:[%s204 + $0x28] sm:%s197]
                  %219 = vst [vmem:[%s205 + $0x18] sm:%s197] %v218
                  %v220 = vld [vmem:[%s204 + $0x2c] sm:%s197]
                  %221 = vst [vmem:[%s205 + $0x1c] sm:%s197] %v220
                  %v222 = vld [vmem:[%s204 + $0x40] sm:%s197]
                  %223 = vst [vmem:[%s205 + $0x20] sm:%s197] %v222
                  %v224 = vld [vmem:[%s204 + $0x44] sm:%s197]
                  %225 = vst [vmem:[%s205 + $0x24] sm:%s197] %v224
                  %v226 = vld [vmem:[%s204 + $0x48] sm:%s197]
                  %227 = vst [vmem:[%s205 + $0x28] sm:%s197] %v226
                  %v228 = vld [vmem:[%s204 + $0x4c] sm:%s197]
                  %229 = vst [vmem:[%s205 + $0x2c] sm:%s197] %v228
                  %v230 = vld [vmem:[%s204 + $0x60] sm:%s197]
                  %231 = vst [vmem:[%s205 + $0x30] sm:%s197] %v230
                  %v232 = vld [vmem:[%s204 + $0x64] sm:%s197]
                  %233 = vst [vmem:[%s205 + $0x34] sm:%s197] %v232
                  %v234 = vld [vmem:[%s204 + $0x68] sm:%s197]
                  %235 = vst [vmem:[%s205 + $0x38] sm:%s197] %v234
                  %v236 = vld [vmem:[%s204 + $0x6c] sm:%s197]
                  %237 = vst [vmem:[%s205 + $0x3c] sm:%s197] %v236
                $region63: #{_lambda_.11} parent=50 // loop_footer
                  %s203 = sadd.s32 1, %s199
                $region64: #{_lambda_.11} parent=50 // loop_footer_branch
                  %198 = sbr.rel target = $region60
                $region65: #{_lambda_.11} parent=50 // loop_exit
                  _
              $region51: #{_lambda_.11} parent=35 // pred_fallthru
                _
            $region36: #{_lambda_.11} parent=31 // pred_fallthru
              _
            // Predicated region
            $region37: #{_lambda_.11} parent=31 // pred_check
              _
            $region38: #{_lambda_.11} parent=31 // pred_check_branch
              %143 = sbr.rel (0) target = $region40
            $region39: #{_lambda_.11} parent=31 // pred_region
              %s145 = ssub.s32 16, 1
              loop: start=0, step=1, limit=1
              $region41: #{_lambda_.11} parent=39 // loop_pre_header
                _
              $region42: #{_lambda_.11} parent=39 // loop_header
                %s147 = sphi 0, %s151
                %p148 = scmp.ge.s32.totalorder %s147, 1
                %s152 = sphi %s137, %s137
                %s153 = sphi %s134, %s134
              $region43: #{_lambda_.11} parent=39 // loop_header_branch
                %150 = sbr.rel (%p148) target = $region47
              $region44: #{_lambda_.11} parent=39 // loop_body
                %v154 = vld [vmem:[%s152] sm:%s145]
                %155 = vst [vmem:[%s153] sm:%s145] %v154
                %v156 = vld [vmem:[%s152 + $0x4] sm:%s145]
                %157 = vst [vmem:[%s153 + $0x4] sm:%s145] %v156
                %v158 = vld [vmem:[%s152 + $0x8] sm:%s145]
                %159 = vst [vmem:[%s153 + $0x8] sm:%s145] %v158
                %v160 = vld [vmem:[%s152 + $0xc] sm:%s145]
                %161 = vst [vmem:[%s153 + $0xc] sm:%s145] %v160
                %v162 = vld [vmem:[%s152 + $0x20] sm:%s145]
                %163 = vst [vmem:[%s153 + $0x10] sm:%s145] %v162
                %v164 = vld [vmem:[%s152 + $0x24] sm:%s145]
                %165 = vst [vmem:[%s153 + $0x14] sm:%s145] %v164
                %v166 = vld [vmem:[%s152 + $0x28] sm:%s145]
                %167 = vst [vmem:[%s153 + $0x18] sm:%s145] %v166
                %v168 = vld [vmem:[%s152 + $0x2c] sm:%s145]
                %169 = vst [vmem:[%s153 + $0x1c] sm:%s145] %v168
                %v170 = vld [vmem:[%s152 + $0x40] sm:%s145]
                %171 = vst [vmem:[%s153 + $0x20] sm:%s145] %v170
                %v172 = vld [vmem:[%s152 + $0x44] sm:%s145]
                %173 = vst [vmem:[%s153 + $0x24] sm:%s145] %v172
                %v174 = vld [vmem:[%s152 + $0x48] sm:%s145]
                %175 = vst [vmem:[%s153 + $0x28] sm:%s145] %v174
                %v176 = vld [vmem:[%s152 + $0x4c] sm:%s145]
                %177 = vst [vmem:[%s153 + $0x2c] sm:%s145] %v176
                %v178 = vld [vmem:[%s152 + $0x60] sm:%s145]
                %179 = vst [vmem:[%s153 + $0x30] sm:%s145] %v178
                %v180 = vld [vmem:[%s152 + $0x64] sm:%s145]
                %181 = vst [vmem:[%s153 + $0x34] sm:%s145] %v180
                %v182 = vld [vmem:[%s152 + $0x68] sm:%s145]
                %183 = vst [vmem:[%s153 + $0x38] sm:%s145] %v182
                %v184 = vld [vmem:[%s152 + $0x6c] sm:%s145]
                %185 = vst [vmem:[%s153 + $0x3c] sm:%s145] %v184
              $region45: #{_lambda_.11} parent=39 // loop_footer
                %s151 = sadd.s32 1, %s147
              $region46: #{_lambda_.11} parent=39 // loop_footer_branch
                %146 = sbr.rel target = $region42
              $region47: #{_lambda_.11} parent=39 // loop_exit
                _
            $region40: #{_lambda_.11} parent=31 // pred_fallthru
              _
          $region32: #{_lambda_.11} parent=27 // pred_fallthru
            _
          %238 = vnop
        $region28: #{_lambda_.11} parent=23 // pred_fallthru
          _
      $region24: #{_lambda_.11} parent=5 // pred_fallthru
        _
      %p239 = scmp.le.s32.totalorder 1, %s9
      %p240 = scmp.lt.s32.totalorder %s9, 3
      %p241 = pnand %p239, %p240
      %p242 = pneg %p241
      // Predicated region
      $region66: #{_lambda_.11} parent=5 // pred_check
        _
      $region67: #{_lambda_.11} parent=5 // pred_check_branch
        %244 = sbr.rel (%p241) target = $region69
      $region68: #{_lambda_.11} parent=5 // pred_region
        %s245 = ssub.s32 %s9, 1
        %s246 = sand.u32 %s22, 1
        %s247 = sand.u32 %s22, 1
        %s248 = smul.addr %s247, 64
        %s249 = scalar_lea.vmem [#allocation2], %s248
        // Predicated region
        $region70: #{_lambda_.11} parent=68 // pred_check
          %p250 = pneg %p35
        $region71: #{_lambda_.11} parent=68 // pred_check_branch
          %252 = sbr.rel (%p250) target = $region73
        $region72: #{_lambda_.11} parent=68 // pred_region
          _
        $region73: #{_lambda_.11} parent=68 // pred_fallthru
          _
        %s253 = sand.u32 %s22, 1
        %s254 = sand.u32 %s22, 1
        %s255 = smul.addr %s254, 64
        %s256 = scalar_lea.vmem [#allocation2], %s255
        %p257 = pneg %p35
        %p258 = pneg %p32
        %p259 = pneg %p56
        %p260 = pneg %p53
        %p261 = pneg %p77
        %p262 = pneg %p74
        %p263 = pneg %p103
        %p264 = pneg %p100
        %p265 = scmp.lt.s32.totalorder %s14, 1
        %s266 = scalar_select %p265, %s14, 1
        %s267 = smul.addr %s266, 3
        %s268 = smul.addr %s267, 4
        %s269 = scalar_lea.vmem %s3, %s268
        %p270 = scmp.lt.s32.totalorder %s14, 1
        %s271 = scalar_select %p270, %s14, 1
        %s272 = smul.addr %s271, 3
        %s273 = smul.addr %s272, 4
        %s274 = scalar_lea.vmem %s3, %s273
        %v276 = vld [vmem:[%s249] sm:$0xf]
        %v277 = vld [vmem:[%s249 + $0x4] sm:$0xf]
        %v278 = vld [vmem:[%s249 + $0x8] sm:$0x3]
        %v279 = vld [vmem:[%s1] sm:$0xf]
        %v280 = vld [vmem:[%s1 + $0x4] sm:$0xf]
        %v281 = vld [vmem:[%s1 + $0x8] sm:$0xf]
        %v282 = vld [vmem:[%s1 + $0xc] sm:$0xf]
        %v283 = vld [vmem:[%s1 + $0x10] sm:$0xf]
        %v284 = vld [vmem:[%s1 + $0x14] sm:$0xf]
        %v285 = vld [vmem:[%s1 + $0x18] sm:$0xf]
        %v286 = vld [vmem:[%s1 + $0x1c] sm:$0xf]
        %v287 = vld [vmem:[%s1 + $0x20] sm:$0xf]
        %v288 = vld [vmem:[%s1 + $0x24] sm:$0xf]
        %v289 = vld [vmem:[%s1 + $0x28] sm:$0xf]
        %v290 = vld [vmem:[%s1 + $0x2c] sm:$0xf]
        %v291 = vld [vmem:[%s1 + $0x30] sm:$0xf]
        %v292 = vld [vmem:[%s1 + $0x34] sm:$0xf]
        %v293 = vld [vmem:[%s1 + $0x38] sm:$0xf]
        %v294 = vld [vmem:[%s1 + $0x3c] sm:$0xf]
        %s295 = scalar_lea.vmem %s249, 16 [#allocation2]
        %v296 = vld [vmem:[%s295] sm:$0xf]
        %v297 = vld [vmem:[%s295 + $0x4] sm:$0xf]
        %v298 = vld [vmem:[%s295 + $0x8] sm:$0x3]
        %s299 = scalar_lea.vmem %s1, 64
        %v300 = vld [vmem:[%s299] sm:$0xf]
        %v301 = vld [vmem:[%s299 + $0x4] sm:$0xf]
        %v302 = vld [vmem:[%s299 + $0x8] sm:$0xf]
        %v303 = vld [vmem:[%s299 + $0xc] sm:$0xf]
        %v304 = vld [vmem:[%s299 + $0x10] sm:$0xf]
        %v305 = vld [vmem:[%s299 + $0x14] sm:$0xf]
        %v306 = vld [vmem:[%s299 + $0x18] sm:$0xf]
        %v307 = vld [vmem:[%s299 + $0x1c] sm:$0xf]
        %v308 = vld [vmem:[%s299 + $0x20] sm:$0xf]
        %v309 = vld [vmem:[%s299 + $0x24] sm:$0xf]
        %v310 = vld [vmem:[%s299 + $0x28] sm:$0xf]
        %v311 = vld [vmem:[%s299 + $0x2c] sm:$0xf]
        %v312 = vld [vmem:[%s299 + $0x30] sm:$0xf]
        %v313 = vld [vmem:[%s299 + $0x34] sm:$0xf]
        %v314 = vld [vmem:[%s299 + $0x38] sm:$0xf]
        %v315 = vld [vmem:[%s299 + $0x3c] sm:$0xf]
        %v319 = vunpack.c.l.b16 %v296
        %v320 = vunpack.c.l.b16 %v297
        %v321 = vunpack.c.l.b16 %v298
        %v322 = vpack.c.b16 %v320, %v319
        %v323 = vpack.c.b16 %v321, %v321
        %v342 = vunpack.c.l.b16 %v300
        %v343 = vunpack.c.l.b16 %v301
        %v344 = vunpack.c.l.b16 %v302
        %v345 = vunpack.c.l.b16 %v303
        %v346 = vunpack.c.l.b16 %v304
        %v347 = vunpack.c.l.b16 %v305
        %v348 = vunpack.c.l.b16 %v306
        %v349 = vunpack.c.l.b16 %v307
        %v350 = vunpack.c.l.b16 %v308
        %v351 = vunpack.c.l.b16 %v309
        %v352 = vunpack.c.l.b16 %v310
        %v353 = vunpack.c.l.b16 %v311
        %v354 = vunpack.c.l.b16 %v312
        %v355 = vunpack.c.l.b16 %v313
        %v356 = vunpack.c.l.b16 %v314
        %v357 = vunpack.c.l.b16 %v315
        %v358 = vpack.c.b16 %v343, %v342
        %v359 = vpack.c.b16 %v345, %v344
        %v360 = vpack.c.b16 %v347, %v346
        %v361 = vpack.c.b16 %v349, %v348
        %v362 = vpack.c.b16 %v351, %v350
        %v363 = vpack.c.b16 %v353, %v352
        %v364 = vpack.c.b16 %v355, %v354
        %v365 = vpack.c.b16 %v357, %v356
        %374 = vmatprep.subr.bf16.mxu0 0
        %375 = vmatpush1.bf16.msra.mxu0 %v365
        %376 = vmatprep.subr.bf16.mxu0 0
        %377 = vmatpush1.bf16.msra.mxu0 %v364
        %378 = vmatprep.subr.bf16.mxu0 0
        %379 = vmatpush1.bf16.msra.mxu0 %v363
        %380 = vmatprep.subr.bf16.mxu0 0
        %381 = vmatpush1.bf16.msra.mxu0 %v362
        %382 = vmatprep.subr.bf16.mxu0 0
        %383 = vmatpush1.bf16.msra.mxu0 %v361
        %384 = vmatprep.subr.bf16.mxu0 0
        %385 = vmatpush1.bf16.msra.mxu0 %v360
        %386 = vmatprep.subr.bf16.mxu0 0
        %387 = vmatpush1.bf16.msra.mxu0 %v359
        %388 = vmatprep.subr.bf16.mxu0 0
        %389 = vmatpush1.bf16.msra.mxu0 %v358
        %390 = vmatprep.subr.bf16.mxu0 0
        %391 = vmatpush2.bf16.msra.mxu0 0
        %392 = vmatprep.subr.bf16.mxu0 0
        %393 = vmatpush2.bf16.msra.mxu0 0
        %394 = vmatprep.subr.bf16.mxu0 0
        %395 = vmatpush2.bf16.msra.mxu0 0
        %396 = vmatprep.subr.bf16.mxu0 0
        %397 = vmatpush2.bf16.msra.mxu0 0
        %398 = vmatprep.subr.bf16.mxu0 0
        %399 = vmatpush2.bf16.msra.mxu0 0
        %400 = vmatprep.subr.bf16.mxu0 0
        %401 = vmatpush2.bf16.msra.mxu0 0
        %402 = vmatprep.subr.bf16.mxu0 0
        %403 = vmatpush2.bf16.msra.mxu0 0
        %404 = vmatprep.subr.bf16.mxu0 0
        %405 = vmatpush2.bf16.msra.mxu0 0
        %406 = vmatprep.mubr.bf16.mxu0 0
        %407 = vmatmul.mubr.bf16.gmra.mxu0 %v322
        %v408 = vpop.f32.mrf.mxu0
        %v409 = vadd.f32 0.0, %v408
        %v410 = vpop.f32.mrf.mxu0
        %v411 = vpop.f32.mrf.mxu0
        %v412 = vadd.f32 0.0, %v411
        %v413 = vpop.f32.mrf.mxu0
        %414 = vmatprep.mubr.bf16.mxu0 0
        %415 = vmatmul.mubr.bf16.gmra.mxu0 %v323
        %v416 = vpop.f32.mrf.mxu0
        %v417 = vadd.f32 0.0, %v416
        %v418 = vpop.f32.mrf.mxu0
        %v419 = vpop.f32.mrf.mxu0
        %v420 = vpop.f32.mrf.mxu0
        %421 = vdwg.mxu0
        %v425 = vunpack.c.l.b16 %v276
        %v426 = vunpack.c.l.b16 %v277
        %v427 = vunpack.c.l.b16 %v278
        %v428 = vpack.c.b16 %v426, %v425
        %v429 = vpack.c.b16 %v427, %v427
        %v448 = vunpack.c.l.b16 %v279
        %v449 = vunpack.c.l.b16 %v280
        %v450 = vunpack.c.l.b16 %v281
        %v451 = vunpack.c.l.b16 %v282
        %v452 = vunpack.c.l.b16 %v283
        %v453 = vunpack.c.l.b16 %v284
        %v454 = vunpack.c.l.b16 %v285
        %v455 = vunpack.c.l.b16 %v286
        %v456 = vunpack.c.l.b16 %v287
        %v457 = vunpack.c.l.b16 %v288
        %v458 = vunpack.c.l.b16 %v289
        %v459 = vunpack.c.l.b16 %v290
        %v460 = vunpack.c.l.b16 %v291
        %v461 = vunpack.c.l.b16 %v292
        %v462 = vunpack.c.l.b16 %v293
        %v463 = vunpack.c.l.b16 %v294
        %v464 = vpack.c.b16 %v449, %v448
        %v465 = vpack.c.b16 %v451, %v450
        %v466 = vpack.c.b16 %v453, %v452
        %v467 = vpack.c.b16 %v455, %v454
        %v468 = vpack.c.b16 %v457, %v456
        %v469 = vpack.c.b16 %v459, %v458
        %v470 = vpack.c.b16 %v461, %v460
        %v471 = vpack.c.b16 %v463, %v462
        %480 = vmatprep.subr.bf16.mxu0 0
        %481 = vmatpush1.bf16.msra.mxu0 %v471
        %482 = vmatprep.subr.bf16.mxu0 0
        %483 = vmatpush1.bf16.msra.mxu0 %v470
        %484 = vmatprep.subr.bf16.mxu0 0
        %485 = vmatpush1.bf16.msra.mxu0 %v469
        %486 = vmatprep.subr.bf16.mxu0 0
        %487 = vmatpush1.bf16.msra.mxu0 %v468
        %488 = vmatprep.subr.bf16.mxu0 0
        %489 = vmatpush1.bf16.msra.mxu0 %v467
        %490 = vmatprep.subr.bf16.mxu0 0
        %491 = vmatpush1.bf16.msra.mxu0 %v466
        %492 = vmatprep.subr.bf16.mxu0 0
        %493 = vmatpush1.bf16.msra.mxu0 %v465
        %494 = vmatprep.subr.bf16.mxu0 0
        %495 = vmatpush1.bf16.msra.mxu0 %v464
        %496 = vmatprep.subr.bf16.mxu0 0
        %497 = vmatpush2.bf16.msra.mxu0 0
        %498 = vmatprep.subr.bf16.mxu0 0
        %499 = vmatpush2.bf16.msra.mxu0 0
        %500 = vmatprep.subr.bf16.mxu0 0
        %501 = vmatpush2.bf16.msra.mxu0 0
        %502 = vmatprep.subr.bf16.mxu0 0
        %503 = vmatpush2.bf16.msra.mxu0 0
        %504 = vmatprep.subr.bf16.mxu0 0
        %505 = vmatpush2.bf16.msra.mxu0 0
        %506 = vmatprep.subr.bf16.mxu0 0
        %507 = vmatpush2.bf16.msra.mxu0 0
        %508 = vmatprep.subr.bf16.mxu0 0
        %509 = vmatpush2.bf16.msra.mxu0 0
        %510 = vmatprep.subr.bf16.mxu0 0
        %511 = vmatpush2.bf16.msra.mxu0 0
        %512 = vmatprep.mubr.bf16.mxu0 0
        %513 = vmatmul.mubr.bf16.gmra.mxu0 %v428
        %v514 = vpop.f32.mrf.mxu0
        %v515 = vadd.f32 %v409, %v514
        %v516 = vpop.f32.mrf.mxu0
        %v517 = vpop.f32.mrf.mxu0
        %v518 = vadd.f32 %v412, %v517
        %v519 = vpop.f32.mrf.mxu0
        %520 = vmatprep.mubr.bf16.mxu0 0
        %521 = vmatmul.mubr.bf16.gmra.mxu0 %v429
        %v522 = vpop.f32.mrf.mxu0
        %v523 = vadd.f32 %v417, %v522
        %v524 = vpop.f32.mrf.mxu0
        %v525 = vpop.f32.mrf.mxu0
        %v526 = vpop.f32.mrf.mxu0
        %527 = vdwg.mxu0
        %v528 = vld [vmem:[%s249 + $0x8] sm:$0x7]
        %s529 = scalar_lea.vmem %s1, 128
        %v530 = vld [vmem:[%s529] sm:$0xf]
        %v531 = vld [vmem:[%s529 + $0x4] sm:$0xf]
        %v532 = vld [vmem:[%s529 + $0x8] sm:$0xf]
        %v533 = vld [vmem:[%s529 + $0xc] sm:$0xf]
        %v534 = vld [vmem:[%s529 + $0x10] sm:$0xf]
        %v535 = vld [vmem:[%s529 + $0x14] sm:$0xf]
        %v536 = vld [vmem:[%s529 + $0x18] sm:$0xf]
        %v537 = vld [vmem:[%s529 + $0x1c] sm:$0xf]
        %v538 = vld [vmem:[%s529 + $0x20] sm:$0xf]
        %v539 = vld [vmem:[%s529 + $0x24] sm:$0xf]
        %v540 = vld [vmem:[%s529 + $0x28] sm:$0xf]
        %v541 = vld [vmem:[%s529 + $0x2c] sm:$0xf]
        %v542 = vld [vmem:[%s529 + $0x30] sm:$0xf]
        %v543 = vld [vmem:[%s529 + $0x34] sm:$0xf]
        %v544 = vld [vmem:[%s529 + $0x38] sm:$0xf]
        %v545 = vld [vmem:[%s529 + $0x3c] sm:$0xf]
        %v547 = vunpack.c.l.b16 %v528
        %v548 = vpack.c.b16 %v547, %v547
        %vm549 = vsmask.f32 7424
        %v551 = vshrl.u32 %v428, 16
        %v553 = vshll.u32 %v428, 16
        %v555 = vrot.slane %v553, 1
        %v556 = vor.u32 %v551, %v555
        %v558 = vshll.u32 %v548, 16
        %v560 = vrot.slane %v558, 1
        %v561 = vsel %vm549, %v556, %v560
        %v562 = vshrl.u32 %v548, 16
        %v564 = vor.u32 %v562, %v560
        %v583 = vunpack.c.l.b16 %v530
        %v584 = vunpack.c.l.b16 %v531
        %v585 = vunpack.c.l.b16 %v532
        %v586 = vunpack.c.l.b16 %v533
        %v587 = vunpack.c.l.b16 %v534
        %v588 = vunpack.c.l.b16 %v535
        %v589 = vunpack.c.l.b16 %v536
        %v590 = vunpack.c.l.b16 %v537
        %v591 = vunpack.c.l.b16 %v538
        %v592 = vunpack.c.l.b16 %v539
        %v593 = vunpack.c.l.b16 %v540
        %v594 = vunpack.c.l.b16 %v541
        %v595 = vunpack.c.l.b16 %v542
        %v596 = vunpack.c.l.b16 %v543
        %v597 = vunpack.c.l.b16 %v544
        %v598 = vunpack.c.l.b16 %v545
        %v599 = vpack.c.b16 %v584, %v583
        %v600 = vpack.c.b16 %v586, %v585
        %v601 = vpack.c.b16 %v588, %v587
        %v602 = vpack.c.b16 %v590, %v589
        %v603 = vpack.c.b16 %v592, %v591
        %v604 = vpack.c.b16 %v594, %v593
        %v605 = vpack.c.b16 %v596, %v595
        %v606 = vpack.c.b16 %v598, %v597
        %615 = vmatprep.subr.bf16.mxu0 0
        %616 = vmatpush1.bf16.msra.mxu0 %v606
        %617 = vmatprep.subr.bf16.mxu0 0
        %618 = vmatpush1.bf16.msra.mxu0 %v605
        %619 = vmatprep.subr.bf16.mxu0 0
        %620 = vmatpush1.bf16.msra.mxu0 %v604
        %621 = vmatprep.subr.bf16.mxu0 0
        %622 = vmatpush1.bf16.msra.mxu0 %v603
        %623 = vmatprep.subr.bf16.mxu0 0
        %624 = vmatpush1.bf16.msra.mxu0 %v602
        %625 = vmatprep.subr.bf16.mxu0 0
        %626 = vmatpush1.bf16.msra.mxu0 %v601
        %627 = vmatprep.subr.bf16.mxu0 0
        %628 = vmatpush1.bf16.msra.mxu0 %v600
        %629 = vmatprep.subr.bf16.mxu0 0
        %630 = vmatpush1.bf16.msra.mxu0 %v599
        %631 = vmatprep.subr.bf16.mxu0 0
        %632 = vmatpush2.bf16.msra.mxu0 0
        %633 = vmatprep.subr.bf16.mxu0 0
        %634 = vmatpush2.bf16.msra.mxu0 0
        %635 = vmatprep.subr.bf16.mxu0 0
        %636 = vmatpush2.bf16.msra.mxu0 0
        %637 = vmatprep.subr.bf16.mxu0 0
        %638 = vmatpush2.bf16.msra.mxu0 0
        %639 = vmatprep.subr.bf16.mxu0 0
        %640 = vmatpush2.bf16.msra.mxu0 0
        %641 = vmatprep.subr.bf16.mxu0 0
        %642 = vmatpush2.bf16.msra.mxu0 0
        %643 = vmatprep.subr.bf16.mxu0 0
        %644 = vmatpush2.bf16.msra.mxu0 0
        %645 = vmatprep.subr.bf16.mxu0 0
        %646 = vmatpush2.bf16.msra.mxu0 0
        %647 = vmatprep.mubr.bf16.mxu0 0
        %648 = vmatmul.mubr.bf16.gmra.mxu0 %v561
        %v649 = vpop.f32.mrf.mxu0
        %v650 = vadd.f32 0.0, %v649
        %v651 = vpop.f32.mrf.mxu0
        %v652 = vpop.f32.mrf.mxu0
        %v653 = vadd.f32 0.0, %v652
        %v654 = vpop.f32.mrf.mxu0
        %655 = vmatprep.mubr.bf16.mxu0 0
        %656 = vmatmul.mubr.bf16.gmra.mxu0 %v564
        %v657 = vpop.f32.mrf.mxu0
        %v658 = vadd.f32 0.0, %v657
        %v659 = vpop.f32.mrf.mxu0
        %v660 = vpop.f32.mrf.mxu0
        %v661 = vpop.f32.mrf.mxu0
        %662 = vdwg.mxu0
        %v663 = vadd.f32 %v515, %v650
        %v664 = vadd.f32 %v518, %v653
        %v665 = vadd.f32 %v523, %v658
        %s666 = scalar_lea.vmem %s249, 32 [#allocation2]
        %v667 = vld [vmem:[%s666] sm:$0xf]
        %v668 = vld [vmem:[%s666 + $0x4] sm:$0xf]
        %v669 = vld [vmem:[%s666 + $0x8] sm:$0x3]
        %s670 = scalar_lea.vmem %s1, 192
        %v671 = vld [vmem:[%s670] sm:$0xf]
        %v672 = vld [vmem:[%s670 + $0x4] sm:$0xf]
        %v673 = vld [vmem:[%s670 + $0x8] sm:$0xf]
        %v674 = vld [vmem:[%s670 + $0xc] sm:$0xf]
        %v675 = vld [vmem:[%s670 + $0x10] sm:$0xf]
        %v676 = vld [vmem:[%s670 + $0x14] sm:$0xf]
        %v677 = vld [vmem:[%s670 + $0x18] sm:$0xf]
        %v678 = vld [vmem:[%s670 + $0x1c] sm:$0xf]
        %v679 = vld [vmem:[%s670 + $0x20] sm:$0xf]
        %v680 = vld [vmem:[%s670 + $0x24] sm:$0xf]
        %v681 = vld [vmem:[%s670 + $0x28] sm:$0xf]
        %v682 = vld [vmem:[%s670 + $0x2c] sm:$0xf]
        %v683 = vld [vmem:[%s670 + $0x30] sm:$0xf]
        %v684 = vld [vmem:[%s670 + $0x34] sm:$0xf]
        %v685 = vld [vmem:[%s670 + $0x38] sm:$0xf]
        %v686 = vld [vmem:[%s670 + $0x3c] sm:$0xf]
        %v690 = vunpack.c.l.b16 %v667
        %v691 = vunpack.c.l.b16 %v668
        %v692 = vunpack.c.l.b16 %v669
        %v693 = vpack.c.b16 %v691, %v690
        %v694 = vpack.c.b16 %v692, %v692
        %v713 = vunpack.c.l.b16 %v671
        %v714 = vunpack.c.l.b16 %v672
        %v715 = vunpack.c.l.b16 %v673
        %v716 = vunpack.c.l.b16 %v674
        %v717 = vunpack.c.l.b16 %v675
        %v718 = vunpack.c.l.b16 %v676
        %v719 = vunpack.c.l.b16 %v677
        %v720 = vunpack.c.l.b16 %v678
        %v721 = vunpack.c.l.b16 %v679
        %v722 = vunpack.c.l.b16 %v680
        %v723 = vunpack.c.l.b16 %v681
        %v724 = vunpack.c.l.b16 %v682
        %v725 = vunpack.c.l.b16 %v683
        %v726 = vunpack.c.l.b16 %v684
        %v727 = vunpack.c.l.b16 %v685
        %v728 = vunpack.c.l.b16 %v686
        %v729 = vpack.c.b16 %v714, %v713
        %v730 = vpack.c.b16 %v716, %v715
        %v731 = vpack.c.b16 %v718, %v717
        %v732 = vpack.c.b16 %v720, %v719
        %v733 = vpack.c.b16 %v722, %v721
        %v734 = vpack.c.b16 %v724, %v723
        %v735 = vpack.c.b16 %v726, %v725
        %v736 = vpack.c.b16 %v728, %v727
        %745 = vmatprep.subr.bf16.mxu0 0
        %746 = vmatpush1.bf16.msra.mxu0 %v736
        %747 = vmatprep.subr.bf16.mxu0 0
        %748 = vmatpush1.bf16.msra.mxu0 %v735
        %749 = vmatprep.subr.bf16.mxu0 0
        %750 = vmatpush1.bf16.msra.mxu0 %v734
        %751 = vmatprep.subr.bf16.mxu0 0
        %752 = vmatpush1.bf16.msra.mxu0 %v733
        %753 = vmatprep.subr.bf16.mxu0 0
        %754 = vmatpush1.bf16.msra.mxu0 %v732
        %755 = vmatprep.subr.bf16.mxu0 0
        %756 = vmatpush1.bf16.msra.mxu0 %v731
        %757 = vmatprep.subr.bf16.mxu0 0
        %758 = vmatpush1.bf16.msra.mxu0 %v730
        %759 = vmatprep.subr.bf16.mxu0 0
        %760 = vmatpush1.bf16.msra.mxu0 %v729
        %761 = vmatprep.subr.bf16.mxu0 0
        %762 = vmatpush2.bf16.msra.mxu0 0
        %763 = vmatprep.subr.bf16.mxu0 0
        %764 = vmatpush2.bf16.msra.mxu0 0
        %765 = vmatprep.subr.bf16.mxu0 0
        %766 = vmatpush2.bf16.msra.mxu0 0
        %767 = vmatprep.subr.bf16.mxu0 0
        %768 = vmatpush2.bf16.msra.mxu0 0
        %769 = vmatprep.subr.bf16.mxu0 0
        %770 = vmatpush2.bf16.msra.mxu0 0
        %771 = vmatprep.subr.bf16.mxu0 0
        %772 = vmatpush2.bf16.msra.mxu0 0
        %773 = vmatprep.subr.bf16.mxu0 0
        %774 = vmatpush2.bf16.msra.mxu0 0
        %775 = vmatprep.subr.bf16.mxu0 0
        %776 = vmatpush2.bf16.msra.mxu0 0
        %777 = vmatprep.mubr.bf16.mxu0 0
        %778 = vmatmul.mubr.bf16.gmra.mxu0 %v693
        %v779 = vpop.f32.mrf.mxu0
        %v780 = vadd.f32 0.0, %v779
        %v781 = vpop.f32.mrf.mxu0
        %v782 = vpop.f32.mrf.mxu0
        %v783 = vadd.f32 0.0, %v782
        %v784 = vpop.f32.mrf.mxu0
        %785 = vmatprep.mubr.bf16.mxu0 0
        %786 = vmatmul.mubr.bf16.gmra.mxu0 %v694
        %v787 = vpop.f32.mrf.mxu0
        %v788 = vadd.f32 0.0, %v787
        %v789 = vpop.f32.mrf.mxu0
        %v790 = vpop.f32.mrf.mxu0
        %v791 = vpop.f32.mrf.mxu0
        %792 = vdwg.mxu0
        %v793 = vadd.f32 %v663, %v780
        %v794 = vadd.f32 %v664, %v783
        %v795 = vadd.f32 %v665, %v788
        %s796 = scalar_lea.vmem %s249, 48 [#allocation2]
        %v797 = vld [vmem:[%s796] sm:$0xf]
        %v798 = vld [vmem:[%s796 + $0x4] sm:$0xf]
        %v799 = vld [vmem:[%s796 + $0x8] sm:$0x3]
        %s800 = scalar_lea.vmem %s1, 256
        %v801 = vld [vmem:[%s800] sm:$0xf]
        %v802 = vld [vmem:[%s800 + $0x4] sm:$0xf]
        %v803 = vld [vmem:[%s800 + $0x8] sm:$0xf]
        %v804 = vld [vmem:[%s800 + $0xc] sm:$0xf]
        %v805 = vld [vmem:[%s800 + $0x10] sm:$0xf]
        %v806 = vld [vmem:[%s800 + $0x14] sm:$0xf]
        %v807 = vld [vmem:[%s800 + $0x18] sm:$0xf]
        %v808 = vld [vmem:[%s800 + $0x1c] sm:$0xf]
        %v809 = vld [vmem:[%s800 + $0x20] sm:$0xf]
        %v810 = vld [vmem:[%s800 + $0x24] sm:$0xf]
        %v811 = vld [vmem:[%s800 + $0x28] sm:$0xf]
        %v812 = vld [vmem:[%s800 + $0x2c] sm:$0xf]
        %v813 = vld [vmem:[%s800 + $0x30] sm:$0xf]
        %v814 = vld [vmem:[%s800 + $0x34] sm:$0xf]
        %v815 = vld [vmem:[%s800 + $0x38] sm:$0xf]
        %v816 = vld [vmem:[%s800 + $0x3c] sm:$0xf]
        %v820 = vunpack.c.l.b16 %v797
        %v821 = vunpack.c.l.b16 %v798
        %v822 = vunpack.c.l.b16 %v799
        %v823 = vpack.c.b16 %v821, %v820
        %v824 = vpack.c.b16 %v822, %v822
        %v843 = vunpack.c.l.b16 %v801
        %v844 = vunpack.c.l.b16 %v802
        %v845 = vunpack.c.l.b16 %v803
        %v846 = vunpack.c.l.b16 %v804
        %v847 = vunpack.c.l.b16 %v805
        %v848 = vunpack.c.l.b16 %v806
        %v849 = vunpack.c.l.b16 %v807
        %v850 = vunpack.c.l.b16 %v808
        %v851 = vunpack.c.l.b16 %v809
        %v852 = vunpack.c.l.b16 %v810
        %v853 = vunpack.c.l.b16 %v811
        %v854 = vunpack.c.l.b16 %v812
        %v855 = vunpack.c.l.b16 %v813
        %v856 = vunpack.c.l.b16 %v814
        %v857 = vunpack.c.l.b16 %v815
        %v858 = vunpack.c.l.b16 %v816
        %v859 = vpack.c.b16 %v844, %v843
        %v860 = vpack.c.b16 %v846, %v845
        %v861 = vpack.c.b16 %v848, %v847
        %v862 = vpack.c.b16 %v850, %v849
        %v863 = vpack.c.b16 %v852, %v851
        %v864 = vpack.c.b16 %v854, %v853
        %v865 = vpack.c.b16 %v856, %v855
        %v866 = vpack.c.b16 %v858, %v857
        %875 = vmatprep.subr.bf16.mxu0 0
        %876 = vmatpush1.bf16.msra.mxu0 %v866
        %877 = vmatprep.subr.bf16.mxu0 0
        %878 = vmatpush1.bf16.msra.mxu0 %v865
        %879 = vmatprep.subr.bf16.mxu0 0
        %880 = vmatpush1.bf16.msra.mxu0 %v864
        %881 = vmatprep.subr.bf16.mxu0 0
        %882 = vmatpush1.bf16.msra.mxu0 %v863
        %883 = vmatprep.subr.bf16.mxu0 0
        %884 = vmatpush1.bf16.msra.mxu0 %v862
        %885 = vmatprep.subr.bf16.mxu0 0
        %886 = vmatpush1.bf16.msra.mxu0 %v861
        %887 = vmatprep.subr.bf16.mxu0 0
        %888 = vmatpush1.bf16.msra.mxu0 %v860
        %889 = vmatprep.subr.bf16.mxu0 0
        %890 = vmatpush1.bf16.msra.mxu0 %v859
        %891 = vmatprep.subr.bf16.mxu0 0
        %892 = vmatpush2.bf16.msra.mxu0 0
        %893 = vmatprep.subr.bf16.mxu0 0
        %894 = vmatpush2.bf16.msra.mxu0 0
        %895 = vmatprep.subr.bf16.mxu0 0
        %896 = vmatpush2.bf16.msra.mxu0 0
        %897 = vmatprep.subr.bf16.mxu0 0
        %898 = vmatpush2.bf16.msra.mxu0 0
        %899 = vmatprep.subr.bf16.mxu0 0
        %900 = vmatpush2.bf16.msra.mxu0 0
        %901 = vmatprep.subr.bf16.mxu0 0
        %902 = vmatpush2.bf16.msra.mxu0 0
        %903 = vmatprep.subr.bf16.mxu0 0
        %904 = vmatpush2.bf16.msra.mxu0 0
        %905 = vmatprep.subr.bf16.mxu0 0
        %906 = vmatpush2.bf16.msra.mxu0 0
        %907 = vmatprep.mubr.bf16.mxu0 0
        %908 = vmatmul.mubr.bf16.gmra.mxu0 %v823
        %v909 = vpop.f32.mrf.mxu0
        %v910 = vadd.f32 0.0, %v909
        %v911 = vpop.f32.mrf.mxu0
        %v912 = vpop.f32.mrf.mxu0
        %v913 = vadd.f32 0.0, %v912
        %v914 = vpop.f32.mrf.mxu0
        %915 = vmatprep.mubr.bf16.mxu0 0
        %916 = vmatmul.mubr.bf16.gmra.mxu0 %v824
        %v917 = vpop.f32.mrf.mxu0
        %v918 = vadd.f32 0.0, %v917
        %v919 = vpop.f32.mrf.mxu0
        %v920 = vpop.f32.mrf.mxu0
        %v921 = vpop.f32.mrf.mxu0
        %922 = vdwg.mxu0
        %v923 = vadd.f32 %v793, %v910
        %v924 = vadd.f32 %v794, %v913
        %v925 = vadd.f32 %v795, %v918
        %v926 = vld [vmem:[%s666 + $0x8] sm:$0x7]
        %s927 = scalar_lea.vmem %s1, 320
        %v928 = vld [vmem:[%s927] sm:$0xf]
        %v929 = vld [vmem:[%s927 + $0x4] sm:$0xf]
        %v930 = vld [vmem:[%s927 + $0x8] sm:$0xf]
        %v931 = vld [vmem:[%s927 + $0xc] sm:$0xf]
        %v932 = vld [vmem:[%s927 + $0x10] sm:$0xf]
        %v933 = vld [vmem:[%s927 + $0x14] sm:$0xf]
        %v934 = vld [vmem:[%s927 + $0x18] sm:$0xf]
        %v935 = vld [vmem:[%s927 + $0x1c] sm:$0xf]
        %v936 = vld [vmem:[%s927 + $0x20] sm:$0xf]
        %v937 = vld [vmem:[%s927 + $0x24] sm:$0xf]
        %v938 = vld [vmem:[%s927 + $0x28] sm:$0xf]
        %v939 = vld [vmem:[%s927 + $0x2c] sm:$0xf]
        %v940 = vld [vmem:[%s927 + $0x30] sm:$0xf]
        %v941 = vld [vmem:[%s927 + $0x34] sm:$0xf]
        %v942 = vld [vmem:[%s927 + $0x38] sm:$0xf]
        %v943 = vld [vmem:[%s927 + $0x3c] sm:$0xf]
        %v945 = vunpack.c.l.b16 %v926
        %v946 = vpack.c.b16 %v945, %v945
        %v948 = vshrl.u32 %v693, 16
        %v950 = vshll.u32 %v693, 16
        %v952 = vrot.slane %v950, 1
        %v953 = vor.u32 %v948, %v952
        %v955 = vshll.u32 %v946, 16
        %v957 = vrot.slane %v955, 1
        %v958 = vsel %vm549, %v953, %v957
        %v959 = vshrl.u32 %v946, 16
        %v961 = vor.u32 %v959, %v957
        %v980 = vunpack.c.l.b16 %v928
        %v981 = vunpack.c.l.b16 %v929
        %v982 = vunpack.c.l.b16 %v930
        %v983 = vunpack.c.l.b16 %v931
        %v984 = vunpack.c.l.b16 %v932
        %v985 = vunpack.c.l.b16 %v933
        %v986 = vunpack.c.l.b16 %v934
        %v987 = vunpack.c.l.b16 %v935
        %v988 = vunpack.c.l.b16 %v936
        %v989 = vunpack.c.l.b16 %v937
        %v990 = vunpack.c.l.b16 %v938
        %v991 = vunpack.c.l.b16 %v939
        %v992 = vunpack.c.l.b16 %v940
        %v993 = vunpack.c.l.b16 %v941
        %v994 = vunpack.c.l.b16 %v942
        %v995 = vunpack.c.l.b16 %v943
        %v996 = vpack.c.b16 %v981, %v980
        %v997 = vpack.c.b16 %v983, %v982
        %v998 = vpack.c.b16 %v985, %v984
        %v999 = vpack.c.b16 %v987, %v986
        %v1000 = vpack.c.b16 %v989, %v988
        %v1001 = vpack.c.b16 %v991, %v990
        %v1002 = vpack.c.b16 %v993, %v992
        %v1003 = vpack.c.b16 %v995, %v994
        %1012 = vmatprep.subr.bf16.mxu0 0
        %1013 = vmatpush1.bf16.msra.mxu0 %v1003
        %1014 = vmatprep.subr.bf16.mxu0 0
        %1015 = vmatpush1.bf16.msra.mxu0 %v1002
        %1016 = vmatprep.subr.bf16.mxu0 0
        %1017 = vmatpush1.bf16.msra.mxu0 %v1001
        %1018 = vmatprep.subr.bf16.mxu0 0
        %1019 = vmatpush1.bf16.msra.mxu0 %v1000
        %1020 = vmatprep.subr.bf16.mxu0 0
        %1021 = vmatpush1.bf16.msra.mxu0 %v999
        %1022 = vmatprep.subr.bf16.mxu0 0
        %1023 = vmatpush1.bf16.msra.mxu0 %v998
        %1024 = vmatprep.subr.bf16.mxu0 0
        %1025 = vmatpush1.bf16.msra.mxu0 %v997
        %1026 = vmatprep.subr.bf16.mxu0 0
        %1027 = vmatpush1.bf16.msra.mxu0 %v996
        %1028 = vmatprep.subr.bf16.mxu0 0
        %1029 = vmatpush2.bf16.msra.mxu0 0
        %1030 = vmatprep.subr.bf16.mxu0 0
        %1031 = vmatpush2.bf16.msra.mxu0 0
        %1032 = vmatprep.subr.bf16.mxu0 0
        %1033 = vmatpush2.bf16.msra.mxu0 0
        %1034 = vmatprep.subr.bf16.mxu0 0
        %1035 = vmatpush2.bf16.msra.mxu0 0
        %1036 = vmatprep.subr.bf16.mxu0 0
        %1037 = vmatpush2.bf16.msra.mxu0 0
        %1038 = vmatprep.subr.bf16.mxu0 0
        %1039 = vmatpush2.bf16.msra.mxu0 0
        %1040 = vmatprep.subr.bf16.mxu0 0
        %1041 = vmatpush2.bf16.msra.mxu0 0
        %1042 = vmatprep.subr.bf16.mxu0 0
        %1043 = vmatpush2.bf16.msra.mxu0 0
        %1044 = vmatprep.mubr.bf16.mxu0 0
        %1045 = vmatmul.mubr.bf16.gmra.mxu0 %v958
        %v1046 = vpop.f32.mrf.mxu0
        %v1047 = vadd.f32 0.0, %v1046
        %v1048 = vpop.f32.mrf.mxu0
        %v1049 = vpop.f32.mrf.mxu0
        %v1050 = vadd.f32 0.0, %v1049
        %v1051 = vpop.f32.mrf.mxu0
        %1052 = vmatprep.mubr.bf16.mxu0 0
        %1053 = vmatmul.mubr.bf16.gmra.mxu0 %v961
        %v1054 = vpop.f32.mrf.mxu0
        %v1055 = vadd.f32 0.0, %v1054
        %v1056 = vpop.f32.mrf.mxu0
        %v1057 = vpop.f32.mrf.mxu0
        %v1058 = vpop.f32.mrf.mxu0
        %1059 = vdwg.mxu0
        %v1060 = vadd.f32 %v923, %v1047
        %v1061 = vadd.f32 %v924, %v1050
        %v1062 = vadd.f32 %v925, %v1055
        %v1063 = vld [vmem:[%s249] sm:$0xc]
        %v1064 = vld [vmem:[%s249 + $0x4] sm:$0xf]
        %v1065 = vld [vmem:[%s249 + $0x8] sm:$0xf]
        %v1066 = vld [vmem:[%s249 + $0xc] sm:$0x1]
        %s1067 = scalar_lea.vmem %s1, 384
        %v1068 = vld [vmem:[%s1067] sm:$0xf]
        %v1069 = vld [vmem:[%s1067 + $0x4] sm:$0xf]
        %v1070 = vld [vmem:[%s1067 + $0x8] sm:$0xf]
        %v1071 = vld [vmem:[%s1067 + $0xc] sm:$0xf]
        %v1072 = vld [vmem:[%s1067 + $0x10] sm:$0xf]
        %v1073 = vld [vmem:[%s1067 + $0x14] sm:$0xf]
        %v1074 = vld [vmem:[%s1067 + $0x18] sm:$0xf]
        %v1075 = vld [vmem:[%s1067 + $0x1c] sm:$0xf]
        %v1076 = vld [vmem:[%s1067 + $0x20] sm:$0xf]
        %v1077 = vld [vmem:[%s1067 + $0x24] sm:$0xf]
        %v1078 = vld [vmem:[%s1067 + $0x28] sm:$0xf]
        %v1079 = vld [vmem:[%s1067 + $0x2c] sm:$0xf]
        %v1080 = vld [vmem:[%s1067 + $0x30] sm:$0xf]
        %v1081 = vld [vmem:[%s1067 + $0x34] sm:$0xf]
        %v1082 = vld [vmem:[%s1067 + $0x38] sm:$0xf]
        %v1083 = vld [vmem:[%s1067 + $0x3c] sm:$0xf]
        %v1088 = vunpack.c.l.b16 %v1063
        %v1089 = vunpack.c.l.b16 %v1064
        %v1090 = vunpack.c.l.b16 %v1065
        %v1091 = vunpack.c.l.b16 %v1066
        %v1092 = vpack.c.b16 %v1089, %v1088
        %v1093 = vpack.c.b16 %v1091, %v1090
        %vm1094 = vsmask.f32 5376
        %v1096 = vshrl.u32 %v1092, 16
        %v1098 = vrot.slane %v1096, 2
        %v1099 = vshll.u32 %v1092, 16
        %v1101 = vrot.slane %v1099, 3
        %v1102 = vor.u32 %v1098, %v1101
        %v1104 = vshrl.u32 %v1093, 16
        %v1106 = vrot.slane %v1104, 2
        %v1107 = vshll.u32 %v1093, 16
        %v1109 = vrot.slane %v1107, 3
        %v1110 = vor.u32 %v1106, %v1109
        %v1111 = vsel %vm1094, %v1102, %v1110
        %v1130 = vunpack.c.l.b16 %v1068
        %v1131 = vunpack.c.l.b16 %v1069
        %v1132 = vunpack.c.l.b16 %v1070
        %v1133 = vunpack.c.l.b16 %v1071
        %v1134 = vunpack.c.l.b16 %v1072
        %v1135 = vunpack.c.l.b16 %v1073
        %v1136 = vunpack.c.l.b16 %v1074
        %v1137 = vunpack.c.l.b16 %v1075
        %v1138 = vunpack.c.l.b16 %v1076
        %v1139 = vunpack.c.l.b16 %v1077
        %v1140 = vunpack.c.l.b16 %v1078
        %v1141 = vunpack.c.l.b16 %v1079
        %v1142 = vunpack.c.l.b16 %v1080
        %v1143 = vunpack.c.l.b16 %v1081
        %v1144 = vunpack.c.l.b16 %v1082
        %v1145 = vunpack.c.l.b16 %v1083
        %v1146 = vpack.c.b16 %v1131, %v1130
        %v1147 = vpack.c.b16 %v1133, %v1132
        %v1148 = vpack.c.b16 %v1135, %v1134
        %v1149 = vpack.c.b16 %v1137, %v1136
        %v1150 = vpack.c.b16 %v1139, %v1138
        %v1151 = vpack.c.b16 %v1141, %v1140
        %v1152 = vpack.c.b16 %v1143, %v1142
        %v1153 = vpack.c.b16 %v1145, %v1144
        %1162 = vmatprep.subr.bf16.mxu0 0
        %1163 = vmatpush1.bf16.msra.mxu0 %v1153
        %1164 = vmatprep.subr.bf16.mxu0 0
        %1165 = vmatpush1.bf16.msra.mxu0 %v1152
        %1166 = vmatprep.subr.bf16.mxu0 0
        %1167 = vmatpush1.bf16.msra.mxu0 %v1151
        %1168 = vmatprep.subr.bf16.mxu0 0
        %1169 = vmatpush1.bf16.msra.mxu0 %v1150
        %1170 = vmatprep.subr.bf16.mxu0 0
        %1171 = vmatpush1.bf16.msra.mxu0 %v1149
        %1172 = vmatprep.subr.bf16.mxu0 0
        %1173 = vmatpush1.bf16.msra.mxu0 %v1148
        %1174 = vmatprep.subr.bf16.mxu0 0
        %1175 = vmatpush1.bf16.msra.mxu0 %v1147
        %1176 = vmatprep.subr.bf16.mxu0 0
        %1177 = vmatpush1.bf16.msra.mxu0 %v1146
        %1178 = vmatprep.subr.bf16.mxu0 0
        %1179 = vmatpush2.bf16.msra.mxu0 0
        %1180 = vmatprep.subr.bf16.mxu0 0
        %1181 = vmatpush2.bf16.msra.mxu0 0
        %1182 = vmatprep.subr.bf16.mxu0 0
        %1183 = vmatpush2.bf16.msra.mxu0 0
        %1184 = vmatprep.subr.bf16.mxu0 0
        %1185 = vmatpush2.bf16.msra.mxu0 0
        %1186 = vmatprep.subr.bf16.mxu0 0
        %1187 = vmatpush2.bf16.msra.mxu0 0
        %1188 = vmatprep.subr.bf16.mxu0 0
        %1189 = vmatpush2.bf16.msra.mxu0 0
        %1190 = vmatprep.subr.bf16.mxu0 0
        %1191 = vmatpush2.bf16.msra.mxu0 0
        %1192 = vmatprep.subr.bf16.mxu0 0
        %1193 = vmatpush2.bf16.msra.mxu0 0
        %1194 = vmatprep.mubr.bf16.mxu0 0
        %1195 = vmatmul.mubr.bf16.gmra.mxu0 %v1111
        %v1196 = vpop.f32.mrf.mxu0
        %v1197 = vadd.f32 0.0, %v1196
        %v1198 = vpop.f32.mrf.mxu0
        %v1199 = vpop.f32.mrf.mxu0
        %v1200 = vadd.f32 0.0, %v1199
        %v1201 = vpop.f32.mrf.mxu0
        %1202 = vmatprep.mubr.bf16.mxu0 0
        %1203 = vmatmul.mubr.bf16.gmra.mxu0 %v1110
        %v1204 = vpop.f32.mrf.mxu0
        %v1205 = vadd.f32 0.0, %v1204
        %v1206 = vpop.f32.mrf.mxu0
        %v1207 = vpop.f32.mrf.mxu0
        %v1208 = vpop.f32.mrf.mxu0
        %1209 = vdwg.mxu0
        %v1210 = vadd.f32 %v1060, %v1197
        %v1211 = vadd.f32 %v1061, %v1200
        %v1212 = vadd.f32 %v1062, %v1205
        %v1213 = vld [vmem:[%s295] sm:$0xc]
        %v1214 = vld [vmem:[%s295 + $0x4] sm:$0xf]
        %v1215 = vld [vmem:[%s295 + $0x8] sm:$0xf]
        %v1216 = vld [vmem:[%s295 + $0xc] sm:$0x1]
        %s1217 = scalar_lea.vmem %s1, 448
        %v1218 = vld [vmem:[%s1217] sm:$0xf]
        %v1219 = vld [vmem:[%s1217 + $0x4] sm:$0xf]
        %v1220 = vld [vmem:[%s1217 + $0x8] sm:$0xf]
        %v1221 = vld [vmem:[%s1217 + $0xc] sm:$0xf]
        %v1222 = vld [vmem:[%s1217 + $0x10] sm:$0xf]
        %v1223 = vld [vmem:[%s1217 + $0x14] sm:$0xf]
        %v1224 = vld [vmem:[%s1217 + $0x18] sm:$0xf]
        %v1225 = vld [vmem:[%s1217 + $0x1c] sm:$0xf]
        %v1226 = vld [vmem:[%s1217 + $0x20] sm:$0xf]
        %v1227 = vld [vmem:[%s1217 + $0x24] sm:$0xf]
        %v1228 = vld [vmem:[%s1217 + $0x28] sm:$0xf]
        %v1229 = vld [vmem:[%s1217 + $0x2c] sm:$0xf]
        %v1230 = vld [vmem:[%s1217 + $0x30] sm:$0xf]
        %v1231 = vld [vmem:[%s1217 + $0x34] sm:$0xf]
        %v1232 = vld [vmem:[%s1217 + $0x38] sm:$0xf]
        %v1233 = vld [vmem:[%s1217 + $0x3c] sm:$0xf]
        %v1238 = vunpack.c.l.b16 %v1213
        %v1239 = vunpack.c.l.b16 %v1214
        %v1240 = vunpack.c.l.b16 %v1215
        %v1241 = vunpack.c.l.b16 %v1216
        %v1242 = vpack.c.b16 %v1239, %v1238
        %v1243 = vpack.c.b16 %v1241, %v1240
        %v1245 = vshrl.u32 %v1242, 16
        %v1247 = vrot.slane %v1245, 2
        %v1248 = vshll.u32 %v1242, 16
        %v1250 = vrot.slane %v1248, 3
        %v1251 = vor.u32 %v1247, %v1250
        %v1253 = vshrl.u32 %v1243, 16
        %v1255 = vrot.slane %v1253, 2
        %v1256 = vshll.u32 %v1243, 16
        %v1258 = vrot.slane %v1256, 3
        %v1259 = vor.u32 %v1255, %v1258
        %v1260 = vsel %vm1094, %v1251, %v1259
        %v1279 = vunpack.c.l.b16 %v1218
        %v1280 = vunpack.c.l.b16 %v1219
        %v1281 = vunpack.c.l.b16 %v1220
        %v1282 = vunpack.c.l.b16 %v1221
        %v1283 = vunpack.c.l.b16 %v1222
        %v1284 = vunpack.c.l.b16 %v1223
        %v1285 = vunpack.c.l.b16 %v1224
        %v1286 = vunpack.c.l.b16 %v1225
        %v1287 = vunpack.c.l.b16 %v1226
        %v1288 = vunpack.c.l.b16 %v1227
        %v1289 = vunpack.c.l.b16 %v1228
        %v1290 = vunpack.c.l.b16 %v1229
        %v1291 = vunpack.c.l.b16 %v1230
        %v1292 = vunpack.c.l.b16 %v1231
        %v1293 = vunpack.c.l.b16 %v1232
        %v1294 = vunpack.c.l.b16 %v1233
        %v1295 = vpack.c.b16 %v1280, %v1279
        %v1296 = vpack.c.b16 %v1282, %v1281
        %v1297 = vpack.c.b16 %v1284, %v1283
        %v1298 = vpack.c.b16 %v1286, %v1285
        %v1299 = vpack.c.b16 %v1288, %v1287
        %v1300 = vpack.c.b16 %v1290, %v1289
        %v1301 = vpack.c.b16 %v1292, %v1291
        %v1302 = vpack.c.b16 %v1294, %v1293
        %1311 = vmatprep.subr.bf16.mxu0 0
        %1312 = vmatpush1.bf16.msra.mxu0 %v1302
        %1313 = vmatprep.subr.bf16.mxu0 0
        %1314 = vmatpush1.bf16.msra.mxu0 %v1301
        %1315 = vmatprep.subr.bf16.mxu0 0
        %1316 = vmatpush1.bf16.msra.mxu0 %v1300
        %1317 = vmatprep.subr.bf16.mxu0 0
        %1318 = vmatpush1.bf16.msra.mxu0 %v1299
        %1319 = vmatprep.subr.bf16.mxu0 0
        %1320 = vmatpush1.bf16.msra.mxu0 %v1298
        %1321 = vmatprep.subr.bf16.mxu0 0
        %1322 = vmatpush1.bf16.msra.mxu0 %v1297
        %1323 = vmatprep.subr.bf16.mxu0 0
        %1324 = vmatpush1.bf16.msra.mxu0 %v1296
        %1325 = vmatprep.subr.bf16.mxu0 0
        %1326 = vmatpush1.bf16.msra.mxu0 %v1295
        %1327 = vmatprep.subr.bf16.mxu0 0
        %1328 = vmatpush2.bf16.msra.mxu0 0
        %1329 = vmatprep.subr.bf16.mxu0 0
        %1330 = vmatpush2.bf16.msra.mxu0 0
        %1331 = vmatprep.subr.bf16.mxu0 0
        %1332 = vmatpush2.bf16.msra.mxu0 0
        %1333 = vmatprep.subr.bf16.mxu0 0
        %1334 = vmatpush2.bf16.msra.mxu0 0
        %1335 = vmatprep.subr.bf16.mxu0 0
        %1336 = vmatpush2.bf16.msra.mxu0 0
        %1337 = vmatprep.subr.bf16.mxu0 0
        %1338 = vmatpush2.bf16.msra.mxu0 0
        %1339 = vmatprep.subr.bf16.mxu0 0
        %1340 = vmatpush2.bf16.msra.mxu0 0
        %1341 = vmatprep.subr.bf16.mxu0 0
        %1342 = vmatpush2.bf16.msra.mxu0 0
        %1343 = vmatprep.mubr.bf16.mxu0 0
        %1344 = vmatmul.mubr.bf16.gmra.mxu0 %v1260
        %v1345 = vpop.f32.mrf.mxu0
        %v1346 = vadd.f32 0.0, %v1345
        %v1347 = vpop.f32.mrf.mxu0
        %v1348 = vpop.f32.mrf.mxu0
        %v1349 = vadd.f32 0.0, %v1348
        %v1350 = vpop.f32.mrf.mxu0
        %1351 = vmatprep.mubr.bf16.mxu0 0
        %1352 = vmatmul.mubr.bf16.gmra.mxu0 %v1259
        %v1353 = vpop.f32.mrf.mxu0
        %v1354 = vadd.f32 0.0, %v1353
        %v1355 = vpop.f32.mrf.mxu0
        %v1356 = vpop.f32.mrf.mxu0
        %v1357 = vpop.f32.mrf.mxu0
        %1358 = vdwg.mxu0
        %v1359 = vadd.f32 %v1210, %v1346
        %v1360 = vadd.f32 %v1211, %v1349
        %v1361 = vadd.f32 %v1212, %v1354
        %v1362 = vld [vmem:[%s249] sm:$0x8]
        %s1363 = scalar_lea.vmem %s1, 512
        %v1364 = vld [vmem:[%s1363] sm:$0xf]
        %v1365 = vld [vmem:[%s1363 + $0x4] sm:$0xf]
        %v1366 = vld [vmem:[%s1363 + $0x8] sm:$0xf]
        %v1367 = vld [vmem:[%s1363 + $0xc] sm:$0xf]
        %v1368 = vld [vmem:[%s1363 + $0x10] sm:$0xf]
        %v1369 = vld [vmem:[%s1363 + $0x14] sm:$0xf]
        %v1370 = vld [vmem:[%s1363 + $0x18] sm:$0xf]
        %v1371 = vld [vmem:[%s1363 + $0x1c] sm:$0xf]
        %v1372 = vld [vmem:[%s1363 + $0x20] sm:$0xf]
        %v1373 = vld [vmem:[%s1363 + $0x24] sm:$0xf]
        %v1374 = vld [vmem:[%s1363 + $0x28] sm:$0xf]
        %v1375 = vld [vmem:[%s1363 + $0x2c] sm:$0xf]
        %v1376 = vld [vmem:[%s1363 + $0x30] sm:$0xf]
        %v1377 = vld [vmem:[%s1363 + $0x34] sm:$0xf]
        %v1378 = vld [vmem:[%s1363 + $0x38] sm:$0xf]
        %v1379 = vld [vmem:[%s1363 + $0x3c] sm:$0xf]
        %v1381 = vunpack.c.l.b16 %v1362
        %v1382 = vpack.c.b16 %v1089, %v1381
        %vm1383 = vcmask 1044480
        %v1384 = vrot.slane %v1382, 3
        %v1385 = vrot.slane %v1093, 3
        %v1386 = vsel %vm1383, %v1384, %v1385
        %v1405 = vunpack.c.l.b16 %v1364
        %v1406 = vunpack.c.l.b16 %v1365
        %v1407 = vunpack.c.l.b16 %v1366
        %v1408 = vunpack.c.l.b16 %v1367
        %v1409 = vunpack.c.l.b16 %v1368
        %v1410 = vunpack.c.l.b16 %v1369
        %v1411 = vunpack.c.l.b16 %v1370
        %v1412 = vunpack.c.l.b16 %v1371
        %v1413 = vunpack.c.l.b16 %v1372
        %v1414 = vunpack.c.l.b16 %v1373
        %v1415 = vunpack.c.l.b16 %v1374
        %v1416 = vunpack.c.l.b16 %v1375
        %v1417 = vunpack.c.l.b16 %v1376
        %v1418 = vunpack.c.l.b16 %v1377
        %v1419 = vunpack.c.l.b16 %v1378
        %v1420 = vunpack.c.l.b16 %v1379
        %v1421 = vpack.c.b16 %v1406, %v1405
        %v1422 = vpack.c.b16 %v1408, %v1407
        %v1423 = vpack.c.b16 %v1410, %v1409
        %v1424 = vpack.c.b16 %v1412, %v1411
        %v1425 = vpack.c.b16 %v1414, %v1413
        %v1426 = vpack.c.b16 %v1416, %v1415
        %v1427 = vpack.c.b16 %v1418, %v1417
        %v1428 = vpack.c.b16 %v1420, %v1419
        %1437 = vmatprep.subr.bf16.mxu0 0
        %1438 = vmatpush1.bf16.msra.mxu0 %v1428
        %1439 = vmatprep.subr.bf16.mxu0 0
        %1440 = vmatpush1.bf16.msra.mxu0 %v1427
        %1441 = vmatprep.subr.bf16.mxu0 0
        %1442 = vmatpush1.bf16.msra.mxu0 %v1426
        %1443 = vmatprep.subr.bf16.mxu0 0
        %1444 = vmatpush1.bf16.msra.mxu0 %v1425
        %1445 = vmatprep.subr.bf16.mxu0 0
        %1446 = vmatpush1.bf16.msra.mxu0 %v1424
        %1447 = vmatprep.subr.bf16.mxu0 0
        %1448 = vmatpush1.bf16.msra.mxu0 %v1423
        %1449 = vmatprep.subr.bf16.mxu0 0
        %1450 = vmatpush1.bf16.msra.mxu0 %v1422
        %1451 = vmatprep.subr.bf16.mxu0 0
        %1452 = vmatpush1.bf16.msra.mxu0 %v1421
        %1453 = vmatprep.subr.bf16.mxu0 0
        %1454 = vmatpush2.bf16.msra.mxu0 0
        %1455 = vmatprep.subr.bf16.mxu0 0
        %1456 = vmatpush2.bf16.msra.mxu0 0
        %1457 = vmatprep.subr.bf16.mxu0 0
        %1458 = vmatpush2.bf16.msra.mxu0 0
        %1459 = vmatprep.subr.bf16.mxu0 0
        %1460 = vmatpush2.bf16.msra.mxu0 0
        %1461 = vmatprep.subr.bf16.mxu0 0
        %1462 = vmatpush2.bf16.msra.mxu0 0
        %1463 = vmatprep.subr.bf16.mxu0 0
        %1464 = vmatpush2.bf16.msra.mxu0 0
        %1465 = vmatprep.subr.bf16.mxu0 0
        %1466 = vmatpush2.bf16.msra.mxu0 0
        %1467 = vmatprep.subr.bf16.mxu0 0
        %1468 = vmatpush2.bf16.msra.mxu0 0
        %1469 = vmatprep.mubr.bf16.mxu0 0
        %1470 = vmatmul.mubr.bf16.gmra.mxu0 %v1386
        %v1471 = vpop.f32.mrf.mxu0
        %v1472 = vadd.f32 0.0, %v1471
        %v1473 = vpop.f32.mrf.mxu0
        %v1474 = vpop.f32.mrf.mxu0
        %v1475 = vadd.f32 0.0, %v1474
        %v1476 = vpop.f32.mrf.mxu0
        %1477 = vmatprep.mubr.bf16.mxu0 0
        %1478 = vmatmul.mubr.bf16.gmra.mxu0 %v1385
        %v1479 = vpop.f32.mrf.mxu0
        %v1480 = vadd.f32 0.0, %v1479
        %v1481 = vpop.f32.mrf.mxu0
        %v1482 = vpop.f32.mrf.mxu0
        %v1483 = vpop.f32.mrf.mxu0
        %1484 = vdwg.mxu0
        %v1485 = vadd.f32 %v1359, %v1472
        %v1486 = vadd.f32 %v1360, %v1475
        %v1487 = vadd.f32 %v1361, %v1480
        %v1488 = vld [vmem:[%s2] sm:$0x1]
        %v1490 = vlaneseq
        %v1491 = vshrl.u32 %v1490, 7
        %v1492 = vsub.s32 0, %v1491
        %v1493 = vrot.slane %v1488, %v1492
        %v1495 = vadd.f32 %v1485, %v1493
        %v1496 = vadd.f32 %v1486, %v1493
        %v1497 = vadd.f32 %v1487, %v1493
        %v1498 = vmax.f32 %v1495, 0.0
        %v1499 = vmax.f32 %v1496, 0.0
        %v1500 = vmax.f32 %v1497, 0.0
        %v1501 = vpack.c.bf16 %v1499, %v1498
        %v1502 = vpack.c.bf16 %v1500, %v1500
        %v1505 = vunpack.c.l.b16 %v1501
        %v1506 = vunpack.c.h.b16 %v1501
        %v1507 = vunpack.c.l.b16 %v1502
        %v1508 = vpack.c.b16 %v1505, %v1505
        %v1509 = vpack.c.b16 %v1506, %v1506
        %v1510 = vpack.c.b16 %v1507, %v1507
        %1514 = vst [vmem:[%s274] sm:$0xf] %v1508
        %1515 = vst [vmem:[%s274 + $0x4] sm:$0xf] %v1509
        %1516 = vst [vmem:[%s274 + $0x8] sm:$0x3] %v1510
        %p1517 = scmp.lt.s32.totalorder %s14, 1
        %s1518 = scalar_select %p1517, %s14, 1
        %s1519 = smul.addr %s1518, 3
        %s1520 = smul.addr %s1519, 4
        %s1521 = scalar_lea.vmem %s3, %s1520
        // Predicated region
        $region74: #{_lambda_.11} parent=68 // pred_check
          %p1522 = pneg %p100
        $region75: #{_lambda_.11} parent=68 // pred_check_branch
          %1524 = sbr.rel (%p1522) target = $region77
        $region76: #{_lambda_.11} parent=68 // pred_region
          _
        $region77: #{_lambda_.11} parent=68 // pred_fallthru
          _
      $region69: #{_lambda_.11} parent=5 // pred_fallthru
        _
      %p1525 = scmp.le.s32.totalorder 2, %s9
      // Predicated region
      $region78: #{_lambda_.11} parent=5 // pred_check
        %p1526 = pneg %p1525
      $region79: #{_lambda_.11} parent=5 // pred_check_branch
        %1528 = sbr.rel (%p1526) target = $region81
      $region80: #{_lambda_.11} parent=5 // pred_region
        %s1529 = ssub.s32 %s9, 2
        // Predicated region
        $region82: #{_lambda_.11} parent=80 // pred_check
          %p1530 = pneg %p106
        $region83: #{_lambda_.11} parent=80 // pred_check_branch
          %1532 = sbr.rel (%p1530) target = $region85
        $region84: #{_lambda_.11} parent=80 // pred_region
          %p1533 = scmp.lt.s32.totalorder %s15, 1
          %s1534 = scalar_select %p1533, %s15, 1
          %s1535 = smul.addr %s1534, 3
          %s1536 = smul.addr %s1535, 4
          %s1537 = scalar_lea.vmem %s3, %s1536
        $region85: #{_lambda_.11} parent=80 // pred_fallthru
          _
      $region81: #{_lambda_.11} parent=5 // pred_fallthru
        _
    $region6: #{_lambda_.11} parent=1 // loop_footer
      %s13 = sadd.s32 1, %s9
    $region7: #{_lambda_.11} parent=1 // loop_footer_branch
      %8 = sbr.rel target = $region3
    $region8: #{_lambda_.11} parent=1 // loop_exit
      _

// kernel: _lambda_.10
$region0: #{_lambda_.10}
  #allocation0 [shape = 'u32[]', space=smem, size = 0x4, offset = 0x4, fixed_abs, tag = 'smem constant byte address 0x4 - core index']
  #allocation1 [shape = 'u32[144,128]{1,0:T(1,128)}', space=vmem, size = 0x12000, scoped, tag = 'internal scratch']
  %s0 = inlined_call_operand.vmem [shape: bf16[1,2,110,128], index: 0, kind: input, shape index: {}]
  %s1 = inlined_call_operand.vmem [shape: bf16[9,128,128], index: 1, kind: input, shape index: {}]
  %s2 = inlined_call_operand.vmem [shape: f32[1,128], index: 2, kind: input, shape index: {}]
  %s3 = inlined_call_operand.vmem [shape: bf16[2,80,128], index: 3, kind: input, shape index: {}]
  %s4 = inlined_call_operand.vmem [shape: bf16[2,80,128], index: 4, kind: output, shape index: {}]
  %s5 = sld [smem:[#allocation0]]
  $region49: #{_lambda_.10} parent=0
    _
  %s7 = ssub.s32 1, %s5
  %s8 = scalar_select 0, %s7, %s5
  loop: start=0, step=1, limit=4
  $region2: #{_lambda_.10} parent=0 // loop_pre_header
    _
  $region3: #{_lambda_.10} parent=0 // loop_header
    %s10 = sphi 0, %s14
    %p11 = scmp.ge.s32.totalorder %s10, 4
    %s20 = sphi 0, %s22
    %s23 = sphi 0, %s20
    %s24 = sphi 0, %s23
    %s40 = sphi 0, %s24
    %s44 = sphi 0, %s44
    %s46 = sphi 0, %s44
    %s47 = sphi 0, %s46
    %s61 = sphi 0, %s47
    %s65 = sphi 0, %s65
    %s67 = sphi 0, %s65
    %s68 = sphi 0, %s67
    %s82 = sphi 0, %s68
    %s88 = sphi 0, %s90
    %s91 = sphi 0, %s88
    %s92 = sphi 0, %s91
    %s108 = sphi 0, %s92
    %s114 = sphi 0, %s116
    %s117 = sphi 0, %s114
    %s118 = sphi 0, %s117
    %s134 = sphi 0, %s118
  $region4: #{_lambda_.10} parent=0 // loop_header_branch
    %13 = sbr.rel (%p11) target = $region8
  $region5: #{_lambda_.10} parent=0 // loop_body
    %s15 = ssub.s32 %s10, 1
    %s16 = ssub.s32 %s10, 2
    %s17 = sadd.s32 %s10, 1
    %s18 = ssub.s32 %s10, %s17
    %p19 = scmp.eq.s32.totalorder %s18, 0
    %s21 = sadd.s32 %s20, 1
    %s22 = scalar_select %p19, %s20, %s21
    %p25 = pneg %p19
    %p26 = scmp.eq.s32.totalorder %s10, 1
    %p27 = por %p25, %p26
    %p28 = scmp.ne.s32.totalorder %s20, %s23
    %p29 = scmp.eq.s32.totalorder %s10, 0
    %p30 = por %p28, %p29
    %p31 = scmp.ne.s32.totalorder %s20, %s23
    %p32 = scmp.eq.s32.totalorder %s15, 1
    %p33 = por %p31, %p32
    %p34 = scmp.ne.s32.totalorder %s23, %s24
    %p35 = scmp.eq.s32.totalorder %s15, 0
    %p36 = por %p34, %p35
    %p37 = scmp.ne.s32.totalorder %s23, %s24
    %p38 = scmp.eq.s32.totalorder %s16, 1
    %p39 = por %p37, %p38
    %p41 = scmp.ne.s32.totalorder %s24, %s40
    %p42 = scmp.eq.s32.totalorder %s16, 0
    %p43 = por %p41, %p42
    %s45 = sadd.s32 %s44, 1
    %p48 = scmp.eq.s32.totalorder %s10, 1
    %p49 = scmp.ne.s32.totalorder %s44, %s46
    %p50 = scmp.eq.s32.totalorder %s10, 0
    %p51 = por %p49, %p50
    %p52 = scmp.ne.s32.totalorder %s44, %s46
    %p53 = scmp.eq.s32.totalorder %s15, 1
    %p54 = por %p52, %p53
    %p55 = scmp.ne.s32.totalorder %s46, %s47
    %p56 = scmp.eq.s32.totalorder %s15, 0
    %p57 = por %p55, %p56
    %p58 = scmp.ne.s32.totalorder %s46, %s47
    %p59 = scmp.eq.s32.totalorder %s16, 1
    %p60 = por %p58, %p59
    %p62 = scmp.ne.s32.totalorder %s47, %s61
    %p63 = scmp.eq.s32.totalorder %s16, 0
    %p64 = por %p62, %p63
    %s66 = sadd.s32 %s65, 1
    %p69 = scmp.eq.s32.totalorder %s10, 1
    %p70 = scmp.ne.s32.totalorder %s65, %s67
    %p71 = scmp.eq.s32.totalorder %s10, 0
    %p72 = por %p70, %p71
    %p73 = scmp.ne.s32.totalorder %s65, %s67
    %p74 = scmp.eq.s32.totalorder %s15, 1
    %p75 = por %p73, %p74
    %p76 = scmp.ne.s32.totalorder %s67, %s68
    %p77 = scmp.eq.s32.totalorder %s15, 0
    %p78 = por %p76, %p77
    %p79 = scmp.ne.s32.totalorder %s67, %s68
    %p80 = scmp.eq.s32.totalorder %s16, 1
    %p81 = por %p79, %p80
    %p83 = scmp.ne.s32.totalorder %s68, %s82
    %p84 = scmp.eq.s32.totalorder %s16, 0
    %p85 = por %p83, %p84
    %s86 = ssub.s32 %s10, %s17
    %p87 = scmp.eq.s32.totalorder %s86, 0
    %s89 = sadd.s32 %s88, 1
    %s90 = scalar_select %p87, %s88, %s89
    %p93 = pneg %p87
    %p94 = scmp.eq.s32.totalorder %s10, 1
    %p95 = por %p93, %p94
    %p96 = scmp.ne.s32.totalorder %s88, %s91
    %p97 = scmp.eq.s32.totalorder %s10, 0
    %p98 = por %p96, %p97
    %p99 = scmp.ne.s32.totalorder %s88, %s91
    %p100 = scmp.eq.s32.totalorder %s15, 1
    %p101 = por %p99, %p100
    %p102 = scmp.ne.s32.totalorder %s91, %s92
    %p103 = scmp.eq.s32.totalorder %s15, 0
    %p104 = por %p102, %p103
    %p105 = scmp.ne.s32.totalorder %s91, %s92
    %p106 = scmp.eq.s32.totalorder %s16, 1
    %p107 = por %p105, %p106
    %p109 = scmp.ne.s32.totalorder %s92, %s108
    %p110 = scmp.eq.s32.totalorder %s16, 0
    %p111 = por %p109, %p110
    %s112 = ssub.s32 %s10, %s17
    %p113 = scmp.eq.s32.totalorder %s112, 0
    %s115 = sadd.s32 %s114, 1
    %s116 = scalar_select %p113, %s114, %s115
    %p119 = pneg %p113
    %p120 = scmp.eq.s32.totalorder %s10, 1
    %p121 = por %p119, %p120
    %p122 = scmp.ne.s32.totalorder %s114, %s117
    %p123 = scmp.eq.s32.totalorder %s10, 0
    %p124 = por %p122, %p123
    %p125 = scmp.ne.s32.totalorder %s114, %s117
    %p126 = scmp.eq.s32.totalorder %s15, 1
    %p127 = por %p125, %p126
    %p128 = scmp.ne.s32.totalorder %s117, %s118
    %p129 = scmp.eq.s32.totalorder %s15, 0
    %p130 = por %p128, %p129
    %p131 = scmp.ne.s32.totalorder %s117, %s118
    %p132 = scmp.eq.s32.totalorder %s16, 1
    %p133 = por %p131, %p132
    %p135 = scmp.ne.s32.totalorder %s118, %s134
    %p136 = scmp.eq.s32.totalorder %s16, 0
    %p137 = por %p135, %p136
    %p138 = scmp.le.s32.totalorder 1, %s10
    %p139 = scmp.lt.s32.totalorder %s10, 3
    %p140 = pnand %p138, %p139
    %p141 = pneg %p140
    // Predicated region
    $region9: #{_lambda_.10} parent=5 // pred_check
      _
    $region10: #{_lambda_.10} parent=5 // pred_check_branch
      %143 = sbr.rel (%p140) target = $region12
    $region11: #{_lambda_.10} parent=5 // pred_region
      %s144 = ssub.s32 %s10, 1
      // Predicated region
      $region13: #{_lambda_.10} parent=11 // pred_check
        %p145 = pneg %p57
      $region14: #{_lambda_.10} parent=11 // pred_check_branch
        %147 = sbr.rel (%p145) target = $region16
      $region15: #{_lambda_.10} parent=11 // pred_region
        _
      $region16: #{_lambda_.10} parent=11 // pred_fallthru
        _
      // Predicated region
      $region17: #{_lambda_.10} parent=11 // pred_check
        %p148 = pneg %p78
      $region18: #{_lambda_.10} parent=11 // pred_check_branch
        %150 = sbr.rel (%p148) target = $region20
      $region19: #{_lambda_.10} parent=11 // pred_region
        _
      $region20: #{_lambda_.10} parent=11 // pred_fallthru
        _
    $region12: #{_lambda_.10} parent=5 // pred_fallthru
      _
    %p151 = scmp.lt.s32.totalorder %s10, 2
    // Predicated region
    $region21: #{_lambda_.10} parent=5 // pred_check
      %p152 = pneg %p151
    $region22: #{_lambda_.10} parent=5 // pred_check_branch
      %154 = sbr.rel (%p152) target = $region24
    $region23: #{_lambda_.10} parent=5 // pred_region
      // Predicated region
      $region25: #{_lambda_.10} parent=23 // pred_check
        %p155 = pneg %p30
      $region26: #{_lambda_.10} parent=23 // pred_check_branch
        %157 = sbr.rel (%p155) target = $region28
      $region27: #{_lambda_.10} parent=23 // pred_region
        %p158 = scmp.lt.s32.totalorder %s10, 1
        %s159 = scalar_select %p158, %s10, 1
        %s160 = smul.addr %s159, 14
        %s161 = smul.addr %s160, 4
        %s162 = scalar_lea.vmem %s0, %s161
      $region28: #{_lambda_.10} parent=23 // pred_fallthru
        _
      // Predicated region
      $region29: #{_lambda_.10} parent=23 // pred_check
        %p163 = pneg %p98
      $region30: #{_lambda_.10} parent=23 // pred_check_branch
        %165 = sbr.rel (%p163) target = $region32
      $region31: #{_lambda_.10} parent=23 // pred_region
        %p166 = scmp.lt.s32.totalorder %s10, 1
        %s167 = scalar_select %p166, %s10, 1
        %s168 = smul.addr %s167, 10
        %s169 = smul.addr %s168, 4
        %s170 = scalar_lea.vmem %s3, %s169
      $region32: #{_lambda_.10} parent=23 // pred_fallthru
        _
    $region24: #{_lambda_.10} parent=5 // pred_fallthru
      _
    %p171 = scmp.le.s32.totalorder 1, %s10
    %p172 = scmp.lt.s32.totalorder %s10, 3
    %p173 = pnand %p171, %p172
    %p174 = pneg %p173
    // Predicated region
    $region33: #{_lambda_.10} parent=5 // pred_check
      _
    $region34: #{_lambda_.10} parent=5 // pred_check_branch
      %176 = sbr.rel (%p173) target = $region36
    $region35: #{_lambda_.10} parent=5 // pred_region
      %s177 = ssub.s32 %s10, 1
      %p178 = scmp.lt.s32.totalorder %s15, 1
      %s179 = scalar_select %p178, %s15, 1
      %s180 = smul.addr %s179, 14
      %s181 = smul.addr %s180, 4
      %s182 = scalar_lea.vmem %s0, %s181
      %p183 = pneg %p36
      %p184 = pneg %p33
      %p185 = pneg %p57
      %p186 = pneg %p54
      %p187 = pneg %p78
      %p188 = pneg %p75
      %p189 = scmp.lt.s32.totalorder %s15, 1
      %s190 = scalar_select %p189, %s15, 1
      %s191 = smul.addr %s190, 10
      %s192 = smul.addr %s191, 4
      %s193 = scalar_lea.vmem %s3, %s192
      %p194 = pneg %p104
      %p195 = pneg %p101
      %p196 = pneg %p130
      %p197 = pneg %p127
      %p198 = scmp.lt.s32.totalorder %s15, 1
      %s199 = scalar_select %p198, %s15, 1
      %s200 = smul.addr %s199, 10
      %s201 = smul.addr %s200, 4
      %s202 = scalar_lea.vmem %s4, %s201
      %p203 = scmp.lt.s32.totalorder %s15, 1
      %s204 = scalar_select %p203, %s15, 1
      %s205 = smul.addr %s204, 14
      %s206 = smul.addr %s205, 4
      %s207 = scalar_lea.vmem %s0, %s206
      %p208 = scmp.lt.s32.totalorder %s15, 1
      %s209 = scalar_select %p208, %s15, 1
      %s210 = smul.addr %s209, 10
      %s211 = smul.addr %s210, 4
      %s212 = scalar_lea.vmem %s3, %s211
      %p213 = scmp.lt.s32.totalorder %s15, 1
      %s214 = scalar_select %p213, %s15, 1
      %s215 = smul.addr %s214, 10
      %s216 = smul.addr %s215, 4
      %s217 = scalar_lea.vmem %s4, %s216
      %v219 = vld [vmem:[%s212] sm:$0xf]
      %v220 = vld [vmem:[%s212 + $0x4] sm:$0xf]
      %v221 = vld [vmem:[%s212 + $0x8] sm:$0xf]
      %v222 = vld [vmem:[%s212 + $0xc] sm:$0xf]
      %v223 = vld [vmem:[%s212 + $0x10] sm:$0xf]
      %v224 = vld [vmem:[%s212 + $0x14] sm:$0xf]
      %v225 = vld [vmem:[%s212 + $0x18] sm:$0xf]
      %v226 = vld [vmem:[%s212 + $0x1c] sm:$0xf]
      %v227 = vld [vmem:[%s212 + $0x20] sm:$0xf]
      %v228 = vld [vmem:[%s212 + $0x24] sm:$0xf]
      %v229 = vunpack.c.l.bf16 %v219
      %v230 = vunpack.c.l.bf16 %v220
      %v231 = vunpack.c.l.bf16 %v221
      %v232 = vunpack.c.l.bf16 %v222
      %v233 = vunpack.c.l.bf16 %v223
      %v234 = vunpack.c.l.bf16 %v224
      %v235 = vunpack.c.l.bf16 %v225
      %v236 = vunpack.c.l.bf16 %v226
      %v237 = vunpack.c.l.bf16 %v227
      %v238 = vunpack.c.l.bf16 %v228
      %v239 = vld [vmem:[%s207] sm:$0xf]
      %v240 = vld [vmem:[%s207 + $0x4] sm:$0xf]
      %v241 = vld [vmem:[%s207 + $0x8] sm:$0xf]
      %v242 = vld [vmem:[%s207 + $0xc] sm:$0xf]
      %v243 = vld [vmem:[%s207 + $0x10] sm:$0xf]
      %v244 = vld [vmem:[%s207 + $0x14] sm:$0xf]
      %v245 = vld [vmem:[%s207 + $0x18] sm:$0xf]
      %v246 = vld [vmem:[%s207 + $0x1c] sm:$0xf]
      %v247 = vld [vmem:[%s207 + $0x20] sm:$0xf]
      %v248 = vld [vmem:[%s207 + $0x24] sm:$0xf]
      %v249 = vld [vmem:[%s1] sm:$0xf]
      %v250 = vld [vmem:[%s1 + $0x4] sm:$0xf]
      %v251 = vld [vmem:[%s1 + $0x8] sm:$0xf]
      %v252 = vld [vmem:[%s1 + $0xc] sm:$0xf]
      %v253 = vld [vmem:[%s1 + $0x10] sm:$0xf]
      %v254 = vld [vmem:[%s1 + $0x14] sm:$0xf]
      %v255 = vld [vmem:[%s1 + $0x18] sm:$0xf]
      %v256 = vld [vmem:[%s1 + $0x1c] sm:$0xf]
      %v257 = vld [vmem:[%s1 + $0x20] sm:$0xf]
      %v258 = vld [vmem:[%s1 + $0x24] sm:$0xf]
      %v259 = vld [vmem:[%s1 + $0x28] sm:$0xf]
      %v260 = vld [vmem:[%s1 + $0x2c] sm:$0xf]
      %v261 = vld [vmem:[%s1 + $0x30] sm:$0xf]
      %v262 = vld [vmem:[%s1 + $0x34] sm:$0xf]
      %v263 = vld [vmem:[%s1 + $0x38] sm:$0xf]
      %v264 = vld [vmem:[%s1 + $0x3c] sm:$0xf]
      %v275 = vunpack.c.l.b16 %v239
      %v276 = vunpack.c.l.b16 %v240
      %v277 = vunpack.c.l.b16 %v241
      %v278 = vunpack.c.l.b16 %v242
      %v279 = vunpack.c.l.b16 %v243
      %v280 = vunpack.c.l.b16 %v244
      %v281 = vunpack.c.l.b16 %v245
      %v282 = vunpack.c.l.b16 %v246
      %v283 = vunpack.c.l.b16 %v247
      %v284 = vunpack.c.l.b16 %v248
      %v285 = vpack.c.b16 %v276, %v275
      %v286 = vpack.c.b16 %v278, %v277
      %v287 = vpack.c.b16 %v280, %v279
      %v288 = vpack.c.b16 %v282, %v281
      %v289 = vpack.c.b16 %v284, %v283
      %v311 = vunpack.c.l.b16 %v249
      %v312 = vunpack.c.l.b16 %v250
      %v313 = vunpack.c.l.b16 %v251
      %v314 = vunpack.c.l.b16 %v252
      %v315 = vunpack.c.l.b16 %v253
      %v316 = vunpack.c.l.b16 %v254
      %v317 = vunpack.c.l.b16 %v255
      %v318 = vunpack.c.l.b16 %v256
      %v319 = vunpack.c.l.b16 %v257
      %v320 = vunpack.c.l.b16 %v258
      %v321 = vunpack.c.l.b16 %v259
      %v322 = vunpack.c.l.b16 %v260
      %v323 = vunpack.c.l.b16 %v261
      %v324 = vunpack.c.l.b16 %v262
      %v325 = vunpack.c.l.b16 %v263
      %v326 = vunpack.c.l.b16 %v264
      %v327 = vpack.c.b16 %v312, %v311
      %v328 = vpack.c.b16 %v314, %v313
      %v329 = vpack.c.b16 %v316, %v315
      %v330 = vpack.c.b16 %v318, %v317
      %v331 = vpack.c.b16 %v320, %v319
      %v332 = vpack.c.b16 %v322, %v321
      %v333 = vpack.c.b16 %v324, %v323
      %v334 = vpack.c.b16 %v326, %v325
      %343 = vmatprep.subr.bf16.mxu0 0
      %344 = vmatpush1.bf16.msra.mxu0 %v334
      %345 = vmatprep.subr.bf16.mxu0 0
      %346 = vmatpush1.bf16.msra.mxu0 %v333
      %347 = vmatprep.subr.bf16.mxu0 0
      %348 = vmatpush1.bf16.msra.mxu0 %v332
      %349 = vmatprep.subr.bf16.mxu0 0
      %350 = vmatpush1.bf16.msra.mxu0 %v331
      %351 = vmatprep.subr.bf16.mxu0 0
      %352 = vmatpush1.bf16.msra.mxu0 %v330
      %353 = vmatprep.subr.bf16.mxu0 0
      %354 = vmatpush1.bf16.msra.mxu0 %v329
      %355 = vmatprep.subr.bf16.mxu0 0
      %356 = vmatpush1.bf16.msra.mxu0 %v328
      %357 = vmatprep.subr.bf16.mxu0 0
      %358 = vmatpush1.bf16.msra.mxu0 %v327
      %359 = vmatprep.subr.bf16.mxu0 0
      %360 = vmatpush2.bf16.msra.mxu0 0
      %361 = vmatprep.subr.bf16.mxu0 0
      %362 = vmatpush2.bf16.msra.mxu0 0
      %363 = vmatprep.subr.bf16.mxu0 0
      %364 = vmatpush2.bf16.msra.mxu0 0
      %365 = vmatprep.subr.bf16.mxu0 0
      %366 = vmatpush2.bf16.msra.mxu0 0
      %367 = vmatprep.subr.bf16.mxu0 0
      %368 = vmatpush2.bf16.msra.mxu0 0
      %369 = vmatprep.subr.bf16.mxu0 0
      %370 = vmatpush2.bf16.msra.mxu0 0
      %371 = vmatprep.subr.bf16.mxu0 0
      %372 = vmatpush2.bf16.msra.mxu0 0
      %373 = vmatprep.subr.bf16.mxu0 0
      %374 = vmatpush2.bf16.msra.mxu0 0
      %375 = vmatprep.mubr.bf16.mxu0 0
      %376 = vmatmul.mubr.bf16.gmra.mxu0 %v285
      %v377 = vpop.f32.mrf.mxu0
      %v378 = vadd.f32 0.0, %v377
      %v379 = vpop.f32.mrf.mxu0
      %v380 = vpop.f32.mrf.mxu0
      %v381 = vadd.f32 0.0, %v380
      %v382 = vpop.f32.mrf.mxu0
      %383 = vmatprep.mubr.bf16.mxu0 0
      %384 = vmatmul.mubr.bf16.gmra.mxu0 %v286
      %v385 = vpop.f32.mrf.mxu0
      %v386 = vadd.f32 0.0, %v385
      %v387 = vpop.f32.mrf.mxu0
      %v388 = vpop.f32.mrf.mxu0
      %v389 = vadd.f32 0.0, %v388
      %v390 = vpop.f32.mrf.mxu0
      %391 = vmatprep.mubr.bf16.mxu0 0
      %392 = vmatmul.mubr.bf16.gmra.mxu0 %v287
      %v393 = vpop.f32.mrf.mxu0
      %v394 = vadd.f32 0.0, %v393
      %v395 = vpop.f32.mrf.mxu0
      %v396 = vpop.f32.mrf.mxu0
      %v397 = vadd.f32 0.0, %v396
      %v398 = vpop.f32.mrf.mxu0
      %399 = vmatprep.mubr.bf16.mxu0 0
      %400 = vmatmul.mubr.bf16.gmra.mxu0 %v288
      %v401 = vpop.f32.mrf.mxu0
      %v402 = vadd.f32 0.0, %v401
      %v403 = vpop.f32.mrf.mxu0
      %v404 = vpop.f32.mrf.mxu0
      %v405 = vadd.f32 0.0, %v404
      %v406 = vpop.f32.mrf.mxu0
      %407 = vmatprep.mubr.bf16.mxu0 0
      %408 = vmatmul.mubr.bf16.gmra.mxu0 %v289
      %v409 = vpop.f32.mrf.mxu0
      %v410 = vadd.f32 0.0, %v409
      %v411 = vpop.f32.mrf.mxu0
      %v412 = vpop.f32.mrf.mxu0
      %v413 = vadd.f32 0.0, %v412
      %v414 = vpop.f32.mrf.mxu0
      %415 = vdwg.mxu0
      %v416 = vadd.f32 %v229, %v378
      %v417 = vadd.f32 %v230, %v381
      %v418 = vadd.f32 %v231, %v386
      %v419 = vadd.f32 %v232, %v389
      %v420 = vadd.f32 %v233, %v394
      %v421 = vadd.f32 %v234, %v397
      %v422 = vadd.f32 %v235, %v402
      %v423 = vadd.f32 %v236, %v405
      %v424 = vadd.f32 %v237, %v410
      %v425 = vadd.f32 %v238, %v413
      %v426 = vld [vmem:[%s207] sm:$0xf]
      %v427 = vld [vmem:[%s207 + $0x4] sm:$0xf]
      %v428 = vld [vmem:[%s207 + $0x8] sm:$0xf]
      %v429 = vld [vmem:[%s207 + $0xc] sm:$0xf]
      %v430 = vld [vmem:[%s207 + $0x10] sm:$0xf]
      %v431 = vld [vmem:[%s207 + $0x14] sm:$0xf]
      %v432 = vld [vmem:[%s207 + $0x18] sm:$0xf]
      %v433 = vld [vmem:[%s207 + $0x1c] sm:$0xf]
      %v434 = vld [vmem:[%s207 + $0x20] sm:$0xf]
      %v435 = vld [vmem:[%s207 + $0x24] sm:$0xf]
      %v436 = vld [vmem:[%s207 + $0x28] sm:$0x1]
      %s437 = scalar_lea.vmem %s1, 64
      %v438 = vld [vmem:[%s437] sm:$0xf]
      %v439 = vld [vmem:[%s437 + $0x4] sm:$0xf]
      %v440 = vld [vmem:[%s437 + $0x8] sm:$0xf]
      %v441 = vld [vmem:[%s437 + $0xc] sm:$0xf]
      %v442 = vld [vmem:[%s437 + $0x10] sm:$0xf]
      %v443 = vld [vmem:[%s437 + $0x14] sm:$0xf]
      %v444 = vld [vmem:[%s437 + $0x18] sm:$0xf]
      %v445 = vld [vmem:[%s437 + $0x1c] sm:$0xf]
      %v446 = vld [vmem:[%s437 + $0x20] sm:$0xf]
      %v447 = vld [vmem:[%s437 + $0x24] sm:$0xf]
      %v448 = vld [vmem:[%s437 + $0x28] sm:$0xf]
      %v449 = vld [vmem:[%s437 + $0x2c] sm:$0xf]
      %v450 = vld [vmem:[%s437 + $0x30] sm:$0xf]
      %v451 = vld [vmem:[%s437 + $0x34] sm:$0xf]
      %v452 = vld [vmem:[%s437 + $0x38] sm:$0xf]
      %v453 = vld [vmem:[%s437 + $0x3c] sm:$0xf]
      %v465 = vunpack.c.l.b16 %v426
      %v466 = vunpack.c.l.b16 %v427
      %v467 = vunpack.c.l.b16 %v428
      %v468 = vunpack.c.l.b16 %v429
      %v469 = vunpack.c.l.b16 %v430
      %v470 = vunpack.c.l.b16 %v431
      %v471 = vunpack.c.l.b16 %v432
      %v472 = vunpack.c.l.b16 %v433
      %v473 = vunpack.c.l.b16 %v434
      %v474 = vunpack.c.l.b16 %v435
      %v475 = vunpack.c.l.b16 %v436
      %v476 = vpack.c.b16 %v466, %v465
      %v477 = vpack.c.b16 %v468, %v467
      %v478 = vpack.c.b16 %v470, %v469
      %v479 = vpack.c.b16 %v472, %v471
      %v480 = vpack.c.b16 %v474, %v473
      %v481 = vpack.c.b16 %v475, %v475
      %vm482 = vsmask.f32 7424
      %v484 = vshrl.u32 %v476, 16
      %v486 = vshll.u32 %v476, 16
      %v488 = vrot.slane %v486, 1
      %v489 = vor.u32 %v484, %v488
      %v491 = vshll.u32 %v477, 16
      %v493 = vrot.slane %v491, 1
      %v494 = vsel %vm482, %v489, %v493
      %v495 = vshrl.u32 %v477, 16
      %v497 = vor.u32 %v495, %v493
      %v499 = vshll.u32 %v478, 16
      %v501 = vrot.slane %v499, 1
      %v502 = vsel %vm482, %v497, %v501
      %v503 = vshrl.u32 %v478, 16
      %v505 = vor.u32 %v503, %v501
      %v507 = vshll.u32 %v479, 16
      %v509 = vrot.slane %v507, 1
      %v510 = vsel %vm482, %v505, %v509
      %v511 = vshrl.u32 %v479, 16
      %v513 = vor.u32 %v511, %v509
      %v515 = vshll.u32 %v480, 16
      %v517 = vrot.slane %v515, 1
      %v518 = vsel %vm482, %v513, %v517
      %v519 = vshrl.u32 %v480, 16
      %v521 = vor.u32 %v519, %v517
      %v523 = vshll.u32 %v481, 16
      %v525 = vrot.slane %v523, 1
      %v526 = vsel %vm482, %v521, %v525
      %v548 = vunpack.c.l.b16 %v438
      %v549 = vunpack.c.l.b16 %v439
      %v550 = vunpack.c.l.b16 %v440
      %v551 = vunpack.c.l.b16 %v441
      %v552 = vunpack.c.l.b16 %v442
      %v553 = vunpack.c.l.b16 %v443
      %v554 = vunpack.c.l.b16 %v444
      %v555 = vunpack.c.l.b16 %v445
      %v556 = vunpack.c.l.b16 %v446
      %v557 = vunpack.c.l.b16 %v447
      %v558 = vunpack.c.l.b16 %v448
      %v559 = vunpack.c.l.b16 %v449
      %v560 = vunpack.c.l.b16 %v450
      %v561 = vunpack.c.l.b16 %v451
      %v562 = vunpack.c.l.b16 %v452
      %v563 = vunpack.c.l.b16 %v453
      %v564 = vpack.c.b16 %v549, %v548
      %v565 = vpack.c.b16 %v551, %v550
      %v566 = vpack.c.b16 %v553, %v552
      %v567 = vpack.c.b16 %v555, %v554
      %v568 = vpack.c.b16 %v557, %v556
      %v569 = vpack.c.b16 %v559, %v558
      %v570 = vpack.c.b16 %v561, %v560
      %v571 = vpack.c.b16 %v563, %v562
      %580 = vmatprep.subr.bf16.mxu0 0
      %581 = vmatpush1.bf16.msra.mxu0 %v571
      %582 = vmatprep.subr.bf16.mxu0 0
      %583 = vmatpush1.bf16.msra.mxu0 %v570
      %584 = vmatprep.subr.bf16.mxu0 0
      %585 = vmatpush1.bf16.msra.mxu0 %v569
      %586 = vmatprep.subr.bf16.mxu0 0
      %587 = vmatpush1.bf16.msra.mxu0 %v568
      %588 = vmatprep.subr.bf16.mxu0 0
      %589 = vmatpush1.bf16.msra.mxu0 %v567
      %590 = vmatprep.subr.bf16.mxu0 0
      %591 = vmatpush1.bf16.msra.mxu0 %v566
      %592 = vmatprep.subr.bf16.mxu0 0
      %593 = vmatpush1.bf16.msra.mxu0 %v565
      %594 = vmatprep.subr.bf16.mxu0 0
      %595 = vmatpush1.bf16.msra.mxu0 %v564
      %596 = vmatprep.subr.bf16.mxu0 0
      %597 = vmatpush2.bf16.msra.mxu0 0
      %598 = vmatprep.subr.bf16.mxu0 0
      %599 = vmatpush2.bf16.msra.mxu0 0
      %600 = vmatprep.subr.bf16.mxu0 0
      %601 = vmatpush2.bf16.msra.mxu0 0
      %602 = vmatprep.subr.bf16.mxu0 0
      %603 = vmatpush2.bf16.msra.mxu0 0
      %604 = vmatprep.subr.bf16.mxu0 0
      %605 = vmatpush2.bf16.msra.mxu0 0
      %606 = vmatprep.subr.bf16.mxu0 0
      %607 = vmatpush2.bf16.msra.mxu0 0
      %608 = vmatprep.subr.bf16.mxu0 0
      %609 = vmatpush2.bf16.msra.mxu0 0
      %610 = vmatprep.subr.bf16.mxu0 0
      %611 = vmatpush2.bf16.msra.mxu0 0
      %612 = vmatprep.mubr.bf16.mxu0 0
      %613 = vmatmul.mubr.bf16.gmra.mxu0 %v494
      %v614 = vpop.f32.mrf.mxu0
      %v615 = vadd.f32 0.0, %v614
      %v616 = vpop.f32.mrf.mxu0
      %v617 = vpop.f32.mrf.mxu0
      %v618 = vadd.f32 0.0, %v617
      %v619 = vpop.f32.mrf.mxu0
      %620 = vmatprep.mubr.bf16.mxu0 0
      %621 = vmatmul.mubr.bf16.gmra.mxu0 %v502
      %v622 = vpop.f32.mrf.mxu0
      %v623 = vadd.f32 0.0, %v622
      %v624 = vpop.f32.mrf.mxu0
      %v625 = vpop.f32.mrf.mxu0
      %v626 = vadd.f32 0.0, %v625
      %v627 = vpop.f32.mrf.mxu0
      %628 = vmatprep.mubr.bf16.mxu0 0
      %629 = vmatmul.mubr.bf16.gmra.mxu0 %v510
      %v630 = vpop.f32.mrf.mxu0
      %v631 = vadd.f32 0.0, %v630
      %v632 = vpop.f32.mrf.mxu0
      %v633 = vpop.f32.mrf.mxu0
      %v634 = vadd.f32 0.0, %v633
      %v635 = vpop.f32.mrf.mxu0
      %636 = vmatprep.mubr.bf16.mxu0 0
      %637 = vmatmul.mubr.bf16.gmra.mxu0 %v518
      %v638 = vpop.f32.mrf.mxu0
      %v639 = vadd.f32 0.0, %v638
      %v640 = vpop.f32.mrf.mxu0
      %v641 = vpop.f32.mrf.mxu0
      %v642 = vadd.f32 0.0, %v641
      %v643 = vpop.f32.mrf.mxu0
      %644 = vmatprep.mubr.bf16.mxu0 0
      %645 = vmatmul.mubr.bf16.gmra.mxu0 %v526
      %v646 = vpop.f32.mrf.mxu0
      %v647 = vadd.f32 0.0, %v646
      %v648 = vpop.f32.mrf.mxu0
      %v649 = vpop.f32.mrf.mxu0
      %v650 = vadd.f32 0.0, %v649
      %v651 = vpop.f32.mrf.mxu0
      %652 = vdwg.mxu0
      %v653 = vadd.f32 %v416, %v615
      %v654 = vadd.f32 %v417, %v618
      %v655 = vadd.f32 %v418, %v623
      %v656 = vadd.f32 %v419, %v626
      %v657 = vadd.f32 %v420, %v631
      %v658 = vadd.f32 %v421, %v634
      %v659 = vadd.f32 %v422, %v639
      %v660 = vadd.f32 %v423, %v642
      %v661 = vadd.f32 %v424, %v647
      %v662 = vadd.f32 %v425, %v650
      %v663 = vld [vmem:[%s207] sm:$0xe]
      %s664 = scalar_lea.vmem %s1, 128
      %v665 = vld [vmem:[%s664] sm:$0xf]
      %v666 = vld [vmem:[%s664 + $0x4] sm:$0xf]
      %v667 = vld [vmem:[%s664 + $0x8] sm:$0xf]
      %v668 = vld [vmem:[%s664 + $0xc] sm:$0xf]
      %v669 = vld [vmem:[%s664 + $0x10] sm:$0xf]
      %v670 = vld [vmem:[%s664 + $0x14] sm:$0xf]
      %v671 = vld [vmem:[%s664 + $0x18] sm:$0xf]
      %v672 = vld [vmem:[%s664 + $0x1c] sm:$0xf]
      %v673 = vld [vmem:[%s664 + $0x20] sm:$0xf]
      %v674 = vld [vmem:[%s664 + $0x24] sm:$0xf]
      %v675 = vld [vmem:[%s664 + $0x28] sm:$0xf]
      %v676 = vld [vmem:[%s664 + $0x2c] sm:$0xf]
      %v677 = vld [vmem:[%s664 + $0x30] sm:$0xf]
      %v678 = vld [vmem:[%s664 + $0x34] sm:$0xf]
      %v679 = vld [vmem:[%s664 + $0x38] sm:$0xf]
      %v680 = vld [vmem:[%s664 + $0x3c] sm:$0xf]
      %v682 = vunpack.c.l.b16 %v663
      %v683 = vpack.c.b16 %v466, %v682
      %vm684 = vcmask 1046528
      %v685 = vrot.slane %v683, 1
      %v686 = vrot.slane %v477, 1
      %v687 = vsel %vm684, %v685, %v686
      %v688 = vrot.slane %v478, 1
      %v689 = vsel %vm684, %v686, %v688
      %v690 = vrot.slane %v479, 1
      %v691 = vsel %vm684, %v688, %v690
      %v692 = vrot.slane %v480, 1
      %v693 = vsel %vm684, %v690, %v692
      %v694 = vrot.slane %v481, 1
      %v695 = vsel %vm684, %v692, %v694
      %v717 = vunpack.c.l.b16 %v665
      %v718 = vunpack.c.l.b16 %v666
      %v719 = vunpack.c.l.b16 %v667
      %v720 = vunpack.c.l.b16 %v668
      %v721 = vunpack.c.l.b16 %v669
      %v722 = vunpack.c.l.b16 %v670
      %v723 = vunpack.c.l.b16 %v671
      %v724 = vunpack.c.l.b16 %v672
      %v725 = vunpack.c.l.b16 %v673
      %v726 = vunpack.c.l.b16 %v674
      %v727 = vunpack.c.l.b16 %v675
      %v728 = vunpack.c.l.b16 %v676
      %v729 = vunpack.c.l.b16 %v677
      %v730 = vunpack.c.l.b16 %v678
      %v731 = vunpack.c.l.b16 %v679
      %v732 = vunpack.c.l.b16 %v680
      %v733 = vpack.c.b16 %v718, %v717
      %v734 = vpack.c.b16 %v720, %v719
      %v735 = vpack.c.b16 %v722, %v721
      %v736 = vpack.c.b16 %v724, %v723
      %v737 = vpack.c.b16 %v726, %v725
      %v738 = vpack.c.b16 %v728, %v727
      %v739 = vpack.c.b16 %v730, %v729
      %v740 = vpack.c.b16 %v732, %v731
      %749 = vmatprep.subr.bf16.mxu0 0
      %750 = vmatpush1.bf16.msra.mxu0 %v740
      %751 = vmatprep.subr.bf16.mxu0 0
      %752 = vmatpush1.bf16.msra.mxu0 %v739
      %753 = vmatprep.subr.bf16.mxu0 0
      %754 = vmatpush1.bf16.msra.mxu0 %v738
      %755 = vmatprep.subr.bf16.mxu0 0
      %756 = vmatpush1.bf16.msra.mxu0 %v737
      %757 = vmatprep.subr.bf16.mxu0 0
      %758 = vmatpush1.bf16.msra.mxu0 %v736
      %759 = vmatprep.subr.bf16.mxu0 0
      %760 = vmatpush1.bf16.msra.mxu0 %v735
      %761 = vmatprep.subr.bf16.mxu0 0
      %762 = vmatpush1.bf16.msra.mxu0 %v734
      %763 = vmatprep.subr.bf16.mxu0 0
      %764 = vmatpush1.bf16.msra.mxu0 %v733
      %765 = vmatprep.subr.bf16.mxu0 0
      %766 = vmatpush2.bf16.msra.mxu0 0
      %767 = vmatprep.subr.bf16.mxu0 0
      %768 = vmatpush2.bf16.msra.mxu0 0
      %769 = vmatprep.subr.bf16.mxu0 0
      %770 = vmatpush2.bf16.msra.mxu0 0
      %771 = vmatprep.subr.bf16.mxu0 0
      %772 = vmatpush2.bf16.msra.mxu0 0
      %773 = vmatprep.subr.bf16.mxu0 0
      %774 = vmatpush2.bf16.msra.mxu0 0
      %775 = vmatprep.subr.bf16.mxu0 0
      %776 = vmatpush2.bf16.msra.mxu0 0
      %777 = vmatprep.subr.bf16.mxu0 0
      %778 = vmatpush2.bf16.msra.mxu0 0
      %779 = vmatprep.subr.bf16.mxu0 0
      %780 = vmatpush2.bf16.msra.mxu0 0
      %781 = vmatprep.mubr.bf16.mxu0 0
      %782 = vmatmul.mubr.bf16.gmra.mxu0 %v687
      %v783 = vpop.f32.mrf.mxu0
      %v784 = vadd.f32 0.0, %v783
      %v785 = vpop.f32.mrf.mxu0
      %v786 = vpop.f32.mrf.mxu0
      %v787 = vadd.f32 0.0, %v786
      %v788 = vpop.f32.mrf.mxu0
      %789 = vmatprep.mubr.bf16.mxu0 0
      %790 = vmatmul.mubr.bf16.gmra.mxu0 %v689
      %v791 = vpop.f32.mrf.mxu0
      %v792 = vadd.f32 0.0, %v791
      %v793 = vpop.f32.mrf.mxu0
      %v794 = vpop.f32.mrf.mxu0
      %v795 = vadd.f32 0.0, %v794
      %v796 = vpop.f32.mrf.mxu0
      %797 = vmatprep.mubr.bf16.mxu0 0
      %798 = vmatmul.mubr.bf16.gmra.mxu0 %v691
      %v799 = vpop.f32.mrf.mxu0
      %v800 = vadd.f32 0.0, %v799
      %v801 = vpop.f32.mrf.mxu0
      %v802 = vpop.f32.mrf.mxu0
      %v803 = vadd.f32 0.0, %v802
      %v804 = vpop.f32.mrf.mxu0
      %805 = vmatprep.mubr.bf16.mxu0 0
      %806 = vmatmul.mubr.bf16.gmra.mxu0 %v693
      %v807 = vpop.f32.mrf.mxu0
      %v808 = vadd.f32 0.0, %v807
      %v809 = vpop.f32.mrf.mxu0
      %v810 = vpop.f32.mrf.mxu0
      %v811 = vadd.f32 0.0, %v810
      %v812 = vpop.f32.mrf.mxu0
      %813 = vmatprep.mubr.bf16.mxu0 0
      %814 = vmatmul.mubr.bf16.gmra.mxu0 %v695
      %v815 = vpop.f32.mrf.mxu0
      %v816 = vadd.f32 0.0, %v815
      %v817 = vpop.f32.mrf.mxu0
      %v818 = vpop.f32.mrf.mxu0
      %v819 = vadd.f32 0.0, %v818
      %v820 = vpop.f32.mrf.mxu0
      %821 = vdwg.mxu0
      %v822 = vadd.f32 %v653, %v784
      %v823 = vadd.f32 %v654, %v787
      %v824 = vadd.f32 %v655, %v792
      %v825 = vadd.f32 %v656, %v795
      %v826 = vadd.f32 %v657, %v800
      %v827 = vadd.f32 %v658, %v803
      %v828 = vadd.f32 %v659, %v808
      %v829 = vadd.f32 %v660, %v811
      %v830 = vadd.f32 %v661, %v816
      %v831 = vadd.f32 %v662, %v819
      %v832 = vld [vmem:[%s207 + $0x4] sm:$0xe]
      %v833 = vld [vmem:[%s207 + $0x8] sm:$0xf]
      %v834 = vld [vmem:[%s207 + $0xc] sm:$0xf]
      %v835 = vld [vmem:[%s207 + $0x10] sm:$0xf]
      %v836 = vld [vmem:[%s207 + $0x14] sm:$0xf]
      %v837 = vld [vmem:[%s207 + $0x18] sm:$0xf]
      %v838 = vld [vmem:[%s207 + $0x1c] sm:$0xf]
      %v839 = vld [vmem:[%s207 + $0x20] sm:$0xf]
      %v840 = vld [vmem:[%s207 + $0x24] sm:$0xf]
      %v841 = vld [vmem:[%s207 + $0x28] sm:$0xf]
      %v842 = vld [vmem:[%s207 + $0x2c] sm:$0x1]
      %s843 = scalar_lea.vmem %s1, 192
      %v844 = vld [vmem:[%s843] sm:$0xf]
      %v845 = vld [vmem:[%s843 + $0x4] sm:$0xf]
      %v846 = vld [vmem:[%s843 + $0x8] sm:$0xf]
      %v847 = vld [vmem:[%s843 + $0xc] sm:$0xf]
      %v848 = vld [vmem:[%s843 + $0x10] sm:$0xf]
      %v849 = vld [vmem:[%s843 + $0x14] sm:$0xf]
      %v850 = vld [vmem:[%s843 + $0x18] sm:$0xf]
      %v851 = vld [vmem:[%s843 + $0x1c] sm:$0xf]
      %v852 = vld [vmem:[%s843 + $0x20] sm:$0xf]
      %v853 = vld [vmem:[%s843 + $0x24] sm:$0xf]
      %v854 = vld [vmem:[%s843 + $0x28] sm:$0xf]
      %v855 = vld [vmem:[%s843 + $0x2c] sm:$0xf]
      %v856 = vld [vmem:[%s843 + $0x30] sm:$0xf]
      %v857 = vld [vmem:[%s843 + $0x34] sm:$0xf]
      %v858 = vld [vmem:[%s843 + $0x38] sm:$0xf]
      %v859 = vld [vmem:[%s843 + $0x3c] sm:$0xf]
      %v871 = vunpack.c.l.b16 %v832
      %v872 = vunpack.c.l.b16 %v833
      %v873 = vunpack.c.l.b16 %v834
      %v874 = vunpack.c.l.b16 %v835
      %v875 = vunpack.c.l.b16 %v836
      %v876 = vunpack.c.l.b16 %v837
      %v877 = vunpack.c.l.b16 %v838
      %v878 = vunpack.c.l.b16 %v839
      %v879 = vunpack.c.l.b16 %v840
      %v880 = vunpack.c.l.b16 %v841
      %v881 = vunpack.c.l.b16 %v842
      %v882 = vpack.c.b16 %v872, %v871
      %v883 = vpack.c.b16 %v874, %v873
      %v884 = vpack.c.b16 %v876, %v875
      %v885 = vpack.c.b16 %v878, %v877
      %v886 = vpack.c.b16 %v880, %v879
      %v887 = vpack.c.b16 %v881, %v881
      %v888 = vrot.slane %v882, 1
      %v889 = vrot.slane %v883, 1
      %v890 = vsel %vm684, %v888, %v889
      %v891 = vrot.slane %v884, 1
      %v892 = vsel %vm684, %v889, %v891
      %v893 = vrot.slane %v885, 1
      %v894 = vsel %vm684, %v891, %v893
      %v895 = vrot.slane %v886, 1
      %v896 = vsel %vm684, %v893, %v895
      %v897 = vrot.slane %v887, 1
      %v898 = vsel %vm684, %v895, %v897
      %v920 = vunpack.c.l.b16 %v844
      %v921 = vunpack.c.l.b16 %v845
      %v922 = vunpack.c.l.b16 %v846
      %v923 = vunpack.c.l.b16 %v847
      %v924 = vunpack.c.l.b16 %v848
      %v925 = vunpack.c.l.b16 %v849
      %v926 = vunpack.c.l.b16 %v850
      %v927 = vunpack.c.l.b16 %v851
      %v928 = vunpack.c.l.b16 %v852
      %v929 = vunpack.c.l.b16 %v853
      %v930 = vunpack.c.l.b16 %v854
      %v931 = vunpack.c.l.b16 %v855
      %v932 = vunpack.c.l.b16 %v856
      %v933 = vunpack.c.l.b16 %v857
      %v934 = vunpack.c.l.b16 %v858
      %v935 = vunpack.c.l.b16 %v859
      %v936 = vpack.c.b16 %v921, %v920
      %v937 = vpack.c.b16 %v923, %v922
      %v938 = vpack.c.b16 %v925, %v924
      %v939 = vpack.c.b16 %v927, %v926
      %v940 = vpack.c.b16 %v929, %v928
      %v941 = vpack.c.b16 %v931, %v930
      %v942 = vpack.c.b16 %v933, %v932
      %v943 = vpack.c.b16 %v935, %v934
      %952 = vmatprep.subr.bf16.mxu0 0
      %953 = vmatpush1.bf16.msra.mxu0 %v943
      %954 = vmatprep.subr.bf16.mxu0 0
      %955 = vmatpush1.bf16.msra.mxu0 %v942
      %956 = vmatprep.subr.bf16.mxu0 0
      %957 = vmatpush1.bf16.msra.mxu0 %v941
      %958 = vmatprep.subr.bf16.mxu0 0
      %959 = vmatpush1.bf16.msra.mxu0 %v940
      %960 = vmatprep.subr.bf16.mxu0 0
      %961 = vmatpush1.bf16.msra.mxu0 %v939
      %962 = vmatprep.subr.bf16.mxu0 0
      %963 = vmatpush1.bf16.msra.mxu0 %v938
      %964 = vmatprep.subr.bf16.mxu0 0
      %965 = vmatpush1.bf16.msra.mxu0 %v937
      %966 = vmatprep.subr.bf16.mxu0 0
      %967 = vmatpush1.bf16.msra.mxu0 %v936
      %968 = vmatprep.subr.bf16.mxu0 0
      %969 = vmatpush2.bf16.msra.mxu0 0
      %970 = vmatprep.subr.bf16.mxu0 0
      %971 = vmatpush2.bf16.msra.mxu0 0
      %972 = vmatprep.subr.bf16.mxu0 0
      %973 = vmatpush2.bf16.msra.mxu0 0
      %974 = vmatprep.subr.bf16.mxu0 0
      %975 = vmatpush2.bf16.msra.mxu0 0
      %976 = vmatprep.subr.bf16.mxu0 0
      %977 = vmatpush2.bf16.msra.mxu0 0
      %978 = vmatprep.subr.bf16.mxu0 0
      %979 = vmatpush2.bf16.msra.mxu0 0
      %980 = vmatprep.subr.bf16.mxu0 0
      %981 = vmatpush2.bf16.msra.mxu0 0
      %982 = vmatprep.subr.bf16.mxu0 0
      %983 = vmatpush2.bf16.msra.mxu0 0
      %984 = vmatprep.mubr.bf16.mxu0 0
      %985 = vmatmul.mubr.bf16.gmra.mxu0 %v890
      %v986 = vpop.f32.mrf.mxu0
      %v987 = vadd.f32 0.0, %v986
      %v988 = vpop.f32.mrf.mxu0
      %v989 = vpop.f32.mrf.mxu0
      %v990 = vadd.f32 0.0, %v989
      %v991 = vpop.f32.mrf.mxu0
      %992 = vmatprep.mubr.bf16.mxu0 0
      %993 = vmatmul.mubr.bf16.gmra.mxu0 %v892
      %v994 = vpop.f32.mrf.mxu0
      %v995 = vadd.f32 0.0, %v994
      %v996 = vpop.f32.mrf.mxu0
      %v997 = vpop.f32.mrf.mxu0
      %v998 = vadd.f32 0.0, %v997
      %v999 = vpop.f32.mrf.mxu0
      %1000 = vmatprep.mubr.bf16.mxu0 0
      %1001 = vmatmul.mubr.bf16.gmra.mxu0 %v894
      %v1002 = vpop.f32.mrf.mxu0
      %v1003 = vadd.f32 0.0, %v1002
      %v1004 = vpop.f32.mrf.mxu0
      %v1005 = vpop.f32.mrf.mxu0
      %v1006 = vadd.f32 0.0, %v1005
      %v1007 = vpop.f32.mrf.mxu0
      %1008 = vmatprep.mubr.bf16.mxu0 0
      %1009 = vmatmul.mubr.bf16.gmra.mxu0 %v896
      %v1010 = vpop.f32.mrf.mxu0
      %v1011 = vadd.f32 0.0, %v1010
      %v1012 = vpop.f32.mrf.mxu0
      %v1013 = vpop.f32.mrf.mxu0
      %v1014 = vadd.f32 0.0, %v1013
      %v1015 = vpop.f32.mrf.mxu0
      %1016 = vmatprep.mubr.bf16.mxu0 0
      %1017 = vmatmul.mubr.bf16.gmra.mxu0 %v898
      %v1018 = vpop.f32.mrf.mxu0
      %v1019 = vadd.f32 0.0, %v1018
      %v1020 = vpop.f32.mrf.mxu0
      %v1021 = vpop.f32.mrf.mxu0
      %v1022 = vadd.f32 0.0, %v1021
      %v1023 = vpop.f32.mrf.mxu0
      %1024 = vdwg.mxu0
      %v1025 = vadd.f32 %v822, %v987
      %v1026 = vadd.f32 %v823, %v990
      %v1027 = vadd.f32 %v824, %v995
      %v1028 = vadd.f32 %v825, %v998
      %v1029 = vadd.f32 %v826, %v1003
      %v1030 = vadd.f32 %v827, %v1006
      %v1031 = vadd.f32 %v828, %v1011
      %v1032 = vadd.f32 %v829, %v1014
      %v1033 = vadd.f32 %v830, %v1019
      %v1034 = vadd.f32 %v831, %v1022
      %v1035 = vld [vmem:[%s207 + $0x2c] sm:$0x3]
      %s1036 = scalar_lea.vmem %s1, 256
      %v1037 = vld [vmem:[%s1036] sm:$0xf]
      %v1038 = vld [vmem:[%s1036 + $0x4] sm:$0xf]
      %v1039 = vld [vmem:[%s1036 + $0x8] sm:$0xf]
      %v1040 = vld [vmem:[%s1036 + $0xc] sm:$0xf]
      %v1041 = vld [vmem:[%s1036 + $0x10] sm:$0xf]
      %v1042 = vld [vmem:[%s1036 + $0x14] sm:$0xf]
      %v1043 = vld [vmem:[%s1036 + $0x18] sm:$0xf]
      %v1044 = vld [vmem:[%s1036 + $0x1c] sm:$0xf]
      %v1045 = vld [vmem:[%s1036 + $0x20] sm:$0xf]
      %v1046 = vld [vmem:[%s1036 + $0x24] sm:$0xf]
      %v1047 = vld [vmem:[%s1036 + $0x28] sm:$0xf]
      %v1048 = vld [vmem:[%s1036 + $0x2c] sm:$0xf]
      %v1049 = vld [vmem:[%s1036 + $0x30] sm:$0xf]
      %v1050 = vld [vmem:[%s1036 + $0x34] sm:$0xf]
      %v1051 = vld [vmem:[%s1036 + $0x38] sm:$0xf]
      %v1052 = vld [vmem:[%s1036 + $0x3c] sm:$0xf]
      %v1054 = vunpack.c.l.b16 %v1035
      %v1055 = vpack.c.b16 %v1054, %v1054
      %vm1056 = vsmask.f32 6400
      %v1058 = vshrl.u32 %v882, 16
      %v1060 = vrot.slane %v1058, 1
      %v1061 = vshll.u32 %v882, 16
      %v1063 = vrot.slane %v1061, 2
      %v1064 = vor.u32 %v1060, %v1063
      %v1066 = vshrl.u32 %v883, 16
      %v1068 = vrot.slane %v1066, 1
      %v1069 = vshll.u32 %v883, 16
      %v1071 = vrot.slane %v1069, 2
      %v1072 = vor.u32 %v1068, %v1071
      %v1073 = vsel %vm1056, %v1064, %v1072
      %v1075 = vshrl.u32 %v884, 16
      %v1077 = vrot.slane %v1075, 1
      %v1078 = vshll.u32 %v884, 16
      %v1080 = vrot.slane %v1078, 2
      %v1081 = vor.u32 %v1077, %v1080
      %v1082 = vsel %vm1056, %v1072, %v1081
      %v1084 = vshrl.u32 %v885, 16
      %v1086 = vrot.slane %v1084, 1
      %v1087 = vshll.u32 %v885, 16
      %v1089 = vrot.slane %v1087, 2
      %v1090 = vor.u32 %v1086, %v1089
      %v1091 = vsel %vm1056, %v1081, %v1090
      %v1093 = vshrl.u32 %v886, 16
      %v1095 = vrot.slane %v1093, 1
      %v1096 = vshll.u32 %v886, 16
      %v1098 = vrot.slane %v1096, 2
      %v1099 = vor.u32 %v1095, %v1098
      %v1100 = vsel %vm1056, %v1090, %v1099
      %v1102 = vshrl.u32 %v1055, 16
      %v1104 = vrot.slane %v1102, 1
      %v1105 = vshll.u32 %v1055, 16
      %v1107 = vrot.slane %v1105, 2
      %v1108 = vor.u32 %v1104, %v1107
      %v1109 = vsel %vm1056, %v1099, %v1108
      %v1131 = vunpack.c.l.b16 %v1037
      %v1132 = vunpack.c.l.b16 %v1038
      %v1133 = vunpack.c.l.b16 %v1039
      %v1134 = vunpack.c.l.b16 %v1040
      %v1135 = vunpack.c.l.b16 %v1041
      %v1136 = vunpack.c.l.b16 %v1042
      %v1137 = vunpack.c.l.b16 %v1043
      %v1138 = vunpack.c.l.b16 %v1044
      %v1139 = vunpack.c.l.b16 %v1045
      %v1140 = vunpack.c.l.b16 %v1046
      %v1141 = vunpack.c.l.b16 %v1047
      %v1142 = vunpack.c.l.b16 %v1048
      %v1143 = vunpack.c.l.b16 %v1049
      %v1144 = vunpack.c.l.b16 %v1050
      %v1145 = vunpack.c.l.b16 %v1051
      %v1146 = vunpack.c.l.b16 %v1052
      %v1147 = vpack.c.b16 %v1132, %v1131
      %v1148 = vpack.c.b16 %v1134, %v1133
      %v1149 = vpack.c.b16 %v1136, %v1135
      %v1150 = vpack.c.b16 %v1138, %v1137
      %v1151 = vpack.c.b16 %v1140, %v1139
      %v1152 = vpack.c.b16 %v1142, %v1141
      %v1153 = vpack.c.b16 %v1144, %v1143
      %v1154 = vpack.c.b16 %v1146, %v1145
      %1163 = vmatprep.subr.bf16.mxu0 0
      %1164 = vmatpush1.bf16.msra.mxu0 %v1154
      %1165 = vmatprep.subr.bf16.mxu0 0
      %1166 = vmatpush1.bf16.msra.mxu0 %v1153
      %1167 = vmatprep.subr.bf16.mxu0 0
      %1168 = vmatpush1.bf16.msra.mxu0 %v1152
      %1169 = vmatprep.subr.bf16.mxu0 0
      %1170 = vmatpush1.bf16.msra.mxu0 %v1151
      %1171 = vmatprep.subr.bf16.mxu0 0
      %1172 = vmatpush1.bf16.msra.mxu0 %v1150
      %1173 = vmatprep.subr.bf16.mxu0 0
      %1174 = vmatpush1.bf16.msra.mxu0 %v1149
      %1175 = vmatprep.subr.bf16.mxu0 0
      %1176 = vmatpush1.bf16.msra.mxu0 %v1148
      %1177 = vmatprep.subr.bf16.mxu0 0
      %1178 = vmatpush1.bf16.msra.mxu0 %v1147
      %1179 = vmatprep.subr.bf16.mxu0 0
      %1180 = vmatpush2.bf16.msra.mxu0 0
      %1181 = vmatprep.subr.bf16.mxu0 0
      %1182 = vmatpush2.bf16.msra.mxu0 0
      %1183 = vmatprep.subr.bf16.mxu0 0
      %1184 = vmatpush2.bf16.msra.mxu0 0
      %1185 = vmatprep.subr.bf16.mxu0 0
      %1186 = vmatpush2.bf16.msra.mxu0 0
      %1187 = vmatprep.subr.bf16.mxu0 0
      %1188 = vmatpush2.bf16.msra.mxu0 0
      %1189 = vmatprep.subr.bf16.mxu0 0
      %1190 = vmatpush2.bf16.msra.mxu0 0
      %1191 = vmatprep.subr.bf16.mxu0 0
      %1192 = vmatpush2.bf16.msra.mxu0 0
      %1193 = vmatprep.subr.bf16.mxu0 0
      %1194 = vmatpush2.bf16.msra.mxu0 0
      %1195 = vmatprep.mubr.bf16.mxu0 0
      %1196 = vmatmul.mubr.bf16.gmra.mxu0 %v1073
      %v1197 = vpop.f32.mrf.mxu0
      %v1198 = vadd.f32 0.0, %v1197
      %v1199 = vpop.f32.mrf.mxu0
      %v1200 = vpop.f32.mrf.mxu0
      %v1201 = vadd.f32 0.0, %v1200
      %v1202 = vpop.f32.mrf.mxu0
      %1203 = vmatprep.mubr.bf16.mxu0 0
      %1204 = vmatmul.mubr.bf16.gmra.mxu0 %v1082
      %v1205 = vpop.f32.mrf.mxu0
      %v1206 = vadd.f32 0.0, %v1205
      %v1207 = vpop.f32.mrf.mxu0
      %v1208 = vpop.f32.mrf.mxu0
      %v1209 = vadd.f32 0.0, %v1208
      %v1210 = vpop.f32.mrf.mxu0
      %1211 = vmatprep.mubr.bf16.mxu0 0
      %1212 = vmatmul.mubr.bf16.gmra.mxu0 %v1091
      %v1213 = vpop.f32.mrf.mxu0
      %v1214 = vadd.f32 0.0, %v1213
      %v1215 = vpop.f32.mrf.mxu0
      %v1216 = vpop.f32.mrf.mxu0
      %v1217 = vadd.f32 0.0, %v1216
      %v1218 = vpop.f32.mrf.mxu0
      %1219 = vmatprep.mubr.bf16.mxu0 0
      %1220 = vmatmul.mubr.bf16.gmra.mxu0 %v1100
      %v1221 = vpop.f32.mrf.mxu0
      %v1222 = vadd.f32 0.0, %v1221
      %v1223 = vpop.f32.mrf.mxu0
      %v1224 = vpop.f32.mrf.mxu0
      %v1225 = vadd.f32 0.0, %v1224
      %v1226 = vpop.f32.mrf.mxu0
      %1227 = vmatprep.mubr.bf16.mxu0 0
      %1228 = vmatmul.mubr.bf16.gmra.mxu0 %v1109
      %v1229 = vpop.f32.mrf.mxu0
      %v1230 = vadd.f32 0.0, %v1229
      %v1231 = vpop.f32.mrf.mxu0
      %v1232 = vpop.f32.mrf.mxu0
      %v1233 = vadd.f32 0.0, %v1232
      %v1234 = vpop.f32.mrf.mxu0
      %1235 = vdwg.mxu0
      %v1236 = vadd.f32 %v1025, %v1198
      %v1237 = vadd.f32 %v1026, %v1201
      %v1238 = vadd.f32 %v1027, %v1206
      %v1239 = vadd.f32 %v1028, %v1209
      %v1240 = vadd.f32 %v1029, %v1214
      %v1241 = vadd.f32 %v1030, %v1217
      %v1242 = vadd.f32 %v1031, %v1222
      %v1243 = vadd.f32 %v1032, %v1225
      %v1244 = vadd.f32 %v1033, %v1230
      %v1245 = vadd.f32 %v1034, %v1233
      %v1246 = vld [vmem:[%s207 + $0x4] sm:$0xc]
      %s1247 = scalar_lea.vmem %s1, 320
      %v1248 = vld [vmem:[%s1247] sm:$0xf]
      %v1249 = vld [vmem:[%s1247 + $0x4] sm:$0xf]
      %v1250 = vld [vmem:[%s1247 + $0x8] sm:$0xf]
      %v1251 = vld [vmem:[%s1247 + $0xc] sm:$0xf]
      %v1252 = vld [vmem:[%s1247 + $0x10] sm:$0xf]
      %v1253 = vld [vmem:[%s1247 + $0x14] sm:$0xf]
      %v1254 = vld [vmem:[%s1247 + $0x18] sm:$0xf]
      %v1255 = vld [vmem:[%s1247 + $0x1c] sm:$0xf]
      %v1256 = vld [vmem:[%s1247 + $0x20] sm:$0xf]
      %v1257 = vld [vmem:[%s1247 + $0x24] sm:$0xf]
      %v1258 = vld [vmem:[%s1247 + $0x28] sm:$0xf]
      %v1259 = vld [vmem:[%s1247 + $0x2c] sm:$0xf]
      %v1260 = vld [vmem:[%s1247 + $0x30] sm:$0xf]
      %v1261 = vld [vmem:[%s1247 + $0x34] sm:$0xf]
      %v1262 = vld [vmem:[%s1247 + $0x38] sm:$0xf]
      %v1263 = vld [vmem:[%s1247 + $0x3c] sm:$0xf]
      %v1265 = vunpack.c.l.b16 %v1246
      %v1266 = vpack.c.b16 %v872, %v1265
      %vm1267 = vcmask 1045504
      %v1268 = vrot.slane %v1266, 2
      %v1269 = vrot.slane %v883, 2
      %v1270 = vsel %vm1267, %v1268, %v1269
      %v1271 = vrot.slane %v884, 2
      %v1272 = vsel %vm1267, %v1269, %v1271
      %v1273 = vrot.slane %v885, 2
      %v1274 = vsel %vm1267, %v1271, %v1273
      %v1275 = vrot.slane %v886, 2
      %v1276 = vsel %vm1267, %v1273, %v1275
      %v1277 = vrot.slane %v1055, 2
      %v1278 = vsel %vm1267, %v1275, %v1277
      %v1300 = vunpack.c.l.b16 %v1248
      %v1301 = vunpack.c.l.b16 %v1249
      %v1302 = vunpack.c.l.b16 %v1250
      %v1303 = vunpack.c.l.b16 %v1251
      %v1304 = vunpack.c.l.b16 %v1252
      %v1305 = vunpack.c.l.b16 %v1253
      %v1306 = vunpack.c.l.b16 %v1254
      %v1307 = vunpack.c.l.b16 %v1255
      %v1308 = vunpack.c.l.b16 %v1256
      %v1309 = vunpack.c.l.b16 %v1257
      %v1310 = vunpack.c.l.b16 %v1258
      %v1311 = vunpack.c.l.b16 %v1259
      %v1312 = vunpack.c.l.b16 %v1260
      %v1313 = vunpack.c.l.b16 %v1261
      %v1314 = vunpack.c.l.b16 %v1262
      %v1315 = vunpack.c.l.b16 %v1263
      %v1316 = vpack.c.b16 %v1301, %v1300
      %v1317 = vpack.c.b16 %v1303, %v1302
      %v1318 = vpack.c.b16 %v1305, %v1304
      %v1319 = vpack.c.b16 %v1307, %v1306
      %v1320 = vpack.c.b16 %v1309, %v1308
      %v1321 = vpack.c.b16 %v1311, %v1310
      %v1322 = vpack.c.b16 %v1313, %v1312
      %v1323 = vpack.c.b16 %v1315, %v1314
      %1332 = vmatprep.subr.bf16.mxu0 0
      %1333 = vmatpush1.bf16.msra.mxu0 %v1323
      %1334 = vmatprep.subr.bf16.mxu0 0
      %1335 = vmatpush1.bf16.msra.mxu0 %v1322
      %1336 = vmatprep.subr.bf16.mxu0 0
      %1337 = vmatpush1.bf16.msra.mxu0 %v1321
      %1338 = vmatprep.subr.bf16.mxu0 0
      %1339 = vmatpush1.bf16.msra.mxu0 %v1320
      %1340 = vmatprep.subr.bf16.mxu0 0
      %1341 = vmatpush1.bf16.msra.mxu0 %v1319
      %1342 = vmatprep.subr.bf16.mxu0 0
      %1343 = vmatpush1.bf16.msra.mxu0 %v1318
      %1344 = vmatprep.subr.bf16.mxu0 0
      %1345 = vmatpush1.bf16.msra.mxu0 %v1317
      %1346 = vmatprep.subr.bf16.mxu0 0
      %1347 = vmatpush1.bf16.msra.mxu0 %v1316
      %1348 = vmatprep.subr.bf16.mxu0 0
      %1349 = vmatpush2.bf16.msra.mxu0 0
      %1350 = vmatprep.subr.bf16.mxu0 0
      %1351 = vmatpush2.bf16.msra.mxu0 0
      %1352 = vmatprep.subr.bf16.mxu0 0
      %1353 = vmatpush2.bf16.msra.mxu0 0
      %1354 = vmatprep.subr.bf16.mxu0 0
      %1355 = vmatpush2.bf16.msra.mxu0 0
      %1356 = vmatprep.subr.bf16.mxu0 0
      %1357 = vmatpush2.bf16.msra.mxu0 0
      %1358 = vmatprep.subr.bf16.mxu0 0
      %1359 = vmatpush2.bf16.msra.mxu0 0
      %1360 = vmatprep.subr.bf16.mxu0 0
      %1361 = vmatpush2.bf16.msra.mxu0 0
      %1362 = vmatprep.subr.bf16.mxu0 0
      %1363 = vmatpush2.bf16.msra.mxu0 0
      %1364 = vmatprep.mubr.bf16.mxu0 0
      %1365 = vmatmul.mubr.bf16.gmra.mxu0 %v1270
      %v1366 = vpop.f32.mrf.mxu0
      %v1367 = vadd.f32 0.0, %v1366
      %v1368 = vpop.f32.mrf.mxu0
      %v1369 = vpop.f32.mrf.mxu0
      %v1370 = vadd.f32 0.0, %v1369
      %v1371 = vpop.f32.mrf.mxu0
      %1372 = vmatprep.mubr.bf16.mxu0 0
      %1373 = vmatmul.mubr.bf16.gmra.mxu0 %v1272
      %v1374 = vpop.f32.mrf.mxu0
      %v1375 = vadd.f32 0.0, %v1374
      %v1376 = vpop.f32.mrf.mxu0
      %v1377 = vpop.f32.mrf.mxu0
      %v1378 = vadd.f32 0.0, %v1377
      %v1379 = vpop.f32.mrf.mxu0
      %1380 = vmatprep.mubr.bf16.mxu0 0
      %1381 = vmatmul.mubr.bf16.gmra.mxu0 %v1274
      %v1382 = vpop.f32.mrf.mxu0
      %v1383 = vadd.f32 0.0, %v1382
      %v1384 = vpop.f32.mrf.mxu0
      %v1385 = vpop.f32.mrf.mxu0
      %v1386 = vadd.f32 0.0, %v1385
      %v1387 = vpop.f32.mrf.mxu0
      %1388 = vmatprep.mubr.bf16.mxu0 0
      %1389 = vmatmul.mubr.bf16.gmra.mxu0 %v1276
      %v1390 = vpop.f32.mrf.mxu0
      %v1391 = vadd.f32 0.0, %v1390
      %v1392 = vpop.f32.mrf.mxu0
      %v1393 = vpop.f32.mrf.mxu0
      %v1394 = vadd.f32 0.0, %v1393
      %v1395 = vpop.f32.mrf.mxu0
      %1396 = vmatprep.mubr.bf16.mxu0 0
      %1397 = vmatmul.mubr.bf16.gmra.mxu0 %v1278
      %v1398 = vpop.f32.mrf.mxu0
      %v1399 = vadd.f32 0.0, %v1398
      %v1400 = vpop.f32.mrf.mxu0
      %v1401 = vpop.f32.mrf.mxu0
      %v1402 = vadd.f32 0.0, %v1401
      %v1403 = vpop.f32.mrf.mxu0
      %1404 = vdwg.mxu0
      %v1405 = vadd.f32 %v1236, %v1367
      %v1406 = vadd.f32 %v1237, %v1370
      %v1407 = vadd.f32 %v1238, %v1375
      %v1408 = vadd.f32 %v1239, %v1378
      %v1409 = vadd.f32 %v1240, %v1383
      %v1410 = vadd.f32 %v1241, %v1386
      %v1411 = vadd.f32 %v1242, %v1391
      %v1412 = vadd.f32 %v1243, %v1394
      %v1413 = vadd.f32 %v1244, %v1399
      %v1414 = vadd.f32 %v1245, %v1402
      %v1415 = vld [vmem:[%s207 + $0x8] sm:$0xc]
      %v1416 = vld [vmem:[%s207 + $0xc] sm:$0xf]
      %v1417 = vld [vmem:[%s207 + $0x10] sm:$0xf]
      %v1418 = vld [vmem:[%s207 + $0x14] sm:$0xf]
      %v1419 = vld [vmem:[%s207 + $0x18] sm:$0xf]
      %v1420 = vld [vmem:[%s207 + $0x1c] sm:$0xf]
      %v1421 = vld [vmem:[%s207 + $0x20] sm:$0xf]
      %v1422 = vld [vmem:[%s207 + $0x24] sm:$0xf]
      %v1423 = vld [vmem:[%s207 + $0x28] sm:$0xf]
      %v1424 = vld [vmem:[%s207 + $0x2c] sm:$0xf]
      %v1425 = vld [vmem:[%s207 + $0x30] sm:$0x3]
      %s1426 = scalar_lea.vmem %s1, 384
      %v1427 = vld [vmem:[%s1426] sm:$0xf]
      %v1428 = vld [vmem:[%s1426 + $0x4] sm:$0xf]
      %v1429 = vld [vmem:[%s1426 + $0x8] sm:$0xf]
      %v1430 = vld [vmem:[%s1426 + $0xc] sm:$0xf]
      %v1431 = vld [vmem:[%s1426 + $0x10] sm:$0xf]
      %v1432 = vld [vmem:[%s1426 + $0x14] sm:$0xf]
      %v1433 = vld [vmem:[%s1426 + $0x18] sm:$0xf]
      %v1434 = vld [vmem:[%s1426 + $0x1c] sm:$0xf]
      %v1435 = vld [vmem:[%s1426 + $0x20] sm:$0xf]
      %v1436 = vld [vmem:[%s1426 + $0x24] sm:$0xf]
      %v1437 = vld [vmem:[%s1426 + $0x28] sm:$0xf]
      %v1438 = vld [vmem:[%s1426 + $0x2c] sm:$0xf]
      %v1439 = vld [vmem:[%s1426 + $0x30] sm:$0xf]
      %v1440 = vld [vmem:[%s1426 + $0x34] sm:$0xf]
      %v1441 = vld [vmem:[%s1426 + $0x38] sm:$0xf]
      %v1442 = vld [vmem:[%s1426 + $0x3c] sm:$0xf]
      %v1454 = vunpack.c.l.b16 %v1415
      %v1455 = vunpack.c.l.b16 %v1416
      %v1456 = vunpack.c.l.b16 %v1417
      %v1457 = vunpack.c.l.b16 %v1418
      %v1458 = vunpack.c.l.b16 %v1419
      %v1459 = vunpack.c.l.b16 %v1420
      %v1460 = vunpack.c.l.b16 %v1421
      %v1461 = vunpack.c.l.b16 %v1422
      %v1462 = vunpack.c.l.b16 %v1423
      %v1463 = vunpack.c.l.b16 %v1424
      %v1464 = vunpack.c.l.b16 %v1425
      %v1465 = vpack.c.b16 %v1455, %v1454
      %v1466 = vpack.c.b16 %v1457, %v1456
      %v1467 = vpack.c.b16 %v1459, %v1458
      %v1468 = vpack.c.b16 %v1461, %v1460
      %v1469 = vpack.c.b16 %v1463, %v1462
      %v1470 = vpack.c.b16 %v1464, %v1464
      %v1471 = vrot.slane %v1465, 2
      %v1472 = vrot.slane %v1466, 2
      %v1473 = vsel %vm1267, %v1471, %v1472
      %v1474 = vrot.slane %v1467, 2
      %v1475 = vsel %vm1267, %v1472, %v1474
      %v1476 = vrot.slane %v1468, 2
      %v1477 = vsel %vm1267, %v1474, %v1476
      %v1478 = vrot.slane %v1469, 2
      %v1479 = vsel %vm1267, %v1476, %v1478
      %v1480 = vrot.slane %v1470, 2
      %v1481 = vsel %vm1267, %v1478, %v1480
      %v1503 = vunpack.c.l.b16 %v1427
      %v1504 = vunpack.c.l.b16 %v1428
      %v1505 = vunpack.c.l.b16 %v1429
      %v1506 = vunpack.c.l.b16 %v1430
      %v1507 = vunpack.c.l.b16 %v1431
      %v1508 = vunpack.c.l.b16 %v1432
      %v1509 = vunpack.c.l.b16 %v1433
      %v1510 = vunpack.c.l.b16 %v1434
      %v1511 = vunpack.c.l.b16 %v1435
      %v1512 = vunpack.c.l.b16 %v1436
      %v1513 = vunpack.c.l.b16 %v1437
      %v1514 = vunpack.c.l.b16 %v1438
      %v1515 = vunpack.c.l.b16 %v1439
      %v1516 = vunpack.c.l.b16 %v1440
      %v1517 = vunpack.c.l.b16 %v1441
      %v1518 = vunpack.c.l.b16 %v1442
      %v1519 = vpack.c.b16 %v1504, %v1503
      %v1520 = vpack.c.b16 %v1506, %v1505
      %v1521 = vpack.c.b16 %v1508, %v1507
      %v1522 = vpack.c.b16 %v1510, %v1509
      %v1523 = vpack.c.b16 %v1512, %v1511
      %v1524 = vpack.c.b16 %v1514, %v1513
      %v1525 = vpack.c.b16 %v1516, %v1515
      %v1526 = vpack.c.b16 %v1518, %v1517
      %1535 = vmatprep.subr.bf16.mxu0 0
      %1536 = vmatpush1.bf16.msra.mxu0 %v1526
      %1537 = vmatprep.subr.bf16.mxu0 0
      %1538 = vmatpush1.bf16.msra.mxu0 %v1525
      %1539 = vmatprep.subr.bf16.mxu0 0
      %1540 = vmatpush1.bf16.msra.mxu0 %v1524
      %1541 = vmatprep.subr.bf16.mxu0 0
      %1542 = vmatpush1.bf16.msra.mxu0 %v1523
      %1543 = vmatprep.subr.bf16.mxu0 0
      %1544 = vmatpush1.bf16.msra.mxu0 %v1522
      %1545 = vmatprep.subr.bf16.mxu0 0
      %1546 = vmatpush1.bf16.msra.mxu0 %v1521
      %1547 = vmatprep.subr.bf16.mxu0 0
      %1548 = vmatpush1.bf16.msra.mxu0 %v1520
      %1549 = vmatprep.subr.bf16.mxu0 0
      %1550 = vmatpush1.bf16.msra.mxu0 %v1519
      %1551 = vmatprep.subr.bf16.mxu0 0
      %1552 = vmatpush2.bf16.msra.mxu0 0
      %1553 = vmatprep.subr.bf16.mxu0 0
      %1554 = vmatpush2.bf16.msra.mxu0 0
      %1555 = vmatprep.subr.bf16.mxu0 0
      %1556 = vmatpush2.bf16.msra.mxu0 0
      %1557 = vmatprep.subr.bf16.mxu0 0
      %1558 = vmatpush2.bf16.msra.mxu0 0
      %1559 = vmatprep.subr.bf16.mxu0 0
      %1560 = vmatpush2.bf16.msra.mxu0 0
      %1561 = vmatprep.subr.bf16.mxu0 0
      %1562 = vmatpush2.bf16.msra.mxu0 0
      %1563 = vmatprep.subr.bf16.mxu0 0
      %1564 = vmatpush2.bf16.msra.mxu0 0
      %1565 = vmatprep.subr.bf16.mxu0 0
      %1566 = vmatpush2.bf16.msra.mxu0 0
      %1567 = vmatprep.mubr.bf16.mxu0 0
      %1568 = vmatmul.mubr.bf16.gmra.mxu0 %v1473
      %v1569 = vpop.f32.mrf.mxu0
      %v1570 = vadd.f32 0.0, %v1569
      %v1571 = vpop.f32.mrf.mxu0
      %v1572 = vpop.f32.mrf.mxu0
      %v1573 = vadd.f32 0.0, %v1572
      %v1574 = vpop.f32.mrf.mxu0
      %1575 = vmatprep.mubr.bf16.mxu0 0
      %1576 = vmatmul.mubr.bf16.gmra.mxu0 %v1475
      %v1577 = vpop.f32.mrf.mxu0
      %v1578 = vadd.f32 0.0, %v1577
      %v1579 = vpop.f32.mrf.mxu0
      %v1580 = vpop.f32.mrf.mxu0
      %v1581 = vadd.f32 0.0, %v1580
      %v1582 = vpop.f32.mrf.mxu0
      %1583 = vmatprep.mubr.bf16.mxu0 0
      %1584 = vmatmul.mubr.bf16.gmra.mxu0 %v1477
      %v1585 = vpop.f32.mrf.mxu0
      %v1586 = vadd.f32 0.0, %v1585
      %v1587 = vpop.f32.mrf.mxu0
      %v1588 = vpop.f32.mrf.mxu0
      %v1589 = vadd.f32 0.0, %v1588
      %v1590 = vpop.f32.mrf.mxu0
      %1591 = vmatprep.mubr.bf16.mxu0 0
      %1592 = vmatmul.mubr.bf16.gmra.mxu0 %v1479
      %v1593 = vpop.f32.mrf.mxu0
      %v1594 = vadd.f32 0.0, %v1593
      %v1595 = vpop.f32.mrf.mxu0
      %v1596 = vpop.f32.mrf.mxu0
      %v1597 = vadd.f32 0.0, %v1596
      %v1598 = vpop.f32.mrf.mxu0
      %1599 = vmatprep.mubr.bf16.mxu0 0
      %1600 = vmatmul.mubr.bf16.gmra.mxu0 %v1481
      %v1601 = vpop.f32.mrf.mxu0
      %v1602 = vadd.f32 0.0, %v1601
      %v1603 = vpop.f32.mrf.mxu0
      %v1604 = vpop.f32.mrf.mxu0
      %v1605 = vadd.f32 0.0, %v1604
      %v1606 = vpop.f32.mrf.mxu0
      %1607 = vdwg.mxu0
      %v1608 = vadd.f32 %v1405, %v1570
      %v1609 = vadd.f32 %v1406, %v1573
      %v1610 = vadd.f32 %v1407, %v1578
      %v1611 = vadd.f32 %v1408, %v1581
      %v1612 = vadd.f32 %v1409, %v1586
      %v1613 = vadd.f32 %v1410, %v1589
      %v1614 = vadd.f32 %v1411, %v1594
      %v1615 = vadd.f32 %v1412, %v1597
      %v1616 = vadd.f32 %v1413, %v1602
      %v1617 = vadd.f32 %v1414, %v1605
      %v1618 = vld [vmem:[%s207 + $0x30] sm:$0x7]
      %s1619 = scalar_lea.vmem %s1, 448
      %v1620 = vld [vmem:[%s1619] sm:$0xf]
      %v1621 = vld [vmem:[%s1619 + $0x4] sm:$0xf]
      %v1622 = vld [vmem:[%s1619 + $0x8] sm:$0xf]
      %v1623 = vld [vmem:[%s1619 + $0xc] sm:$0xf]
      %v1624 = vld [vmem:[%s1619 + $0x10] sm:$0xf]
      %v1625 = vld [vmem:[%s1619 + $0x14] sm:$0xf]
      %v1626 = vld [vmem:[%s1619 + $0x18] sm:$0xf]
      %v1627 = vld [vmem:[%s1619 + $0x1c] sm:$0xf]
      %v1628 = vld [vmem:[%s1619 + $0x20] sm:$0xf]
      %v1629 = vld [vmem:[%s1619 + $0x24] sm:$0xf]
      %v1630 = vld [vmem:[%s1619 + $0x28] sm:$0xf]
      %v1631 = vld [vmem:[%s1619 + $0x2c] sm:$0xf]
      %v1632 = vld [vmem:[%s1619 + $0x30] sm:$0xf]
      %v1633 = vld [vmem:[%s1619 + $0x34] sm:$0xf]
      %v1634 = vld [vmem:[%s1619 + $0x38] sm:$0xf]
      %v1635 = vld [vmem:[%s1619 + $0x3c] sm:$0xf]
      %v1637 = vunpack.c.l.b16 %v1618
      %v1638 = vpack.c.b16 %v1637, %v1637
      %vm1639 = vsmask.f32 5376
      %v1641 = vshrl.u32 %v1465, 16
      %v1643 = vrot.slane %v1641, 2
      %v1644 = vshll.u32 %v1465, 16
      %v1646 = vrot.slane %v1644, 3
      %v1647 = vor.u32 %v1643, %v1646
      %v1649 = vshrl.u32 %v1466, 16
      %v1651 = vrot.slane %v1649, 2
      %v1652 = vshll.u32 %v1466, 16
      %v1654 = vrot.slane %v1652, 3
      %v1655 = vor.u32 %v1651, %v1654
      %v1656 = vsel %vm1639, %v1647, %v1655
      %v1658 = vshrl.u32 %v1467, 16
      %v1660 = vrot.slane %v1658, 2
      %v1661 = vshll.u32 %v1467, 16
      %v1663 = vrot.slane %v1661, 3
      %v1664 = vor.u32 %v1660, %v1663
      %v1665 = vsel %vm1639, %v1655, %v1664
      %v1667 = vshrl.u32 %v1468, 16
      %v1669 = vrot.slane %v1667, 2
      %v1670 = vshll.u32 %v1468, 16
      %v1672 = vrot.slane %v1670, 3
      %v1673 = vor.u32 %v1669, %v1672
      %v1674 = vsel %vm1639, %v1664, %v1673
      %v1676 = vshrl.u32 %v1469, 16
      %v1678 = vrot.slane %v1676, 2
      %v1679 = vshll.u32 %v1469, 16
      %v1681 = vrot.slane %v1679, 3
      %v1682 = vor.u32 %v1678, %v1681
      %v1683 = vsel %vm1639, %v1673, %v1682
      %v1685 = vshrl.u32 %v1638, 16
      %v1687 = vrot.slane %v1685, 2
      %v1688 = vshll.u32 %v1638, 16
      %v1690 = vrot.slane %v1688, 3
      %v1691 = vor.u32 %v1687, %v1690
      %v1692 = vsel %vm1639, %v1682, %v1691
      %v1714 = vunpack.c.l.b16 %v1620
      %v1715 = vunpack.c.l.b16 %v1621
      %v1716 = vunpack.c.l.b16 %v1622
      %v1717 = vunpack.c.l.b16 %v1623
      %v1718 = vunpack.c.l.b16 %v1624
      %v1719 = vunpack.c.l.b16 %v1625
      %v1720 = vunpack.c.l.b16 %v1626
      %v1721 = vunpack.c.l.b16 %v1627
      %v1722 = vunpack.c.l.b16 %v1628
      %v1723 = vunpack.c.l.b16 %v1629
      %v1724 = vunpack.c.l.b16 %v1630
      %v1725 = vunpack.c.l.b16 %v1631
      %v1726 = vunpack.c.l.b16 %v1632
      %v1727 = vunpack.c.l.b16 %v1633
      %v1728 = vunpack.c.l.b16 %v1634
      %v1729 = vunpack.c.l.b16 %v1635
      %v1730 = vpack.c.b16 %v1715, %v1714
      %v1731 = vpack.c.b16 %v1717, %v1716
      %v1732 = vpack.c.b16 %v1719, %v1718
      %v1733 = vpack.c.b16 %v1721, %v1720
      %v1734 = vpack.c.b16 %v1723, %v1722
      %v1735 = vpack.c.b16 %v1725, %v1724
      %v1736 = vpack.c.b16 %v1727, %v1726
      %v1737 = vpack.c.b16 %v1729, %v1728
      %1746 = vmatprep.subr.bf16.mxu0 0
      %1747 = vmatpush1.bf16.msra.mxu0 %v1737
      %1748 = vmatprep.subr.bf16.mxu0 0
      %1749 = vmatpush1.bf16.msra.mxu0 %v1736
      %1750 = vmatprep.subr.bf16.mxu0 0
      %1751 = vmatpush1.bf16.msra.mxu0 %v1735
      %1752 = vmatprep.subr.bf16.mxu0 0
      %1753 = vmatpush1.bf16.msra.mxu0 %v1734
      %1754 = vmatprep.subr.bf16.mxu0 0
      %1755 = vmatpush1.bf16.msra.mxu0 %v1733
      %1756 = vmatprep.subr.bf16.mxu0 0
      %1757 = vmatpush1.bf16.msra.mxu0 %v1732
      %1758 = vmatprep.subr.bf16.mxu0 0
      %1759 = vmatpush1.bf16.msra.mxu0 %v1731
      %1760 = vmatprep.subr.bf16.mxu0 0
      %1761 = vmatpush1.bf16.msra.mxu0 %v1730
      %1762 = vmatprep.subr.bf16.mxu0 0
      %1763 = vmatpush2.bf16.msra.mxu0 0
      %1764 = vmatprep.subr.bf16.mxu0 0
      %1765 = vmatpush2.bf16.msra.mxu0 0
      %1766 = vmatprep.subr.bf16.mxu0 0
      %1767 = vmatpush2.bf16.msra.mxu0 0
      %1768 = vmatprep.subr.bf16.mxu0 0
      %1769 = vmatpush2.bf16.msra.mxu0 0
      %1770 = vmatprep.subr.bf16.mxu0 0
      %1771 = vmatpush2.bf16.msra.mxu0 0
      %1772 = vmatprep.subr.bf16.mxu0 0
      %1773 = vmatpush2.bf16.msra.mxu0 0
      %1774 = vmatprep.subr.bf16.mxu0 0
      %1775 = vmatpush2.bf16.msra.mxu0 0
      %1776 = vmatprep.subr.bf16.mxu0 0
      %1777 = vmatpush2.bf16.msra.mxu0 0
      %1778 = vmatprep.mubr.bf16.mxu0 0
      %1779 = vmatmul.mubr.bf16.gmra.mxu0 %v1656
      %v1780 = vpop.f32.mrf.mxu0
      %v1781 = vadd.f32 0.0, %v1780
      %v1782 = vpop.f32.mrf.mxu0
      %v1783 = vpop.f32.mrf.mxu0
      %v1784 = vadd.f32 0.0, %v1783
      %v1785 = vpop.f32.mrf.mxu0
      %1786 = vmatprep.mubr.bf16.mxu0 0
      %1787 = vmatmul.mubr.bf16.gmra.mxu0 %v1665
      %v1788 = vpop.f32.mrf.mxu0
      %v1789 = vadd.f32 0.0, %v1788
      %v1790 = vpop.f32.mrf.mxu0
      %v1791 = vpop.f32.mrf.mxu0
      %v1792 = vadd.f32 0.0, %v1791
      %v1793 = vpop.f32.mrf.mxu0
      %1794 = vmatprep.mubr.bf16.mxu0 0
      %1795 = vmatmul.mubr.bf16.gmra.mxu0 %v1674
      %v1796 = vpop.f32.mrf.mxu0
      %v1797 = vadd.f32 0.0, %v1796
      %v1798 = vpop.f32.mrf.mxu0
      %v1799 = vpop.f32.mrf.mxu0
      %v1800 = vadd.f32 0.0, %v1799
      %v1801 = vpop.f32.mrf.mxu0
      %1802 = vmatprep.mubr.bf16.mxu0 0
      %1803 = vmatmul.mubr.bf16.gmra.mxu0 %v1683
      %v1804 = vpop.f32.mrf.mxu0
      %v1805 = vadd.f32 0.0, %v1804
      %v1806 = vpop.f32.mrf.mxu0
      %v1807 = vpop.f32.mrf.mxu0
      %v1808 = vadd.f32 0.0, %v1807
      %v1809 = vpop.f32.mrf.mxu0
      %1810 = vmatprep.mubr.bf16.mxu0 0
      %1811 = vmatmul.mubr.bf16.gmra.mxu0 %v1692
      %v1812 = vpop.f32.mrf.mxu0
      %v1813 = vadd.f32 0.0, %v1812
      %v1814 = vpop.f32.mrf.mxu0
      %v1815 = vpop.f32.mrf.mxu0
      %v1816 = vadd.f32 0.0, %v1815
      %v1817 = vpop.f32.mrf.mxu0
      %1818 = vdwg.mxu0
      %v1819 = vadd.f32 %v1608, %v1781
      %v1820 = vadd.f32 %v1609, %v1784
      %v1821 = vadd.f32 %v1610, %v1789
      %v1822 = vadd.f32 %v1611, %v1792
      %v1823 = vadd.f32 %v1612, %v1797
      %v1824 = vadd.f32 %v1613, %v1800
      %v1825 = vadd.f32 %v1614, %v1805
      %v1826 = vadd.f32 %v1615, %v1808
      %v1827 = vadd.f32 %v1616, %v1813
      %v1828 = vadd.f32 %v1617, %v1816
      %v1829 = vld [vmem:[%s207 + $0x8] sm:$0x8]
      %s1830 = scalar_lea.vmem %s1, 512
      %v1831 = vld [vmem:[%s1830] sm:$0xf]
      %v1832 = vld [vmem:[%s1830 + $0x4] sm:$0xf]
      %v1833 = vld [vmem:[%s1830 + $0x8] sm:$0xf]
      %v1834 = vld [vmem:[%s1830 + $0xc] sm:$0xf]
      %v1835 = vld [vmem:[%s1830 + $0x10] sm:$0xf]
      %v1836 = vld [vmem:[%s1830 + $0x14] sm:$0xf]
      %v1837 = vld [vmem:[%s1830 + $0x18] sm:$0xf]
      %v1838 = vld [vmem:[%s1830 + $0x1c] sm:$0xf]
      %v1839 = vld [vmem:[%s1830 + $0x20] sm:$0xf]
      %v1840 = vld [vmem:[%s1830 + $0x24] sm:$0xf]
      %v1841 = vld [vmem:[%s1830 + $0x28] sm:$0xf]
      %v1842 = vld [vmem:[%s1830 + $0x2c] sm:$0xf]
      %v1843 = vld [vmem:[%s1830 + $0x30] sm:$0xf]
      %v1844 = vld [vmem:[%s1830 + $0x34] sm:$0xf]
      %v1845 = vld [vmem:[%s1830 + $0x38] sm:$0xf]
      %v1846 = vld [vmem:[%s1830 + $0x3c] sm:$0xf]
      %v1848 = vunpack.c.l.b16 %v1829
      %v1849 = vpack.c.b16 %v1455, %v1848
      %vm1850 = vcmask 1044480
      %v1851 = vrot.slane %v1849, 3
      %v1852 = vrot.slane %v1466, 3
      %v1853 = vsel %vm1850, %v1851, %v1852
      %v1854 = vrot.slane %v1467, 3
      %v1855 = vsel %vm1850, %v1852, %v1854
      %v1856 = vrot.slane %v1468, 3
      %v1857 = vsel %vm1850, %v1854, %v1856
      %v1858 = vrot.slane %v1469, 3
      %v1859 = vsel %vm1850, %v1856, %v1858
      %v1860 = vrot.slane %v1638, 3
      %v1861 = vsel %vm1850, %v1858, %v1860
      %v1883 = vunpack.c.l.b16 %v1831
      %v1884 = vunpack.c.l.b16 %v1832
      %v1885 = vunpack.c.l.b16 %v1833
      %v1886 = vunpack.c.l.b16 %v1834
      %v1887 = vunpack.c.l.b16 %v1835
      %v1888 = vunpack.c.l.b16 %v1836
      %v1889 = vunpack.c.l.b16 %v1837
      %v1890 = vunpack.c.l.b16 %v1838
      %v1891 = vunpack.c.l.b16 %v1839
      %v1892 = vunpack.c.l.b16 %v1840
      %v1893 = vunpack.c.l.b16 %v1841
      %v1894 = vunpack.c.l.b16 %v1842
      %v1895 = vunpack.c.l.b16 %v1843
      %v1896 = vunpack.c.l.b16 %v1844
      %v1897 = vunpack.c.l.b16 %v1845
      %v1898 = vunpack.c.l.b16 %v1846
      %v1899 = vpack.c.b16 %v1884, %v1883
      %v1900 = vpack.c.b16 %v1886, %v1885
      %v1901 = vpack.c.b16 %v1888, %v1887
      %v1902 = vpack.c.b16 %v1890, %v1889
      %v1903 = vpack.c.b16 %v1892, %v1891
      %v1904 = vpack.c.b16 %v1894, %v1893
      %v1905 = vpack.c.b16 %v1896, %v1895
      %v1906 = vpack.c.b16 %v1898, %v1897
      %1915 = vmatprep.subr.bf16.mxu0 0
      %1916 = vmatpush1.bf16.msra.mxu0 %v1906
      %1917 = vmatprep.subr.bf16.mxu0 0
      %1918 = vmatpush1.bf16.msra.mxu0 %v1905
      %1919 = vmatprep.subr.bf16.mxu0 0
      %1920 = vmatpush1.bf16.msra.mxu0 %v1904
      %1921 = vmatprep.subr.bf16.mxu0 0
      %1922 = vmatpush1.bf16.msra.mxu0 %v1903
      %1923 = vmatprep.subr.bf16.mxu0 0
      %1924 = vmatpush1.bf16.msra.mxu0 %v1902
      %1925 = vmatprep.subr.bf16.mxu0 0
      %1926 = vmatpush1.bf16.msra.mxu0 %v1901
      %1927 = vmatprep.subr.bf16.mxu0 0
      %1928 = vmatpush1.bf16.msra.mxu0 %v1900
      %1929 = vmatprep.subr.bf16.mxu0 0
      %1930 = vmatpush1.bf16.msra.mxu0 %v1899
      %1931 = vmatprep.subr.bf16.mxu0 0
      %1932 = vmatpush2.bf16.msra.mxu0 0
      %1933 = vmatprep.subr.bf16.mxu0 0
      %1934 = vmatpush2.bf16.msra.mxu0 0
      %1935 = vmatprep.subr.bf16.mxu0 0
      %1936 = vmatpush2.bf16.msra.mxu0 0
      %1937 = vmatprep.subr.bf16.mxu0 0
      %1938 = vmatpush2.bf16.msra.mxu0 0
      %1939 = vmatprep.subr.bf16.mxu0 0
      %1940 = vmatpush2.bf16.msra.mxu0 0
      %1941 = vmatprep.subr.bf16.mxu0 0
      %1942 = vmatpush2.bf16.msra.mxu0 0
      %1943 = vmatprep.subr.bf16.mxu0 0
      %1944 = vmatpush2.bf16.msra.mxu0 0
      %1945 = vmatprep.subr.bf16.mxu0 0
      %1946 = vmatpush2.bf16.msra.mxu0 0
      %1947 = vmatprep.mubr.bf16.mxu0 0
      %1948 = vmatmul.mubr.bf16.gmra.mxu0 %v1853
      %v1949 = vpop.f32.mrf.mxu0
      %v1950 = vadd.f32 0.0, %v1949
      %v1951 = vpop.f32.mrf.mxu0
      %v1952 = vpop.f32.mrf.mxu0
      %v1953 = vadd.f32 0.0, %v1952
      %v1954 = vpop.f32.mrf.mxu0
      %1955 = vmatprep.mubr.bf16.mxu0 0
      %1956 = vmatmul.mubr.bf16.gmra.mxu0 %v1855
      %v1957 = vpop.f32.mrf.mxu0
      %v1958 = vadd.f32 0.0, %v1957
      %v1959 = vpop.f32.mrf.mxu0
      %v1960 = vpop.f32.mrf.mxu0
      %v1961 = vadd.f32 0.0, %v1960
      %v1962 = vpop.f32.mrf.mxu0
      %1963 = vmatprep.mubr.bf16.mxu0 0
      %1964 = vmatmul.mubr.bf16.gmra.mxu0 %v1857
      %v1965 = vpop.f32.mrf.mxu0
      %v1966 = vadd.f32 0.0, %v1965
      %v1967 = vpop.f32.mrf.mxu0
      %v1968 = vpop.f32.mrf.mxu0
      %v1969 = vadd.f32 0.0, %v1968
      %v1970 = vpop.f32.mrf.mxu0
      %1971 = vmatprep.mubr.bf16.mxu0 0
      %1972 = vmatmul.mubr.bf16.gmra.mxu0 %v1859
      %v1973 = vpop.f32.mrf.mxu0
      %v1974 = vadd.f32 0.0, %v1973
      %v1975 = vpop.f32.mrf.mxu0
      %v1976 = vpop.f32.mrf.mxu0
      %v1977 = vadd.f32 0.0, %v1976
      %v1978 = vpop.f32.mrf.mxu0
      %1979 = vmatprep.mubr.bf16.mxu0 0
      %1980 = vmatmul.mubr.bf16.gmra.mxu0 %v1861
      %v1981 = vpop.f32.mrf.mxu0
      %v1982 = vadd.f32 0.0, %v1981
      %v1983 = vpop.f32.mrf.mxu0
      %v1984 = vpop.f32.mrf.mxu0
      %v1985 = vadd.f32 0.0, %v1984
      %v1986 = vpop.f32.mrf.mxu0
      %1987 = vdwg.mxu0
      %v1988 = vadd.f32 %v1819, %v1950
      %v1989 = vadd.f32 %v1820, %v1953
      %v1990 = vadd.f32 %v1821, %v1958
      %v1991 = vadd.f32 %v1822, %v1961
      %v1992 = vadd.f32 %v1823, %v1966
      %v1993 = vadd.f32 %v1824, %v1969
      %v1994 = vadd.f32 %v1825, %v1974
      %v1995 = vadd.f32 %v1826, %v1977
      %v1996 = vadd.f32 %v1827, %v1982
      %v1997 = vadd.f32 %v1828, %v1985
      %v1998 = vld [vmem:[%s2] sm:$0x1]
      %v2000 = vlaneseq
      %v2001 = vshrl.u32 %v2000, 7
      %v2002 = vsub.s32 0, %v2001
      %v2003 = vrot.slane %v1998, %v2002
      %v2005 = vadd.f32 %v1988, %v2003
      %v2006 = vadd.f32 %v1989, %v2003
      %v2007 = vadd.f32 %v1990, %v2003
      %v2008 = vadd.f32 %v1991, %v2003
      %v2009 = vadd.f32 %v1992, %v2003
      %v2010 = vadd.f32 %v1993, %v2003
      %v2011 = vadd.f32 %v1994, %v2003
      %v2012 = vadd.f32 %v1995, %v2003
      %v2013 = vadd.f32 %v1996, %v2003
      %v2014 = vadd.f32 %v1997, %v2003
      %v2015 = vmax.f32 %v2005, 0.0
      %v2016 = vmax.f32 %v2006, 0.0
      %v2017 = vmax.f32 %v2007, 0.0
      %v2018 = vmax.f32 %v2008, 0.0
      %v2019 = vmax.f32 %v2009, 0.0
      %v2020 = vmax.f32 %v2010, 0.0
      %v2021 = vmax.f32 %v2011, 0.0
      %v2022 = vmax.f32 %v2012, 0.0
      %v2023 = vmax.f32 %v2013, 0.0
      %v2024 = vmax.f32 %v2014, 0.0
      %v2025 = vpack.c.bf16 %v2016, %v2015
      %v2026 = vpack.c.bf16 %v2018, %v2017
      %v2027 = vpack.c.bf16 %v2020, %v2019
      %v2028 = vpack.c.bf16 %v2022, %v2021
      %v2029 = vpack.c.bf16 %v2024, %v2023
      %v2035 = vunpack.c.l.b16 %v2025
      %v2036 = vunpack.c.h.b16 %v2025
      %v2037 = vunpack.c.l.b16 %v2026
      %v2038 = vunpack.c.h.b16 %v2026
      %v2039 = vunpack.c.l.b16 %v2027
      %v2040 = vunpack.c.h.b16 %v2027
      %v2041 = vunpack.c.l.b16 %v2028
      %v2042 = vunpack.c.h.b16 %v2028
      %v2043 = vunpack.c.l.b16 %v2029
      %v2044 = vunpack.c.h.b16 %v2029
      %v2045 = vpack.c.b16 %v2035, %v2035
      %v2046 = vpack.c.b16 %v2036, %v2036
      %v2047 = vpack.c.b16 %v2037, %v2037
      %v2048 = vpack.c.b16 %v2038, %v2038
      %v2049 = vpack.c.b16 %v2039, %v2039
      %v2050 = vpack.c.b16 %v2040, %v2040
      %v2051 = vpack.c.b16 %v2041, %v2041
      %v2052 = vpack.c.b16 %v2042, %v2042
      %v2053 = vpack.c.b16 %v2043, %v2043
      %v2054 = vpack.c.b16 %v2044, %v2044
      %2065 = vst [vmem:[%s217] sm:$0xf] %v2045
      %2066 = vst [vmem:[%s217 + $0x4] sm:$0xf] %v2046
      %2067 = vst [vmem:[%s217 + $0x8] sm:$0xf] %v2047
      %2068 = vst [vmem:[%s217 + $0xc] sm:$0xf] %v2048
      %2069 = vst [vmem:[%s217 + $0x10] sm:$0xf] %v2049
      %2070 = vst [vmem:[%s217 + $0x14] sm:$0xf] %v2050
      %2071 = vst [vmem:[%s217 + $0x18] sm:$0xf] %v2051
      %2072 = vst [vmem:[%s217 + $0x1c] sm:$0xf] %v2052
      %2073 = vst [vmem:[%s217 + $0x20] sm:$0xf] %v2053
      %2074 = vst [vmem:[%s217 + $0x24] sm:$0xf] %v2054
      %p2075 = scmp.lt.s32.totalorder %s15, 1
      %s2076 = scalar_select %p2075, %s15, 1
      %s2077 = smul.addr %s2076, 10
      %s2078 = smul.addr %s2077, 4
      %s2079 = scalar_lea.vmem %s4, %s2078
      // Predicated region
      $region37: #{_lambda_.10} parent=35 // pred_check
        %p2080 = pneg %p127
      $region38: #{_lambda_.10} parent=35 // pred_check_branch
        %2082 = sbr.rel (%p2080) target = $region40
      $region39: #{_lambda_.10} parent=35 // pred_region
        _
      $region40: #{_lambda_.10} parent=35 // pred_fallthru
        _
    $region36: #{_lambda_.10} parent=5 // pred_fallthru
      _
    %p2083 = scmp.le.s32.totalorder 2, %s10
    // Predicated region
    $region41: #{_lambda_.10} parent=5 // pred_check
      %p2084 = pneg %p2083
    $region42: #{_lambda_.10} parent=5 // pred_check_branch
      %2086 = sbr.rel (%p2084) target = $region44
    $region43: #{_lambda_.10} parent=5 // pred_region
      %s2087 = ssub.s32 %s10, 2
      // Predicated region
      $region45: #{_lambda_.10} parent=43 // pred_check
        %p2088 = pneg %p133
      $region46: #{_lambda_.10} parent=43 // pred_check_branch
        %2090 = sbr.rel (%p2088) target = $region48
      $region47: #{_lambda_.10} parent=43 // pred_region
        %p2091 = scmp.lt.s32.totalorder %s16, 1
        %s2092 = scalar_select %p2091, %s16, 1
        %s2093 = smul.addr %s2092, 10
        %s2094 = smul.addr %s2093, 4
        %s2095 = scalar_lea.vmem %s4, %s2094
      $region48: #{_lambda_.10} parent=43 // pred_fallthru
        _
    $region44: #{_lambda_.10} parent=5 // pred_fallthru
      _
  $region6: #{_lambda_.10} parent=0 // loop_footer
    %s14 = sadd.s32 1, %s10
  $region7: #{_lambda_.10} parent=0 // loop_footer_branch
    %9 = sbr.rel target = $region3
  $region8: #{_lambda_.10} parent=0 // loop_exit
    _

// kernel: _lambda_.13
$region0: #{_lambda_.13}
  #allocation0 [shape = 'u32[]', space=smem, size = 0x4, offset = 0x4, fixed_abs, tag = 'smem constant byte address 0x4 - core index']
  #allocation1 [shape = 'u32[144,128]{1,0:T(1,128)}', space=vmem, size = 0x12000, scoped, tag = 'internal scratch']
  %s0 = inlined_call_operand.vmem [shape: bf16[2,16,128], index: 0, kind: input, shape index: {}]
  %s1 = inlined_call_operand.vmem [shape: f32[128,128], index: 1, kind: input, shape index: {}]
  %s2 = inlined_call_operand.vmem [shape: f32[1,128], index: 2, kind: input, shape index: {}]
  %s3 = inlined_call_operand.hbm [shape: f32[2,128], index: 3, kind: output, shape index: {}]
  %s4 = sld [smem:[#allocation0]]
  $region22: #{_lambda_.13} parent=0
    _
  %s6 = ssub.s32 1, %s4
  %s7 = scalar_select 0, %s6, %s4
  $region1: #{_lambda_.13} parent=0
    #allocation2 [shape = 'u8[1024]{0}', space=vmem, size = 0x400, scoped, tag = 'output window, operand 0, single buffered']
    #allocation3 [shape = 's32[1]{0}', space=sflag, size = 0x4, scoped, tag = 'scoped memory for _lambda_.13']
    %8 = vsyncpa [#allocation3], 0
    // Predicated region
    $region2: #{_lambda_.13} parent=1 // pred_check
      _
    $region3: #{_lambda_.13} parent=1 // pred_check_branch
      %10 = sbr.rel (0) target = $region5
    $region4: #{_lambda_.13} parent=1 // pred_region
      _
    $region5: #{_lambda_.13} parent=1 // pred_fallthru
      _
    // Predicated region
    $region6: #{_lambda_.13} parent=1 // pred_check
      _
    $region7: #{_lambda_.13} parent=1 // pred_check_branch
      %12 = sbr.rel (0) target = $region9
    $region8: #{_lambda_.13} parent=1 // pred_region
      _
    $region9: #{_lambda_.13} parent=1 // pred_fallthru
      _
    // Predicated region
    $region10: #{_lambda_.13} parent=1 // pred_check
      _
    $region11: #{_lambda_.13} parent=1 // pred_check_branch
      %14 = sbr.rel (0) target = $region13
    $region12: #{_lambda_.13} parent=1 // pred_region
      _
    $region13: #{_lambda_.13} parent=1 // pred_fallthru
      _
    %v15 = vld [vmem:[%s0] sm:$0xf]
    %v16 = vld [vmem:[%s0 + $0x4] sm:$0xf]
    %v17 = vld [vmem:[%s0 + $0x8] sm:$0xf]
    %v18 = vld [vmem:[%s0 + $0xc] sm:$0xf]
    %v19 = vunpack.c.l.bf16 %v15
    %v20 = vunpack.c.l.bf16 %v16
    %v21 = vunpack.c.l.bf16 %v17
    %v22 = vunpack.c.l.bf16 %v18
    %v23 = vadd.f32 %v19, %v20
    %v24 = vrot.slane %v23, 4
    %v25 = vadd.f32 %v23, %v24
    %v26 = vrot.slane %v25, 2
    %v27 = vadd.f32 %v25, %v26
    %v28 = vrot.slane %v27, 1
    %v29 = vadd.f32 %v27, %v28
    %v30 = vadd.f32 %v21, %v22
    %v31 = vrot.slane %v30, 4
    %v32 = vadd.f32 %v30, %v31
    %v33 = vrot.slane %v32, 2
    %v34 = vadd.f32 %v32, %v33
    %v35 = vrot.slane %v34, 1
    %v36 = vadd.f32 %v34, %v35
    %v37 = vrcp.pop 16.0
    %v38 = vmul.f32 %v29, %v37
    %v39 = vmul.f32 %v36, %v37
    %v40 = vld [vmem:[%s1] sm:$0xff]
    %v41 = vld [vmem:[%s1 + $0x8] sm:$0xff]
    %v42 = vld [vmem:[%s1 + $0x10] sm:$0xff]
    %v43 = vld [vmem:[%s1 + $0x18] sm:$0xff]
    %v44 = vld [vmem:[%s1 + $0x20] sm:$0xff]
    %v45 = vld [vmem:[%s1 + $0x28] sm:$0xff]
    %v46 = vld [vmem:[%s1 + $0x30] sm:$0xff]
    %v47 = vld [vmem:[%s1 + $0x38] sm:$0xff]
    %v48 = vld [vmem:[%s1 + $0x40] sm:$0xff]
    %v49 = vld [vmem:[%s1 + $0x48] sm:$0xff]
    %v50 = vld [vmem:[%s1 + $0x50] sm:$0xff]
    %v51 = vld [vmem:[%s1 + $0x58] sm:$0xff]
    %v52 = vld [vmem:[%s1 + $0x60] sm:$0xff]
    %v53 = vld [vmem:[%s1 + $0x68] sm:$0xff]
    %v54 = vld [vmem:[%s1 + $0x70] sm:$0xff]
    %v55 = vld [vmem:[%s1 + $0x78] sm:$0xff]
    %v56 = vld [vmem:[%s2] sm:$0x1]
    %v58 = vlaneseq
    %v59 = vshrl.u32 %v58, 7
    %v60 = vsub.s32 0, %v59
    %v61 = vrot.slane %v56, %v60
    %vm65 = vcmask 1041409
    %v66 = vsel %vm65, %v39, %v38
    %68 = vmatprep.subr.mxu0 0.0
    %69 = vmatpush1.msra.mxu0 %v55
    %70 = vmatprep.subr.mxu0 0.0
    %71 = vmatpush1.msra.mxu0 %v54
    %72 = vmatprep.subr.mxu0 0.0
    %73 = vmatpush1.msra.mxu0 %v53
    %74 = vmatprep.subr.mxu0 0.0
    %75 = vmatpush1.msra.mxu0 %v52
    %76 = vmatprep.subr.mxu0 0.0
    %77 = vmatpush1.msra.mxu0 %v51
    %78 = vmatprep.subr.mxu0 0.0
    %79 = vmatpush1.msra.mxu0 %v50
    %80 = vmatprep.subr.mxu0 0.0
    %81 = vmatpush1.msra.mxu0 %v49
    %82 = vmatprep.subr.mxu0 0.0
    %83 = vmatpush1.msra.mxu0 %v48
    %84 = vmatprep.subr.mxu0 0.0
    %85 = vmatpush1.msra.mxu0 %v47
    %86 = vmatprep.subr.mxu0 0.0
    %87 = vmatpush1.msra.mxu0 %v46
    %88 = vmatprep.subr.mxu0 0.0
    %89 = vmatpush1.msra.mxu0 %v45
    %90 = vmatprep.subr.mxu0 0.0
    %91 = vmatpush1.msra.mxu0 %v44
    %92 = vmatprep.subr.mxu0 0.0
    %93 = vmatpush1.msra.mxu0 %v43
    %94 = vmatprep.subr.mxu0 0.0
    %95 = vmatpush1.msra.mxu0 %v42
    %96 = vmatprep.subr.mxu0 0.0
    %97 = vmatpush1.msra.mxu0 %v41
    %98 = vmatprep.subr.mxu0 0.0
    %99 = vmatpush1.msra.mxu0 %v40
    %100 = vmatprep.subr.mxu0 0.0
    %101 = vmatpush2.msra.mxu0 0.0
    %102 = vmatprep.subr.mxu0 0.0
    %103 = vmatpush2.msra.mxu0 0.0
    %104 = vmatprep.subr.mxu0 0.0
    %105 = vmatpush2.msra.mxu0 0.0
    %106 = vmatprep.subr.mxu0 0.0
    %107 = vmatpush2.msra.mxu0 0.0
    %108 = vmatprep.subr.mxu0 0.0
    %109 = vmatpush2.msra.mxu0 0.0
    %110 = vmatprep.subr.mxu0 0.0
    %111 = vmatpush2.msra.mxu0 0.0
    %112 = vmatprep.subr.mxu0 0.0
    %113 = vmatpush2.msra.mxu0 0.0
    %114 = vmatprep.subr.mxu0 0.0
    %115 = vmatpush2.msra.mxu0 0.0
    %116 = vmatprep.subr.mxu0 0.0
    %117 = vmatpush2.msra.mxu0 0.0
    %118 = vmatprep.subr.mxu0 0.0
    %119 = vmatpush2.msra.mxu0 0.0
    %120 = vmatprep.subr.mxu0 0.0
    %121 = vmatpush2.msra.mxu0 0.0
    %122 = vmatprep.subr.mxu0 0.0
    %123 = vmatpush2.msra.mxu0 0.0
    %124 = vmatprep.subr.mxu0 0.0
    %125 = vmatpush2.msra.mxu0 0.0
    %126 = vmatprep.subr.mxu0 0.0
    %127 = vmatpush2.msra.mxu0 0.0
    %128 = vmatprep.subr.mxu0 0.0
    %129 = vmatpush2.msra.mxu0 0.0
    %130 = vmatprep.subr.mxu0 0.0
    %131 = vmatpush2.msra.mxu0 0.0
    %132 = vmatprep.mubr.f32.mxu0 0.0
    %133 = vmatmul.mubr.f32.gmra.mxu0 %v66
    %v134 = vpop.f32.mrf.mxu0
    %v135 = vadd.f32 %v61, %v134
    %v136 = vpop.f32.mrf.mxu0
    %137 = vdwg.mxu0
    %138 = vst [vmem:[#allocation2] sm:$0x3] %v135
    // Predicated region
    $region14: #{_lambda_.13} parent=1 // pred_check
      _
    $region15: #{_lambda_.13} parent=1 // pred_check_branch
      %140 = sbr.rel (0) target = $region17
    $region16: #{_lambda_.13} parent=1 // pred_region
      %s142 = ssub.s32 32, 32
      %143 = vsyncadd [#allocation3], %s142
      %s145 = sshll.u32 [#allocation2], 4
      %s146 = int_to_ptr.vmem [resolvable:$true] %s145
      %148 = dma.vmem_to_hbm [thread:$0]  %s146, 32, %s3, [#allocation3]
    $region17: #{_lambda_.13} parent=1 // pred_fallthru
      _
    // Predicated region
    $region18: #{_lambda_.13} parent=1 // pred_check
      _
    $region19: #{_lambda_.13} parent=1 // pred_check_branch
      %150 = sbr.rel (0) target = $region21
    $region20: #{_lambda_.13} parent=1 // pred_region
      %151 = dma.done [#allocation3], 32
    $region21: #{_lambda_.13} parent=1 // pred_fallthru
      _
    %152 = vsyncpa [#allocation3], 1

// kernel: _lambda_.12
$region0: #{_lambda_.12}
  #allocation0 [shape = 'u32[]', space=smem, size = 0x4, offset = 0x4, fixed_abs, tag = 'smem constant byte address 0x4 - core index']
  #allocation1 [shape = 'u32[144,128]{1,0:T(1,128)}', space=vmem, size = 0x12000, scoped, tag = 'internal scratch']
  %s0 = inlined_call_operand.vmem [shape: bf16[1,2,42,128], index: 0, kind: input, shape index: {}]
  %s1 = inlined_call_operand.vmem [shape: bf16[9,128,128], index: 1, kind: input, shape index: {}]
  %s2 = inlined_call_operand.vmem [shape: f32[1,128], index: 2, kind: input, shape index: {}, may-alias: {2,5}]
  %s3 = inlined_call_operand.vmem [shape: bf16[2,24,128], index: 3, kind: input, shape index: {}]
  %s4 = inlined_call_operand.vmem [shape: bf16[128,128], index: 4, kind: input, shape index: {}]
  %s5 = inlined_call_operand.vmem [shape: f32[1,128], index: 5, kind: input, shape index: {}, may-alias: {2,5}]
  %s6 = inlined_call_operand.vmem [shape: bf16[2,24,128], index: 6, kind: output, shape index: {}]
  %s7 = sld [smem:[#allocation0]]
  $region57: #{_lambda_.12} parent=0
    _
  %s9 = ssub.s32 1, %s7
  %s10 = scalar_select 0, %s9, %s7
  loop: start=0, step=1, limit=4
  $region2: #{_lambda_.12} parent=0 // loop_pre_header
    _
  $region3: #{_lambda_.12} parent=0 // loop_header
    %s12 = sphi 0, %s16
    %p13 = scmp.ge.s32.totalorder %s12, 4
    %s22 = sphi 0, %s24
    %s25 = sphi 0, %s22
    %s26 = sphi 0, %s25
    %s42 = sphi 0, %s26
    %s46 = sphi 0, %s46
    %s48 = sphi 0, %s46
    %s49 = sphi 0, %s48
    %s63 = sphi 0, %s49
    %s67 = sphi 0, %s67
    %s69 = sphi 0, %s67
    %s70 = sphi 0, %s69
    %s84 = sphi 0, %s70
    %s90 = sphi 0, %s92
    %s93 = sphi 0, %s90
    %s94 = sphi 0, %s93
    %s110 = sphi 0, %s94
    %s114 = sphi 0, %s114
    %s116 = sphi 0, %s114
    %s117 = sphi 0, %s116
    %s131 = sphi 0, %s117
    %s135 = sphi 0, %s135
    %s137 = sphi 0, %s135
    %s138 = sphi 0, %s137
    %s152 = sphi 0, %s138
    %s158 = sphi 0, %s160
    %s161 = sphi 0, %s158
    %s162 = sphi 0, %s161
    %s178 = sphi 0, %s162
  $region4: #{_lambda_.12} parent=0 // loop_header_branch
    %15 = sbr.rel (%p13) target = $region8
  $region5: #{_lambda_.12} parent=0 // loop_body
    %s17 = ssub.s32 %s12, 1
    %s18 = ssub.s32 %s12, 2
    %s19 = sadd.s32 %s12, 1
    %s20 = ssub.s32 %s12, %s19
    %p21 = scmp.eq.s32.totalorder %s20, 0
    %s23 = sadd.s32 %s22, 1
    %s24 = scalar_select %p21, %s22, %s23
    %p27 = pneg %p21
    %p28 = scmp.eq.s32.totalorder %s12, 1
    %p29 = por %p27, %p28
    %p30 = scmp.ne.s32.totalorder %s22, %s25
    %p31 = scmp.eq.s32.totalorder %s12, 0
    %p32 = por %p30, %p31
    %p33 = scmp.ne.s32.totalorder %s22, %s25
    %p34 = scmp.eq.s32.totalorder %s17, 1
    %p35 = por %p33, %p34
    %p36 = scmp.ne.s32.totalorder %s25, %s26
    %p37 = scmp.eq.s32.totalorder %s17, 0
    %p38 = por %p36, %p37
    %p39 = scmp.ne.s32.totalorder %s25, %s26
    %p40 = scmp.eq.s32.totalorder %s18, 1
    %p41 = por %p39, %p40
    %p43 = scmp.ne.s32.totalorder %s26, %s42
    %p44 = scmp.eq.s32.totalorder %s18, 0
    %p45 = por %p43, %p44
    %s47 = sadd.s32 %s46, 1
    %p50 = scmp.eq.s32.totalorder %s12, 1
    %p51 = scmp.ne.s32.totalorder %s46, %s48
    %p52 = scmp.eq.s32.totalorder %s12, 0
    %p53 = por %p51, %p52
    %p54 = scmp.ne.s32.totalorder %s46, %s48
    %p55 = scmp.eq.s32.totalorder %s17, 1
    %p56 = por %p54, %p55
    %p57 = scmp.ne.s32.totalorder %s48, %s49
    %p58 = scmp.eq.s32.totalorder %s17, 0
    %p59 = por %p57, %p58
    %p60 = scmp.ne.s32.totalorder %s48, %s49
    %p61 = scmp.eq.s32.totalorder %s18, 1
    %p62 = por %p60, %p61
    %p64 = scmp.ne.s32.totalorder %s49, %s63
    %p65 = scmp.eq.s32.totalorder %s18, 0
    %p66 = por %p64, %p65
    %s68 = sadd.s32 %s67, 1
    %p71 = scmp.eq.s32.totalorder %s12, 1
    %p72 = scmp.ne.s32.totalorder %s67, %s69
    %p73 = scmp.eq.s32.totalorder %s12, 0
    %p74 = por %p72, %p73
    %p75 = scmp.ne.s32.totalorder %s67, %s69
    %p76 = scmp.eq.s32.totalorder %s17, 1
    %p77 = por %p75, %p76
    %p78 = scmp.ne.s32.totalorder %s69, %s70
    %p79 = scmp.eq.s32.totalorder %s17, 0
    %p80 = por %p78, %p79
    %p81 = scmp.ne.s32.totalorder %s69, %s70
    %p82 = scmp.eq.s32.totalorder %s18, 1
    %p83 = por %p81, %p82
    %p85 = scmp.ne.s32.totalorder %s70, %s84
    %p86 = scmp.eq.s32.totalorder %s18, 0
    %p87 = por %p85, %p86
    %s88 = ssub.s32 %s12, %s19
    %p89 = scmp.eq.s32.totalorder %s88, 0
    %s91 = sadd.s32 %s90, 1
    %s92 = scalar_select %p89, %s90, %s91
    %p95 = pneg %p89
    %p96 = scmp.eq.s32.totalorder %s12, 1
    %p97 = por %p95, %p96
    %p98 = scmp.ne.s32.totalorder %s90, %s93
    %p99 = scmp.eq.s32.totalorder %s12, 0
    %p100 = por %p98, %p99
    %p101 = scmp.ne.s32.totalorder %s90, %s93
    %p102 = scmp.eq.s32.totalorder %s17, 1
    %p103 = por %p101, %p102
    %p104 = scmp.ne.s32.totalorder %s93, %s94
    %p105 = scmp.eq.s32.totalorder %s17, 0
    %p106 = por %p104, %p105
    %p107 = scmp.ne.s32.totalorder %s93, %s94
    %p108 = scmp.eq.s32.totalorder %s18, 1
    %p109 = por %p107, %p108
    %p111 = scmp.ne.s32.totalorder %s94, %s110
    %p112 = scmp.eq.s32.totalorder %s18, 0
    %p113 = por %p111, %p112
    %s115 = sadd.s32 %s114, 1
    %p118 = scmp.eq.s32.totalorder %s12, 1
    %p119 = scmp.ne.s32.totalorder %s114, %s116
    %p120 = scmp.eq.s32.totalorder %s12, 0
    %p121 = por %p119, %p120
    %p122 = scmp.ne.s32.totalorder %s114, %s116
    %p123 = scmp.eq.s32.totalorder %s17, 1
    %p124 = por %p122, %p123
    %p125 = scmp.ne.s32.totalorder %s116, %s117
    %p126 = scmp.eq.s32.totalorder %s17, 0
    %p127 = por %p125, %p126
    %p128 = scmp.ne.s32.totalorder %s116, %s117
    %p129 = scmp.eq.s32.totalorder %s18, 1
    %p130 = por %p128, %p129
    %p132 = scmp.ne.s32.totalorder %s117, %s131
    %p133 = scmp.eq.s32.totalorder %s18, 0
    %p134 = por %p132, %p133
    %s136 = sadd.s32 %s135, 1
    %p139 = scmp.eq.s32.totalorder %s12, 1
    %p140 = scmp.ne.s32.totalorder %s135, %s137
    %p141 = scmp.eq.s32.totalorder %s12, 0
    %p142 = por %p140, %p141
    %p143 = scmp.ne.s32.totalorder %s135, %s137
    %p144 = scmp.eq.s32.totalorder %s17, 1
    %p145 = por %p143, %p144
    %p146 = scmp.ne.s32.totalorder %s137, %s138
    %p147 = scmp.eq.s32.totalorder %s17, 0
    %p148 = por %p146, %p147
    %p149 = scmp.ne.s32.totalorder %s137, %s138
    %p150 = scmp.eq.s32.totalorder %s18, 1
    %p151 = por %p149, %p150
    %p153 = scmp.ne.s32.totalorder %s138, %s152
    %p154 = scmp.eq.s32.totalorder %s18, 0
    %p155 = por %p153, %p154
    %s156 = ssub.s32 %s12, %s19
    %p157 = scmp.eq.s32.totalorder %s156, 0
    %s159 = sadd.s32 %s158, 1
    %s160 = scalar_select %p157, %s158, %s159
    %p163 = pneg %p157
    %p164 = scmp.eq.s32.totalorder %s12, 1
    %p165 = por %p163, %p164
    %p166 = scmp.ne.s32.totalorder %s158, %s161
    %p167 = scmp.eq.s32.totalorder %s12, 0
    %p168 = por %p166, %p167
    %p169 = scmp.ne.s32.totalorder %s158, %s161
    %p170 = scmp.eq.s32.totalorder %s17, 1
    %p171 = por %p169, %p170
    %p172 = scmp.ne.s32.totalorder %s161, %s162
    %p173 = scmp.eq.s32.totalorder %s17, 0
    %p174 = por %p172, %p173
    %p175 = scmp.ne.s32.totalorder %s161, %s162
    %p176 = scmp.eq.s32.totalorder %s18, 1
    %p177 = por %p175, %p176
    %p179 = scmp.ne.s32.totalorder %s162, %s178
    %p180 = scmp.eq.s32.totalorder %s18, 0
    %p181 = por %p179, %p180
    %p182 = scmp.le.s32.totalorder 1, %s12
    %p183 = scmp.lt.s32.totalorder %s12, 3
    %p184 = pnand %p182, %p183
    %p185 = pneg %p184
    // Predicated region
    $region9: #{_lambda_.12} parent=5 // pred_check
      _
    $region10: #{_lambda_.12} parent=5 // pred_check_branch
      %187 = sbr.rel (%p184) target = $region12
    $region11: #{_lambda_.12} parent=5 // pred_region
      %s188 = ssub.s32 %s12, 1
      // Predicated region
      $region13: #{_lambda_.12} parent=11 // pred_check
        %p189 = pneg %p59
      $region14: #{_lambda_.12} parent=11 // pred_check_branch
        %191 = sbr.rel (%p189) target = $region16
      $region15: #{_lambda_.12} parent=11 // pred_region
        _
      $region16: #{_lambda_.12} parent=11 // pred_fallthru
        _
      // Predicated region
      $region17: #{_lambda_.12} parent=11 // pred_check
        %p192 = pneg %p80
      $region18: #{_lambda_.12} parent=11 // pred_check_branch
        %194 = sbr.rel (%p192) target = $region20
      $region19: #{_lambda_.12} parent=11 // pred_region
        _
      $region20: #{_lambda_.12} parent=11 // pred_fallthru
        _
      // Predicated region
      $region21: #{_lambda_.12} parent=11 // pred_check
        %p195 = pneg %p127
      $region22: #{_lambda_.12} parent=11 // pred_check_branch
        %197 = sbr.rel (%p195) target = $region24
      $region23: #{_lambda_.12} parent=11 // pred_region
        _
      $region24: #{_lambda_.12} parent=11 // pred_fallthru
        _
      // Predicated region
      $region25: #{_lambda_.12} parent=11 // pred_check
        %p198 = pneg %p148
      $region26: #{_lambda_.12} parent=11 // pred_check_branch
        %200 = sbr.rel (%p198) target = $region28
      $region27: #{_lambda_.12} parent=11 // pred_region
        _
      $region28: #{_lambda_.12} parent=11 // pred_fallthru
        _
    $region12: #{_lambda_.12} parent=5 // pred_fallthru
      _
    %p201 = scmp.lt.s32.totalorder %s12, 2
    // Predicated region
    $region29: #{_lambda_.12} parent=5 // pred_check
      %p202 = pneg %p201
    $region30: #{_lambda_.12} parent=5 // pred_check_branch
      %204 = sbr.rel (%p202) target = $region32
    $region31: #{_lambda_.12} parent=5 // pred_region
      // Predicated region
      $region33: #{_lambda_.12} parent=31 // pred_check
        %p205 = pneg %p32
      $region34: #{_lambda_.12} parent=31 // pred_check_branch
        %207 = sbr.rel (%p205) target = $region36
      $region35: #{_lambda_.12} parent=31 // pred_region
        %p208 = scmp.lt.s32.totalorder %s12, 1
        %s209 = scalar_select %p208, %s12, 1
        %s210 = smul.addr %s209, 6
        %s211 = smul.addr %s210, 4
        %s212 = scalar_lea.vmem %s0, %s211
      $region36: #{_lambda_.12} parent=31 // pred_fallthru
        _
      // Predicated region
      $region37: #{_lambda_.12} parent=31 // pred_check
        %p213 = pneg %p100
      $region38: #{_lambda_.12} parent=31 // pred_check_branch
        %215 = sbr.rel (%p213) target = $region40
      $region39: #{_lambda_.12} parent=31 // pred_region
        %p216 = scmp.lt.s32.totalorder %s12, 1
        %s217 = scalar_select %p216, %s12, 1
        %s218 = smul.addr %s217, 3
        %s219 = smul.addr %s218, 4
        %s220 = scalar_lea.vmem %s3, %s219
      $region40: #{_lambda_.12} parent=31 // pred_fallthru
        _
    $region32: #{_lambda_.12} parent=5 // pred_fallthru
      _
    %p221 = scmp.le.s32.totalorder 1, %s12
    %p222 = scmp.lt.s32.totalorder %s12, 3
    %p223 = pnand %p221, %p222
    %p224 = pneg %p223
    // Predicated region
    $region41: #{_lambda_.12} parent=5 // pred_check
      _
    $region42: #{_lambda_.12} parent=5 // pred_check_branch
      %226 = sbr.rel (%p223) target = $region44
    $region43: #{_lambda_.12} parent=5 // pred_region
      %s227 = ssub.s32 %s12, 1
      %p228 = scmp.lt.s32.totalorder %s17, 1
      %s229 = scalar_select %p228, %s17, 1
      %s230 = smul.addr %s229, 6
      %s231 = smul.addr %s230, 4
      %s232 = scalar_lea.vmem %s0, %s231
      %p233 = pneg %p38
      %p234 = pneg %p35
      %p235 = pneg %p59
      %p236 = pneg %p56
      %p237 = pneg %p80
      %p238 = pneg %p77
      %p239 = scmp.lt.s32.totalorder %s17, 1
      %s240 = scalar_select %p239, %s17, 1
      %s241 = smul.addr %s240, 3
      %s242 = smul.addr %s241, 4
      %s243 = scalar_lea.vmem %s3, %s242
      %p244 = pneg %p106
      %p245 = pneg %p103
      %p246 = pneg %p127
      %p247 = pneg %p124
      %p248 = pneg %p148
      %p249 = pneg %p145
      %p250 = pneg %p174
      %p251 = pneg %p171
      %p252 = scmp.lt.s32.totalorder %s17, 1
      %s253 = scalar_select %p252, %s17, 1
      %s254 = smul.addr %s253, 3
      %s255 = smul.addr %s254, 4
      %s256 = scalar_lea.vmem %s6, %s255
      %p257 = scmp.lt.s32.totalorder %s17, 1
      %s258 = scalar_select %p257, %s17, 1
      %s259 = smul.addr %s258, 6
      %s260 = smul.addr %s259, 4
      %s261 = scalar_lea.vmem %s0, %s260
      %p262 = scmp.lt.s32.totalorder %s17, 1
      %s263 = scalar_select %p262, %s17, 1
      %s264 = smul.addr %s263, 3
      %s265 = smul.addr %s264, 4
      %s266 = scalar_lea.vmem %s3, %s265
      %p267 = scmp.lt.s32.totalorder %s17, 1
      %s268 = scalar_select %p267, %s17, 1
      %s269 = smul.addr %s268, 3
      %s270 = smul.addr %s269, 4
      %s271 = scalar_lea.vmem %s6, %s270
      %v273 = vld [vmem:[%s266] sm:$0xf]
      %v274 = vld [vmem:[%s266 + $0x4] sm:$0xf]
      %v275 = vld [vmem:[%s266 + $0x8] sm:$0xf]
      %v276 = vld [vmem:[%s4] sm:$0xf]
      %v277 = vld [vmem:[%s4 + $0x4] sm:$0xf]
      %v278 = vld [vmem:[%s4 + $0x8] sm:$0xf]
      %v279 = vld [vmem:[%s4 + $0xc] sm:$0xf]
      %v280 = vld [vmem:[%s4 + $0x10] sm:$0xf]
      %v281 = vld [vmem:[%s4 + $0x14] sm:$0xf]
      %v282 = vld [vmem:[%s4 + $0x18] sm:$0xf]
      %v283 = vld [vmem:[%s4 + $0x1c] sm:$0xf]
      %v284 = vld [vmem:[%s4 + $0x20] sm:$0xf]
      %v285 = vld [vmem:[%s4 + $0x24] sm:$0xf]
      %v286 = vld [vmem:[%s4 + $0x28] sm:$0xf]
      %v287 = vld [vmem:[%s4 + $0x2c] sm:$0xf]
      %v288 = vld [vmem:[%s4 + $0x30] sm:$0xf]
      %v289 = vld [vmem:[%s4 + $0x34] sm:$0xf]
      %v290 = vld [vmem:[%s4 + $0x38] sm:$0xf]
      %v291 = vld [vmem:[%s4 + $0x3c] sm:$0xf]
      %v292 = vld [vmem:[%s5] sm:$0x1]
      %v294 = vlaneseq
      %v295 = vshrl.u32 %v294, 7
      %v296 = vsub.s32 0, %v295
      %v297 = vrot.slane %v292, %v296
      %v302 = vunpack.c.l.b16 %v273
      %v303 = vunpack.c.l.b16 %v274
      %v304 = vunpack.c.l.b16 %v275
      %v305 = vpack.c.b16 %v303, %v302
      %v306 = vpack.c.b16 %v304, %v304
      %v325 = vunpack.c.l.b16 %v276
      %v326 = vunpack.c.l.b16 %v277
      %v327 = vunpack.c.l.b16 %v278
      %v328 = vunpack.c.l.b16 %v279
      %v329 = vunpack.c.l.b16 %v280
      %v330 = vunpack.c.l.b16 %v281
      %v331 = vunpack.c.l.b16 %v282
      %v332 = vunpack.c.l.b16 %v283
      %v333 = vunpack.c.l.b16 %v284
      %v334 = vunpack.c.l.b16 %v285
      %v335 = vunpack.c.l.b16 %v286
      %v336 = vunpack.c.l.b16 %v287
      %v337 = vunpack.c.l.b16 %v288
      %v338 = vunpack.c.l.b16 %v289
      %v339 = vunpack.c.l.b16 %v290
      %v340 = vunpack.c.l.b16 %v291
      %v341 = vpack.c.b16 %v326, %v325
      %v342 = vpack.c.b16 %v328, %v327
      %v343 = vpack.c.b16 %v330, %v329
      %v344 = vpack.c.b16 %v332, %v331
      %v345 = vpack.c.b16 %v334, %v333
      %v346 = vpack.c.b16 %v336, %v335
      %v347 = vpack.c.b16 %v338, %v337
      %v348 = vpack.c.b16 %v340, %v339
      %357 = vmatprep.subr.bf16.mxu0 0
      %358 = vmatpush1.bf16.msra.mxu0 %v348
      %359 = vmatprep.subr.bf16.mxu0 0
      %360 = vmatpush1.bf16.msra.mxu0 %v347
      %361 = vmatprep.subr.bf16.mxu0 0
      %362 = vmatpush1.bf16.msra.mxu0 %v346
      %363 = vmatprep.subr.bf16.mxu0 0
      %364 = vmatpush1.bf16.msra.mxu0 %v345
      %365 = vmatprep.subr.bf16.mxu0 0
      %366 = vmatpush1.bf16.msra.mxu0 %v344
      %367 = vmatprep.subr.bf16.mxu0 0
      %368 = vmatpush1.bf16.msra.mxu0 %v343
      %369 = vmatprep.subr.bf16.mxu0 0
      %370 = vmatpush1.bf16.msra.mxu0 %v342
      %371 = vmatprep.subr.bf16.mxu0 0
      %372 = vmatpush1.bf16.msra.mxu0 %v341
      %373 = vmatprep.subr.bf16.mxu0 0
      %374 = vmatpush2.bf16.msra.mxu0 0
      %375 = vmatprep.subr.bf16.mxu0 0
      %376 = vmatpush2.bf16.msra.mxu0 0
      %377 = vmatprep.subr.bf16.mxu0 0
      %378 = vmatpush2.bf16.msra.mxu0 0
      %379 = vmatprep.subr.bf16.mxu0 0
      %380 = vmatpush2.bf16.msra.mxu0 0
      %381 = vmatprep.subr.bf16.mxu0 0
      %382 = vmatpush2.bf16.msra.mxu0 0
      %383 = vmatprep.subr.bf16.mxu0 0
      %384 = vmatpush2.bf16.msra.mxu0 0
      %385 = vmatprep.subr.bf16.mxu0 0
      %386 = vmatpush2.bf16.msra.mxu0 0
      %387 = vmatprep.subr.bf16.mxu0 0
      %388 = vmatpush2.bf16.msra.mxu0 0
      %389 = vmatprep.mubr.bf16.mxu0 0
      %390 = vmatmul.mubr.bf16.gmra.mxu0 %v305
      %v391 = vpop.f32.mrf.mxu0
      %v392 = vadd.f32 %v297, %v391
      %v393 = vpop.f32.mrf.mxu0
      %v394 = vpop.f32.mrf.mxu0
      %v395 = vadd.f32 %v297, %v394
      %v396 = vpop.f32.mrf.mxu0
      %397 = vmatprep.mubr.bf16.mxu0 0
      %398 = vmatmul.mubr.bf16.gmra.mxu0 %v306
      %v399 = vpop.f32.mrf.mxu0
      %v400 = vadd.f32 %v297, %v399
      %v401 = vpop.f32.mrf.mxu0
      %v402 = vpop.f32.mrf.mxu0
      %v403 = vpop.f32.mrf.mxu0
      %404 = vdwg.mxu0
      %v405 = vld [vmem:[%s261] sm:$0xf]
      %v406 = vld [vmem:[%s261 + $0x4] sm:$0xf]
      %v407 = vld [vmem:[%s261 + $0x8] sm:$0xf]
      %v408 = vld [vmem:[%s1] sm:$0xf]
      %v409 = vld [vmem:[%s1 + $0x4] sm:$0xf]
      %v410 = vld [vmem:[%s1 + $0x8] sm:$0xf]
      %v411 = vld [vmem:[%s1 + $0xc] sm:$0xf]
      %v412 = vld [vmem:[%s1 + $0x10] sm:$0xf]
      %v413 = vld [vmem:[%s1 + $0x14] sm:$0xf]
      %v414 = vld [vmem:[%s1 + $0x18] sm:$0xf]
      %v415 = vld [vmem:[%s1 + $0x1c] sm:$0xf]
      %v416 = vld [vmem:[%s1 + $0x20] sm:$0xf]
      %v417 = vld [vmem:[%s1 + $0x24] sm:$0xf]
      %v418 = vld [vmem:[%s1 + $0x28] sm:$0xf]
      %v419 = vld [vmem:[%s1 + $0x2c] sm:$0xf]
      %v420 = vld [vmem:[%s1 + $0x30] sm:$0xf]
      %v421 = vld [vmem:[%s1 + $0x34] sm:$0xf]
      %v422 = vld [vmem:[%s1 + $0x38] sm:$0xf]
      %v423 = vld [vmem:[%s1 + $0x3c] sm:$0xf]
      %v427 = vunpack.c.l.b16 %v405
      %v428 = vunpack.c.l.b16 %v406
      %v429 = vunpack.c.l.b16 %v407
      %v430 = vpack.c.b16 %v428, %v427
      %v431 = vpack.c.b16 %v429, %v429
      %v450 = vunpack.c.l.b16 %v408
      %v451 = vunpack.c.l.b16 %v409
      %v452 = vunpack.c.l.b16 %v410
      %v453 = vunpack.c.l.b16 %v411
      %v454 = vunpack.c.l.b16 %v412
      %v455 = vunpack.c.l.b16 %v413
      %v456 = vunpack.c.l.b16 %v414
      %v457 = vunpack.c.l.b16 %v415
      %v458 = vunpack.c.l.b16 %v416
      %v459 = vunpack.c.l.b16 %v417
      %v460 = vunpack.c.l.b16 %v418
      %v461 = vunpack.c.l.b16 %v419
      %v462 = vunpack.c.l.b16 %v420
      %v463 = vunpack.c.l.b16 %v421
      %v464 = vunpack.c.l.b16 %v422
      %v465 = vunpack.c.l.b16 %v423
      %v466 = vpack.c.b16 %v451, %v450
      %v467 = vpack.c.b16 %v453, %v452
      %v468 = vpack.c.b16 %v455, %v454
      %v469 = vpack.c.b16 %v457, %v456
      %v470 = vpack.c.b16 %v459, %v458
      %v471 = vpack.c.b16 %v461, %v460
      %v472 = vpack.c.b16 %v463, %v462
      %v473 = vpack.c.b16 %v465, %v464
      %482 = vmatprep.subr.bf16.mxu0 0
      %483 = vmatpush1.bf16.msra.mxu0 %v473
      %484 = vmatprep.subr.bf16.mxu0 0
      %485 = vmatpush1.bf16.msra.mxu0 %v472
      %486 = vmatprep.subr.bf16.mxu0 0
      %487 = vmatpush1.bf16.msra.mxu0 %v471
      %488 = vmatprep.subr.bf16.mxu0 0
      %489 = vmatpush1.bf16.msra.mxu0 %v470
      %490 = vmatprep.subr.bf16.mxu0 0
      %491 = vmatpush1.bf16.msra.mxu0 %v469
      %492 = vmatprep.subr.bf16.mxu0 0
      %493 = vmatpush1.bf16.msra.mxu0 %v468
      %494 = vmatprep.subr.bf16.mxu0 0
      %495 = vmatpush1.bf16.msra.mxu0 %v467
      %496 = vmatprep.subr.bf16.mxu0 0
      %497 = vmatpush1.bf16.msra.mxu0 %v466
      %498 = vmatprep.subr.bf16.mxu0 0
      %499 = vmatpush2.bf16.msra.mxu0 0
      %500 = vmatprep.subr.bf16.mxu0 0
      %501 = vmatpush2.bf16.msra.mxu0 0
      %502 = vmatprep.subr.bf16.mxu0 0
      %503 = vmatpush2.bf16.msra.mxu0 0
      %504 = vmatprep.subr.bf16.mxu0 0
      %505 = vmatpush2.bf16.msra.mxu0 0
      %506 = vmatprep.subr.bf16.mxu0 0
      %507 = vmatpush2.bf16.msra.mxu0 0
      %508 = vmatprep.subr.bf16.mxu0 0
      %509 = vmatpush2.bf16.msra.mxu0 0
      %510 = vmatprep.subr.bf16.mxu0 0
      %511 = vmatpush2.bf16.msra.mxu0 0
      %512 = vmatprep.subr.bf16.mxu0 0
      %513 = vmatpush2.bf16.msra.mxu0 0
      %514 = vmatprep.mubr.bf16.mxu0 0
      %515 = vmatmul.mubr.bf16.gmra.mxu0 %v430
      %v516 = vpop.f32.mrf.mxu0
      %v517 = vadd.f32 0.0, %v516
      %v518 = vpop.f32.mrf.mxu0
      %v519 = vpop.f32.mrf.mxu0
      %v520 = vadd.f32 0.0, %v519
      %v521 = vpop.f32.mrf.mxu0
      %522 = vmatprep.mubr.bf16.mxu0 0
      %523 = vmatmul.mubr.bf16.gmra.mxu0 %v431
      %v524 = vpop.f32.mrf.mxu0
      %v525 = vadd.f32 0.0, %v524
      %v526 = vpop.f32.mrf.mxu0
      %v527 = vpop.f32.mrf.mxu0
      %v528 = vpop.f32.mrf.mxu0
      %529 = vdwg.mxu0
      %v530 = vadd.f32 %v392, %v517
      %v531 = vadd.f32 %v395, %v520
      %v532 = vadd.f32 %v400, %v525
      %v533 = vld [vmem:[%s261] sm:$0xf]
      %v534 = vld [vmem:[%s261 + $0x4] sm:$0xf]
      %v535 = vld [vmem:[%s261 + $0x8] sm:$0xf]
      %v536 = vld [vmem:[%s261 + $0xc] sm:$0x1]
      %s537 = scalar_lea.vmem %s1, 64
      %v538 = vld [vmem:[%s537] sm:$0xf]
      %v539 = vld [vmem:[%s537 + $0x4] sm:$0xf]
      %v540 = vld [vmem:[%s537 + $0x8] sm:$0xf]
      %v541 = vld [vmem:[%s537 + $0xc] sm:$0xf]
      %v542 = vld [vmem:[%s537 + $0x10] sm:$0xf]
      %v543 = vld [vmem:[%s537 + $0x14] sm:$0xf]
      %v544 = vld [vmem:[%s537 + $0x18] sm:$0xf]
      %v545 = vld [vmem:[%s537 + $0x1c] sm:$0xf]
      %v546 = vld [vmem:[%s537 + $0x20] sm:$0xf]
      %v547 = vld [vmem:[%s537 + $0x24] sm:$0xf]
      %v548 = vld [vmem:[%s537 + $0x28] sm:$0xf]
      %v549 = vld [vmem:[%s537 + $0x2c] sm:$0xf]
      %v550 = vld [vmem:[%s537 + $0x30] sm:$0xf]
      %v551 = vld [vmem:[%s537 + $0x34] sm:$0xf]
      %v552 = vld [vmem:[%s537 + $0x38] sm:$0xf]
      %v553 = vld [vmem:[%s537 + $0x3c] sm:$0xf]
      %v558 = vunpack.c.l.b16 %v533
      %v559 = vunpack.c.l.b16 %v534
      %v560 = vunpack.c.l.b16 %v535
      %v561 = vunpack.c.l.b16 %v536
      %v562 = vpack.c.b16 %v559, %v558
      %v563 = vpack.c.b16 %v561, %v560
      %vm564 = vsmask.f32 7424
      %v566 = vshrl.u32 %v562, 16
      %v568 = vshll.u32 %v562, 16
      %v570 = vrot.slane %v568, 1
      %v571 = vor.u32 %v566, %v570
      %v573 = vshll.u32 %v563, 16
      %v575 = vrot.slane %v573, 1
      %v576 = vsel %vm564, %v571, %v575
      %v577 = vshrl.u32 %v563, 16
      %v579 = vor.u32 %v577, %v575
      %v598 = vunpack.c.l.b16 %v538
      %v599 = vunpack.c.l.b16 %v539
      %v600 = vunpack.c.l.b16 %v540
      %v601 = vunpack.c.l.b16 %v541
      %v602 = vunpack.c.l.b16 %v542
      %v603 = vunpack.c.l.b16 %v543
      %v604 = vunpack.c.l.b16 %v544
      %v605 = vunpack.c.l.b16 %v545
      %v606 = vunpack.c.l.b16 %v546
      %v607 = vunpack.c.l.b16 %v547
      %v608 = vunpack.c.l.b16 %v548
      %v609 = vunpack.c.l.b16 %v549
      %v610 = vunpack.c.l.b16 %v550
      %v611 = vunpack.c.l.b16 %v551
      %v612 = vunpack.c.l.b16 %v552
      %v613 = vunpack.c.l.b16 %v553
      %v614 = vpack.c.b16 %v599, %v598
      %v615 = vpack.c.b16 %v601, %v600
      %v616 = vpack.c.b16 %v603, %v602
      %v617 = vpack.c.b16 %v605, %v604
      %v618 = vpack.c.b16 %v607, %v606
      %v619 = vpack.c.b16 %v609, %v608
      %v620 = vpack.c.b16 %v611, %v610
      %v621 = vpack.c.b16 %v613, %v612
      %630 = vmatprep.subr.bf16.mxu0 0
      %631 = vmatpush1.bf16.msra.mxu0 %v621
      %632 = vmatprep.subr.bf16.mxu0 0
      %633 = vmatpush1.bf16.msra.mxu0 %v620
      %634 = vmatprep.subr.bf16.mxu0 0
      %635 = vmatpush1.bf16.msra.mxu0 %v619
      %636 = vmatprep.subr.bf16.mxu0 0
      %637 = vmatpush1.bf16.msra.mxu0 %v618
      %638 = vmatprep.subr.bf16.mxu0 0
      %639 = vmatpush1.bf16.msra.mxu0 %v617
      %640 = vmatprep.subr.bf16.mxu0 0
      %641 = vmatpush1.bf16.msra.mxu0 %v616
      %642 = vmatprep.subr.bf16.mxu0 0
      %643 = vmatpush1.bf16.msra.mxu0 %v615
      %644 = vmatprep.subr.bf16.mxu0 0
      %645 = vmatpush1.bf16.msra.mxu0 %v614
      %646 = vmatprep.subr.bf16.mxu0 0
      %647 = vmatpush2.bf16.msra.mxu0 0
      %648 = vmatprep.subr.bf16.mxu0 0
      %649 = vmatpush2.bf16.msra.mxu0 0
      %650 = vmatprep.subr.bf16.mxu0 0
      %651 = vmatpush2.bf16.msra.mxu0 0
      %652 = vmatprep.subr.bf16.mxu0 0
      %653 = vmatpush2.bf16.msra.mxu0 0
      %654 = vmatprep.subr.bf16.mxu0 0
      %655 = vmatpush2.bf16.msra.mxu0 0
      %656 = vmatprep.subr.bf16.mxu0 0
      %657 = vmatpush2.bf16.msra.mxu0 0
      %658 = vmatprep.subr.bf16.mxu0 0
      %659 = vmatpush2.bf16.msra.mxu0 0
      %660 = vmatprep.subr.bf16.mxu0 0
      %661 = vmatpush2.bf16.msra.mxu0 0
      %662 = vmatprep.mubr.bf16.mxu0 0
      %663 = vmatmul.mubr.bf16.gmra.mxu0 %v576
      %v664 = vpop.f32.mrf.mxu0
      %v665 = vadd.f32 0.0, %v664
      %v666 = vpop.f32.mrf.mxu0
      %v667 = vpop.f32.mrf.mxu0
      %v668 = vadd.f32 0.0, %v667
      %v669 = vpop.f32.mrf.mxu0
      %670 = vmatprep.mubr.bf16.mxu0 0
      %671 = vmatmul.mubr.bf16.gmra.mxu0 %v579
      %v672 = vpop.f32.mrf.mxu0
      %v673 = vadd.f32 0.0, %v672
      %v674 = vpop.f32.mrf.mxu0
      %v675 = vpop.f32.mrf.mxu0
      %v676 = vpop.f32.mrf.mxu0
      %677 = vdwg.mxu0
      %v678 = vadd.f32 %v530, %v665
      %v679 = vadd.f32 %v531, %v668
      %v680 = vadd.f32 %v532, %v673
      %v681 = vld [vmem:[%s261] sm:$0xe]
      %s682 = scalar_lea.vmem %s1, 128
      %v683 = vld [vmem:[%s682] sm:$0xf]
      %v684 = vld [vmem:[%s682 + $0x4] sm:$0xf]
      %v685 = vld [vmem:[%s682 + $0x8] sm:$0xf]
      %v686 = vld [vmem:[%s682 + $0xc] sm:$0xf]
      %v687 = vld [vmem:[%s682 + $0x10] sm:$0xf]
      %v688 = vld [vmem:[%s682 + $0x14] sm:$0xf]
      %v689 = vld [vmem:[%s682 + $0x18] sm:$0xf]
      %v690 = vld [vmem:[%s682 + $0x1c] sm:$0xf]
      %v691 = vld [vmem:[%s682 + $0x20] sm:$0xf]
      %v692 = vld [vmem:[%s682 + $0x24] sm:$0xf]
      %v693 = vld [vmem:[%s682 + $0x28] sm:$0xf]
      %v694 = vld [vmem:[%s682 + $0x2c] sm:$0xf]
      %v695 = vld [vmem:[%s682 + $0x30] sm:$0xf]
      %v696 = vld [vmem:[%s682 + $0x34] sm:$0xf]
      %v697 = vld [vmem:[%s682 + $0x38] sm:$0xf]
      %v698 = vld [vmem:[%s682 + $0x3c] sm:$0xf]
      %v700 = vunpack.c.l.b16 %v681
      %v701 = vpack.c.b16 %v559, %v700
      %vm702 = vcmask 1046528
      %v703 = vrot.slane %v701, 1
      %v704 = vrot.slane %v563, 1
      %v705 = vsel %vm702, %v703, %v704
      %v724 = vunpack.c.l.b16 %v683
      %v725 = vunpack.c.l.b16 %v684
      %v726 = vunpack.c.l.b16 %v685
      %v727 = vunpack.c.l.b16 %v686
      %v728 = vunpack.c.l.b16 %v687
      %v729 = vunpack.c.l.b16 %v688
      %v730 = vunpack.c.l.b16 %v689
      %v731 = vunpack.c.l.b16 %v690
      %v732 = vunpack.c.l.b16 %v691
      %v733 = vunpack.c.l.b16 %v692
      %v734 = vunpack.c.l.b16 %v693
      %v735 = vunpack.c.l.b16 %v694
      %v736 = vunpack.c.l.b16 %v695
      %v737 = vunpack.c.l.b16 %v696
      %v738 = vunpack.c.l.b16 %v697
      %v739 = vunpack.c.l.b16 %v698
      %v740 = vpack.c.b16 %v725, %v724
      %v741 = vpack.c.b16 %v727, %v726
      %v742 = vpack.c.b16 %v729, %v728
      %v743 = vpack.c.b16 %v731, %v730
      %v744 = vpack.c.b16 %v733, %v732
      %v745 = vpack.c.b16 %v735, %v734
      %v746 = vpack.c.b16 %v737, %v736
      %v747 = vpack.c.b16 %v739, %v738
      %756 = vmatprep.subr.bf16.mxu0 0
      %757 = vmatpush1.bf16.msra.mxu0 %v747
      %758 = vmatprep.subr.bf16.mxu0 0
      %759 = vmatpush1.bf16.msra.mxu0 %v746
      %760 = vmatprep.subr.bf16.mxu0 0
      %761 = vmatpush1.bf16.msra.mxu0 %v745
      %762 = vmatprep.subr.bf16.mxu0 0
      %763 = vmatpush1.bf16.msra.mxu0 %v744
      %764 = vmatprep.subr.bf16.mxu0 0
      %765 = vmatpush1.bf16.msra.mxu0 %v743
      %766 = vmatprep.subr.bf16.mxu0 0
      %767 = vmatpush1.bf16.msra.mxu0 %v742
      %768 = vmatprep.subr.bf16.mxu0 0
      %769 = vmatpush1.bf16.msra.mxu0 %v741
      %770 = vmatprep.subr.bf16.mxu0 0
      %771 = vmatpush1.bf16.msra.mxu0 %v740
      %772 = vmatprep.subr.bf16.mxu0 0
      %773 = vmatpush2.bf16.msra.mxu0 0
      %774 = vmatprep.subr.bf16.mxu0 0
      %775 = vmatpush2.bf16.msra.mxu0 0
      %776 = vmatprep.subr.bf16.mxu0 0
      %777 = vmatpush2.bf16.msra.mxu0 0
      %778 = vmatprep.subr.bf16.mxu0 0
      %779 = vmatpush2.bf16.msra.mxu0 0
      %780 = vmatprep.subr.bf16.mxu0 0
      %781 = vmatpush2.bf16.msra.mxu0 0
      %782 = vmatprep.subr.bf16.mxu0 0
      %783 = vmatpush2.bf16.msra.mxu0 0
      %784 = vmatprep.subr.bf16.mxu0 0
      %785 = vmatpush2.bf16.msra.mxu0 0
      %786 = vmatprep.subr.bf16.mxu0 0
      %787 = vmatpush2.bf16.msra.mxu0 0
      %788 = vmatprep.mubr.bf16.mxu0 0
      %789 = vmatmul.mubr.bf16.gmra.mxu0 %v705
      %v790 = vpop.f32.mrf.mxu0
      %v791 = vadd.f32 0.0, %v790
      %v792 = vpop.f32.mrf.mxu0
      %v793 = vpop.f32.mrf.mxu0
      %v794 = vadd.f32 0.0, %v793
      %v795 = vpop.f32.mrf.mxu0
      %796 = vmatprep.mubr.bf16.mxu0 0
      %797 = vmatmul.mubr.bf16.gmra.mxu0 %v704
      %v798 = vpop.f32.mrf.mxu0
      %v799 = vadd.f32 0.0, %v798
      %v800 = vpop.f32.mrf.mxu0
      %v801 = vpop.f32.mrf.mxu0
      %v802 = vpop.f32.mrf.mxu0
      %803 = vdwg.mxu0
      %v804 = vadd.f32 %v678, %v791
      %v805 = vadd.f32 %v679, %v794
      %v806 = vadd.f32 %v680, %v799
      %v807 = vld [vmem:[%s261] sm:$0x8]
      %v808 = vld [vmem:[%s261 + $0xc] sm:$0x7]
      %s809 = scalar_lea.vmem %s1, 192
      %v810 = vld [vmem:[%s809] sm:$0xf]
      %v811 = vld [vmem:[%s809 + $0x4] sm:$0xf]
      %v812 = vld [vmem:[%s809 + $0x8] sm:$0xf]
      %v813 = vld [vmem:[%s809 + $0xc] sm:$0xf]
      %v814 = vld [vmem:[%s809 + $0x10] sm:$0xf]
      %v815 = vld [vmem:[%s809 + $0x14] sm:$0xf]
      %v816 = vld [vmem:[%s809 + $0x18] sm:$0xf]
      %v817 = vld [vmem:[%s809 + $0x1c] sm:$0xf]
      %v818 = vld [vmem:[%s809 + $0x20] sm:$0xf]
      %v819 = vld [vmem:[%s809 + $0x24] sm:$0xf]
      %v820 = vld [vmem:[%s809 + $0x28] sm:$0xf]
      %v821 = vld [vmem:[%s809 + $0x2c] sm:$0xf]
      %v822 = vld [vmem:[%s809 + $0x30] sm:$0xf]
      %v823 = vld [vmem:[%s809 + $0x34] sm:$0xf]
      %v824 = vld [vmem:[%s809 + $0x38] sm:$0xf]
      %v825 = vld [vmem:[%s809 + $0x3c] sm:$0xf]
      %v828 = vunpack.c.l.b16 %v807
      %v829 = vunpack.c.l.b16 %v808
      %v830 = vpack.c.b16 %v559, %v828
      %v831 = vpack.c.b16 %v829, %v560
      %vm832 = vcmask 1044480
      %v833 = vrot.slane %v830, 3
      %v834 = vrot.slane %v831, 3
      %v835 = vsel %vm832, %v833, %v834
      %v854 = vunpack.c.l.b16 %v810
      %v855 = vunpack.c.l.b16 %v811
      %v856 = vunpack.c.l.b16 %v812
      %v857 = vunpack.c.l.b16 %v813
      %v858 = vunpack.c.l.b16 %v814
      %v859 = vunpack.c.l.b16 %v815
      %v860 = vunpack.c.l.b16 %v816
      %v861 = vunpack.c.l.b16 %v817
      %v862 = vunpack.c.l.b16 %v818
      %v863 = vunpack.c.l.b16 %v819
      %v864 = vunpack.c.l.b16 %v820
      %v865 = vunpack.c.l.b16 %v821
      %v866 = vunpack.c.l.b16 %v822
      %v867 = vunpack.c.l.b16 %v823
      %v868 = vunpack.c.l.b16 %v824
      %v869 = vunpack.c.l.b16 %v825
      %v870 = vpack.c.b16 %v855, %v854
      %v871 = vpack.c.b16 %v857, %v856
      %v872 = vpack.c.b16 %v859, %v858
      %v873 = vpack.c.b16 %v861, %v860
      %v874 = vpack.c.b16 %v863, %v862
      %v875 = vpack.c.b16 %v865, %v864
      %v876 = vpack.c.b16 %v867, %v866
      %v877 = vpack.c.b16 %v869, %v868
      %886 = vmatprep.subr.bf16.mxu0 0
      %887 = vmatpush1.bf16.msra.mxu0 %v877
      %888 = vmatprep.subr.bf16.mxu0 0
      %889 = vmatpush1.bf16.msra.mxu0 %v876
      %890 = vmatprep.subr.bf16.mxu0 0
      %891 = vmatpush1.bf16.msra.mxu0 %v875
      %892 = vmatprep.subr.bf16.mxu0 0
      %893 = vmatpush1.bf16.msra.mxu0 %v874
      %894 = vmatprep.subr.bf16.mxu0 0
      %895 = vmatpush1.bf16.msra.mxu0 %v873
      %896 = vmatprep.subr.bf16.mxu0 0
      %897 = vmatpush1.bf16.msra.mxu0 %v872
      %898 = vmatprep.subr.bf16.mxu0 0
      %899 = vmatpush1.bf16.msra.mxu0 %v871
      %900 = vmatprep.subr.bf16.mxu0 0
      %901 = vmatpush1.bf16.msra.mxu0 %v870
      %902 = vmatprep.subr.bf16.mxu0 0
      %903 = vmatpush2.bf16.msra.mxu0 0
      %904 = vmatprep.subr.bf16.mxu0 0
      %905 = vmatpush2.bf16.msra.mxu0 0
      %906 = vmatprep.subr.bf16.mxu0 0
      %907 = vmatpush2.bf16.msra.mxu0 0
      %908 = vmatprep.subr.bf16.mxu0 0
      %909 = vmatpush2.bf16.msra.mxu0 0
      %910 = vmatprep.subr.bf16.mxu0 0
      %911 = vmatpush2.bf16.msra.mxu0 0
      %912 = vmatprep.subr.bf16.mxu0 0
      %913 = vmatpush2.bf16.msra.mxu0 0
      %914 = vmatprep.subr.bf16.mxu0 0
      %915 = vmatpush2.bf16.msra.mxu0 0
      %916 = vmatprep.subr.bf16.mxu0 0
      %917 = vmatpush2.bf16.msra.mxu0 0
      %918 = vmatprep.mubr.bf16.mxu0 0
      %919 = vmatmul.mubr.bf16.gmra.mxu0 %v835
      %v920 = vpop.f32.mrf.mxu0
      %v921 = vadd.f32 0.0, %v920
      %v922 = vpop.f32.mrf.mxu0
      %v923 = vpop.f32.mrf.mxu0
      %v924 = vadd.f32 0.0, %v923
      %v925 = vpop.f32.mrf.mxu0
      %926 = vmatprep.mubr.bf16.mxu0 0
      %927 = vmatmul.mubr.bf16.gmra.mxu0 %v834
      %v928 = vpop.f32.mrf.mxu0
      %v929 = vadd.f32 0.0, %v928
      %v930 = vpop.f32.mrf.mxu0
      %v931 = vpop.f32.mrf.mxu0
      %v932 = vpop.f32.mrf.mxu0
      %933 = vdwg.mxu0
      %v934 = vadd.f32 %v804, %v921
      %v935 = vadd.f32 %v805, %v924
      %v936 = vadd.f32 %v806, %v929
      %v937 = vld [vmem:[%s261 + $0xc] sm:$0xf]
      %s938 = scalar_lea.vmem %s1, 256
      %v939 = vld [vmem:[%s938] sm:$0xf]
      %v940 = vld [vmem:[%s938 + $0x4] sm:$0xf]
      %v941 = vld [vmem:[%s938 + $0x8] sm:$0xf]
      %v942 = vld [vmem:[%s938 + $0xc] sm:$0xf]
      %v943 = vld [vmem:[%s938 + $0x10] sm:$0xf]
      %v944 = vld [vmem:[%s938 + $0x14] sm:$0xf]
      %v945 = vld [vmem:[%s938 + $0x18] sm:$0xf]
      %v946 = vld [vmem:[%s938 + $0x1c] sm:$0xf]
      %v947 = vld [vmem:[%s938 + $0x20] sm:$0xf]
      %v948 = vld [vmem:[%s938 + $0x24] sm:$0xf]
      %v949 = vld [vmem:[%s938 + $0x28] sm:$0xf]
      %v950 = vld [vmem:[%s938 + $0x2c] sm:$0xf]
      %v951 = vld [vmem:[%s938 + $0x30] sm:$0xf]
      %v952 = vld [vmem:[%s938 + $0x34] sm:$0xf]
      %v953 = vld [vmem:[%s938 + $0x38] sm:$0xf]
      %v954 = vld [vmem:[%s938 + $0x3c] sm:$0xf]
      %v956 = vunpack.c.l.b16 %v937
      %v957 = vpack.c.b16 %v956, %v560
      %vm958 = vsmask.f32 4352
      %v960 = vshrl.u32 %v830, 16
      %v962 = vrot.slane %v960, 3
      %v963 = vshll.u32 %v830, 16
      %v965 = vrot.slane %v963, 4
      %v966 = vor.u32 %v962, %v965
      %v968 = vshrl.u32 %v957, 16
      %v970 = vrot.slane %v968, 3
      %v971 = vshll.u32 %v957, 16
      %v973 = vrot.slane %v971, 4
      %v974 = vor.u32 %v970, %v973
      %v975 = vsel %vm958, %v966, %v974
      %v994 = vunpack.c.l.b16 %v939
      %v995 = vunpack.c.l.b16 %v940
      %v996 = vunpack.c.l.b16 %v941
      %v997 = vunpack.c.l.b16 %v942
      %v998 = vunpack.c.l.b16 %v943
      %v999 = vunpack.c.l.b16 %v944
      %v1000 = vunpack.c.l.b16 %v945
      %v1001 = vunpack.c.l.b16 %v946
      %v1002 = vunpack.c.l.b16 %v947
      %v1003 = vunpack.c.l.b16 %v948
      %v1004 = vunpack.c.l.b16 %v949
      %v1005 = vunpack.c.l.b16 %v950
      %v1006 = vunpack.c.l.b16 %v951
      %v1007 = vunpack.c.l.b16 %v952
      %v1008 = vunpack.c.l.b16 %v953
      %v1009 = vunpack.c.l.b16 %v954
      %v1010 = vpack.c.b16 %v995, %v994
      %v1011 = vpack.c.b16 %v997, %v996
      %v1012 = vpack.c.b16 %v999, %v998
      %v1013 = vpack.c.b16 %v1001, %v1000
      %v1014 = vpack.c.b16 %v1003, %v1002
      %v1015 = vpack.c.b16 %v1005, %v1004
      %v1016 = vpack.c.b16 %v1007, %v1006
      %v1017 = vpack.c.b16 %v1009, %v1008
      %1026 = vmatprep.subr.bf16.mxu0 0
      %1027 = vmatpush1.bf16.msra.mxu0 %v1017
      %1028 = vmatprep.subr.bf16.mxu0 0
      %1029 = vmatpush1.bf16.msra.mxu0 %v1016
      %1030 = vmatprep.subr.bf16.mxu0 0
      %1031 = vmatpush1.bf16.msra.mxu0 %v1015
      %1032 = vmatprep.subr.bf16.mxu0 0
      %1033 = vmatpush1.bf16.msra.mxu0 %v1014
      %1034 = vmatprep.subr.bf16.mxu0 0
      %1035 = vmatpush1.bf16.msra.mxu0 %v1013
      %1036 = vmatprep.subr.bf16.mxu0 0
      %1037 = vmatpush1.bf16.msra.mxu0 %v1012
      %1038 = vmatprep.subr.bf16.mxu0 0
      %1039 = vmatpush1.bf16.msra.mxu0 %v1011
      %1040 = vmatprep.subr.bf16.mxu0 0
      %1041 = vmatpush1.bf16.msra.mxu0 %v1010
      %1042 = vmatprep.subr.bf16.mxu0 0
      %1043 = vmatpush2.bf16.msra.mxu0 0
      %1044 = vmatprep.subr.bf16.mxu0 0
      %1045 = vmatpush2.bf16.msra.mxu0 0
      %1046 = vmatprep.subr.bf16.mxu0 0
      %1047 = vmatpush2.bf16.msra.mxu0 0
      %1048 = vmatprep.subr.bf16.mxu0 0
      %1049 = vmatpush2.bf16.msra.mxu0 0
      %1050 = vmatprep.subr.bf16.mxu0 0
      %1051 = vmatpush2.bf16.msra.mxu0 0
      %1052 = vmatprep.subr.bf16.mxu0 0
      %1053 = vmatpush2.bf16.msra.mxu0 0
      %1054 = vmatprep.subr.bf16.mxu0 0
      %1055 = vmatpush2.bf16.msra.mxu0 0
      %1056 = vmatprep.subr.bf16.mxu0 0
      %1057 = vmatpush2.bf16.msra.mxu0 0
      %1058 = vmatprep.mubr.bf16.mxu0 0
      %1059 = vmatmul.mubr.bf16.gmra.mxu0 %v975
      %v1060 = vpop.f32.mrf.mxu0
      %v1061 = vadd.f32 0.0, %v1060
      %v1062 = vpop.f32.mrf.mxu0
      %v1063 = vpop.f32.mrf.mxu0
      %v1064 = vadd.f32 0.0, %v1063
      %v1065 = vpop.f32.mrf.mxu0
      %1066 = vmatprep.mubr.bf16.mxu0 0
      %1067 = vmatmul.mubr.bf16.gmra.mxu0 %v974
      %v1068 = vpop.f32.mrf.mxu0
      %v1069 = vadd.f32 0.0, %v1068
      %v1070 = vpop.f32.mrf.mxu0
      %v1071 = vpop.f32.mrf.mxu0
      %v1072 = vpop.f32.mrf.mxu0
      %1073 = vdwg.mxu0
      %v1074 = vadd.f32 %v934, %v1061
      %v1075 = vadd.f32 %v935, %v1064
      %v1076 = vadd.f32 %v936, %v1069
      %s1077 = scalar_lea.vmem %s1, 320
      %v1078 = vld [vmem:[%s1077] sm:$0xf]
      %v1079 = vld [vmem:[%s1077 + $0x4] sm:$0xf]
      %v1080 = vld [vmem:[%s1077 + $0x8] sm:$0xf]
      %v1081 = vld [vmem:[%s1077 + $0xc] sm:$0xf]
      %v1082 = vld [vmem:[%s1077 + $0x10] sm:$0xf]
      %v1083 = vld [vmem:[%s1077 + $0x14] sm:$0xf]
      %v1084 = vld [vmem:[%s1077 + $0x18] sm:$0xf]
      %v1085 = vld [vmem:[%s1077 + $0x1c] sm:$0xf]
      %v1086 = vld [vmem:[%s1077 + $0x20] sm:$0xf]
      %v1087 = vld [vmem:[%s1077 + $0x24] sm:$0xf]
      %v1088 = vld [vmem:[%s1077 + $0x28] sm:$0xf]
      %v1089 = vld [vmem:[%s1077 + $0x2c] sm:$0xf]
      %v1090 = vld [vmem:[%s1077 + $0x30] sm:$0xf]
      %v1091 = vld [vmem:[%s1077 + $0x34] sm:$0xf]
      %v1092 = vld [vmem:[%s1077 + $0x38] sm:$0xf]
      %v1093 = vld [vmem:[%s1077 + $0x3c] sm:$0xf]
      %v1094 = vpack.c.b16 %v560, %v559
      %v1095 = vpack.c.b16 %v956, %v956
      %v1114 = vunpack.c.l.b16 %v1078
      %v1115 = vunpack.c.l.b16 %v1079
      %v1116 = vunpack.c.l.b16 %v1080
      %v1117 = vunpack.c.l.b16 %v1081
      %v1118 = vunpack.c.l.b16 %v1082
      %v1119 = vunpack.c.l.b16 %v1083
      %v1120 = vunpack.c.l.b16 %v1084
      %v1121 = vunpack.c.l.b16 %v1085
      %v1122 = vunpack.c.l.b16 %v1086
      %v1123 = vunpack.c.l.b16 %v1087
      %v1124 = vunpack.c.l.b16 %v1088
      %v1125 = vunpack.c.l.b16 %v1089
      %v1126 = vunpack.c.l.b16 %v1090
      %v1127 = vunpack.c.l.b16 %v1091
      %v1128 = vunpack.c.l.b16 %v1092
      %v1129 = vunpack.c.l.b16 %v1093
      %v1130 = vpack.c.b16 %v1115, %v1114
      %v1131 = vpack.c.b16 %v1117, %v1116
      %v1132 = vpack.c.b16 %v1119, %v1118
      %v1133 = vpack.c.b16 %v1121, %v1120
      %v1134 = vpack.c.b16 %v1123, %v1122
      %v1135 = vpack.c.b16 %v1125, %v1124
      %v1136 = vpack.c.b16 %v1127, %v1126
      %v1137 = vpack.c.b16 %v1129, %v1128
      %1146 = vmatprep.subr.bf16.mxu0 0
      %1147 = vmatpush1.bf16.msra.mxu0 %v1137
      %1148 = vmatprep.subr.bf16.mxu0 0
      %1149 = vmatpush1.bf16.msra.mxu0 %v1136
      %1150 = vmatprep.subr.bf16.mxu0 0
      %1151 = vmatpush1.bf16.msra.mxu0 %v1135
      %1152 = vmatprep.subr.bf16.mxu0 0
      %1153 = vmatpush1.bf16.msra.mxu0 %v1134
      %1154 = vmatprep.subr.bf16.mxu0 0
      %1155 = vmatpush1.bf16.msra.mxu0 %v1133
      %1156 = vmatprep.subr.bf16.mxu0 0
      %1157 = vmatpush1.bf16.msra.mxu0 %v1132
      %1158 = vmatprep.subr.bf16.mxu0 0
      %1159 = vmatpush1.bf16.msra.mxu0 %v1131
      %1160 = vmatprep.subr.bf16.mxu0 0
      %1161 = vmatpush1.bf16.msra.mxu0 %v1130
      %1162 = vmatprep.subr.bf16.mxu0 0
      %1163 = vmatpush2.bf16.msra.mxu0 0
      %1164 = vmatprep.subr.bf16.mxu0 0
      %1165 = vmatpush2.bf16.msra.mxu0 0
      %1166 = vmatprep.subr.bf16.mxu0 0
      %1167 = vmatpush2.bf16.msra.mxu0 0
      %1168 = vmatprep.subr.bf16.mxu0 0
      %1169 = vmatpush2.bf16.msra.mxu0 0
      %1170 = vmatprep.subr.bf16.mxu0 0
      %1171 = vmatpush2.bf16.msra.mxu0 0
      %1172 = vmatprep.subr.bf16.mxu0 0
      %1173 = vmatpush2.bf16.msra.mxu0 0
      %1174 = vmatprep.subr.bf16.mxu0 0
      %1175 = vmatpush2.bf16.msra.mxu0 0
      %1176 = vmatprep.subr.bf16.mxu0 0
      %1177 = vmatpush2.bf16.msra.mxu0 0
      %1178 = vmatprep.mubr.bf16.mxu0 0
      %1179 = vmatmul.mubr.bf16.gmra.mxu0 %v1094
      %v1180 = vpop.f32.mrf.mxu0
      %v1181 = vadd.f32 0.0, %v1180
      %v1182 = vpop.f32.mrf.mxu0
      %v1183 = vpop.f32.mrf.mxu0
      %v1184 = vadd.f32 0.0, %v1183
      %v1185 = vpop.f32.mrf.mxu0
      %1186 = vmatprep.mubr.bf16.mxu0 0
      %1187 = vmatmul.mubr.bf16.gmra.mxu0 %v1095
      %v1188 = vpop.f32.mrf.mxu0
      %v1189 = vadd.f32 0.0, %v1188
      %v1190 = vpop.f32.mrf.mxu0
      %v1191 = vpop.f32.mrf.mxu0
      %v1192 = vpop.f32.mrf.mxu0
      %1193 = vdwg.mxu0
      %v1194 = vadd.f32 %v1074, %v1181
      %v1195 = vadd.f32 %v1075, %v1184
      %v1196 = vadd.f32 %v1076, %v1189
      %v1197 = vld [vmem:[%s261 + $0x4] sm:$0xc]
      %v1198 = vld [vmem:[%s261 + $0x8] sm:$0xf]
      %v1199 = vld [vmem:[%s261 + $0xc] sm:$0xf]
      %v1200 = vld [vmem:[%s261 + $0x10] sm:$0x3]
      %s1201 = scalar_lea.vmem %s1, 384
      %v1202 = vld [vmem:[%s1201] sm:$0xf]
      %v1203 = vld [vmem:[%s1201 + $0x4] sm:$0xf]
      %v1204 = vld [vmem:[%s1201 + $0x8] sm:$0xf]
      %v1205 = vld [vmem:[%s1201 + $0xc] sm:$0xf]
      %v1206 = vld [vmem:[%s1201 + $0x10] sm:$0xf]
      %v1207 = vld [vmem:[%s1201 + $0x14] sm:$0xf]
      %v1208 = vld [vmem:[%s1201 + $0x18] sm:$0xf]
      %v1209 = vld [vmem:[%s1201 + $0x1c] sm:$0xf]
      %v1210 = vld [vmem:[%s1201 + $0x20] sm:$0xf]
      %v1211 = vld [vmem:[%s1201 + $0x24] sm:$0xf]
      %v1212 = vld [vmem:[%s1201 + $0x28] sm:$0xf]
      %v1213 = vld [vmem:[%s1201 + $0x2c] sm:$0xf]
      %v1214 = vld [vmem:[%s1201 + $0x30] sm:$0xf]
      %v1215 = vld [vmem:[%s1201 + $0x34] sm:$0xf]
      %v1216 = vld [vmem:[%s1201 + $0x38] sm:$0xf]
      %v1217 = vld [vmem:[%s1201 + $0x3c] sm:$0xf]
      %v1222 = vunpack.c.l.b16 %v1197
      %v1223 = vunpack.c.l.b16 %v1198
      %v1224 = vunpack.c.l.b16 %v1199
      %v1225 = vunpack.c.l.b16 %v1200
      %v1226 = vpack.c.b16 %v1223, %v1222
      %v1227 = vpack.c.b16 %v1225, %v1224
      %vm1228 = vcmask 1045504
      %v1229 = vrot.slane %v1226, 2
      %v1230 = vrot.slane %v1227, 2
      %v1231 = vsel %vm1228, %v1229, %v1230
      %v1250 = vunpack.c.l.b16 %v1202
      %v1251 = vunpack.c.l.b16 %v1203
      %v1252 = vunpack.c.l.b16 %v1204
      %v1253 = vunpack.c.l.b16 %v1205
      %v1254 = vunpack.c.l.b16 %v1206
      %v1255 = vunpack.c.l.b16 %v1207
      %v1256 = vunpack.c.l.b16 %v1208
      %v1257 = vunpack.c.l.b16 %v1209
      %v1258 = vunpack.c.l.b16 %v1210
      %v1259 = vunpack.c.l.b16 %v1211
      %v1260 = vunpack.c.l.b16 %v1212
      %v1261 = vunpack.c.l.b16 %v1213
      %v1262 = vunpack.c.l.b16 %v1214
      %v1263 = vunpack.c.l.b16 %v1215
      %v1264 = vunpack.c.l.b16 %v1216
      %v1265 = vunpack.c.l.b16 %v1217
      %v1266 = vpack.c.b16 %v1251, %v1250
      %v1267 = vpack.c.b16 %v1253, %v1252
      %v1268 = vpack.c.b16 %v1255, %v1254
      %v1269 = vpack.c.b16 %v1257, %v1256
      %v1270 = vpack.c.b16 %v1259, %v1258
      %v1271 = vpack.c.b16 %v1261, %v1260
      %v1272 = vpack.c.b16 %v1263, %v1262
      %v1273 = vpack.c.b16 %v1265, %v1264
      %1282 = vmatprep.subr.bf16.mxu0 0
      %1283 = vmatpush1.bf16.msra.mxu0 %v1273
      %1284 = vmatprep.subr.bf16.mxu0 0
      %1285 = vmatpush1.bf16.msra.mxu0 %v1272
      %1286 = vmatprep.subr.bf16.mxu0 0
      %1287 = vmatpush1.bf16.msra.mxu0 %v1271
      %1288 = vmatprep.subr.bf16.mxu0 0
      %1289 = vmatpush1.bf16.msra.mxu0 %v1270
      %1290 = vmatprep.subr.bf16.mxu0 0
      %1291 = vmatpush1.bf16.msra.mxu0 %v1269
      %1292 = vmatprep.subr.bf16.mxu0 0
      %1293 = vmatpush1.bf16.msra.mxu0 %v1268
      %1294 = vmatprep.subr.bf16.mxu0 0
      %1295 = vmatpush1.bf16.msra.mxu0 %v1267
      %1296 = vmatprep.subr.bf16.mxu0 0
      %1297 = vmatpush1.bf16.msra.mxu0 %v1266
      %1298 = vmatprep.subr.bf16.mxu0 0
      %1299 = vmatpush2.bf16.msra.mxu0 0
      %1300 = vmatprep.subr.bf16.mxu0 0
      %1301 = vmatpush2.bf16.msra.mxu0 0
      %1302 = vmatprep.subr.bf16.mxu0 0
      %1303 = vmatpush2.bf16.msra.mxu0 0
      %1304 = vmatprep.subr.bf16.mxu0 0
      %1305 = vmatpush2.bf16.msra.mxu0 0
      %1306 = vmatprep.subr.bf16.mxu0 0
      %1307 = vmatpush2.bf16.msra.mxu0 0
      %1308 = vmatprep.subr.bf16.mxu0 0
      %1309 = vmatpush2.bf16.msra.mxu0 0
      %1310 = vmatprep.subr.bf16.mxu0 0
      %1311 = vmatpush2.bf16.msra.mxu0 0
      %1312 = vmatprep.subr.bf16.mxu0 0
      %1313 = vmatpush2.bf16.msra.mxu0 0
      %1314 = vmatprep.mubr.bf16.mxu0 0
      %1315 = vmatmul.mubr.bf16.gmra.mxu0 %v1231
      %v1316 = vpop.f32.mrf.mxu0
      %v1317 = vadd.f32 0.0, %v1316
      %v1318 = vpop.f32.mrf.mxu0
      %v1319 = vpop.f32.mrf.mxu0
      %v1320 = vadd.f32 0.0, %v1319
      %v1321 = vpop.f32.mrf.mxu0
      %1322 = vmatprep.mubr.bf16.mxu0 0
      %1323 = vmatmul.mubr.bf16.gmra.mxu0 %v1230
      %v1324 = vpop.f32.mrf.mxu0
      %v1325 = vadd.f32 0.0, %v1324
      %v1326 = vpop.f32.mrf.mxu0
      %v1327 = vpop.f32.mrf.mxu0
      %v1328 = vpop.f32.mrf.mxu0
      %1329 = vdwg.mxu0
      %v1330 = vadd.f32 %v1194, %v1317
      %v1331 = vadd.f32 %v1195, %v1320
      %v1332 = vadd.f32 %v1196, %v1325
      %v1333 = vld [vmem:[%s261 + $0x10] sm:$0x7]
      %s1334 = scalar_lea.vmem %s1, 448
      %v1335 = vld [vmem:[%s1334] sm:$0xf]
      %v1336 = vld [vmem:[%s1334 + $0x4] sm:$0xf]
      %v1337 = vld [vmem:[%s1334 + $0x8] sm:$0xf]
      %v1338 = vld [vmem:[%s1334 + $0xc] sm:$0xf]
      %v1339 = vld [vmem:[%s1334 + $0x10] sm:$0xf]
      %v1340 = vld [vmem:[%s1334 + $0x14] sm:$0xf]
      %v1341 = vld [vmem:[%s1334 + $0x18] sm:$0xf]
      %v1342 = vld [vmem:[%s1334 + $0x1c] sm:$0xf]
      %v1343 = vld [vmem:[%s1334 + $0x20] sm:$0xf]
      %v1344 = vld [vmem:[%s1334 + $0x24] sm:$0xf]
      %v1345 = vld [vmem:[%s1334 + $0x28] sm:$0xf]
      %v1346 = vld [vmem:[%s1334 + $0x2c] sm:$0xf]
      %v1347 = vld [vmem:[%s1334 + $0x30] sm:$0xf]
      %v1348 = vld [vmem:[%s1334 + $0x34] sm:$0xf]
      %v1349 = vld [vmem:[%s1334 + $0x38] sm:$0xf]
      %v1350 = vld [vmem:[%s1334 + $0x3c] sm:$0xf]
      %v1352 = vunpack.c.l.b16 %v1333
      %v1353 = vpack.c.b16 %v1352, %v1224
      %vm1354 = vsmask.f32 5376
      %v1356 = vshrl.u32 %v1226, 16
      %v1358 = vrot.slane %v1356, 2
      %v1359 = vshll.u32 %v1226, 16
      %v1361 = vrot.slane %v1359, 3
      %v1362 = vor.u32 %v1358, %v1361
      %v1364 = vshrl.u32 %v1353, 16
      %v1366 = vrot.slane %v1364, 2
      %v1367 = vshll.u32 %v1353, 16
      %v1369 = vrot.slane %v1367, 3
      %v1370 = vor.u32 %v1366, %v1369
      %v1371 = vsel %vm1354, %v1362, %v1370
      %v1390 = vunpack.c.l.b16 %v1335
      %v1391 = vunpack.c.l.b16 %v1336
      %v1392 = vunpack.c.l.b16 %v1337
      %v1393 = vunpack.c.l.b16 %v1338
      %v1394 = vunpack.c.l.b16 %v1339
      %v1395 = vunpack.c.l.b16 %v1340
      %v1396 = vunpack.c.l.b16 %v1341
      %v1397 = vunpack.c.l.b16 %v1342
      %v1398 = vunpack.c.l.b16 %v1343
      %v1399 = vunpack.c.l.b16 %v1344
      %v1400 = vunpack.c.l.b16 %v1345
      %v1401 = vunpack.c.l.b16 %v1346
      %v1402 = vunpack.c.l.b16 %v1347
      %v1403 = vunpack.c.l.b16 %v1348
      %v1404 = vunpack.c.l.b16 %v1349
      %v1405 = vunpack.c.l.b16 %v1350
      %v1406 = vpack.c.b16 %v1391, %v1390
      %v1407 = vpack.c.b16 %v1393, %v1392
      %v1408 = vpack.c.b16 %v1395, %v1394
      %v1409 = vpack.c.b16 %v1397, %v1396
      %v1410 = vpack.c.b16 %v1399, %v1398
      %v1411 = vpack.c.b16 %v1401, %v1400
      %v1412 = vpack.c.b16 %v1403, %v1402
      %v1413 = vpack.c.b16 %v1405, %v1404
      %1422 = vmatprep.subr.bf16.mxu0 0
      %1423 = vmatpush1.bf16.msra.mxu0 %v1413
      %1424 = vmatprep.subr.bf16.mxu0 0
      %1425 = vmatpush1.bf16.msra.mxu0 %v1412
      %1426 = vmatprep.subr.bf16.mxu0 0
      %1427 = vmatpush1.bf16.msra.mxu0 %v1411
      %1428 = vmatprep.subr.bf16.mxu0 0
      %1429 = vmatpush1.bf16.msra.mxu0 %v1410
      %1430 = vmatprep.subr.bf16.mxu0 0
      %1431 = vmatpush1.bf16.msra.mxu0 %v1409
      %1432 = vmatprep.subr.bf16.mxu0 0
      %1433 = vmatpush1.bf16.msra.mxu0 %v1408
      %1434 = vmatprep.subr.bf16.mxu0 0
      %1435 = vmatpush1.bf16.msra.mxu0 %v1407
      %1436 = vmatprep.subr.bf16.mxu0 0
      %1437 = vmatpush1.bf16.msra.mxu0 %v1406
      %1438 = vmatprep.subr.bf16.mxu0 0
      %1439 = vmatpush2.bf16.msra.mxu0 0
      %1440 = vmatprep.subr.bf16.mxu0 0
      %1441 = vmatpush2.bf16.msra.mxu0 0
      %1442 = vmatprep.subr.bf16.mxu0 0
      %1443 = vmatpush2.bf16.msra.mxu0 0
      %1444 = vmatprep.subr.bf16.mxu0 0
      %1445 = vmatpush2.bf16.msra.mxu0 0
      %1446 = vmatprep.subr.bf16.mxu0 0
      %1447 = vmatpush2.bf16.msra.mxu0 0
      %1448 = vmatprep.subr.bf16.mxu0 0
      %1449 = vmatpush2.bf16.msra.mxu0 0
      %1450 = vmatprep.subr.bf16.mxu0 0
      %1451 = vmatpush2.bf16.msra.mxu0 0
      %1452 = vmatprep.subr.bf16.mxu0 0
      %1453 = vmatpush2.bf16.msra.mxu0 0
      %1454 = vmatprep.mubr.bf16.mxu0 0
      %1455 = vmatmul.mubr.bf16.gmra.mxu0 %v1371
      %v1456 = vpop.f32.mrf.mxu0
      %v1457 = vadd.f32 0.0, %v1456
      %v1458 = vpop.f32.mrf.mxu0
      %v1459 = vpop.f32.mrf.mxu0
      %v1460 = vadd.f32 0.0, %v1459
      %v1461 = vpop.f32.mrf.mxu0
      %1462 = vmatprep.mubr.bf16.mxu0 0
      %1463 = vmatmul.mubr.bf16.gmra.mxu0 %v1370
      %v1464 = vpop.f32.mrf.mxu0
      %v1465 = vadd.f32 0.0, %v1464
      %v1466 = vpop.f32.mrf.mxu0
      %v1467 = vpop.f32.mrf.mxu0
      %v1468 = vpop.f32.mrf.mxu0
      %1469 = vdwg.mxu0
      %v1470 = vadd.f32 %v1330, %v1457
      %v1471 = vadd.f32 %v1331, %v1460
      %v1472 = vadd.f32 %v1332, %v1465
      %v1473 = vld [vmem:[%s261 + $0x4] sm:$0x8]
      %s1474 = scalar_lea.vmem %s1, 512
      %v1475 = vld [vmem:[%s1474] sm:$0xf]
      %v1476 = vld [vmem:[%s1474 + $0x4] sm:$0xf]
      %v1477 = vld [vmem:[%s1474 + $0x8] sm:$0xf]
      %v1478 = vld [vmem:[%s1474 + $0xc] sm:$0xf]
      %v1479 = vld [vmem:[%s1474 + $0x10] sm:$0xf]
      %v1480 = vld [vmem:[%s1474 + $0x14] sm:$0xf]
      %v1481 = vld [vmem:[%s1474 + $0x18] sm:$0xf]
      %v1482 = vld [vmem:[%s1474 + $0x1c] sm:$0xf]
      %v1483 = vld [vmem:[%s1474 + $0x20] sm:$0xf]
      %v1484 = vld [vmem:[%s1474 + $0x24] sm:$0xf]
      %v1485 = vld [vmem:[%s1474 + $0x28] sm:$0xf]
      %v1486 = vld [vmem:[%s1474 + $0x2c] sm:$0xf]
      %v1487 = vld [vmem:[%s1474 + $0x30] sm:$0xf]
      %v1488 = vld [vmem:[%s1474 + $0x34] sm:$0xf]
      %v1489 = vld [vmem:[%s1474 + $0x38] sm:$0xf]
      %v1490 = vld [vmem:[%s1474 + $0x3c] sm:$0xf]
      %v1492 = vunpack.c.l.b16 %v1473
      %v1493 = vpack.c.b16 %v1223, %v1492
      %v1494 = vrot.slane %v1493, 3
      %v1495 = vrot.slane %v1353, 3
      %v1496 = vsel %vm832, %v1494, %v1495
      %v1515 = vunpack.c.l.b16 %v1475
      %v1516 = vunpack.c.l.b16 %v1476
      %v1517 = vunpack.c.l.b16 %v1477
      %v1518 = vunpack.c.l.b16 %v1478
      %v1519 = vunpack.c.l.b16 %v1479
      %v1520 = vunpack.c.l.b16 %v1480
      %v1521 = vunpack.c.l.b16 %v1481
      %v1522 = vunpack.c.l.b16 %v1482
      %v1523 = vunpack.c.l.b16 %v1483
      %v1524 = vunpack.c.l.b16 %v1484
      %v1525 = vunpack.c.l.b16 %v1485
      %v1526 = vunpack.c.l.b16 %v1486
      %v1527 = vunpack.c.l.b16 %v1487
      %v1528 = vunpack.c.l.b16 %v1488
      %v1529 = vunpack.c.l.b16 %v1489
      %v1530 = vunpack.c.l.b16 %v1490
      %v1531 = vpack.c.b16 %v1516, %v1515
      %v1532 = vpack.c.b16 %v1518, %v1517
      %v1533 = vpack.c.b16 %v1520, %v1519
      %v1534 = vpack.c.b16 %v1522, %v1521
      %v1535 = vpack.c.b16 %v1524, %v1523
      %v1536 = vpack.c.b16 %v1526, %v1525
      %v1537 = vpack.c.b16 %v1528, %v1527
      %v1538 = vpack.c.b16 %v1530, %v1529
      %1547 = vmatprep.subr.bf16.mxu0 0
      %1548 = vmatpush1.bf16.msra.mxu0 %v1538
      %1549 = vmatprep.subr.bf16.mxu0 0
      %1550 = vmatpush1.bf16.msra.mxu0 %v1537
      %1551 = vmatprep.subr.bf16.mxu0 0
      %1552 = vmatpush1.bf16.msra.mxu0 %v1536
      %1553 = vmatprep.subr.bf16.mxu0 0
      %1554 = vmatpush1.bf16.msra.mxu0 %v1535
      %1555 = vmatprep.subr.bf16.mxu0 0
      %1556 = vmatpush1.bf16.msra.mxu0 %v1534
      %1557 = vmatprep.subr.bf16.mxu0 0
      %1558 = vmatpush1.bf16.msra.mxu0 %v1533
      %1559 = vmatprep.subr.bf16.mxu0 0
      %1560 = vmatpush1.bf16.msra.mxu0 %v1532
      %1561 = vmatprep.subr.bf16.mxu0 0
      %1562 = vmatpush1.bf16.msra.mxu0 %v1531
      %1563 = vmatprep.subr.bf16.mxu0 0
      %1564 = vmatpush2.bf16.msra.mxu0 0
      %1565 = vmatprep.subr.bf16.mxu0 0
      %1566 = vmatpush2.bf16.msra.mxu0 0
      %1567 = vmatprep.subr.bf16.mxu0 0
      %1568 = vmatpush2.bf16.msra.mxu0 0
      %1569 = vmatprep.subr.bf16.mxu0 0
      %1570 = vmatpush2.bf16.msra.mxu0 0
      %1571 = vmatprep.subr.bf16.mxu0 0
      %1572 = vmatpush2.bf16.msra.mxu0 0
      %1573 = vmatprep.subr.bf16.mxu0 0
      %1574 = vmatpush2.bf16.msra.mxu0 0
      %1575 = vmatprep.subr.bf16.mxu0 0
      %1576 = vmatpush2.bf16.msra.mxu0 0
      %1577 = vmatprep.subr.bf16.mxu0 0
      %1578 = vmatpush2.bf16.msra.mxu0 0
      %1579 = vmatprep.mubr.bf16.mxu0 0
      %1580 = vmatmul.mubr.bf16.gmra.mxu0 %v1496
      %v1581 = vpop.f32.mrf.mxu0
      %v1582 = vadd.f32 0.0, %v1581
      %v1583 = vpop.f32.mrf.mxu0
      %v1584 = vpop.f32.mrf.mxu0
      %v1585 = vadd.f32 0.0, %v1584
      %v1586 = vpop.f32.mrf.mxu0
      %1587 = vmatprep.mubr.bf16.mxu0 0
      %1588 = vmatmul.mubr.bf16.gmra.mxu0 %v1495
      %v1589 = vpop.f32.mrf.mxu0
      %v1590 = vadd.f32 0.0, %v1589
      %v1591 = vpop.f32.mrf.mxu0
      %v1592 = vpop.f32.mrf.mxu0
      %v1593 = vpop.f32.mrf.mxu0
      %1594 = vdwg.mxu0
      %v1595 = vadd.f32 %v1470, %v1582
      %v1596 = vadd.f32 %v1471, %v1585
      %v1597 = vadd.f32 %v1472, %v1590
      %v1598 = vld [vmem:[%s2] sm:$0x1]
      %v1600 = vlaneseq
      %v1601 = vshrl.u32 %v1600, 7
      %v1602 = vsub.s32 0, %v1601
      %v1603 = vrot.slane %v1598, %v1602
      %v1605 = vadd.f32 %v1595, %v1603
      %v1606 = vadd.f32 %v1596, %v1603
      %v1607 = vadd.f32 %v1597, %v1603
      %v1608 = vmax.f32 %v1605, 0.0
      %v1609 = vmax.f32 %v1606, 0.0
      %v1610 = vmax.f32 %v1607, 0.0
      %v1611 = vpack.c.bf16 %v1609, %v1608
      %v1612 = vpack.c.bf16 %v1610, %v1610
      %v1615 = vunpack.c.l.b16 %v1611
      %v1616 = vunpack.c.h.b16 %v1611
      %v1617 = vunpack.c.l.b16 %v1612
      %v1618 = vpack.c.b16 %v1615, %v1615
      %v1619 = vpack.c.b16 %v1616, %v1616
      %v1620 = vpack.c.b16 %v1617, %v1617
      %1624 = vst [vmem:[%s271] sm:$0xf] %v1618
      %1625 = vst [vmem:[%s271 + $0x4] sm:$0xf] %v1619
      %1626 = vst [vmem:[%s271 + $0x8] sm:$0xf] %v1620
      %p1627 = scmp.lt.s32.totalorder %s17, 1
      %s1628 = scalar_select %p1627, %s17, 1
      %s1629 = smul.addr %s1628, 3
      %s1630 = smul.addr %s1629, 4
      %s1631 = scalar_lea.vmem %s6, %s1630
      // Predicated region
      $region45: #{_lambda_.12} parent=43 // pred_check
        %p1632 = pneg %p171
      $region46: #{_lambda_.12} parent=43 // pred_check_branch
        %1634 = sbr.rel (%p1632) target = $region48
      $region47: #{_lambda_.12} parent=43 // pred_region
        _
      $region48: #{_lambda_.12} parent=43 // pred_fallthru
        _
    $region44: #{_lambda_.12} parent=5 // pred_fallthru
      _
    %p1635 = scmp.le.s32.totalorder 2, %s12
    // Predicated region
    $region49: #{_lambda_.12} parent=5 // pred_check
      %p1636 = pneg %p1635
    $region50: #{_lambda_.12} parent=5 // pred_check_branch
      %1638 = sbr.rel (%p1636) target = $region52
    $region51: #{_lambda_.12} parent=5 // pred_region
      %s1639 = ssub.s32 %s12, 2
      // Predicated region
      $region53: #{_lambda_.12} parent=51 // pred_check
        %p1640 = pneg %p177
      $region54: #{_lambda_.12} parent=51 // pred_check_branch
        %1642 = sbr.rel (%p1640) target = $region56
      $region55: #{_lambda_.12} parent=51 // pred_region
        %p1643 = scmp.lt.s32.totalorder %s18, 1
        %s1644 = scalar_select %p1643, %s18, 1
        %s1645 = smul.addr %s1644, 3
        %s1646 = smul.addr %s1645, 4
        %s1647 = scalar_lea.vmem %s6, %s1646
      $region56: #{_lambda_.12} parent=51 // pred_fallthru
        _
    $region52: #{_lambda_.12} parent=5 // pred_fallthru
      _
  $region6: #{_lambda_.12} parent=0 // loop_footer
    %s16 = sadd.s32 1, %s12
  $region7: #{_lambda_.12} parent=0 // loop_footer_branch
    %11 = sbr.rel target = $region3
  $region8: #{_lambda_.12} parent=0 // loop_exit
    _

</llo_original>
